<compile_context>
chip_gen: v6e
topology: v6e:2x2x1
jax: 0.10.0
libtpu: 0.0.40
codegen_flags: <defaults>
</compile_context>

<pallas_src>
import jax
import jax.numpy as jnp
import numpy as np
from jax import lax
from jax.experimental import pallas as pl
from jax.experimental.pallas import tpu as pltpu

EPS = 1e-5  # PyTorch InstanceNorm2d default


def _round_up(n, m):
    return (n + m - 1) // m * m


# ---------------------------------------------------------------------------
# ConvTranspose2d(k=4, s=2, p=1, bias=False) + InstanceNorm2d(affine) + ReLU
# ---------------------------------------------------------------------------
def conv_transpose_in_relu(x, w_t, gamma, beta):
    B, Cin, H, W = x.shape
    Cout, K = w_t.shape[1], w_t.shape[2]
    KK = K * K
    # stride-2 transpose conv == stride-1 conv (spatially flipped kernel) on the
    # zero-dilated input padded by K-1-p = 2.
    Hp, Wp = 2 * H + 3, 2 * W + 3
    Ho, Wo = 2 * H, 2 * W

    xd = jnp.zeros((B, Cin, 2 * H - 1, 2 * W - 1), x.dtype).at[:, :, ::2, ::2].set(x)
    xd = jnp.pad(xd, ((0, 0), (0, 0), (2, 2), (2, 2)))            # (B,Cin,Hp,Wp)

    M = _round_up(Ho * Wp, 128)                                   # lane-dense output width
    offs = tuple(a * Wp + b for a in range(K) for b in range(K))  # tap lane offsets
    Lx = _round_up(offs[-1] + M, 128)                             # padded input width
    xf = xd.reshape(B, Cin, Hp * Wp)
    xf = jnp.pad(xf, ((0, 0), (0, 0), (0, Lx - Hp * Wp))).astype(jnp.bfloat16)

    # PyTorch ConvTranspose2d weight (Cin,Cout,K,K) -> per-tap (Cout,Cin) matrices
    # of the equivalent forward conv: Wm[a*K+b, o, c] = w_t[c, o, K-1-a, K-1-b].
    wm = (jnp.flip(w_t, axis=(2, 3)).transpose(2, 3, 1, 0)
          .reshape(KK, Cout, Cin).astype(jnp.bfloat16))
    g = gamma.reshape(Cout, 1).astype(jnp.float32)
    b = beta.reshape(Cout, 1).astype(jnp.float32)

    q = np.arange(M)
    valid = ((q % Wp) < Wo) & (q < Ho * Wp)                       # drop wrap/pad lanes
    mask = jnp.asarray(valid, dtype=jnp.float32).reshape(1, M)
    inv_n = 1.0 / float(Ho * Wo)

    def kernel(xf_ref, w_ref, g_ref, b_ref, m_ref, o_ref):
        # Conv as K*K shifted-slice matmuls (MXU), accumulated in f32 registers.
        acc = jnp.dot(w_ref[0], xf_ref[0, :, offs[0]:offs[0] + M],
                      preferred_element_type=jnp.float32)
        for t in range(1, KK):
            off = offs[t]
            acc = acc + jnp.dot(w_ref[t], xf_ref[0, :, off:off + M],
                                preferred_element_type=jnp.float32)
        # One-pass InstanceNorm stats over valid lanes only.
        m = m_ref[...]                                            # (1, M)
        ym = acc * m
        s = jnp.sum(ym, axis=1, keepdims=True)                    # (Cout, 1)
        ss = jnp.sum(ym * ym, axis=1, keepdims=True)
        mean = s * inv_n
        var = jnp.maximum(ss * inv_n - mean * mean, 0.0)
        yn = (acc - mean) * lax.rsqrt(var + EPS)
        o_ref[0] = jnp.maximum(yn * g_ref[...] + b_ref[...], 0.0)  # affine + ReLU

    out = pl.pallas_call(
        kernel,
        out_shape=jax.ShapeDtypeStruct((B, Cout, M), jnp.float32),
        grid=(B,),
        in_specs=[
            pl.BlockSpec((1, Cin, Lx), lambda i: (i, 0, 0)),
            pl.BlockSpec((KK, Cout, Cin), lambda i: (0, 0, 0)),
            pl.BlockSpec((Cout, 1), lambda i: (0, 0)),
            pl.BlockSpec((Cout, 1), lambda i: (0, 0)),
            pl.BlockSpec((1, M), lambda i: (0, 0)),
        ],
        out_specs=pl.BlockSpec((1, Cout, M), lambda i: (i, 0, 0)),
        compiler_params=pltpu.CompilerParams(dimension_semantics=("parallel",)),
    )(xf, wm, g, b, mask)

    # Output is already NCHW: strip lane padding and the wrap columns (ox >= Wo).
    return out[:, :, :Ho * Wp].reshape(B, Cout, Ho, Wp)[:, :, :, :Wo]


# ---------------------------------------------------------------------------
# Conv2d(Cin, 1, k=7, s=1, p=3, bias=False) + Sigmoid
# ---------------------------------------------------------------------------
def conv7_sigmoid(x, w):
    B, Cin, H, W = x.shape
    K = 7
    KK = K * K
    Hp, Wp = H + 6, W + 6
    Ho, Wo = H, W

    M = _round_up(Ho * Wp, 128)
    offs = tuple(a * Wp + b for a in range(K) for b in range(K))
    Lx = _round_up(offs[-1] + M, 128)
    xp = jnp.pad(x, ((0, 0), (0, 0), (3, 3), (3, 3))).reshape(B, Cin, Hp * Wp)
    xf = jnp.pad(xp, ((0, 0), (0, 0), (0, Lx - Hp * Wp))).astype(jnp.bfloat16)
    wc = w[0].transpose(1, 2, 0).reshape(KK, Cin, 1).astype(jnp.float32)  # per-tap (Cin,1)

    def kernel(xf_ref, w_ref, o_ref):
        # Cout == 1: VPU broadcast-multiply accumulate (a 1-row MXU matmul would be
        # ~0% utilized), then one sublane reduce over Cin.  Output stays (1, M)
        # lane-dense.
        acc = xf_ref[0, :, offs[0]:offs[0] + M].astype(jnp.float32) * w_ref[0]
        for t in range(1, KK):
            off = offs[t]
            acc = acc + xf_ref[0, :, off:off + M].astype(jnp.float32) * w_ref[t]
        y = jnp.sum(acc, axis=0, keepdims=True)                   # (1, M)
        o_ref[0] = jax.nn.sigmoid(y)

    out = pl.pallas_call(
        kernel,
        out_shape=jax.ShapeDtypeStruct((B, 1, M), jnp.float32),
        grid=(B,),
        in_specs=[
            pl.BlockSpec((1, Cin, Lx), lambda i: (i, 0, 0)),
            pl.BlockSpec((KK, Cin, 1), lambda i: (0, 0, 0)),
        ],
        out_specs=pl.BlockSpec((1, 1, M), lambda i: (i, 0, 0)),
        compiler_params=pltpu.CompilerParams(dimension_semantics=("parallel",)),
    )(xf, wc)
    return out[:, :, :Ho * Wp].reshape(B, 1, Ho, Wp)[:, :, :, :Wo]


def mask_generator_r(x, params):
    h = x
    for (w_t, g, b) in params["up"]:
        h = conv_transpose_in_relu(h, w_t, g, b)
    return conv7_sigmoid(h, params["final_w"])


# ---------------------------------------------------------------------------
# Deterministic parameter init (matches module __init__ shapes)
# ---------------------------------------------------------------------------
def init_params(key, conv_dim=4, num_upsample=2):
    curr = conv_dim * int(np.power(2, num_upsample))
    ups = []
    for _ in range(num_upsample):
        key, k1 = jax.random.split(key)
        w = jax.random.normal(k1, (curr, curr // 2, 4, 4), jnp.float32) * 0.1
        g = jnp.ones((curr // 2,), jnp.float32)    # InstanceNorm2d affine weight init
        b = jnp.zeros((curr // 2,), jnp.float32)   # InstanceNorm2d affine bias init
        ups.append((w, g, b))
        curr //= 2
    key, k2 = jax.random.split(key)
    wf = jax.random.normal(k2, (1, curr, 7, 7), jnp.float32) * 0.1
    return {"up": ups, "final_w": wf}


# ---------------------------------------------------------------------------
# Pure-JAX full-precision reference (correctness check only)
# ---------------------------------------------------------------------------
def _ref_forward(x, params):
    h = x
    for (w_t, g, b) in params["up"]:
        w_conv = jnp.flip(w_t, axis=(2, 3)).transpose(1, 0, 2, 3)  # [Cout, Cin, K, K]
        h = lax.conv_general_dilated(
            h, w_conv, window_strides=(1, 1), padding=((2, 2), (2, 2)),
            lhs_dilation=(2, 2), dimension_numbers=("NCHW", "OIHW", "NCHW"),
            precision=lax.Precision.HIGHEST)
        mean = h.mean(axis=(2, 3), keepdims=True)
        var = ((h - mean) ** 2).mean(axis=(2, 3), keepdims=True)
        h = (h - mean) / jnp.sqrt(var + EPS)
        h = h * g.reshape(1, -1, 1, 1) + b.reshape(1, -1, 1, 1)
        h = jnp.maximum(h, 0.0)
    h = lax.conv_general_dilated(
        h, params["final_w"], (1, 1), ((3, 3), (3, 3)),
        dimension_numbers=("NCHW", "OIHW", "NCHW"),
        precision=lax.Precision.HIGHEST)
    return jax.nn.sigmoid(h)


if __name__ == "__main__":
    key = jax.random.PRNGKey(0)
    k_param, k_x = jax.random.split(key)

    conv_dim, num_upsample = 4, 2
    B, H, W = 2, 8, 8
    Cin = conv_dim * int(np.power(2, num_upsample))           # 16
    x = jax.random.normal(k_x, (B, Cin, H, W), jnp.float32)   # NCHW, like PyTorch

    params = init_params(k_param, conv_dim=conv_dim, num_upsample=num_upsample)

    fwd = jax.jit(mask_generator_r)
    out = jax.block_until_ready(fwd(x, params))
    assert out.shape == (B, 1, H * 4, W * 4), out.shape
    assert jnp.all(jnp.isfinite(out))

    ref = jax.block_until_ready(_ref_forward(x, params))
    # Kernel matmuls use bf16 operands (f32 accumulation) per the perf review, so
    # tolerance vs. the f32/HIGHEST reference is loosened accordingly.
    np.testing.assert_allclose(np.asarray(out), np.asarray(ref), atol=3e-2, rtol=3e-2)

    print("KERNEL_OK")
</pallas_src>

<mosaic_0001>
module attributes {stable_mosaic.version = 11 : i64} {
  func.func @kernel(%arg0: i32, %arg1: memref<1x16x512xbf16, #tpu.memory_space<vmem>>, %arg2: memref<16x8x16xbf16, #tpu.memory_space<vmem>>, %arg3: memref<8x1xf32, #tpu.memory_space<vmem>>, %arg4: memref<8x1xf32, #tpu.memory_space<vmem>>, %arg5: memref<1x384xf32, #tpu.memory_space<vmem>>, %arg6: memref<1x8x384xf32, #tpu.memory_space<vmem>>) attributes {dimension_semantics = [#tpu.dimension_semantics<parallel>], iteration_bounds = array<i64: 2>, scalar_prefetch = 0 : i64, scratch_operands = 0 : i64, tpu.core_type = #tpu.core_type<tc>, window_params = [{transform_indices = @transform_0, window_bounds = array<i64: 1, 16, 512>}, {pipeline_mode = #tpu.pipeline_mode<synchronous>, transform_indices = @transform_1, window_bounds = array<i64: 16, 8, 16>}, {pipeline_mode = #tpu.pipeline_mode<synchronous>, transform_indices = @transform_2, window_bounds = array<i64: 8, 1>}, {pipeline_mode = #tpu.pipeline_mode<synchronous>, transform_indices = @transform_3, window_bounds = array<i64: 8, 1>}, {pipeline_mode = #tpu.pipeline_mode<synchronous>, transform_indices = @transform_4, window_bounds = array<i64: 1, 384>}, {transform_indices = @transform_5, window_bounds = array<i64: 1, 8, 384>}]} {
    %c0 = arith.constant 0 : index
    %c0_0 = arith.constant 0 : index
    %c0_1 = arith.constant 0 : index
    %0 = vector.load %arg2[%c0, %c0_0, %c0_1] : memref<16x8x16xbf16, #tpu.memory_space<vmem>>, vector<1x8x16xbf16>
    %1 = vector.shape_cast %0 : vector<1x8x16xbf16> to vector<8x16xbf16>
    %c0_2 = arith.constant 0 : index
    %c0_3 = arith.constant 0 : index
    %c0_4 = arith.constant 0 : index
    %2 = vector.load %arg1[%c0_2, %c0_3, %c0_4] : memref<1x16x512xbf16, #tpu.memory_space<vmem>>, vector<1x16x384xbf16>
    %3 = vector.shape_cast %2 : vector<1x16x384xbf16> to vector<16x384xbf16>
    %cst = arith.constant dense<0.000000e+00> : vector<8x384xf32>
    %4 = tpu.matmul %1, %3, %cst {dimension_numbers = #tpu.dot_dimension_numbers<[1], [0], [0], [1], [0, 0, 1, 1], [], []>} : vector<8x16xbf16>, vector<16x384xbf16>, vector<8x384xf32> -> vector<8x384xf32>
    %c1 = arith.constant 1 : index
    %c0_5 = arith.constant 0 : index
    %c0_6 = arith.constant 0 : index
    %5 = vector.load %arg2[%c1, %c0_5, %c0_6] : memref<16x8x16xbf16, #tpu.memory_space<vmem>>, vector<1x8x16xbf16>
    %6 = vector.shape_cast %5 : vector<1x8x16xbf16> to vector<8x16xbf16>
    %c0_7 = arith.constant 0 : index
    %c0_8 = arith.constant 0 : index
    %c1_9 = arith.constant 1 : index
    %7 = vector.load %arg1[%c0_7, %c0_8, %c1_9] : memref<1x16x512xbf16, #tpu.memory_space<vmem>>, vector<1x16x384xbf16>
    %8 = vector.shape_cast %7 : vector<1x16x384xbf16> to vector<16x384xbf16>
    %cst_10 = arith.constant dense<0.000000e+00> : vector<8x384xf32>
    %9 = tpu.matmul %6, %8, %cst_10 {dimension_numbers = #tpu.dot_dimension_numbers<[1], [0], [0], [1], [0, 0, 1, 1], [], []>} : vector<8x16xbf16>, vector<16x384xbf16>, vector<8x384xf32> -> vector<8x384xf32>
    %10 = arith.addf %4, %9 : vector<8x384xf32>
    %c2 = arith.constant 2 : index
    %c0_11 = arith.constant 0 : index
    %c0_12 = arith.constant 0 : index
    %11 = vector.load %arg2[%c2, %c0_11, %c0_12] : memref<16x8x16xbf16, #tpu.memory_space<vmem>>, vector<1x8x16xbf16>
    %12 = vector.shape_cast %11 : vector<1x8x16xbf16> to vector<8x16xbf16>
    %c0_13 = arith.constant 0 : index
    %c0_14 = arith.constant 0 : index
    %c2_15 = arith.constant 2 : index
    %13 = vector.load %arg1[%c0_13, %c0_14, %c2_15] : memref<1x16x512xbf16, #tpu.memory_space<vmem>>, vector<1x16x384xbf16>
    %14 = vector.shape_cast %13 : vector<1x16x384xbf16> to vector<16x384xbf16>
    %cst_16 = arith.constant dense<0.000000e+00> : vector<8x384xf32>
    %15 = tpu.matmul %12, %14, %cst_16 {dimension_numbers = #tpu.dot_dimension_numbers<[1], [0], [0], [1], [0, 0, 1, 1], [], []>} : vector<8x16xbf16>, vector<16x384xbf16>, vector<8x384xf32> -> vector<8x384xf32>
    %16 = arith.addf %10, %15 : vector<8x384xf32>
    %c3 = arith.constant 3 : index
    %c0_17 = arith.constant 0 : index
    %c0_18 = arith.constant 0 : index
    %17 = vector.load %arg2[%c3, %c0_17, %c0_18] : memref<16x8x16xbf16, #tpu.memory_space<vmem>>, vector<1x8x16xbf16>
    %18 = vector.shape_cast %17 : vector<1x8x16xbf16> to vector<8x16xbf16>
    %c0_19 = arith.constant 0 : index
    %c0_20 = arith.constant 0 : index
    %c3_21 = arith.constant 3 : index
    %19 = vector.load %arg1[%c0_19, %c0_20, %c3_21] : memref<1x16x512xbf16, #tpu.memory_space<vmem>>, vector<1x16x384xbf16>
    %20 = vector.shape_cast %19 : vector<1x16x384xbf16> to vector<16x384xbf16>
    %cst_22 = arith.constant dense<0.000000e+00> : vector<8x384xf32>
    %21 = tpu.matmul %18, %20, %cst_22 {dimension_numbers = #tpu.dot_dimension_numbers<[1], [0], [0], [1], [0, 0, 1, 1], [], []>} : vector<8x16xbf16>, vector<16x384xbf16>, vector<8x384xf32> -> vector<8x384xf32>
    %22 = arith.addf %16, %21 : vector<8x384xf32>
    %c4 = arith.constant 4 : index
    %c0_23 = arith.constant 0 : index
    %c0_24 = arith.constant 0 : index
    %23 = vector.load %arg2[%c4, %c0_23, %c0_24] : memref<16x8x16xbf16, #tpu.memory_space<vmem>>, vector<1x8x16xbf16>
    %24 = vector.shape_cast %23 : vector<1x8x16xbf16> to vector<8x16xbf16>
    %c0_25 = arith.constant 0 : index
    %c0_26 = arith.constant 0 : index
    %c19 = arith.constant 19 : index
    %25 = vector.load %arg1[%c0_25, %c0_26, %c19] : memref<1x16x512xbf16, #tpu.memory_space<vmem>>, vector<1x16x384xbf16>
    %26 = vector.shape_cast %25 : vector<1x16x384xbf16> to vector<16x384xbf16>
    %cst_27 = arith.constant dense<0.000000e+00> : vector<8x384xf32>
    %27 = tpu.matmul %24, %26, %cst_27 {dimension_numbers = #tpu.dot_dimension_numbers<[1], [0], [0], [1], [0, 0, 1, 1], [], []>} : vector<8x16xbf16>, vector<16x384xbf16>, vector<8x384xf32> -> vector<8x384xf32>
    %28 = arith.addf %22, %27 : vector<8x384xf32>
    %c5 = arith.constant 5 : index
    %c0_28 = arith.constant 0 : index
    %c0_29 = arith.constant 0 : index
    %29 = vector.load %arg2[%c5, %c0_28, %c0_29] : memref<16x8x16xbf16, #tpu.memory_space<vmem>>, vector<1x8x16xbf16>
    %30 = vector.shape_cast %29 : vector<1x8x16xbf16> to vector<8x16xbf16>
    %c0_30 = arith.constant 0 : index
    %c0_31 = arith.constant 0 : index
    %c20 = arith.constant 20 : index
    %31 = vector.load %arg1[%c0_30, %c0_31, %c20] : memref<1x16x512xbf16, #tpu.memory_space<vmem>>, vector<1x16x384xbf16>
    %32 = vector.shape_cast %31 : vector<1x16x384xbf16> to vector<16x384xbf16>
    %cst_32 = arith.constant dense<0.000000e+00> : vector<8x384xf32>
    %33 = tpu.matmul %30, %32, %cst_32 {dimension_numbers = #tpu.dot_dimension_numbers<[1], [0], [0], [1], [0, 0, 1, 1], [], []>} : vector<8x16xbf16>, vector<16x384xbf16>, vector<8x384xf32> -> vector<8x384xf32>
    %34 = arith.addf %28, %33 : vector<8x384xf32>
    %c6 = arith.constant 6 : index
    %c0_33 = arith.constant 0 : index
    %c0_34 = arith.constant 0 : index
    %35 = vector.load %arg2[%c6, %c0_33, %c0_34] : memref<16x8x16xbf16, #tpu.memory_space<vmem>>, vector<1x8x16xbf16>
    %36 = vector.shape_cast %35 : vector<1x8x16xbf16> to vector<8x16xbf16>
    %c0_35 = arith.constant 0 : index
    %c0_36 = arith.constant 0 : index
    %c21 = arith.constant 21 : index
    %37 = vector.load %arg1[%c0_35, %c0_36, %c21] : memref<1x16x512xbf16, #tpu.memory_space<vmem>>, vector<1x16x384xbf16>
    %38 = vector.shape_cast %37 : vector<1x16x384xbf16> to vector<16x384xbf16>
    %cst_37 = arith.constant dense<0.000000e+00> : vector<8x384xf32>
    %39 = tpu.matmul %36, %38, %cst_37 {dimension_numbers = #tpu.dot_dimension_numbers<[1], [0], [0], [1], [0, 0, 1, 1], [], []>} : vector<8x16xbf16>, vector<16x384xbf16>, vector<8x384xf32> -> vector<8x384xf32>
    %40 = arith.addf %34, %39 : vector<8x384xf32>
    %c7 = arith.constant 7 : index
    %c0_38 = arith.constant 0 : index
    %c0_39 = arith.constant 0 : index
    %41 = vector.load %arg2[%c7, %c0_38, %c0_39] : memref<16x8x16xbf16, #tpu.memory_space<vmem>>, vector<1x8x16xbf16>
    %42 = vector.shape_cast %41 : vector<1x8x16xbf16> to vector<8x16xbf16>
    %c0_40 = arith.constant 0 : index
    %c0_41 = arith.constant 0 : index
    %c22 = arith.constant 22 : index
    %43 = vector.load %arg1[%c0_40, %c0_41, %c22] : memref<1x16x512xbf16, #tpu.memory_space<vmem>>, vector<1x16x384xbf16>
    %44 = vector.shape_cast %43 : vector<1x16x384xbf16> to vector<16x384xbf16>
    %cst_42 = arith.constant dense<0.000000e+00> : vector<8x384xf32>
    %45 = tpu.matmul %42, %44, %cst_42 {dimension_numbers = #tpu.dot_dimension_numbers<[1], [0], [0], [1], [0, 0, 1, 1], [], []>} : vector<8x16xbf16>, vector<16x384xbf16>, vector<8x384xf32> -> vector<8x384xf32>
    %46 = arith.addf %40, %45 : vector<8x384xf32>
    %c8 = arith.constant 8 : index
    %c0_43 = arith.constant 0 : index
    %c0_44 = arith.constant 0 : index
    %47 = vector.load %arg2[%c8, %c0_43, %c0_44] : memref<16x8x16xbf16, #tpu.memory_space<vmem>>, vector<1x8x16xbf16>
    %48 = vector.shape_cast %47 : vector<1x8x16xbf16> to vector<8x16xbf16>
    %c0_45 = arith.constant 0 : index
    %c0_46 = arith.constant 0 : index
    %c38 = arith.constant 38 : index
    %49 = vector.load %arg1[%c0_45, %c0_46, %c38] : memref<1x16x512xbf16, #tpu.memory_space<vmem>>, vector<1x16x384xbf16>
    %50 = vector.shape_cast %49 : vector<1x16x384xbf16> to vector<16x384xbf16>
    %cst_47 = arith.constant dense<0.000000e+00> : vector<8x384xf32>
    %51 = tpu.matmul %48, %50, %cst_47 {dimension_numbers = #tpu.dot_dimension_numbers<[1], [0], [0], [1], [0, 0, 1, 1], [], []>} : vector<8x16xbf16>, vector<16x384xbf16>, vector<8x384xf32> -> vector<8x384xf32>
    %52 = arith.addf %46, %51 : vector<8x384xf32>
    %c9 = arith.constant 9 : index
    %c0_48 = arith.constant 0 : index
    %c0_49 = arith.constant 0 : index
    %53 = vector.load %arg2[%c9, %c0_48, %c0_49] : memref<16x8x16xbf16, #tpu.memory_space<vmem>>, vector<1x8x16xbf16>
    %54 = vector.shape_cast %53 : vector<1x8x16xbf16> to vector<8x16xbf16>
    %c0_50 = arith.constant 0 : index
    %c0_51 = arith.constant 0 : index
    %c39 = arith.constant 39 : index
    %55 = vector.load %arg1[%c0_50, %c0_51, %c39] : memref<1x16x512xbf16, #tpu.memory_space<vmem>>, vector<1x16x384xbf16>
    %56 = vector.shape_cast %55 : vector<1x16x384xbf16> to vector<16x384xbf16>
    %cst_52 = arith.constant dense<0.000000e+00> : vector<8x384xf32>
    %57 = tpu.matmul %54, %56, %cst_52 {dimension_numbers = #tpu.dot_dimension_numbers<[1], [0], [0], [1], [0, 0, 1, 1], [], []>} : vector<8x16xbf16>, vector<16x384xbf16>, vector<8x384xf32> -> vector<8x384xf32>
    %58 = arith.addf %52, %57 : vector<8x384xf32>
    %c10 = arith.constant 10 : index
    %c0_53 = arith.constant 0 : index
    %c0_54 = arith.constant 0 : index
    %59 = vector.load %arg2[%c10, %c0_53, %c0_54] : memref<16x8x16xbf16, #tpu.memory_space<vmem>>, vector<1x8x16xbf16>
    %60 = vector.shape_cast %59 : vector<1x8x16xbf16> to vector<8x16xbf16>
    %c0_55 = arith.constant 0 : index
    %c0_56 = arith.constant 0 : index
    %c40 = arith.constant 40 : index
    %61 = vector.load %arg1[%c0_55, %c0_56, %c40] : memref<1x16x512xbf16, #tpu.memory_space<vmem>>, vector<1x16x384xbf16>
    %62 = vector.shape_cast %61 : vector<1x16x384xbf16> to vector<16x384xbf16>
    %cst_57 = arith.constant dense<0.000000e+00> : vector<8x384xf32>
    %63 = tpu.matmul %60, %62, %cst_57 {dimension_numbers = #tpu.dot_dimension_numbers<[1], [0], [0], [1], [0, 0, 1, 1], [], []>} : vector<8x16xbf16>, vector<16x384xbf16>, vector<8x384xf32> -> vector<8x384xf32>
    %64 = arith.addf %58, %63 : vector<8x384xf32>
    %c11 = arith.constant 11 : index
    %c0_58 = arith.constant 0 : index
    %c0_59 = arith.constant 0 : index
    %65 = vector.load %arg2[%c11, %c0_58, %c0_59] : memref<16x8x16xbf16, #tpu.memory_space<vmem>>, vector<1x8x16xbf16>
    %66 = vector.shape_cast %65 : vector<1x8x16xbf16> to vector<8x16xbf16>
    %c0_60 = arith.constant 0 : index
    %c0_61 = arith.constant 0 : index
    %c41 = arith.constant 41 : index
    %67 = vector.load %arg1[%c0_60, %c0_61, %c41] : memref<1x16x512xbf16, #tpu.memory_space<vmem>>, vector<1x16x384xbf16>
    %68 = vector.shape_cast %67 : vector<1x16x384xbf16> to vector<16x384xbf16>
    %cst_62 = arith.constant dense<0.000000e+00> : vector<8x384xf32>
    %69 = tpu.matmul %66, %68, %cst_62 {dimension_numbers = #tpu.dot_dimension_numbers<[1], [0], [0], [1], [0, 0, 1, 1], [], []>} : vector<8x16xbf16>, vector<16x384xbf16>, vector<8x384xf32> -> vector<8x384xf32>
    %70 = arith.addf %64, %69 : vector<8x384xf32>
    %c12 = arith.constant 12 : index
    %c0_63 = arith.constant 0 : index
    %c0_64 = arith.constant 0 : index
    %71 = vector.load %arg2[%c12, %c0_63, %c0_64] : memref<16x8x16xbf16, #tpu.memory_space<vmem>>, vector<1x8x16xbf16>
    %72 = vector.shape_cast %71 : vector<1x8x16xbf16> to vector<8x16xbf16>
    %c0_65 = arith.constant 0 : index
    %c0_66 = arith.constant 0 : index
    %c57 = arith.constant 57 : index
    %73 = vector.load %arg1[%c0_65, %c0_66, %c57] : memref<1x16x512xbf16, #tpu.memory_space<vmem>>, vector<1x16x384xbf16>
    %74 = vector.shape_cast %73 : vector<1x16x384xbf16> to vector<16x384xbf16>
    %cst_67 = arith.constant dense<0.000000e+00> : vector<8x384xf32>
    %75 = tpu.matmul %72, %74, %cst_67 {dimension_numbers = #tpu.dot_dimension_numbers<[1], [0], [0], [1], [0, 0, 1, 1], [], []>} : vector<8x16xbf16>, vector<16x384xbf16>, vector<8x384xf32> -> vector<8x384xf32>
    %76 = arith.addf %70, %75 : vector<8x384xf32>
    %c13 = arith.constant 13 : index
    %c0_68 = arith.constant 0 : index
    %c0_69 = arith.constant 0 : index
    %77 = vector.load %arg2[%c13, %c0_68, %c0_69] : memref<16x8x16xbf16, #tpu.memory_space<vmem>>, vector<1x8x16xbf16>
    %78 = vector.shape_cast %77 : vector<1x8x16xbf16> to vector<8x16xbf16>
    %c0_70 = arith.constant 0 : index
    %c0_71 = arith.constant 0 : index
    %c58 = arith.constant 58 : index
    %79 = vector.load %arg1[%c0_70, %c0_71, %c58] : memref<1x16x512xbf16, #tpu.memory_space<vmem>>, vector<1x16x384xbf16>
    %80 = vector.shape_cast %79 : vector<1x16x384xbf16> to vector<16x384xbf16>
    %cst_72 = arith.constant dense<0.000000e+00> : vector<8x384xf32>
    %81 = tpu.matmul %78, %80, %cst_72 {dimension_numbers = #tpu.dot_dimension_numbers<[1], [0], [0], [1], [0, 0, 1, 1], [], []>} : vector<8x16xbf16>, vector<16x384xbf16>, vector<8x384xf32> -> vector<8x384xf32>
    %82 = arith.addf %76, %81 : vector<8x384xf32>
    %c14 = arith.constant 14 : index
    %c0_73 = arith.constant 0 : index
    %c0_74 = arith.constant 0 : index
    %83 = vector.load %arg2[%c14, %c0_73, %c0_74] : memref<16x8x16xbf16, #tpu.memory_space<vmem>>, vector<1x8x16xbf16>
    %84 = vector.shape_cast %83 : vector<1x8x16xbf16> to vector<8x16xbf16>
    %c0_75 = arith.constant 0 : index
    %c0_76 = arith.constant 0 : index
    %c59 = arith.constant 59 : index
    %85 = vector.load %arg1[%c0_75, %c0_76, %c59] : memref<1x16x512xbf16, #tpu.memory_space<vmem>>, vector<1x16x384xbf16>
    %86 = vector.shape_cast %85 : vector<1x16x384xbf16> to vector<16x384xbf16>
    %cst_77 = arith.constant dense<0.000000e+00> : vector<8x384xf32>
    %87 = tpu.matmul %84, %86, %cst_77 {dimension_numbers = #tpu.dot_dimension_numbers<[1], [0], [0], [1], [0, 0, 1, 1], [], []>} : vector<8x16xbf16>, vector<16x384xbf16>, vector<8x384xf32> -> vector<8x384xf32>
    %88 = arith.addf %82, %87 : vector<8x384xf32>
    %c15 = arith.constant 15 : index
    %c0_78 = arith.constant 0 : index
    %c0_79 = arith.constant 0 : index
    %89 = vector.load %arg2[%c15, %c0_78, %c0_79] : memref<16x8x16xbf16, #tpu.memory_space<vmem>>, vector<1x8x16xbf16>
    %90 = vector.shape_cast %89 : vector<1x8x16xbf16> to vector<8x16xbf16>
    %c0_80 = arith.constant 0 : index
    %c0_81 = arith.constant 0 : index
    %c60 = arith.constant 60 : index
    %91 = vector.load %arg1[%c0_80, %c0_81, %c60] : memref<1x16x512xbf16, #tpu.memory_space<vmem>>, vector<1x16x384xbf16>
    %92 = vector.shape_cast %91 : vector<1x16x384xbf16> to vector<16x384xbf16>
    %cst_82 = arith.constant dense<0.000000e+00> : vector<8x384xf32>
    %93 = tpu.matmul %90, %92, %cst_82 {dimension_numbers = #tpu.dot_dimension_numbers<[1], [0], [0], [1], [0, 0, 1, 1], [], []>} : vector<8x16xbf16>, vector<16x384xbf16>, vector<8x384xf32> -> vector<8x384xf32>
    %94 = arith.addf %88, %93 : vector<8x384xf32>
    %c0_83 = arith.constant 0 : index
    %c0_84 = arith.constant 0 : index
    %95 = vector.load %arg5[%c0_83, %c0_84] : memref<1x384xf32, #tpu.memory_space<vmem>>, vector<1x384xf32>
    %96 = vector.broadcast %95 : vector<1x384xf32> to vector<8x384xf32>
    %97 = arith.mulf %94, %96 : vector<8x384xf32>
    %cst_85 = arith.constant dense<0.000000e+00> : vector<8xf32>
    %98 = vector.multi_reduction <add>, %97, %cst_85 [1] : vector<8x384xf32> to vector<8xf32>
    %99 = vector.shape_cast %98 : vector<8xf32> to vector<8x1xf32>
    %100 = arith.mulf %97, %97 : vector<8x384xf32>
    %cst_86 = arith.constant dense<0.000000e+00> : vector<8xf32>
    %101 = vector.multi_reduction <add>, %100, %cst_86 [1] : vector<8x384xf32> to vector<8xf32>
    %102 = vector.shape_cast %101 : vector<8xf32> to vector<8x1xf32>
    %cst_87 = arith.constant 3.906250e-03 : f32
    %103 = vector.broadcast %cst_87 : f32 to vector<8x1xf32>
    %104 = arith.mulf %99, %103 : vector<8x1xf32>
    %cst_88 = arith.constant 3.906250e-03 : f32
    %105 = vector.broadcast %cst_88 : f32 to vector<8x1xf32>
    %106 = arith.mulf %102, %105 : vector<8x1xf32>
    %107 = arith.mulf %104, %104 : vector<8x1xf32>
    %108 = arith.subf %106, %107 : vector<8x1xf32>
    %cst_89 = arith.constant 0.000000e+00 : f32
    %109 = vector.broadcast %cst_89 : f32 to vector<8x1xf32>
    %110 = arith.maximumf %108, %109 : vector<8x1xf32>
    %111 = vector.broadcast %104 : vector<8x1xf32> to vector<8x384xf32>
    %112 = arith.subf %94, %111 : vector<8x384xf32>
    %cst_90 = arith.constant 9.99999974E-6 : f32
    %113 = vector.broadcast %cst_90 : f32 to vector<8x1xf32>
    %114 = arith.addf %110, %113 : vector<8x1xf32>
    %115 = math.rsqrt %114 : vector<8x1xf32>
    %116 = vector.broadcast %115 : vector<8x1xf32> to vector<8x384xf32>
    %117 = arith.mulf %112, %116 : vector<8x384xf32>
    %c0_91 = arith.constant 0 : index
    %c0_92 = arith.constant 0 : index
    %118 = vector.load %arg3[%c0_91, %c0_92] : memref<8x1xf32, #tpu.memory_space<vmem>>, vector<8x1xf32>
    %119 = vector.broadcast %118 : vector<8x1xf32> to vector<8x384xf32>
    %120 = arith.mulf %117, %119 : vector<8x384xf32>
    %c0_93 = arith.constant 0 : index
    %c0_94 = arith.constant 0 : index
    %121 = vector.load %arg4[%c0_93, %c0_94] : memref<8x1xf32, #tpu.memory_space<vmem>>, vector<8x1xf32>
    %122 = vector.broadcast %121 : vector<8x1xf32> to vector<8x384xf32>
    %123 = arith.addf %120, %122 : vector<8x384xf32>
    %cst_95 = arith.constant 0.000000e+00 : f32
    %124 = vector.broadcast %cst_95 : f32 to vector<8x384xf32>
    %125 = arith.maximumf %123, %124 : vector<8x384xf32>
    %c0_96 = arith.constant 0 : index
    %c0_97 = arith.constant 0 : index
    %c0_98 = arith.constant 0 : index
    %126 = vector.load %arg6[%c0_96, %c0_97, %c0_98] : memref<1x8x384xf32, #tpu.memory_space<vmem>>, vector<1x8x384xf32>
    %127 = vector.shape_cast %126 : vector<1x8x384xf32> to vector<8x384xf32>
    %128 = vector.shape_cast %125 : vector<8x384xf32> to vector<1x8x384xf32>
    tpu.vector_store %arg6[%c0_96, %c0_97, %c0_98], %128 {strides = array<i32>} : memref<1x8x384xf32, #tpu.memory_space<vmem>>, vector<1x8x384xf32>,
    return
  }
  func.func @transform_0(%arg0: i32) -> (i32, i32, i32) {
    %c0_i32 = arith.constant 0 : i32
    %c0_i32_0 = arith.constant 0 : i32
    %c0_i32_1 = arith.constant 0 : i32
    return %arg0, %c0_i32, %c0_i32_0 : i32, i32, i32
  }
  func.func @transform_1(%arg0: i32) -> (i32, i32, i32) {
    %c0_i32 = arith.constant 0 : i32
    %c0_i32_0 = arith.constant 0 : i32
    %c0_i32_1 = arith.constant 0 : i32
    %c0_i32_2 = arith.constant 0 : i32
    return %c0_i32, %c0_i32_0, %c0_i32_1 : i32, i32, i32
  }
  func.func @transform_2(%arg0: i32) -> (i32, i32) {
    %c0_i32 = arith.constant 0 : i32
    %c0_i32_0 = arith.constant 0 : i32
    %c0_i32_1 = arith.constant 0 : i32
    return %c0_i32, %c0_i32_0 : i32, i32
  }
  func.func @transform_3(%arg0: i32) -> (i32, i32) {
    %c0_i32 = arith.constant 0 : i32
    %c0_i32_0 = arith.constant 0 : i32
    %c0_i32_1 = arith.constant 0 : i32
    return %c0_i32, %c0_i32_0 : i32, i32
  }
  func.func @transform_4(%arg0: i32) -> (i32, i32) {
    %c0_i32 = arith.constant 0 : i32
    %c0_i32_0 = arith.constant 0 : i32
    %c0_i32_1 = arith.constant 0 : i32
    return %c0_i32, %c0_i32_0 : i32, i32
  }
  func.func @transform_5(%arg0: i32) -> (i32, i32, i32) {
    %c0_i32 = arith.constant 0 : i32
    %c0_i32_0 = arith.constant 0 : i32
    %c0_i32_1 = arith.constant 0 : i32
    return %arg0, %c0_i32, %c0_i32_0 : i32, i32, i32
  }
}

module attributes {stable_mosaic.version = 11 : i64} {
  func.func @kernel(%arg0: i32, %arg1: memref<1x8x1280xbf16, #tpu.memory_space<vmem>>, %arg2: memref<16x4x8xbf16, #tpu.memory_space<vmem>>, %arg3: memref<4x1xf32, #tpu.memory_space<vmem>>, %arg4: memref<4x1xf32, #tpu.memory_space<vmem>>, %arg5: memref<1x1152xf32, #tpu.memory_space<vmem>>, %arg6: memref<1x4x1152xf32, #tpu.memory_space<vmem>>) attributes {dimension_semantics = [#tpu.dimension_semantics<parallel>], iteration_bounds = array<i64: 2>, scalar_prefetch = 0 : i64, scratch_operands = 0 : i64, tpu.core_type = #tpu.core_type<tc>, window_params = [{transform_indices = @transform_0, window_bounds = array<i64: 1, 8, 1280>}, {pipeline_mode = #tpu.pipeline_mode<synchronous>, transform_indices = @transform_1, window_bounds = array<i64: 16, 4, 8>}, {pipeline_mode = #tpu.pipeline_mode<synchronous>, transform_indices = @transform_2, window_bounds = array<i64: 4, 1>}, {pipeline_mode = #tpu.pipeline_mode<synchronous>, transform_indices = @transform_3, window_bounds = array<i64: 4, 1>}, {pipeline_mode = #tpu.pipeline_mode<synchronous>, transform_indices = @transform_4, window_bounds = array<i64: 1, 1152>}, {transform_indices = @transform_5, window_bounds = array<i64: 1, 4, 1152>}]} {
    %c0 = arith.constant 0 : index
    %c0_0 = arith.constant 0 : index
    %c0_1 = arith.constant 0 : index
    %0 = vector.load %arg2[%c0, %c0_0, %c0_1] : memref<16x4x8xbf16, #tpu.memory_space<vmem>>, vector<1x4x8xbf16>
    %1 = vector.shape_cast %0 : vector<1x4x8xbf16> to vector<4x8xbf16>
    %c0_2 = arith.constant 0 : index
    %c0_3 = arith.constant 0 : index
    %c0_4 = arith.constant 0 : index
    %2 = vector.load %arg1[%c0_2, %c0_3, %c0_4] : memref<1x8x1280xbf16, #tpu.memory_space<vmem>>, vector<1x8x1152xbf16>
    %3 = vector.shape_cast %2 : vector<1x8x1152xbf16> to vector<8x1152xbf16>
    %cst = arith.constant dense<0.000000e+00> : vector<4x1152xf32>
    %4 = tpu.matmul %1, %3, %cst {dimension_numbers = #tpu.dot_dimension_numbers<[1], [0], [0], [1], [0, 0, 1, 1], [], []>} : vector<4x8xbf16>, vector<8x1152xbf16>, vector<4x1152xf32> -> vector<4x1152xf32>
    %c1 = arith.constant 1 : index
    %c0_5 = arith.constant 0 : index
    %c0_6 = arith.constant 0 : index
    %5 = vector.load %arg2[%c1, %c0_5, %c0_6] : memref<16x4x8xbf16, #tpu.memory_space<vmem>>, vector<1x4x8xbf16>
    %6 = vector.shape_cast %5 : vector<1x4x8xbf16> to vector<4x8xbf16>
    %c0_7 = arith.constant 0 : index
    %c0_8 = arith.constant 0 : index
    %c1_9 = arith.constant 1 : index
    %7 = vector.load %arg1[%c0_7, %c0_8, %c1_9] : memref<1x8x1280xbf16, #tpu.memory_space<vmem>>, vector<1x8x1152xbf16>
    %8 = vector.shape_cast %7 : vector<1x8x1152xbf16> to vector<8x1152xbf16>
    %cst_10 = arith.constant dense<0.000000e+00> : vector<4x1152xf32>
    %9 = tpu.matmul %6, %8, %cst_10 {dimension_numbers = #tpu.dot_dimension_numbers<[1], [0], [0], [1], [0, 0, 1, 1], [], []>} : vector<4x8xbf16>, vector<8x1152xbf16>, vector<4x1152xf32> -> vector<4x1152xf32>
    %10 = arith.addf %4, %9 : vector<4x1152xf32>
    %c2 = arith.constant 2 : index
    %c0_11 = arith.constant 0 : index
    %c0_12 = arith.constant 0 : index
    %11 = vector.load %arg2[%c2, %c0_11, %c0_12] : memref<16x4x8xbf16, #tpu.memory_space<vmem>>, vector<1x4x8xbf16>
    %12 = vector.shape_cast %11 : vector<1x4x8xbf16> to vector<4x8xbf16>
    %c0_13 = arith.constant 0 : index
    %c0_14 = arith.constant 0 : index
    %c2_15 = arith.constant 2 : index
    %13 = vector.load %arg1[%c0_13, %c0_14, %c2_15] : memref<1x8x1280xbf16, #tpu.memory_space<vmem>>, vector<1x8x1152xbf16>
    %14 = vector.shape_cast %13 : vector<1x8x1152xbf16> to vector<8x1152xbf16>
    %cst_16 = arith.constant dense<0.000000e+00> : vector<4x1152xf32>
    %15 = tpu.matmul %12, %14, %cst_16 {dimension_numbers = #tpu.dot_dimension_numbers<[1], [0], [0], [1], [0, 0, 1, 1], [], []>} : vector<4x8xbf16>, vector<8x1152xbf16>, vector<4x1152xf32> -> vector<4x1152xf32>
    %16 = arith.addf %10, %15 : vector<4x1152xf32>
    %c3 = arith.constant 3 : index
    %c0_17 = arith.constant 0 : index
    %c0_18 = arith.constant 0 : index
    %17 = vector.load %arg2[%c3, %c0_17, %c0_18] : memref<16x4x8xbf16, #tpu.memory_space<vmem>>, vector<1x4x8xbf16>
    %18 = vector.shape_cast %17 : vector<1x4x8xbf16> to vector<4x8xbf16>
    %c0_19 = arith.constant 0 : index
    %c0_20 = arith.constant 0 : index
    %c3_21 = arith.constant 3 : index
    %19 = vector.load %arg1[%c0_19, %c0_20, %c3_21] : memref<1x8x1280xbf16, #tpu.memory_space<vmem>>, vector<1x8x1152xbf16>
    %20 = vector.shape_cast %19 : vector<1x8x1152xbf16> to vector<8x1152xbf16>
    %cst_22 = arith.constant dense<0.000000e+00> : vector<4x1152xf32>
    %21 = tpu.matmul %18, %20, %cst_22 {dimension_numbers = #tpu.dot_dimension_numbers<[1], [0], [0], [1], [0, 0, 1, 1], [], []>} : vector<4x8xbf16>, vector<8x1152xbf16>, vector<4x1152xf32> -> vector<4x1152xf32>
    %22 = arith.addf %16, %21 : vector<4x1152xf32>
    %c4 = arith.constant 4 : index
    %c0_23 = arith.constant 0 : index
    %c0_24 = arith.constant 0 : index
    %23 = vector.load %arg2[%c4, %c0_23, %c0_24] : memref<16x4x8xbf16, #tpu.memory_space<vmem>>, vector<1x4x8xbf16>
    %24 = vector.shape_cast %23 : vector<1x4x8xbf16> to vector<4x8xbf16>
    %c0_25 = arith.constant 0 : index
    %c0_26 = arith.constant 0 : index
    %c35 = arith.constant 35 : index
    %25 = vector.load %arg1[%c0_25, %c0_26, %c35] : memref<1x8x1280xbf16, #tpu.memory_space<vmem>>, vector<1x8x1152xbf16>
    %26 = vector.shape_cast %25 : vector<1x8x1152xbf16> to vector<8x1152xbf16>
    %cst_27 = arith.constant dense<0.000000e+00> : vector<4x1152xf32>
    %27 = tpu.matmul %24, %26, %cst_27 {dimension_numbers = #tpu.dot_dimension_numbers<[1], [0], [0], [1], [0, 0, 1, 1], [], []>} : vector<4x8xbf16>, vector<8x1152xbf16>, vector<4x1152xf32> -> vector<4x1152xf32>
    %28 = arith.addf %22, %27 : vector<4x1152xf32>
    %c5 = arith.constant 5 : index
    %c0_28 = arith.constant 0 : index
    %c0_29 = arith.constant 0 : index
    %29 = vector.load %arg2[%c5, %c0_28, %c0_29] : memref<16x4x8xbf16, #tpu.memory_space<vmem>>, vector<1x4x8xbf16>
    %30 = vector.shape_cast %29 : vector<1x4x8xbf16> to vector<4x8xbf16>
    %c0_30 = arith.constant 0 : index
    %c0_31 = arith.constant 0 : index
    %c36 = arith.constant 36 : index
    %31 = vector.load %arg1[%c0_30, %c0_31, %c36] : memref<1x8x1280xbf16, #tpu.memory_space<vmem>>, vector<1x8x1152xbf16>
    %32 = vector.shape_cast %31 : vector<1x8x1152xbf16> to vector<8x1152xbf16>
    %cst_32 = arith.constant dense<0.000000e+00> : vector<4x1152xf32>
    %33 = tpu.matmul %30, %32, %cst_32 {dimension_numbers = #tpu.dot_dimension_numbers<[1], [0], [0], [1], [0, 0, 1, 1], [], []>} : vector<4x8xbf16>, vector<8x1152xbf16>, vector<4x1152xf32> -> vector<4x1152xf32>
    %34 = arith.addf %28, %33 : vector<4x1152xf32>
    %c6 = arith.constant 6 : index
    %c0_33 = arith.constant 0 : index
    %c0_34 = arith.constant 0 : index
    %35 = vector.load %arg2[%c6, %c0_33, %c0_34] : memref<16x4x8xbf16, #tpu.memory_space<vmem>>, vector<1x4x8xbf16>
    %36 = vector.shape_cast %35 : vector<1x4x8xbf16> to vector<4x8xbf16>
    %c0_35 = arith.constant 0 : index
    %c0_36 = arith.constant 0 : index
    %c37 = arith.constant 37 : index
    %37 = vector.load %arg1[%c0_35, %c0_36, %c37] : memref<1x8x1280xbf16, #tpu.memory_space<vmem>>, vector<1x8x1152xbf16>
    %38 = vector.shape_cast %37 : vector<1x8x1152xbf16> to vector<8x1152xbf16>
    %cst_37 = arith.constant dense<0.000000e+00> : vector<4x1152xf32>
    %39 = tpu.matmul %36, %38, %cst_37 {dimension_numbers = #tpu.dot_dimension_numbers<[1], [0], [0], [1], [0, 0, 1, 1], [], []>} : vector<4x8xbf16>, vector<8x1152xbf16>, vector<4x1152xf32> -> vector<4x1152xf32>
    %40 = arith.addf %34, %39 : vector<4x1152xf32>
    %c7 = arith.constant 7 : index
    %c0_38 = arith.constant 0 : index
    %c0_39 = arith.constant 0 : index
    %41 = vector.load %arg2[%c7, %c0_38, %c0_39] : memref<16x4x8xbf16, #tpu.memory_space<vmem>>, vector<1x4x8xbf16>
    %42 = vector.shape_cast %41 : vector<1x4x8xbf16> to vector<4x8xbf16>
    %c0_40 = arith.constant 0 : index
    %c0_41 = arith.constant 0 : index
    %c38 = arith.constant 38 : index
    %43 = vector.load %arg1[%c0_40, %c0_41, %c38] : memref<1x8x1280xbf16, #tpu.memory_space<vmem>>, vector<1x8x1152xbf16>
    %44 = vector.shape_cast %43 : vector<1x8x1152xbf16> to vector<8x1152xbf16>
    %cst_42 = arith.constant dense<0.000000e+00> : vector<4x1152xf32>
    %45 = tpu.matmul %42, %44, %cst_42 {dimension_numbers = #tpu.dot_dimension_numbers<[1], [0], [0], [1], [0, 0, 1, 1], [], []>} : vector<4x8xbf16>, vector<8x1152xbf16>, vector<4x1152xf32> -> vector<4x1152xf32>
    %46 = arith.addf %40, %45 : vector<4x1152xf32>
    %c8 = arith.constant 8 : index
    %c0_43 = arith.constant 0 : index
    %c0_44 = arith.constant 0 : index
    %47 = vector.load %arg2[%c8, %c0_43, %c0_44] : memref<16x4x8xbf16, #tpu.memory_space<vmem>>, vector<1x4x8xbf16>
    %48 = vector.shape_cast %47 : vector<1x4x8xbf16> to vector<4x8xbf16>
    %c0_45 = arith.constant 0 : index
    %c0_46 = arith.constant 0 : index
    %c70 = arith.constant 70 : index
    %49 = vector.load %arg1[%c0_45, %c0_46, %c70] : memref<1x8x1280xbf16, #tpu.memory_space<vmem>>, vector<1x8x1152xbf16>
    %50 = vector.shape_cast %49 : vector<1x8x1152xbf16> to vector<8x1152xbf16>
    %cst_47 = arith.constant dense<0.000000e+00> : vector<4x1152xf32>
    %51 = tpu.matmul %48, %50, %cst_47 {dimension_numbers = #tpu.dot_dimension_numbers<[1], [0], [0], [1], [0, 0, 1, 1], [], []>} : vector<4x8xbf16>, vector<8x1152xbf16>, vector<4x1152xf32> -> vector<4x1152xf32>
    %52 = arith.addf %46, %51 : vector<4x1152xf32>
    %c9 = arith.constant 9 : index
    %c0_48 = arith.constant 0 : index
    %c0_49 = arith.constant 0 : index
    %53 = vector.load %arg2[%c9, %c0_48, %c0_49] : memref<16x4x8xbf16, #tpu.memory_space<vmem>>, vector<1x4x8xbf16>
    %54 = vector.shape_cast %53 : vector<1x4x8xbf16> to vector<4x8xbf16>
    %c0_50 = arith.constant 0 : index
    %c0_51 = arith.constant 0 : index
    %c71 = arith.constant 71 : index
    %55 = vector.load %arg1[%c0_50, %c0_51, %c71] : memref<1x8x1280xbf16, #tpu.memory_space<vmem>>, vector<1x8x1152xbf16>
    %56 = vector.shape_cast %55 : vector<1x8x1152xbf16> to vector<8x1152xbf16>
    %cst_52 = arith.constant dense<0.000000e+00> : vector<4x1152xf32>
    %57 = tpu.matmul %54, %56, %cst_52 {dimension_numbers = #tpu.dot_dimension_numbers<[1], [0], [0], [1], [0, 0, 1, 1], [], []>} : vector<4x8xbf16>, vector<8x1152xbf16>, vector<4x1152xf32> -> vector<4x1152xf32>
    %58 = arith.addf %52, %57 : vector<4x1152xf32>
    %c10 = arith.constant 10 : index
    %c0_53 = arith.constant 0 : index
    %c0_54 = arith.constant 0 : index
    %59 = vector.load %arg2[%c10, %c0_53, %c0_54] : memref<16x4x8xbf16, #tpu.memory_space<vmem>>, vector<1x4x8xbf16>
    %60 = vector.shape_cast %59 : vector<1x4x8xbf16> to vector<4x8xbf16>
    %c0_55 = arith.constant 0 : index
    %c0_56 = arith.constant 0 : index
    %c72 = arith.constant 72 : index
    %61 = vector.load %arg1[%c0_55, %c0_56, %c72] : memref<1x8x1280xbf16, #tpu.memory_space<vmem>>, vector<1x8x1152xbf16>
    %62 = vector.shape_cast %61 : vector<1x8x1152xbf16> to vector<8x1152xbf16>
    %cst_57 = arith.constant dense<0.000000e+00> : vector<4x1152xf32>
    %63 = tpu.matmul %60, %62, %cst_57 {dimension_numbers = #tpu.dot_dimension_numbers<[1], [0], [0], [1], [0, 0, 1, 1], [], []>} : vector<4x8xbf16>, vector<8x1152xbf16>, vector<4x1152xf32> -> vector<4x1152xf32>
    %64 = arith.addf %58, %63 : vector<4x1152xf32>
    %c11 = arith.constant 11 : index
    %c0_58 = arith.constant 0 : index
    %c0_59 = arith.constant 0 : index
    %65 = vector.load %arg2[%c11, %c0_58, %c0_59] : memref<16x4x8xbf16, #tpu.memory_space<vmem>>, vector<1x4x8xbf16>
    %66 = vector.shape_cast %65 : vector<1x4x8xbf16> to vector<4x8xbf16>
    %c0_60 = arith.constant 0 : index
    %c0_61 = arith.constant 0 : index
    %c73 = arith.constant 73 : index
    %67 = vector.load %arg1[%c0_60, %c0_61, %c73] : memref<1x8x1280xbf16, #tpu.memory_space<vmem>>, vector<1x8x1152xbf16>
    %68 = vector.shape_cast %67 : vector<1x8x1152xbf16> to vector<8x1152xbf16>
    %cst_62 = arith.constant dense<0.000000e+00> : vector<4x1152xf32>
    %69 = tpu.matmul %66, %68, %cst_62 {dimension_numbers = #tpu.dot_dimension_numbers<[1], [0], [0], [1], [0, 0, 1, 1], [], []>} : vector<4x8xbf16>, vector<8x1152xbf16>, vector<4x1152xf32> -> vector<4x1152xf32>
    %70 = arith.addf %64, %69 : vector<4x1152xf32>
    %c12 = arith.constant 12 : index
    %c0_63 = arith.constant 0 : index
    %c0_64 = arith.constant 0 : index
    %71 = vector.load %arg2[%c12, %c0_63, %c0_64] : memref<16x4x8xbf16, #tpu.memory_space<vmem>>, vector<1x4x8xbf16>
    %72 = vector.shape_cast %71 : vector<1x4x8xbf16> to vector<4x8xbf16>
    %c0_65 = arith.constant 0 : index
    %c0_66 = arith.constant 0 : index
    %c105 = arith.constant 105 : index
    %73 = vector.load %arg1[%c0_65, %c0_66, %c105] : memref<1x8x1280xbf16, #tpu.memory_space<vmem>>, vector<1x8x1152xbf16>
    %74 = vector.shape_cast %73 : vector<1x8x1152xbf16> to vector<8x1152xbf16>
    %cst_67 = arith.constant dense<0.000000e+00> : vector<4x1152xf32>
    %75 = tpu.matmul %72, %74, %cst_67 {dimension_numbers = #tpu.dot_dimension_numbers<[1], [0], [0], [1], [0, 0, 1, 1], [], []>} : vector<4x8xbf16>, vector<8x1152xbf16>, vector<4x1152xf32> -> vector<4x1152xf32>
    %76 = arith.addf %70, %75 : vector<4x1152xf32>
    %c13 = arith.constant 13 : index
    %c0_68 = arith.constant 0 : index
    %c0_69 = arith.constant 0 : index
    %77 = vector.load %arg2[%c13, %c0_68, %c0_69] : memref<16x4x8xbf16, #tpu.memory_space<vmem>>, vector<1x4x8xbf16>
    %78 = vector.shape_cast %77 : vector<1x4x8xbf16> to vector<4x8xbf16>
    %c0_70 = arith.constant 0 : index
    %c0_71 = arith.constant 0 : index
    %c106 = arith.constant 106 : index
    %79 = vector.load %arg1[%c0_70, %c0_71, %c106] : memref<1x8x1280xbf16, #tpu.memory_space<vmem>>, vector<1x8x1152xbf16>
    %80 = vector.shape_cast %79 : vector<1x8x1152xbf16> to vector<8x1152xbf16>
    %cst_72 = arith.constant dense<0.000000e+00> : vector<4x1152xf32>
    %81 = tpu.matmul %78, %80, %cst_72 {dimension_numbers = #tpu.dot_dimension_numbers<[1], [0], [0], [1], [0, 0, 1, 1], [], []>} : vector<4x8xbf16>, vector<8x1152xbf16>, vector<4x1152xf32> -> vector<4x1152xf32>
    %82 = arith.addf %76, %81 : vector<4x1152xf32>
    %c14 = arith.constant 14 : index
    %c0_73 = arith.constant 0 : index
    %c0_74 = arith.constant 0 : index
    %83 = vector.load %arg2[%c14, %c0_73, %c0_74] : memref<16x4x8xbf16, #tpu.memory_space<vmem>>, vector<1x4x8xbf16>
    %84 = vector.shape_cast %83 : vector<1x4x8xbf16> to vector<4x8xbf16>
    %c0_75 = arith.constant 0 : index
    %c0_76 = arith.constant 0 : index
    %c107 = arith.constant 107 : index
    %85 = vector.load %arg1[%c0_75, %c0_76, %c107] : memref<1x8x1280xbf16, #tpu.memory_space<vmem>>, vector<1x8x1152xbf16>
    %86 = vector.shape_cast %85 : vector<1x8x1152xbf16> to vector<8x1152xbf16>
    %cst_77 = arith.constant dense<0.000000e+00> : vector<4x1152xf32>
    %87 = tpu.matmul %84, %86, %cst_77 {dimension_numbers = #tpu.dot_dimension_numbers<[1], [0], [0], [1], [0, 0, 1, 1], [], []>} : vector<4x8xbf16>, vector<8x1152xbf16>, vector<4x1152xf32> -> vector<4x1152xf32>
    %88 = arith.addf %82, %87 : vector<4x1152xf32>
    %c15 = arith.constant 15 : index
    %c0_78 = arith.constant 0 : index
    %c0_79 = arith.constant 0 : index
    %89 = vector.load %arg2[%c15, %c0_78, %c0_79] : memref<16x4x8xbf16, #tpu.memory_space<vmem>>, vector<1x4x8xbf16>
    %90 = vector.shape_cast %89 : vector<1x4x8xbf16> to vector<4x8xbf16>
    %c0_80 = arith.constant 0 : index
    %c0_81 = arith.constant 0 : index
    %c108 = arith.constant 108 : index
    %91 = vector.load %arg1[%c0_80, %c0_81, %c108] : memref<1x8x1280xbf16, #tpu.memory_space<vmem>>, vector<1x8x1152xbf16>
    %92 = vector.shape_cast %91 : vector<1x8x1152xbf16> to vector<8x1152xbf16>
    %cst_82 = arith.constant dense<0.000000e+00> : vector<4x1152xf32>
    %93 = tpu.matmul %90, %92, %cst_82 {dimension_numbers = #tpu.dot_dimension_numbers<[1], [0], [0], [1], [0, 0, 1, 1], [], []>} : vector<4x8xbf16>, vector<8x1152xbf16>, vector<4x1152xf32> -> vector<4x1152xf32>
    %94 = arith.addf %88, %93 : vector<4x1152xf32>
    %c0_83 = arith.constant 0 : index
    %c0_84 = arith.constant 0 : index
    %95 = vector.load %arg5[%c0_83, %c0_84] : memref<1x1152xf32, #tpu.memory_space<vmem>>, vector<1x1152xf32>
    %96 = vector.broadcast %95 : vector<1x1152xf32> to vector<4x1152xf32>
    %97 = arith.mulf %94, %96 : vector<4x1152xf32>
    %cst_85 = arith.constant dense<0.000000e+00> : vector<4xf32>
    %98 = vector.multi_reduction <add>, %97, %cst_85 [1] : vector<4x1152xf32> to vector<4xf32>
    %99 = vector.shape_cast %98 : vector<4xf32> to vector<4x1xf32>
    %100 = arith.mulf %97, %97 : vector<4x1152xf32>
    %cst_86 = arith.constant dense<0.000000e+00> : vector<4xf32>
    %101 = vector.multi_reduction <add>, %100, %cst_86 [1] : vector<4x1152xf32> to vector<4xf32>
    %102 = vector.shape_cast %101 : vector<4xf32> to vector<4x1xf32>
    %cst_87 = arith.constant 9.765625E-4 : f32
    %103 = vector.broadcast %cst_87 : f32 to vector<4x1xf32>
    %104 = arith.mulf %99, %103 : vector<4x1xf32>
    %cst_88 = arith.constant 9.765625E-4 : f32
    %105 = vector.broadcast %cst_88 : f32 to vector<4x1xf32>
    %106 = arith.mulf %102, %105 : vector<4x1xf32>
    %107 = arith.mulf %104, %104 : vector<4x1xf32>
    %108 = arith.subf %106, %107 : vector<4x1xf32>
    %cst_89 = arith.constant 0.000000e+00 : f32
    %109 = vector.broadcast %cst_89 : f32 to vector<4x1xf32>
    %110 = arith.maximumf %108, %109 : vector<4x1xf32>
    %111 = vector.broadcast %104 : vector<4x1xf32> to vector<4x1152xf32>
    %112 = arith.subf %94, %111 : vector<4x1152xf32>
    %cst_90 = arith.constant 9.99999974E-6 : f32
    %113 = vector.broadcast %cst_90 : f32 to vector<4x1xf32>
    %114 = arith.addf %110, %113 : vector<4x1xf32>
    %115 = math.rsqrt %114 : vector<4x1xf32>
    %116 = vector.broadcast %115 : vector<4x1xf32> to vector<4x1152xf32>
    %117 = arith.mulf %112, %116 : vector<4x1152xf32>
    %c0_91 = arith.constant 0 : index
    %c0_92 = arith.constant 0 : index
    %118 = vector.load %arg3[%c0_91, %c0_92] : memref<4x1xf32, #tpu.memory_space<vmem>>, vector<4x1xf32>
    %119 = vector.broadcast %118 : vector<4x1xf32> to vector<4x1152xf32>
    %120 = arith.mulf %117, %119 : vector<4x1152xf32>
    %c0_93 = arith.constant 0 : index
    %c0_94 = arith.constant 0 : index
    %121 = vector.load %arg4[%c0_93, %c0_94] : memref<4x1xf32, #tpu.memory_space<vmem>>, vector<4x1xf32>
    %122 = vector.broadcast %121 : vector<4x1xf32> to vector<4x1152xf32>
    %123 = arith.addf %120, %122 : vector<4x1152xf32>
    %cst_95 = arith.constant 0.000000e+00 : f32
    %124 = vector.broadcast %cst_95 : f32 to vector<4x1152xf32>
    %125 = arith.maximumf %123, %124 : vector<4x1152xf32>
    %c0_96 = arith.constant 0 : index
    %c0_97 = arith.constant 0 : index
    %c0_98 = arith.constant 0 : index
    %126 = vector.load %arg6[%c0_96, %c0_97, %c0_98] : memref<1x4x1152xf32, #tpu.memory_space<vmem>>, vector<1x4x1152xf32>
    %127 = vector.shape_cast %126 : vector<1x4x1152xf32> to vector<4x1152xf32>
    %128 = vector.shape_cast %125 : vector<4x1152xf32> to vector<1x4x1152xf32>
    tpu.vector_store %arg6[%c0_96, %c0_97, %c0_98], %128 {strides = array<i32>} : memref<1x4x1152xf32, #tpu.memory_space<vmem>>, vector<1x4x1152xf32>,
    return
  }
  func.func @transform_0(%arg0: i32) -> (i32, i32, i32) {
    %c0_i32 = arith.constant 0 : i32
    %c0_i32_0 = arith.constant 0 : i32
    %c0_i32_1 = arith.constant 0 : i32
    return %arg0, %c0_i32, %c0_i32_0 : i32, i32, i32
  }
  func.func @transform_1(%arg0: i32) -> (i32, i32, i32) {
    %c0_i32 = arith.constant 0 : i32
    %c0_i32_0 = arith.constant 0 : i32
    %c0_i32_1 = arith.constant 0 : i32
    %c0_i32_2 = arith.constant 0 : i32
    return %c0_i32, %c0_i32_0, %c0_i32_1 : i32, i32, i32
  }
  func.func @transform_2(%arg0: i32) -> (i32, i32) {
    %c0_i32 = arith.constant 0 : i32
    %c0_i32_0 = arith.constant 0 : i32
    %c0_i32_1 = arith.constant 0 : i32
    return %c0_i32, %c0_i32_0 : i32, i32
  }
  func.func @transform_3(%arg0: i32) -> (i32, i32) {
    %c0_i32 = arith.constant 0 : i32
    %c0_i32_0 = arith.constant 0 : i32
    %c0_i32_1 = arith.constant 0 : i32
    return %c0_i32, %c0_i32_0 : i32, i32
  }
  func.func @transform_4(%arg0: i32) -> (i32, i32) {
    %c0_i32 = arith.constant 0 : i32
    %c0_i32_0 = arith.constant 0 : i32
    %c0_i32_1 = arith.constant 0 : i32
    return %c0_i32, %c0_i32_0 : i32, i32
  }
  func.func @transform_5(%arg0: i32) -> (i32, i32, i32) {
    %c0_i32 = arith.constant 0 : i32
    %c0_i32_0 = arith.constant 0 : i32
    %c0_i32_1 = arith.constant 0 : i32
    return %arg0, %c0_i32, %c0_i32_0 : i32, i32, i32
  }
}

module attributes {stable_mosaic.version = 11 : i64} {
  func.func @kernel(%arg0: i32, %arg1: memref<1x4x1536xbf16, #tpu.memory_space<vmem>>, %arg2: memref<49x4x1xf32, #tpu.memory_space<vmem>>, %arg3: memref<1x1x1280xf32, #tpu.memory_space<vmem>>) attributes {dimension_semantics = [#tpu.dimension_semantics<parallel>], iteration_bounds = array<i64: 2>, scalar_prefetch = 0 : i64, scratch_operands = 0 : i64, tpu.core_type = #tpu.core_type<tc>, window_params = [{transform_indices = @transform_0, window_bounds = array<i64: 1, 4, 1536>}, {pipeline_mode = #tpu.pipeline_mode<synchronous>, transform_indices = @transform_1, window_bounds = array<i64: 49, 4, 1>}, {transform_indices = @transform_2, window_bounds = array<i64: 1, 1, 1280>}]} {
    %c0 = arith.constant 0 : index
    %c0_0 = arith.constant 0 : index
    %c0_1 = arith.constant 0 : index
    %0 = vector.load %arg1[%c0, %c0_0, %c0_1] : memref<1x4x1536xbf16, #tpu.memory_space<vmem>>, vector<1x4x1280xbf16>
    %1 = vector.shape_cast %0 : vector<1x4x1280xbf16> to vector<4x1280xbf16>
    %2 = arith.extf %1 : vector<4x1280xbf16> to vector<4x1280xf32>
    %c0_2 = arith.constant 0 : index
    %c0_3 = arith.constant 0 : index
    %c0_4 = arith.constant 0 : index
    %3 = vector.load %arg2[%c0_2, %c0_3, %c0_4] : memref<49x4x1xf32, #tpu.memory_space<vmem>>, vector<1x4x1xf32>
    %4 = vector.shape_cast %3 : vector<1x4x1xf32> to vector<4x1xf32>
    %5 = vector.broadcast %4 : vector<4x1xf32> to vector<4x1280xf32>
    %6 = arith.mulf %2, %5 : vector<4x1280xf32>
    %c0_5 = arith.constant 0 : index
    %c0_6 = arith.constant 0 : index
    %c1 = arith.constant 1 : index
    %7 = vector.load %arg1[%c0_5, %c0_6, %c1] : memref<1x4x1536xbf16, #tpu.memory_space<vmem>>, vector<1x4x1280xbf16>
    %8 = vector.shape_cast %7 : vector<1x4x1280xbf16> to vector<4x1280xbf16>
    %9 = arith.extf %8 : vector<4x1280xbf16> to vector<4x1280xf32>
    %c1_7 = arith.constant 1 : index
    %c0_8 = arith.constant 0 : index
    %c0_9 = arith.constant 0 : index
    %10 = vector.load %arg2[%c1_7, %c0_8, %c0_9] : memref<49x4x1xf32, #tpu.memory_space<vmem>>, vector<1x4x1xf32>
    %11 = vector.shape_cast %10 : vector<1x4x1xf32> to vector<4x1xf32>
    %12 = vector.broadcast %11 : vector<4x1xf32> to vector<4x1280xf32>
    %13 = arith.mulf %9, %12 : vector<4x1280xf32>
    %14 = arith.addf %6, %13 : vector<4x1280xf32>
    %c0_10 = arith.constant 0 : index
    %c0_11 = arith.constant 0 : index
    %c2 = arith.constant 2 : index
    %15 = vector.load %arg1[%c0_10, %c0_11, %c2] : memref<1x4x1536xbf16, #tpu.memory_space<vmem>>, vector<1x4x1280xbf16>
    %16 = vector.shape_cast %15 : vector<1x4x1280xbf16> to vector<4x1280xbf16>
    %17 = arith.extf %16 : vector<4x1280xbf16> to vector<4x1280xf32>
    %c2_12 = arith.constant 2 : index
    %c0_13 = arith.constant 0 : index
    %c0_14 = arith.constant 0 : index
    %18 = vector.load %arg2[%c2_12, %c0_13, %c0_14] : memref<49x4x1xf32, #tpu.memory_space<vmem>>, vector<1x4x1xf32>
    %19 = vector.shape_cast %18 : vector<1x4x1xf32> to vector<4x1xf32>
    %20 = vector.broadcast %19 : vector<4x1xf32> to vector<4x1280xf32>
    %21 = arith.mulf %17, %20 : vector<4x1280xf32>
    %22 = arith.addf %14, %21 : vector<4x1280xf32>
    %c0_15 = arith.constant 0 : index
    %c0_16 = arith.constant 0 : index
    %c3 = arith.constant 3 : index
    %23 = vector.load %arg1[%c0_15, %c0_16, %c3] : memref<1x4x1536xbf16, #tpu.memory_space<vmem>>, vector<1x4x1280xbf16>
    %24 = vector.shape_cast %23 : vector<1x4x1280xbf16> to vector<4x1280xbf16>
    %25 = arith.extf %24 : vector<4x1280xbf16> to vector<4x1280xf32>
    %c3_17 = arith.constant 3 : index
    %c0_18 = arith.constant 0 : index
    %c0_19 = arith.constant 0 : index
    %26 = vector.load %arg2[%c3_17, %c0_18, %c0_19] : memref<49x4x1xf32, #tpu.memory_space<vmem>>, vector<1x4x1xf32>
    %27 = vector.shape_cast %26 : vector<1x4x1xf32> to vector<4x1xf32>
    %28 = vector.broadcast %27 : vector<4x1xf32> to vector<4x1280xf32>
    %29 = arith.mulf %25, %28 : vector<4x1280xf32>
    %30 = arith.addf %22, %29 : vector<4x1280xf32>
    %c0_20 = arith.constant 0 : index
    %c0_21 = arith.constant 0 : index
    %c4 = arith.constant 4 : index
    %31 = vector.load %arg1[%c0_20, %c0_21, %c4] : memref<1x4x1536xbf16, #tpu.memory_space<vmem>>, vector<1x4x1280xbf16>
    %32 = vector.shape_cast %31 : vector<1x4x1280xbf16> to vector<4x1280xbf16>
    %33 = arith.extf %32 : vector<4x1280xbf16> to vector<4x1280xf32>
    %c4_22 = arith.constant 4 : index
    %c0_23 = arith.constant 0 : index
    %c0_24 = arith.constant 0 : index
    %34 = vector.load %arg2[%c4_22, %c0_23, %c0_24] : memref<49x4x1xf32, #tpu.memory_space<vmem>>, vector<1x4x1xf32>
    %35 = vector.shape_cast %34 : vector<1x4x1xf32> to vector<4x1xf32>
    %36 = vector.broadcast %35 : vector<4x1xf32> to vector<4x1280xf32>
    %37 = arith.mulf %33, %36 : vector<4x1280xf32>
    %38 = arith.addf %30, %37 : vector<4x1280xf32>
    %c0_25 = arith.constant 0 : index
    %c0_26 = arith.constant 0 : index
    %c5 = arith.constant 5 : index
    %39 = vector.load %arg1[%c0_25, %c0_26, %c5] : memref<1x4x1536xbf16, #tpu.memory_space<vmem>>, vector<1x4x1280xbf16>
    %40 = vector.shape_cast %39 : vector<1x4x1280xbf16> to vector<4x1280xbf16>
    %41 = arith.extf %40 : vector<4x1280xbf16> to vector<4x1280xf32>
    %c5_27 = arith.constant 5 : index
    %c0_28 = arith.constant 0 : index
    %c0_29 = arith.constant 0 : index
    %42 = vector.load %arg2[%c5_27, %c0_28, %c0_29] : memref<49x4x1xf32, #tpu.memory_space<vmem>>, vector<1x4x1xf32>
    %43 = vector.shape_cast %42 : vector<1x4x1xf32> to vector<4x1xf32>
    %44 = vector.broadcast %43 : vector<4x1xf32> to vector<4x1280xf32>
    %45 = arith.mulf %41, %44 : vector<4x1280xf32>
    %46 = arith.addf %38, %45 : vector<4x1280xf32>
    %c0_30 = arith.constant 0 : index
    %c0_31 = arith.constant 0 : index
    %c6 = arith.constant 6 : index
    %47 = vector.load %arg1[%c0_30, %c0_31, %c6] : memref<1x4x1536xbf16, #tpu.memory_space<vmem>>, vector<1x4x1280xbf16>
    %48 = vector.shape_cast %47 : vector<1x4x1280xbf16> to vector<4x1280xbf16>
    %49 = arith.extf %48 : vector<4x1280xbf16> to vector<4x1280xf32>
    %c6_32 = arith.constant 6 : index
    %c0_33 = arith.constant 0 : index
    %c0_34 = arith.constant 0 : index
    %50 = vector.load %arg2[%c6_32, %c0_33, %c0_34] : memref<49x4x1xf32, #tpu.memory_space<vmem>>, vector<1x4x1xf32>
    %51 = vector.shape_cast %50 : vector<1x4x1xf32> to vector<4x1xf32>
    %52 = vector.broadcast %51 : vector<4x1xf32> to vector<4x1280xf32>
    %53 = arith.mulf %49, %52 : vector<4x1280xf32>
    %54 = arith.addf %46, %53 : vector<4x1280xf32>
    %c0_35 = arith.constant 0 : index
    %c0_36 = arith.constant 0 : index
    %c38 = arith.constant 38 : index
    %55 = vector.load %arg1[%c0_35, %c0_36, %c38] : memref<1x4x1536xbf16, #tpu.memory_space<vmem>>, vector<1x4x1280xbf16>
    %56 = vector.shape_cast %55 : vector<1x4x1280xbf16> to vector<4x1280xbf16>
    %57 = arith.extf %56 : vector<4x1280xbf16> to vector<4x1280xf32>
    %c7 = arith.constant 7 : index
    %c0_37 = arith.constant 0 : index
    %c0_38 = arith.constant 0 : index
    %58 = vector.load %arg2[%c7, %c0_37, %c0_38] : memref<49x4x1xf32, #tpu.memory_space<vmem>>, vector<1x4x1xf32>
    %59 = vector.shape_cast %58 : vector<1x4x1xf32> to vector<4x1xf32>
    %60 = vector.broadcast %59 : vector<4x1xf32> to vector<4x1280xf32>
    %61 = arith.mulf %57, %60 : vector<4x1280xf32>
    %62 = arith.addf %54, %61 : vector<4x1280xf32>
    %c0_39 = arith.constant 0 : index
    %c0_40 = arith.constant 0 : index
    %c39 = arith.constant 39 : index
    %63 = vector.load %arg1[%c0_39, %c0_40, %c39] : memref<1x4x1536xbf16, #tpu.memory_space<vmem>>, vector<1x4x1280xbf16>
    %64 = vector.shape_cast %63 : vector<1x4x1280xbf16> to vector<4x1280xbf16>
    %65 = arith.extf %64 : vector<4x1280xbf16> to vector<4x1280xf32>
    %c8 = arith.constant 8 : index
    %c0_41 = arith.constant 0 : index
    %c0_42 = arith.constant 0 : index
    %66 = vector.load %arg2[%c8, %c0_41, %c0_42] : memref<49x4x1xf32, #tpu.memory_space<vmem>>, vector<1x4x1xf32>
    %67 = vector.shape_cast %66 : vector<1x4x1xf32> to vector<4x1xf32>
    %68 = vector.broadcast %67 : vector<4x1xf32> to vector<4x1280xf32>
    %69 = arith.mulf %65, %68 : vector<4x1280xf32>
    %70 = arith.addf %62, %69 : vector<4x1280xf32>
    %c0_43 = arith.constant 0 : index
    %c0_44 = arith.constant 0 : index
    %c40 = arith.constant 40 : index
    %71 = vector.load %arg1[%c0_43, %c0_44, %c40] : memref<1x4x1536xbf16, #tpu.memory_space<vmem>>, vector<1x4x1280xbf16>
    %72 = vector.shape_cast %71 : vector<1x4x1280xbf16> to vector<4x1280xbf16>
    %73 = arith.extf %72 : vector<4x1280xbf16> to vector<4x1280xf32>
    %c9 = arith.constant 9 : index
    %c0_45 = arith.constant 0 : index
    %c0_46 = arith.constant 0 : index
    %74 = vector.load %arg2[%c9, %c0_45, %c0_46] : memref<49x4x1xf32, #tpu.memory_space<vmem>>, vector<1x4x1xf32>
    %75 = vector.shape_cast %74 : vector<1x4x1xf32> to vector<4x1xf32>
    %76 = vector.broadcast %75 : vector<4x1xf32> to vector<4x1280xf32>
    %77 = arith.mulf %73, %76 : vector<4x1280xf32>
    %78 = arith.addf %70, %77 : vector<4x1280xf32>
    %c0_47 = arith.constant 0 : index
    %c0_48 = arith.constant 0 : index
    %c41 = arith.constant 41 : index
    %79 = vector.load %arg1[%c0_47, %c0_48, %c41] : memref<1x4x1536xbf16, #tpu.memory_space<vmem>>, vector<1x4x1280xbf16>
    %80 = vector.shape_cast %79 : vector<1x4x1280xbf16> to vector<4x1280xbf16>
    %81 = arith.extf %80 : vector<4x1280xbf16> to vector<4x1280xf32>
    %c10 = arith.constant 10 : index
    %c0_49 = arith.constant 0 : index
    %c0_50 = arith.constant 0 : index
    %82 = vector.load %arg2[%c10, %c0_49, %c0_50] : memref<49x4x1xf32, #tpu.memory_space<vmem>>, vector<1x4x1xf32>
    %83 = vector.shape_cast %82 : vector<1x4x1xf32> to vector<4x1xf32>
    %84 = vector.broadcast %83 : vector<4x1xf32> to vector<4x1280xf32>
    %85 = arith.mulf %81, %84 : vector<4x1280xf32>
    %86 = arith.addf %78, %85 : vector<4x1280xf32>
    %c0_51 = arith.constant 0 : index
    %c0_52 = arith.constant 0 : index
    %c42 = arith.constant 42 : index
    %87 = vector.load %arg1[%c0_51, %c0_52, %c42] : memref<1x4x1536xbf16, #tpu.memory_space<vmem>>, vector<1x4x1280xbf16>
    %88 = vector.shape_cast %87 : vector<1x4x1280xbf16> to vector<4x1280xbf16>
    %89 = arith.extf %88 : vector<4x1280xbf16> to vector<4x1280xf32>
    %c11 = arith.constant 11 : index
    %c0_53 = arith.constant 0 : index
    %c0_54 = arith.constant 0 : index
    %90 = vector.load %arg2[%c11, %c0_53, %c0_54] : memref<49x4x1xf32, #tpu.memory_space<vmem>>, vector<1x4x1xf32>
    %91 = vector.shape_cast %90 : vector<1x4x1xf32> to vector<4x1xf32>
    %92 = vector.broadcast %91 : vector<4x1xf32> to vector<4x1280xf32>
    %93 = arith.mulf %89, %92 : vector<4x1280xf32>
    %94 = arith.addf %86, %93 : vector<4x1280xf32>
    %c0_55 = arith.constant 0 : index
    %c0_56 = arith.constant 0 : index
    %c43 = arith.constant 43 : index
    %95 = vector.load %arg1[%c0_55, %c0_56, %c43] : memref<1x4x1536xbf16, #tpu.memory_space<vmem>>, vector<1x4x1280xbf16>
    %96 = vector.shape_cast %95 : vector<1x4x1280xbf16> to vector<4x1280xbf16>
    %97 = arith.extf %96 : vector<4x1280xbf16> to vector<4x1280xf32>
    %c12 = arith.constant 12 : index
    %c0_57 = arith.constant 0 : index
    %c0_58 = arith.constant 0 : index
    %98 = vector.load %arg2[%c12, %c0_57, %c0_58] : memref<49x4x1xf32, #tpu.memory_space<vmem>>, vector<1x4x1xf32>
    %99 = vector.shape_cast %98 : vector<1x4x1xf32> to vector<4x1xf32>
    %100 = vector.broadcast %99 : vector<4x1xf32> to vector<4x1280xf32>
    %101 = arith.mulf %97, %100 : vector<4x1280xf32>
    %102 = arith.addf %94, %101 : vector<4x1280xf32>
    %c0_59 = arith.constant 0 : index
    %c0_60 = arith.constant 0 : index
    %c44 = arith.constant 44 : index
    %103 = vector.load %arg1[%c0_59, %c0_60, %c44] : memref<1x4x1536xbf16, #tpu.memory_space<vmem>>, vector<1x4x1280xbf16>
    %104 = vector.shape_cast %103 : vector<1x4x1280xbf16> to vector<4x1280xbf16>
    %105 = arith.extf %104 : vector<4x1280xbf16> to vector<4x1280xf32>
    %c13 = arith.constant 13 : index
    %c0_61 = arith.constant 0 : index
    %c0_62 = arith.constant 0 : index
    %106 = vector.load %arg2[%c13, %c0_61, %c0_62] : memref<49x4x1xf32, #tpu.memory_space<vmem>>, vector<1x4x1xf32>
    %107 = vector.shape_cast %106 : vector<1x4x1xf32> to vector<4x1xf32>
    %108 = vector.broadcast %107 : vector<4x1xf32> to vector<4x1280xf32>
    %109 = arith.mulf %105, %108 : vector<4x1280xf32>
    %110 = arith.addf %102, %109 : vector<4x1280xf32>
    %c0_63 = arith.constant 0 : index
    %c0_64 = arith.constant 0 : index
    %c76 = arith.constant 76 : index
    %111 = vector.load %arg1[%c0_63, %c0_64, %c76] : memref<1x4x1536xbf16, #tpu.memory_space<vmem>>, vector<1x4x1280xbf16>
    %112 = vector.shape_cast %111 : vector<1x4x1280xbf16> to vector<4x1280xbf16>
    %113 = arith.extf %112 : vector<4x1280xbf16> to vector<4x1280xf32>
    %c14 = arith.constant 14 : index
    %c0_65 = arith.constant 0 : index
    %c0_66 = arith.constant 0 : index
    %114 = vector.load %arg2[%c14, %c0_65, %c0_66] : memref<49x4x1xf32, #tpu.memory_space<vmem>>, vector<1x4x1xf32>
    %115 = vector.shape_cast %114 : vector<1x4x1xf32> to vector<4x1xf32>
    %116 = vector.broadcast %115 : vector<4x1xf32> to vector<4x1280xf32>
    %117 = arith.mulf %113, %116 : vector<4x1280xf32>
    %118 = arith.addf %110, %117 : vector<4x1280xf32>
    %c0_67 = arith.constant 0 : index
    %c0_68 = arith.constant 0 : index
    %c77 = arith.constant 77 : index
    %119 = vector.load %arg1[%c0_67, %c0_68, %c77] : memref<1x4x1536xbf16, #tpu.memory_space<vmem>>, vector<1x4x1280xbf16>
    %120 = vector.shape_cast %119 : vector<1x4x1280xbf16> to vector<4x1280xbf16>
    %121 = arith.extf %120 : vector<4x1280xbf16> to vector<4x1280xf32>
    %c15 = arith.constant 15 : index
    %c0_69 = arith.constant 0 : index
    %c0_70 = arith.constant 0 : index
    %122 = vector.load %arg2[%c15, %c0_69, %c0_70] : memref<49x4x1xf32, #tpu.memory_space<vmem>>, vector<1x4x1xf32>
    %123 = vector.shape_cast %122 : vector<1x4x1xf32> to vector<4x1xf32>
    %124 = vector.broadcast %123 : vector<4x1xf32> to vector<4x1280xf32>
    %125 = arith.mulf %121, %124 : vector<4x1280xf32>
    %126 = arith.addf %118, %125 : vector<4x1280xf32>
    %c0_71 = arith.constant 0 : index
    %c0_72 = arith.constant 0 : index
    %c78 = arith.constant 78 : index
    %127 = vector.load %arg1[%c0_71, %c0_72, %c78] : memref<1x4x1536xbf16, #tpu.memory_space<vmem>>, vector<1x4x1280xbf16>
    %128 = vector.shape_cast %127 : vector<1x4x1280xbf16> to vector<4x1280xbf16>
    %129 = arith.extf %128 : vector<4x1280xbf16> to vector<4x1280xf32>
    %c16 = arith.constant 16 : index
    %c0_73 = arith.constant 0 : index
    %c0_74 = arith.constant 0 : index
    %130 = vector.load %arg2[%c16, %c0_73, %c0_74] : memref<49x4x1xf32, #tpu.memory_space<vmem>>, vector<1x4x1xf32>
    %131 = vector.shape_cast %130 : vector<1x4x1xf32> to vector<4x1xf32>
    %132 = vector.broadcast %131 : vector<4x1xf32> to vector<4x1280xf32>
    %133 = arith.mulf %129, %132 : vector<4x1280xf32>
    %134 = arith.addf %126, %133 : vector<4x1280xf32>
    %c0_75 = arith.constant 0 : index
    %c0_76 = arith.constant 0 : index
    %c79 = arith.constant 79 : index
    %135 = vector.load %arg1[%c0_75, %c0_76, %c79] : memref<1x4x1536xbf16, #tpu.memory_space<vmem>>, vector<1x4x1280xbf16>
    %136 = vector.shape_cast %135 : vector<1x4x1280xbf16> to vector<4x1280xbf16>
    %137 = arith.extf %136 : vector<4x1280xbf16> to vector<4x1280xf32>
    %c17 = arith.constant 17 : index
    %c0_77 = arith.constant 0 : index
    %c0_78 = arith.constant 0 : index
    %138 = vector.load %arg2[%c17, %c0_77, %c0_78] : memref<49x4x1xf32, #tpu.memory_space<vmem>>, vector<1x4x1xf32>
    %139 = vector.shape_cast %138 : vector<1x4x1xf32> to vector<4x1xf32>
    %140 = vector.broadcast %139 : vector<4x1xf32> to vector<4x1280xf32>
    %141 = arith.mulf %137, %140 : vector<4x1280xf32>
    %142 = arith.addf %134, %141 : vector<4x1280xf32>
    %c0_79 = arith.constant 0 : index
    %c0_80 = arith.constant 0 : index
    %c80 = arith.constant 80 : index
    %143 = vector.load %arg1[%c0_79, %c0_80, %c80] : memref<1x4x1536xbf16, #tpu.memory_space<vmem>>, vector<1x4x1280xbf16>
    %144 = vector.shape_cast %143 : vector<1x4x1280xbf16> to vector<4x1280xbf16>
    %145 = arith.extf %144 : vector<4x1280xbf16> to vector<4x1280xf32>
    %c18 = arith.constant 18 : index
    %c0_81 = arith.constant 0 : index
    %c0_82 = arith.constant 0 : index
    %146 = vector.load %arg2[%c18, %c0_81, %c0_82] : memref<49x4x1xf32, #tpu.memory_space<vmem>>, vector<1x4x1xf32>
    %147 = vector.shape_cast %146 : vector<1x4x1xf32> to vector<4x1xf32>
    %148 = vector.broadcast %147 : vector<4x1xf32> to vector<4x1280xf32>
    %149 = arith.mulf %145, %148 : vector<4x1280xf32>
    %150 = arith.addf %142, %149 : vector<4x1280xf32>
    %c0_83 = arith.constant 0 : index
    %c0_84 = arith.constant 0 : index
    %c81 = arith.constant 81 : index
    %151 = vector.load %arg1[%c0_83, %c0_84, %c81] : memref<1x4x1536xbf16, #tpu.memory_space<vmem>>, vector<1x4x1280xbf16>
    %152 = vector.shape_cast %151 : vector<1x4x1280xbf16> to vector<4x1280xbf16>
    %153 = arith.extf %152 : vector<4x1280xbf16> to vector<4x1280xf32>
    %c19 = arith.constant 19 : index
    %c0_85 = arith.constant 0 : index
    %c0_86 = arith.constant 0 : index
    %154 = vector.load %arg2[%c19, %c0_85, %c0_86] : memref<49x4x1xf32, #tpu.memory_space<vmem>>, vector<1x4x1xf32>
    %155 = vector.shape_cast %154 : vector<1x4x1xf32> to vector<4x1xf32>
    %156 = vector.broadcast %155 : vector<4x1xf32> to vector<4x1280xf32>
    %157 = arith.mulf %153, %156 : vector<4x1280xf32>
    %158 = arith.addf %150, %157 : vector<4x1280xf32>
    %c0_87 = arith.constant 0 : index
    %c0_88 = arith.constant 0 : index
    %c82 = arith.constant 82 : index
    %159 = vector.load %arg1[%c0_87, %c0_88, %c82] : memref<1x4x1536xbf16, #tpu.memory_space<vmem>>, vector<1x4x1280xbf16>
    %160 = vector.shape_cast %159 : vector<1x4x1280xbf16> to vector<4x1280xbf16>
    %161 = arith.extf %160 : vector<4x1280xbf16> to vector<4x1280xf32>
    %c20 = arith.constant 20 : index
    %c0_89 = arith.constant 0 : index
    %c0_90 = arith.constant 0 : index
    %162 = vector.load %arg2[%c20, %c0_89, %c0_90] : memref<49x4x1xf32, #tpu.memory_space<vmem>>, vector<1x4x1xf32>
    %163 = vector.shape_cast %162 : vector<1x4x1xf32> to vector<4x1xf32>
    %164 = vector.broadcast %163 : vector<4x1xf32> to vector<4x1280xf32>
    %165 = arith.mulf %161, %164 : vector<4x1280xf32>
    %166 = arith.addf %158, %165 : vector<4x1280xf32>
    %c0_91 = arith.constant 0 : index
    %c0_92 = arith.constant 0 : index
    %c114 = arith.constant 114 : index
    %167 = vector.load %arg1[%c0_91, %c0_92, %c114] : memref<1x4x1536xbf16, #tpu.memory_space<vmem>>, vector<1x4x1280xbf16>
    %168 = vector.shape_cast %167 : vector<1x4x1280xbf16> to vector<4x1280xbf16>
    %169 = arith.extf %168 : vector<4x1280xbf16> to vector<4x1280xf32>
    %c21 = arith.constant 21 : index
    %c0_93 = arith.constant 0 : index
    %c0_94 = arith.constant 0 : index
    %170 = vector.load %arg2[%c21, %c0_93, %c0_94] : memref<49x4x1xf32, #tpu.memory_space<vmem>>, vector<1x4x1xf32>
    %171 = vector.shape_cast %170 : vector<1x4x1xf32> to vector<4x1xf32>
    %172 = vector.broadcast %171 : vector<4x1xf32> to vector<4x1280xf32>
    %173 = arith.mulf %169, %172 : vector<4x1280xf32>
    %174 = arith.addf %166, %173 : vector<4x1280xf32>
    %c0_95 = arith.constant 0 : index
    %c0_96 = arith.constant 0 : index
    %c115 = arith.constant 115 : index
    %175 = vector.load %arg1[%c0_95, %c0_96, %c115] : memref<1x4x1536xbf16, #tpu.memory_space<vmem>>, vector<1x4x1280xbf16>
    %176 = vector.shape_cast %175 : vector<1x4x1280xbf16> to vector<4x1280xbf16>
    %177 = arith.extf %176 : vector<4x1280xbf16> to vector<4x1280xf32>
    %c22 = arith.constant 22 : index
    %c0_97 = arith.constant 0 : index
    %c0_98 = arith.constant 0 : index
    %178 = vector.load %arg2[%c22, %c0_97, %c0_98] : memref<49x4x1xf32, #tpu.memory_space<vmem>>, vector<1x4x1xf32>
    %179 = vector.shape_cast %178 : vector<1x4x1xf32> to vector<4x1xf32>
    %180 = vector.broadcast %179 : vector<4x1xf32> to vector<4x1280xf32>
    %181 = arith.mulf %177, %180 : vector<4x1280xf32>
    %182 = arith.addf %174, %181 : vector<4x1280xf32>
    %c0_99 = arith.constant 0 : index
    %c0_100 = arith.constant 0 : index
    %c116 = arith.constant 116 : index
    %183 = vector.load %arg1[%c0_99, %c0_100, %c116] : memref<1x4x1536xbf16, #tpu.memory_space<vmem>>, vector<1x4x1280xbf16>
    %184 = vector.shape_cast %183 : vector<1x4x1280xbf16> to vector<4x1280xbf16>
    %185 = arith.extf %184 : vector<4x1280xbf16> to vector<4x1280xf32>
    %c23 = arith.constant 23 : index
    %c0_101 = arith.constant 0 : index
    %c0_102 = arith.constant 0 : index
    %186 = vector.load %arg2[%c23, %c0_101, %c0_102] : memref<49x4x1xf32, #tpu.memory_space<vmem>>, vector<1x4x1xf32>
    %187 = vector.shape_cast %186 : vector<1x4x1xf32> to vector<4x1xf32>
    %188 = vector.broadcast %187 : vector<4x1xf32> to vector<4x1280xf32>
    %189 = arith.mulf %185, %188 : vector<4x1280xf32>
    %190 = arith.addf %182, %189 : vector<4x1280xf32>
    %c0_103 = arith.constant 0 : index
    %c0_104 = arith.constant 0 : index
    %c117 = arith.constant 117 : index
    %191 = vector.load %arg1[%c0_103, %c0_104, %c117] : memref<1x4x1536xbf16, #tpu.memory_space<vmem>>, vector<1x4x1280xbf16>
    %192 = vector.shape_cast %191 : vector<1x4x1280xbf16> to vector<4x1280xbf16>
    %193 = arith.extf %192 : vector<4x1280xbf16> to vector<4x1280xf32>
    %c24 = arith.constant 24 : index
    %c0_105 = arith.constant 0 : index
    %c0_106 = arith.constant 0 : index
    %194 = vector.load %arg2[%c24, %c0_105, %c0_106] : memref<49x4x1xf32, #tpu.memory_space<vmem>>, vector<1x4x1xf32>
    %195 = vector.shape_cast %194 : vector<1x4x1xf32> to vector<4x1xf32>
    %196 = vector.broadcast %195 : vector<4x1xf32> to vector<4x1280xf32>
    %197 = arith.mulf %193, %196 : vector<4x1280xf32>
    %198 = arith.addf %190, %197 : vector<4x1280xf32>
    %c0_107 = arith.constant 0 : index
    %c0_108 = arith.constant 0 : index
    %c118 = arith.constant 118 : index
    %199 = vector.load %arg1[%c0_107, %c0_108, %c118] : memref<1x4x1536xbf16, #tpu.memory_space<vmem>>, vector<1x4x1280xbf16>
    %200 = vector.shape_cast %199 : vector<1x4x1280xbf16> to vector<4x1280xbf16>
    %201 = arith.extf %200 : vector<4x1280xbf16> to vector<4x1280xf32>
    %c25 = arith.constant 25 : index
    %c0_109 = arith.constant 0 : index
    %c0_110 = arith.constant 0 : index
    %202 = vector.load %arg2[%c25, %c0_109, %c0_110] : memref<49x4x1xf32, #tpu.memory_space<vmem>>, vector<1x4x1xf32>
    %203 = vector.shape_cast %202 : vector<1x4x1xf32> to vector<4x1xf32>
    %204 = vector.broadcast %203 : vector<4x1xf32> to vector<4x1280xf32>
    %205 = arith.mulf %201, %204 : vector<4x1280xf32>
    %206 = arith.addf %198, %205 : vector<4x1280xf32>
    %c0_111 = arith.constant 0 : index
    %c0_112 = arith.constant 0 : index
    %c119 = arith.constant 119 : index
    %207 = vector.load %arg1[%c0_111, %c0_112, %c119] : memref<1x4x1536xbf16, #tpu.memory_space<vmem>>, vector<1x4x1280xbf16>
    %208 = vector.shape_cast %207 : vector<1x4x1280xbf16> to vector<4x1280xbf16>
    %209 = arith.extf %208 : vector<4x1280xbf16> to vector<4x1280xf32>
    %c26 = arith.constant 26 : index
    %c0_113 = arith.constant 0 : index
    %c0_114 = arith.constant 0 : index
    %210 = vector.load %arg2[%c26, %c0_113, %c0_114] : memref<49x4x1xf32, #tpu.memory_space<vmem>>, vector<1x4x1xf32>
    %211 = vector.shape_cast %210 : vector<1x4x1xf32> to vector<4x1xf32>
    %212 = vector.broadcast %211 : vector<4x1xf32> to vector<4x1280xf32>
    %213 = arith.mulf %209, %212 : vector<4x1280xf32>
    %214 = arith.addf %206, %213 : vector<4x1280xf32>
    %c0_115 = arith.constant 0 : index
    %c0_116 = arith.constant 0 : index
    %c120 = arith.constant 120 : index
    %215 = vector.load %arg1[%c0_115, %c0_116, %c120] : memref<1x4x1536xbf16, #tpu.memory_space<vmem>>, vector<1x4x1280xbf16>
    %216 = vector.shape_cast %215 : vector<1x4x1280xbf16> to vector<4x1280xbf16>
    %217 = arith.extf %216 : vector<4x1280xbf16> to vector<4x1280xf32>
    %c27 = arith.constant 27 : index
    %c0_117 = arith.constant 0 : index
    %c0_118 = arith.constant 0 : index
    %218 = vector.load %arg2[%c27, %c0_117, %c0_118] : memref<49x4x1xf32, #tpu.memory_space<vmem>>, vector<1x4x1xf32>
    %219 = vector.shape_cast %218 : vector<1x4x1xf32> to vector<4x1xf32>
    %220 = vector.broadcast %219 : vector<4x1xf32> to vector<4x1280xf32>
    %221 = arith.mulf %217, %220 : vector<4x1280xf32>
    %222 = arith.addf %214, %221 : vector<4x1280xf32>
    %c0_119 = arith.constant 0 : index
    %c0_120 = arith.constant 0 : index
    %c152 = arith.constant 152 : index
    %223 = vector.load %arg1[%c0_119, %c0_120, %c152] : memref<1x4x1536xbf16, #tpu.memory_space<vmem>>, vector<1x4x1280xbf16>
    %224 = vector.shape_cast %223 : vector<1x4x1280xbf16> to vector<4x1280xbf16>
    %225 = arith.extf %224 : vector<4x1280xbf16> to vector<4x1280xf32>
    %c28 = arith.constant 28 : index
    %c0_121 = arith.constant 0 : index
    %c0_122 = arith.constant 0 : index
    %226 = vector.load %arg2[%c28, %c0_121, %c0_122] : memref<49x4x1xf32, #tpu.memory_space<vmem>>, vector<1x4x1xf32>
    %227 = vector.shape_cast %226 : vector<1x4x1xf32> to vector<4x1xf32>
    %228 = vector.broadcast %227 : vector<4x1xf32> to vector<4x1280xf32>
    %229 = arith.mulf %225, %228 : vector<4x1280xf32>
    %230 = arith.addf %222, %229 : vector<4x1280xf32>
    %c0_123 = arith.constant 0 : index
    %c0_124 = arith.constant 0 : index
    %c153 = arith.constant 153 : index
    %231 = vector.load %arg1[%c0_123, %c0_124, %c153] : memref<1x4x1536xbf16, #tpu.memory_space<vmem>>, vector<1x4x1280xbf16>
    %232 = vector.shape_cast %231 : vector<1x4x1280xbf16> to vector<4x1280xbf16>
    %233 = arith.extf %232 : vector<4x1280xbf16> to vector<4x1280xf32>
    %c29 = arith.constant 29 : index
    %c0_125 = arith.constant 0 : index
    %c0_126 = arith.constant 0 : index
    %234 = vector.load %arg2[%c29, %c0_125, %c0_126] : memref<49x4x1xf32, #tpu.memory_space<vmem>>, vector<1x4x1xf32>
    %235 = vector.shape_cast %234 : vector<1x4x1xf32> to vector<4x1xf32>
    %236 = vector.broadcast %235 : vector<4x1xf32> to vector<4x1280xf32>
    %237 = arith.mulf %233, %236 : vector<4x1280xf32>
    %238 = arith.addf %230, %237 : vector<4x1280xf32>
    %c0_127 = arith.constant 0 : index
    %c0_128 = arith.constant 0 : index
    %c154 = arith.constant 154 : index
    %239 = vector.load %arg1[%c0_127, %c0_128, %c154] : memref<1x4x1536xbf16, #tpu.memory_space<vmem>>, vector<1x4x1280xbf16>
    %240 = vector.shape_cast %239 : vector<1x4x1280xbf16> to vector<4x1280xbf16>
    %241 = arith.extf %240 : vector<4x1280xbf16> to vector<4x1280xf32>
    %c30 = arith.constant 30 : index
    %c0_129 = arith.constant 0 : index
    %c0_130 = arith.constant 0 : index
    %242 = vector.load %arg2[%c30, %c0_129, %c0_130] : memref<49x4x1xf32, #tpu.memory_space<vmem>>, vector<1x4x1xf32>
    %243 = vector.shape_cast %242 : vector<1x4x1xf32> to vector<4x1xf32>
    %244 = vector.broadcast %243 : vector<4x1xf32> to vector<4x1280xf32>
    %245 = arith.mulf %241, %244 : vector<4x1280xf32>
    %246 = arith.addf %238, %245 : vector<4x1280xf32>
    %c0_131 = arith.constant 0 : index
    %c0_132 = arith.constant 0 : index
    %c155 = arith.constant 155 : index
    %247 = vector.load %arg1[%c0_131, %c0_132, %c155] : memref<1x4x1536xbf16, #tpu.memory_space<vmem>>, vector<1x4x1280xbf16>
    %248 = vector.shape_cast %247 : vector<1x4x1280xbf16> to vector<4x1280xbf16>
    %249 = arith.extf %248 : vector<4x1280xbf16> to vector<4x1280xf32>
    %c31 = arith.constant 31 : index
    %c0_133 = arith.constant 0 : index
    %c0_134 = arith.constant 0 : index
    %250 = vector.load %arg2[%c31, %c0_133, %c0_134] : memref<49x4x1xf32, #tpu.memory_space<vmem>>, vector<1x4x1xf32>
    %251 = vector.shape_cast %250 : vector<1x4x1xf32> to vector<4x1xf32>
    %252 = vector.broadcast %251 : vector<4x1xf32> to vector<4x1280xf32>
    %253 = arith.mulf %249, %252 : vector<4x1280xf32>
    %254 = arith.addf %246, %253 : vector<4x1280xf32>
    %c0_135 = arith.constant 0 : index
    %c0_136 = arith.constant 0 : index
    %c156 = arith.constant 156 : index
    %255 = vector.load %arg1[%c0_135, %c0_136, %c156] : memref<1x4x1536xbf16, #tpu.memory_space<vmem>>, vector<1x4x1280xbf16>
    %256 = vector.shape_cast %255 : vector<1x4x1280xbf16> to vector<4x1280xbf16>
    %257 = arith.extf %256 : vector<4x1280xbf16> to vector<4x1280xf32>
    %c32 = arith.constant 32 : index
    %c0_137 = arith.constant 0 : index
    %c0_138 = arith.constant 0 : index
    %258 = vector.load %arg2[%c32, %c0_137, %c0_138] : memref<49x4x1xf32, #tpu.memory_space<vmem>>, vector<1x4x1xf32>
    %259 = vector.shape_cast %258 : vector<1x4x1xf32> to vector<4x1xf32>
    %260 = vector.broadcast %259 : vector<4x1xf32> to vector<4x1280xf32>
    %261 = arith.mulf %257, %260 : vector<4x1280xf32>
    %262 = arith.addf %254, %261 : vector<4x1280xf32>
    %c0_139 = arith.constant 0 : index
    %c0_140 = arith.constant 0 : index
    %c157 = arith.constant 157 : index
    %263 = vector.load %arg1[%c0_139, %c0_140, %c157] : memref<1x4x1536xbf16, #tpu.memory_space<vmem>>, vector<1x4x1280xbf16>
    %264 = vector.shape_cast %263 : vector<1x4x1280xbf16> to vector<4x1280xbf16>
    %265 = arith.extf %264 : vector<4x1280xbf16> to vector<4x1280xf32>
    %c33 = arith.constant 33 : index
    %c0_141 = arith.constant 0 : index
    %c0_142 = arith.constant 0 : index
    %266 = vector.load %arg2[%c33, %c0_141, %c0_142] : memref<49x4x1xf32, #tpu.memory_space<vmem>>, vector<1x4x1xf32>
    %267 = vector.shape_cast %266 : vector<1x4x1xf32> to vector<4x1xf32>
    %268 = vector.broadcast %267 : vector<4x1xf32> to vector<4x1280xf32>
    %269 = arith.mulf %265, %268 : vector<4x1280xf32>
    %270 = arith.addf %262, %269 : vector<4x1280xf32>
    %c0_143 = arith.constant 0 : index
    %c0_144 = arith.constant 0 : index
    %c158 = arith.constant 158 : index
    %271 = vector.load %arg1[%c0_143, %c0_144, %c158] : memref<1x4x1536xbf16, #tpu.memory_space<vmem>>, vector<1x4x1280xbf16>
    %272 = vector.shape_cast %271 : vector<1x4x1280xbf16> to vector<4x1280xbf16>
    %273 = arith.extf %272 : vector<4x1280xbf16> to vector<4x1280xf32>
    %c34 = arith.constant 34 : index
    %c0_145 = arith.constant 0 : index
    %c0_146 = arith.constant 0 : index
    %274 = vector.load %arg2[%c34, %c0_145, %c0_146] : memref<49x4x1xf32, #tpu.memory_space<vmem>>, vector<1x4x1xf32>
    %275 = vector.shape_cast %274 : vector<1x4x1xf32> to vector<4x1xf32>
    %276 = vector.broadcast %275 : vector<4x1xf32> to vector<4x1280xf32>
    %277 = arith.mulf %273, %276 : vector<4x1280xf32>
    %278 = arith.addf %270, %277 : vector<4x1280xf32>
    %c0_147 = arith.constant 0 : index
    %c0_148 = arith.constant 0 : index
    %c190 = arith.constant 190 : index
    %279 = vector.load %arg1[%c0_147, %c0_148, %c190] : memref<1x4x1536xbf16, #tpu.memory_space<vmem>>, vector<1x4x1280xbf16>
    %280 = vector.shape_cast %279 : vector<1x4x1280xbf16> to vector<4x1280xbf16>
    %281 = arith.extf %280 : vector<4x1280xbf16> to vector<4x1280xf32>
    %c35 = arith.constant 35 : index
    %c0_149 = arith.constant 0 : index
    %c0_150 = arith.constant 0 : index
    %282 = vector.load %arg2[%c35, %c0_149, %c0_150] : memref<49x4x1xf32, #tpu.memory_space<vmem>>, vector<1x4x1xf32>
    %283 = vector.shape_cast %282 : vector<1x4x1xf32> to vector<4x1xf32>
    %284 = vector.broadcast %283 : vector<4x1xf32> to vector<4x1280xf32>
    %285 = arith.mulf %281, %284 : vector<4x1280xf32>
    %286 = arith.addf %278, %285 : vector<4x1280xf32>
    %c0_151 = arith.constant 0 : index
    %c0_152 = arith.constant 0 : index
    %c191 = arith.constant 191 : index
    %287 = vector.load %arg1[%c0_151, %c0_152, %c191] : memref<1x4x1536xbf16, #tpu.memory_space<vmem>>, vector<1x4x1280xbf16>
    %288 = vector.shape_cast %287 : vector<1x4x1280xbf16> to vector<4x1280xbf16>
    %289 = arith.extf %288 : vector<4x1280xbf16> to vector<4x1280xf32>
    %c36 = arith.constant 36 : index
    %c0_153 = arith.constant 0 : index
    %c0_154 = arith.constant 0 : index
    %290 = vector.load %arg2[%c36, %c0_153, %c0_154] : memref<49x4x1xf32, #tpu.memory_space<vmem>>, vector<1x4x1xf32>
    %291 = vector.shape_cast %290 : vector<1x4x1xf32> to vector<4x1xf32>
    %292 = vector.broadcast %291 : vector<4x1xf32> to vector<4x1280xf32>
    %293 = arith.mulf %289, %292 : vector<4x1280xf32>
    %294 = arith.addf %286, %293 : vector<4x1280xf32>
    %c0_155 = arith.constant 0 : index
    %c0_156 = arith.constant 0 : index
    %c192 = arith.constant 192 : index
    %295 = vector.load %arg1[%c0_155, %c0_156, %c192] : memref<1x4x1536xbf16, #tpu.memory_space<vmem>>, vector<1x4x1280xbf16>
    %296 = vector.shape_cast %295 : vector<1x4x1280xbf16> to vector<4x1280xbf16>
    %297 = arith.extf %296 : vector<4x1280xbf16> to vector<4x1280xf32>
    %c37 = arith.constant 37 : index
    %c0_157 = arith.constant 0 : index
    %c0_158 = arith.constant 0 : index
    %298 = vector.load %arg2[%c37, %c0_157, %c0_158] : memref<49x4x1xf32, #tpu.memory_space<vmem>>, vector<1x4x1xf32>
    %299 = vector.shape_cast %298 : vector<1x4x1xf32> to vector<4x1xf32>
    %300 = vector.broadcast %299 : vector<4x1xf32> to vector<4x1280xf32>
    %301 = arith.mulf %297, %300 : vector<4x1280xf32>
    %302 = arith.addf %294, %301 : vector<4x1280xf32>
    %c0_159 = arith.constant 0 : index
    %c0_160 = arith.constant 0 : index
    %c193 = arith.constant 193 : index
    %303 = vector.load %arg1[%c0_159, %c0_160, %c193] : memref<1x4x1536xbf16, #tpu.memory_space<vmem>>, vector<1x4x1280xbf16>
    %304 = vector.shape_cast %303 : vector<1x4x1280xbf16> to vector<4x1280xbf16>
    %305 = arith.extf %304 : vector<4x1280xbf16> to vector<4x1280xf32>
    %c38_161 = arith.constant 38 : index
    %c0_162 = arith.constant 0 : index
    %c0_163 = arith.constant 0 : index
    %306 = vector.load %arg2[%c38_161, %c0_162, %c0_163] : memref<49x4x1xf32, #tpu.memory_space<vmem>>, vector<1x4x1xf32>
    %307 = vector.shape_cast %306 : vector<1x4x1xf32> to vector<4x1xf32>
    %308 = vector.broadcast %307 : vector<4x1xf32> to vector<4x1280xf32>
    %309 = arith.mulf %305, %308 : vector<4x1280xf32>
    %310 = arith.addf %302, %309 : vector<4x1280xf32>
    %c0_164 = arith.constant 0 : index
    %c0_165 = arith.constant 0 : index
    %c194 = arith.constant 194 : index
    %311 = vector.load %arg1[%c0_164, %c0_165, %c194] : memref<1x4x1536xbf16, #tpu.memory_space<vmem>>, vector<1x4x1280xbf16>
    %312 = vector.shape_cast %311 : vector<1x4x1280xbf16> to vector<4x1280xbf16>
    %313 = arith.extf %312 : vector<4x1280xbf16> to vector<4x1280xf32>
    %c39_166 = arith.constant 39 : index
    %c0_167 = arith.constant 0 : index
    %c0_168 = arith.constant 0 : index
    %314 = vector.load %arg2[%c39_166, %c0_167, %c0_168] : memref<49x4x1xf32, #tpu.memory_space<vmem>>, vector<1x4x1xf32>
    %315 = vector.shape_cast %314 : vector<1x4x1xf32> to vector<4x1xf32>
    %316 = vector.broadcast %315 : vector<4x1xf32> to vector<4x1280xf32>
    %317 = arith.mulf %313, %316 : vector<4x1280xf32>
    %318 = arith.addf %310, %317 : vector<4x1280xf32>
    %c0_169 = arith.constant 0 : index
    %c0_170 = arith.constant 0 : index
    %c195 = arith.constant 195 : index
    %319 = vector.load %arg1[%c0_169, %c0_170, %c195] : memref<1x4x1536xbf16, #tpu.memory_space<vmem>>, vector<1x4x1280xbf16>
    %320 = vector.shape_cast %319 : vector<1x4x1280xbf16> to vector<4x1280xbf16>
    %321 = arith.extf %320 : vector<4x1280xbf16> to vector<4x1280xf32>
    %c40_171 = arith.constant 40 : index
    %c0_172 = arith.constant 0 : index
    %c0_173 = arith.constant 0 : index
    %322 = vector.load %arg2[%c40_171, %c0_172, %c0_173] : memref<49x4x1xf32, #tpu.memory_space<vmem>>, vector<1x4x1xf32>
    %323 = vector.shape_cast %322 : vector<1x4x1xf32> to vector<4x1xf32>
    %324 = vector.broadcast %323 : vector<4x1xf32> to vector<4x1280xf32>
    %325 = arith.mulf %321, %324 : vector<4x1280xf32>
    %326 = arith.addf %318, %325 : vector<4x1280xf32>
    %c0_174 = arith.constant 0 : index
    %c0_175 = arith.constant 0 : index
    %c196 = arith.constant 196 : index
    %327 = vector.load %arg1[%c0_174, %c0_175, %c196] : memref<1x4x1536xbf16, #tpu.memory_space<vmem>>, vector<1x4x1280xbf16>
    %328 = vector.shape_cast %327 : vector<1x4x1280xbf16> to vector<4x1280xbf16>
    %329 = arith.extf %328 : vector<4x1280xbf16> to vector<4x1280xf32>
    %c41_176 = arith.constant 41 : index
    %c0_177 = arith.constant 0 : index
    %c0_178 = arith.constant 0 : index
    %330 = vector.load %arg2[%c41_176, %c0_177, %c0_178] : memref<49x4x1xf32, #tpu.memory_space<vmem>>, vector<1x4x1xf32>
    %331 = vector.shape_cast %330 : vector<1x4x1xf32> to vector<4x1xf32>
    %332 = vector.broadcast %331 : vector<4x1xf32> to vector<4x1280xf32>
    %333 = arith.mulf %329, %332 : vector<4x1280xf32>
    %334 = arith.addf %326, %333 : vector<4x1280xf32>
    %c0_179 = arith.constant 0 : index
    %c0_180 = arith.constant 0 : index
    %c228 = arith.constant 228 : index
    %335 = vector.load %arg1[%c0_179, %c0_180, %c228] : memref<1x4x1536xbf16, #tpu.memory_space<vmem>>, vector<1x4x1280xbf16>
    %336 = vector.shape_cast %335 : vector<1x4x1280xbf16> to vector<4x1280xbf16>
    %337 = arith.extf %336 : vector<4x1280xbf16> to vector<4x1280xf32>
    %c42_181 = arith.constant 42 : index
    %c0_182 = arith.constant 0 : index
    %c0_183 = arith.constant 0 : index
    %338 = vector.load %arg2[%c42_181, %c0_182, %c0_183] : memref<49x4x1xf32, #tpu.memory_space<vmem>>, vector<1x4x1xf32>
    %339 = vector.shape_cast %338 : vector<1x4x1xf32> to vector<4x1xf32>
    %340 = vector.broadcast %339 : vector<4x1xf32> to vector<4x1280xf32>
    %341 = arith.mulf %337, %340 : vector<4x1280xf32>
    %342 = arith.addf %334, %341 : vector<4x1280xf32>
    %c0_184 = arith.constant 0 : index
    %c0_185 = arith.constant 0 : index
    %c229 = arith.constant 229 : index
    %343 = vector.load %arg1[%c0_184, %c0_185, %c229] : memref<1x4x1536xbf16, #tpu.memory_space<vmem>>, vector<1x4x1280xbf16>
    %344 = vector.shape_cast %343 : vector<1x4x1280xbf16> to vector<4x1280xbf16>
    %345 = arith.extf %344 : vector<4x1280xbf16> to vector<4x1280xf32>
    %c43_186 = arith.constant 43 : index
    %c0_187 = arith.constant 0 : index
    %c0_188 = arith.constant 0 : index
    %346 = vector.load %arg2[%c43_186, %c0_187, %c0_188] : memref<49x4x1xf32, #tpu.memory_space<vmem>>, vector<1x4x1xf32>
    %347 = vector.shape_cast %346 : vector<1x4x1xf32> to vector<4x1xf32>
    %348 = vector.broadcast %347 : vector<4x1xf32> to vector<4x1280xf32>
    %349 = arith.mulf %345, %348 : vector<4x1280xf32>
    %350 = arith.addf %342, %349 : vector<4x1280xf32>
    %c0_189 = arith.constant 0 : index
    %c0_190 = arith.constant 0 : index
    %c230 = arith.constant 230 : index
    %351 = vector.load %arg1[%c0_189, %c0_190, %c230] : memref<1x4x1536xbf16, #tpu.memory_space<vmem>>, vector<1x4x1280xbf16>
    %352 = vector.shape_cast %351 : vector<1x4x1280xbf16> to vector<4x1280xbf16>
    %353 = arith.extf %352 : vector<4x1280xbf16> to vector<4x1280xf32>
    %c44_191 = arith.constant 44 : index
    %c0_192 = arith.constant 0 : index
    %c0_193 = arith.constant 0 : index
    %354 = vector.load %arg2[%c44_191, %c0_192, %c0_193] : memref<49x4x1xf32, #tpu.memory_space<vmem>>, vector<1x4x1xf32>
    %355 = vector.shape_cast %354 : vector<1x4x1xf32> to vector<4x1xf32>
    %356 = vector.broadcast %355 : vector<4x1xf32> to vector<4x1280xf32>
    %357 = arith.mulf %353, %356 : vector<4x1280xf32>
    %358 = arith.addf %350, %357 : vector<4x1280xf32>
    %c0_194 = arith.constant 0 : index
    %c0_195 = arith.constant 0 : index
    %c231 = arith.constant 231 : index
    %359 = vector.load %arg1[%c0_194, %c0_195, %c231] : memref<1x4x1536xbf16, #tpu.memory_space<vmem>>, vector<1x4x1280xbf16>
    %360 = vector.shape_cast %359 : vector<1x4x1280xbf16> to vector<4x1280xbf16>
    %361 = arith.extf %360 : vector<4x1280xbf16> to vector<4x1280xf32>
    %c45 = arith.constant 45 : index
    %c0_196 = arith.constant 0 : index
    %c0_197 = arith.constant 0 : index
    %362 = vector.load %arg2[%c45, %c0_196, %c0_197] : memref<49x4x1xf32, #tpu.memory_space<vmem>>, vector<1x4x1xf32>
    %363 = vector.shape_cast %362 : vector<1x4x1xf32> to vector<4x1xf32>
    %364 = vector.broadcast %363 : vector<4x1xf32> to vector<4x1280xf32>
    %365 = arith.mulf %361, %364 : vector<4x1280xf32>
    %366 = arith.addf %358, %365 : vector<4x1280xf32>
    %c0_198 = arith.constant 0 : index
    %c0_199 = arith.constant 0 : index
    %c232 = arith.constant 232 : index
    %367 = vector.load %arg1[%c0_198, %c0_199, %c232] : memref<1x4x1536xbf16, #tpu.memory_space<vmem>>, vector<1x4x1280xbf16>
    %368 = vector.shape_cast %367 : vector<1x4x1280xbf16> to vector<4x1280xbf16>
    %369 = arith.extf %368 : vector<4x1280xbf16> to vector<4x1280xf32>
    %c46 = arith.constant 46 : index
    %c0_200 = arith.constant 0 : index
    %c0_201 = arith.constant 0 : index
    %370 = vector.load %arg2[%c46, %c0_200, %c0_201] : memref<49x4x1xf32, #tpu.memory_space<vmem>>, vector<1x4x1xf32>
    %371 = vector.shape_cast %370 : vector<1x4x1xf32> to vector<4x1xf32>
    %372 = vector.broadcast %371 : vector<4x1xf32> to vector<4x1280xf32>
    %373 = arith.mulf %369, %372 : vector<4x1280xf32>
    %374 = arith.addf %366, %373 : vector<4x1280xf32>
    %c0_202 = arith.constant 0 : index
    %c0_203 = arith.constant 0 : index
    %c233 = arith.constant 233 : index
    %375 = vector.load %arg1[%c0_202, %c0_203, %c233] : memref<1x4x1536xbf16, #tpu.memory_space<vmem>>, vector<1x4x1280xbf16>
    %376 = vector.shape_cast %375 : vector<1x4x1280xbf16> to vector<4x1280xbf16>
    %377 = arith.extf %376 : vector<4x1280xbf16> to vector<4x1280xf32>
    %c47 = arith.constant 47 : index
    %c0_204 = arith.constant 0 : index
    %c0_205 = arith.constant 0 : index
    %378 = vector.load %arg2[%c47, %c0_204, %c0_205] : memref<49x4x1xf32, #tpu.memory_space<vmem>>, vector<1x4x1xf32>
    %379 = vector.shape_cast %378 : vector<1x4x1xf32> to vector<4x1xf32>
    %380 = vector.broadcast %379 : vector<4x1xf32> to vector<4x1280xf32>
    %381 = arith.mulf %377, %380 : vector<4x1280xf32>
    %382 = arith.addf %374, %381 : vector<4x1280xf32>
    %c0_206 = arith.constant 0 : index
    %c0_207 = arith.constant 0 : index
    %c234 = arith.constant 234 : index
    %383 = vector.load %arg1[%c0_206, %c0_207, %c234] : memref<1x4x1536xbf16, #tpu.memory_space<vmem>>, vector<1x4x1280xbf16>
    %384 = vector.shape_cast %383 : vector<1x4x1280xbf16> to vector<4x1280xbf16>
    %385 = arith.extf %384 : vector<4x1280xbf16> to vector<4x1280xf32>
    %c48 = arith.constant 48 : index
    %c0_208 = arith.constant 0 : index
    %c0_209 = arith.constant 0 : index
    %386 = vector.load %arg2[%c48, %c0_208, %c0_209] : memref<49x4x1xf32, #tpu.memory_space<vmem>>, vector<1x4x1xf32>
    %387 = vector.shape_cast %386 : vector<1x4x1xf32> to vector<4x1xf32>
    %388 = vector.broadcast %387 : vector<4x1xf32> to vector<4x1280xf32>
    %389 = arith.mulf %385, %388 : vector<4x1280xf32>
    %390 = arith.addf %382, %389 : vector<4x1280xf32>
    %cst = arith.constant dense<0.000000e+00> : vector<1280xf32>
    %391 = vector.multi_reduction <add>, %390, %cst [0] : vector<4x1280xf32> to vector<1280xf32>
    %392 = vector.shape_cast %391 : vector<1280xf32> to vector<1x1280xf32>
    %393 = arith.negf %392 : vector<1x1280xf32>
    %394 = math.exp %393 : vector<1x1280xf32>
    %cst_210 = arith.constant 1.000000e+00 : f32
    %395 = vector.broadcast %cst_210 : f32 to vector<1x1280xf32>
    %396 = arith.addf %395, %394 : vector<1x1280xf32>
    %397 = arith.divf %395, %396 : vector<1x1280xf32>
    %c0_211 = arith.constant 0 : index
    %c0_212 = arith.constant 0 : index
    %c0_213 = arith.constant 0 : index
    %398 = vector.load %arg3[%c0_211, %c0_212, %c0_213] : memref<1x1x1280xf32, #tpu.memory_space<vmem>>, vector<1x1x1280xf32>
    %399 = vector.shape_cast %398 : vector<1x1x1280xf32> to vector<1x1280xf32>
    %400 = vector.shape_cast %397 : vector<1x1280xf32> to vector<1x1x1280xf32>
    tpu.vector_store %arg3[%c0_211, %c0_212, %c0_213], %400 {strides = array<i32>} : memref<1x1x1280xf32, #tpu.memory_space<vmem>>, vector<1x1x1280xf32>,
    return
  }
  func.func @transform_0(%arg0: i32) -> (i32, i32, i32) {
    %c0_i32 = arith.constant 0 : i32
    %c0_i32_0 = arith.constant 0 : i32
    %c0_i32_1 = arith.constant 0 : i32
    return %arg0, %c0_i32, %c0_i32_0 : i32, i32, i32
  }
  func.func @transform_1(%arg0: i32) -> (i32, i32, i32) {
    %c0_i32 = arith.constant 0 : i32
    %c0_i32_0 = arith.constant 0 : i32
    %c0_i32_1 = arith.constant 0 : i32
    %c0_i32_2 = arith.constant 0 : i32
    return %c0_i32, %c0_i32_0, %c0_i32_1 : i32, i32, i32
  }
  func.func @transform_2(%arg0: i32) -> (i32, i32, i32) {
    %c0_i32 = arith.constant 0 : i32
    %c0_i32_0 = arith.constant 0 : i32
    %c0_i32_1 = arith.constant 0 : i32
    return %arg0, %c0_i32, %c0_i32_0 : i32, i32, i32
  }
}

</mosaic_0001>

<llo_original>
// kernel: mask_generator_r.3
$region0: #{mask_generator_r.3}
  #allocation0 [shape = 'u32[]', space=smem, size = 0x4, offset = 0x4, fixed_abs, tag = 'smem constant byte address 0x4 - core index']
  #allocation1 [shape = 'u32[144,128]{1,0:T(1,128)}', space=vmem, size = 0x12000, scoped, tag = 'internal scratch']
  %s0 = inlined_call_operand.vmem [shape: bf16[2,16,512], index: 0, kind: input, shape index: {}]
  %s1 = inlined_call_operand.vmem [shape: bf16[16,8,16], index: 1, kind: input, shape index: {}]
  %s2 = inlined_call_operand.vmem [shape: f32[8,1], index: 2, kind: input, shape index: {}]
  %s3 = inlined_call_operand.vmem [shape: f32[8,1], index: 3, kind: input, shape index: {}]
  %s4 = inlined_call_operand.vmem [shape: f32[1,384], index: 4, kind: input, shape index: {}]
  %s5 = inlined_call_operand.vmem [shape: f32[2,8,384], index: 5, kind: output, shape index: {}]
  %s6 = sld [smem:[#allocation0]]
  $region53: #{mask_generator_r.3} parent=0
    _
  %s8 = ssub.s32 1, %s6
  %s9 = scalar_select 0, %s8, %s6
  loop: start=0, step=1, limit=4
  $region2: #{mask_generator_r.3} parent=0 // loop_pre_header
    _
  $region3: #{mask_generator_r.3} parent=0 // loop_header
    %s11 = sphi 0, %s15
    %p12 = scmp.ge.s32.totalorder %s11, 4
    %s21 = sphi 0, %s23
    %s24 = sphi 0, %s21
    %s25 = sphi 0, %s24
    %s41 = sphi 0, %s25
    %s45 = sphi 0, %s45
    %s47 = sphi 0, %s45
    %s48 = sphi 0, %s47
    %s62 = sphi 0, %s48
    %s66 = sphi 0, %s66
    %s68 = sphi 0, %s66
    %s69 = sphi 0, %s68
    %s83 = sphi 0, %s69
    %s87 = sphi 0, %s87
    %s89 = sphi 0, %s87
    %s90 = sphi 0, %s89
    %s104 = sphi 0, %s90
    %s108 = sphi 0, %s108
    %s110 = sphi 0, %s108
    %s111 = sphi 0, %s110
    %s125 = sphi 0, %s111
    %s131 = sphi 0, %s133
    %s134 = sphi 0, %s131
    %s135 = sphi 0, %s134
    %s151 = sphi 0, %s135
  $region4: #{mask_generator_r.3} parent=0 // loop_header_branch
    %14 = sbr.rel (%p12) target = $region8
  $region5: #{mask_generator_r.3} parent=0 // loop_body
    %s16 = ssub.s32 %s11, 1
    %s17 = ssub.s32 %s11, 2
    %s18 = sadd.s32 %s11, 1
    %s19 = ssub.s32 %s11, %s18
    %p20 = scmp.eq.s32.totalorder %s19, 0
    %s22 = sadd.s32 %s21, 1
    %s23 = scalar_select %p20, %s21, %s22
    %p26 = pneg %p20
    %p27 = scmp.eq.s32.totalorder %s11, 1
    %p28 = por %p26, %p27
    %p29 = scmp.ne.s32.totalorder %s21, %s24
    %p30 = scmp.eq.s32.totalorder %s11, 0
    %p31 = por %p29, %p30
    %p32 = scmp.ne.s32.totalorder %s21, %s24
    %p33 = scmp.eq.s32.totalorder %s16, 1
    %p34 = por %p32, %p33
    %p35 = scmp.ne.s32.totalorder %s24, %s25
    %p36 = scmp.eq.s32.totalorder %s16, 0
    %p37 = por %p35, %p36
    %p38 = scmp.ne.s32.totalorder %s24, %s25
    %p39 = scmp.eq.s32.totalorder %s17, 1
    %p40 = por %p38, %p39
    %p42 = scmp.ne.s32.totalorder %s25, %s41
    %p43 = scmp.eq.s32.totalorder %s17, 0
    %p44 = por %p42, %p43
    %s46 = sadd.s32 %s45, 1
    %p49 = scmp.eq.s32.totalorder %s11, 1
    %p50 = scmp.ne.s32.totalorder %s45, %s47
    %p51 = scmp.eq.s32.totalorder %s11, 0
    %p52 = por %p50, %p51
    %p53 = scmp.ne.s32.totalorder %s45, %s47
    %p54 = scmp.eq.s32.totalorder %s16, 1
    %p55 = por %p53, %p54
    %p56 = scmp.ne.s32.totalorder %s47, %s48
    %p57 = scmp.eq.s32.totalorder %s16, 0
    %p58 = por %p56, %p57
    %p59 = scmp.ne.s32.totalorder %s47, %s48
    %p60 = scmp.eq.s32.totalorder %s17, 1
    %p61 = por %p59, %p60
    %p63 = scmp.ne.s32.totalorder %s48, %s62
    %p64 = scmp.eq.s32.totalorder %s17, 0
    %p65 = por %p63, %p64
    %s67 = sadd.s32 %s66, 1
    %p70 = scmp.eq.s32.totalorder %s11, 1
    %p71 = scmp.ne.s32.totalorder %s66, %s68
    %p72 = scmp.eq.s32.totalorder %s11, 0
    %p73 = por %p71, %p72
    %p74 = scmp.ne.s32.totalorder %s66, %s68
    %p75 = scmp.eq.s32.totalorder %s16, 1
    %p76 = por %p74, %p75
    %p77 = scmp.ne.s32.totalorder %s68, %s69
    %p78 = scmp.eq.s32.totalorder %s16, 0
    %p79 = por %p77, %p78
    %p80 = scmp.ne.s32.totalorder %s68, %s69
    %p81 = scmp.eq.s32.totalorder %s17, 1
    %p82 = por %p80, %p81
    %p84 = scmp.ne.s32.totalorder %s69, %s83
    %p85 = scmp.eq.s32.totalorder %s17, 0
    %p86 = por %p84, %p85
    %s88 = sadd.s32 %s87, 1
    %p91 = scmp.eq.s32.totalorder %s11, 1
    %p92 = scmp.ne.s32.totalorder %s87, %s89
    %p93 = scmp.eq.s32.totalorder %s11, 0
    %p94 = por %p92, %p93
    %p95 = scmp.ne.s32.totalorder %s87, %s89
    %p96 = scmp.eq.s32.totalorder %s16, 1
    %p97 = por %p95, %p96
    %p98 = scmp.ne.s32.totalorder %s89, %s90
    %p99 = scmp.eq.s32.totalorder %s16, 0
    %p100 = por %p98, %p99
    %p101 = scmp.ne.s32.totalorder %s89, %s90
    %p102 = scmp.eq.s32.totalorder %s17, 1
    %p103 = por %p101, %p102
    %p105 = scmp.ne.s32.totalorder %s90, %s104
    %p106 = scmp.eq.s32.totalorder %s17, 0
    %p107 = por %p105, %p106
    %s109 = sadd.s32 %s108, 1
    %p112 = scmp.eq.s32.totalorder %s11, 1
    %p113 = scmp.ne.s32.totalorder %s108, %s110
    %p114 = scmp.eq.s32.totalorder %s11, 0
    %p115 = por %p113, %p114
    %p116 = scmp.ne.s32.totalorder %s108, %s110
    %p117 = scmp.eq.s32.totalorder %s16, 1
    %p118 = por %p116, %p117
    %p119 = scmp.ne.s32.totalorder %s110, %s111
    %p120 = scmp.eq.s32.totalorder %s16, 0
    %p121 = por %p119, %p120
    %p122 = scmp.ne.s32.totalorder %s110, %s111
    %p123 = scmp.eq.s32.totalorder %s17, 1
    %p124 = por %p122, %p123
    %p126 = scmp.ne.s32.totalorder %s111, %s125
    %p127 = scmp.eq.s32.totalorder %s17, 0
    %p128 = por %p126, %p127
    %s129 = ssub.s32 %s11, %s18
    %p130 = scmp.eq.s32.totalorder %s129, 0
    %s132 = sadd.s32 %s131, 1
    %s133 = scalar_select %p130, %s131, %s132
    %p136 = pneg %p130
    %p137 = scmp.eq.s32.totalorder %s11, 1
    %p138 = por %p136, %p137
    %p139 = scmp.ne.s32.totalorder %s131, %s134
    %p140 = scmp.eq.s32.totalorder %s11, 0
    %p141 = por %p139, %p140
    %p142 = scmp.ne.s32.totalorder %s131, %s134
    %p143 = scmp.eq.s32.totalorder %s16, 1
    %p144 = por %p142, %p143
    %p145 = scmp.ne.s32.totalorder %s134, %s135
    %p146 = scmp.eq.s32.totalorder %s16, 0
    %p147 = por %p145, %p146
    %p148 = scmp.ne.s32.totalorder %s134, %s135
    %p149 = scmp.eq.s32.totalorder %s17, 1
    %p150 = por %p148, %p149
    %p152 = scmp.ne.s32.totalorder %s135, %s151
    %p153 = scmp.eq.s32.totalorder %s17, 0
    %p154 = por %p152, %p153
    %p155 = scmp.le.s32.totalorder 1, %s11
    %p156 = scmp.lt.s32.totalorder %s11, 3
    %p157 = pnand %p155, %p156
    %p158 = pneg %p157
    // Predicated region
    $region9: #{mask_generator_r.3} parent=5 // pred_check
      _
    $region10: #{mask_generator_r.3} parent=5 // pred_check_branch
      %160 = sbr.rel (%p157) target = $region12
    $region11: #{mask_generator_r.3} parent=5 // pred_region
      %s161 = ssub.s32 %s11, 1
      // Predicated region
      $region13: #{mask_generator_r.3} parent=11 // pred_check
        %p162 = pneg %p58
      $region14: #{mask_generator_r.3} parent=11 // pred_check_branch
        %164 = sbr.rel (%p162) target = $region16
      $region15: #{mask_generator_r.3} parent=11 // pred_region
        _
      $region16: #{mask_generator_r.3} parent=11 // pred_fallthru
        _
      // Predicated region
      $region17: #{mask_generator_r.3} parent=11 // pred_check
        %p165 = pneg %p79
      $region18: #{mask_generator_r.3} parent=11 // pred_check_branch
        %167 = sbr.rel (%p165) target = $region20
      $region19: #{mask_generator_r.3} parent=11 // pred_region
        _
      $region20: #{mask_generator_r.3} parent=11 // pred_fallthru
        _
      // Predicated region
      $region21: #{mask_generator_r.3} parent=11 // pred_check
        %p168 = pneg %p100
      $region22: #{mask_generator_r.3} parent=11 // pred_check_branch
        %170 = sbr.rel (%p168) target = $region24
      $region23: #{mask_generator_r.3} parent=11 // pred_region
        _
      $region24: #{mask_generator_r.3} parent=11 // pred_fallthru
        _
      // Predicated region
      $region25: #{mask_generator_r.3} parent=11 // pred_check
        %p171 = pneg %p121
      $region26: #{mask_generator_r.3} parent=11 // pred_check_branch
        %173 = sbr.rel (%p171) target = $region28
      $region27: #{mask_generator_r.3} parent=11 // pred_region
        _
      $region28: #{mask_generator_r.3} parent=11 // pred_fallthru
        _
    $region12: #{mask_generator_r.3} parent=5 // pred_fallthru
      _
    %p174 = scmp.lt.s32.totalorder %s11, 2
    // Predicated region
    $region29: #{mask_generator_r.3} parent=5 // pred_check
      %p175 = pneg %p174
    $region30: #{mask_generator_r.3} parent=5 // pred_check_branch
      %177 = sbr.rel (%p175) target = $region32
    $region31: #{mask_generator_r.3} parent=5 // pred_region
      // Predicated region
      $region33: #{mask_generator_r.3} parent=31 // pred_check
        %p178 = pneg %p31
      $region34: #{mask_generator_r.3} parent=31 // pred_check_branch
        %180 = sbr.rel (%p178) target = $region36
      $region35: #{mask_generator_r.3} parent=31 // pred_region
        %p181 = scmp.lt.s32.totalorder %s11, 1
        %s182 = scalar_select %p181, %s11, 1
        %s183 = smul.addr %s182, 8
        %s184 = smul.addr %s183, 4
        %s185 = scalar_lea.vmem %s0, %s184
      $region36: #{mask_generator_r.3} parent=31 // pred_fallthru
        _
    $region32: #{mask_generator_r.3} parent=5 // pred_fallthru
      _
    %p186 = scmp.le.s32.totalorder 1, %s11
    %p187 = scmp.lt.s32.totalorder %s11, 3
    %p188 = pnand %p186, %p187
    %p189 = pneg %p188
    // Predicated region
    $region37: #{mask_generator_r.3} parent=5 // pred_check
      _
    $region38: #{mask_generator_r.3} parent=5 // pred_check_branch
      %191 = sbr.rel (%p188) target = $region40
    $region39: #{mask_generator_r.3} parent=5 // pred_region
      %s192 = ssub.s32 %s11, 1
      %p193 = scmp.lt.s32.totalorder %s16, 1
      %s194 = scalar_select %p193, %s16, 1
      %s195 = smul.addr %s194, 8
      %s196 = smul.addr %s195, 4
      %s197 = scalar_lea.vmem %s0, %s196
      %p198 = pneg %p37
      %p199 = pneg %p34
      %p200 = pneg %p58
      %p201 = pneg %p55
      %p202 = pneg %p79
      %p203 = pneg %p76
      %p204 = pneg %p100
      %p205 = pneg %p97
      %p206 = pneg %p121
      %p207 = pneg %p118
      %p208 = pneg %p147
      %p209 = pneg %p144
      %p210 = scmp.lt.s32.totalorder %s16, 1
      %s211 = scalar_select %p210, %s16, 1
      %s212 = smul.addr %s211, 3
      %s213 = smul.addr %s212, 8
      %s214 = scalar_lea.vmem %s5, %s213
      %p215 = scmp.lt.s32.totalorder %s16, 1
      %s216 = scalar_select %p215, %s16, 1
      %s217 = smul.addr %s216, 8
      %s218 = smul.addr %s217, 4
      %s219 = scalar_lea.vmem %s0, %s218
      %p220 = scmp.lt.s32.totalorder %s16, 1
      %s221 = scalar_select %p220, %s16, 1
      %s222 = smul.addr %s221, 3
      %s223 = smul.addr %s222, 8
      %s224 = scalar_lea.vmem %s5, %s223
      %v226 = vld [vmem:[%s1] sm:$0xf]
      %v227 = vld [vmem:[%s219] sm:$0xff]
      %v228 = vld [vmem:[%s219 + $0x8] sm:$0xf]
      %v229 = vld [vmem:[%s219 + $0x10] sm:$0xff]
      %v230 = vld [vmem:[%s219 + $0x18] sm:$0xf]
      %s231 = scalar_lea.vmem %s1, 4
      %v232 = vld [vmem:[%s231] sm:$0xf]
      %v233 = vld [vmem:[%s219] sm:$0xff]
      %v234 = vld [vmem:[%s219 + $0x8] sm:$0xff]
      %v235 = vld [vmem:[%s219 + $0x10] sm:$0xff]
      %v236 = vld [vmem:[%s219 + $0x18] sm:$0xff]
      %v241 = vunpack.c.l.b16 %v233
      %v242 = vunpack.c.h.b16 %v233
      %v243 = vunpack.c.l.b16 %v234
      %v244 = vunpack.c.h.b16 %v234
      %v245 = vunpack.c.l.b16 %v235
      %v246 = vunpack.c.h.b16 %v235
      %v247 = vunpack.c.l.b16 %v236
      %v248 = vunpack.c.h.b16 %v236
      %v249 = vpack.c.b16 %v245, %v241
      %v250 = vpack.c.b16 %v246, %v242
      %v251 = vpack.c.b16 %v247, %v243
      %v252 = vpack.c.b16 %v248, %v244
      %253 = vrot.lane.b32.xlu0 %v249, 127
      %v254 = vpop.permute.xlu0 %253
      %255 = vrot.lane.b32.xlu0 %v250, 127
      %v256 = vpop.permute.xlu0 %255
      %257 = vrot.lane.b32.xlu0 %v251, 127
      %v258 = vpop.permute.xlu0 %257
      %259 = vrot.lane.b32.xlu0 %v252, 127
      %v260 = vpop.permute.xlu0 %259
      %vm261 = vcmask 1039360
      %v262 = vsel %vm261, %v254, %v256
      %v263 = vsel %vm261, %v256, %v258
      %v264 = vsel %vm261, %v258, %v260
      %vm268 = vcmask 130048
      %v270 = vsel %vm268, %v232, 0
      %272 = vmatprep.subr.bf16.mxu0 0
      %273 = vmatpush1.bf16.msra.mxu0 0
      %274 = vmatprep.subr.bf16.mxu0 0
      %275 = vmatpush1.bf16.msra.mxu0 0
      %276 = vmatprep.subr.bf16.mxu0 0
      %277 = vmatpush1.bf16.msra.mxu0 0
      %278 = vmatprep.subr.bf16.mxu0 0
      %279 = vmatpush1.bf16.msra.mxu0 0
      %280 = vmatprep.subr.bf16.mxu0 0
      %281 = vmatpush1.bf16.msra.mxu0 0
      %282 = vmatprep.subr.bf16.mxu0 0
      %283 = vmatpush1.bf16.msra.mxu0 0
      %284 = vmatprep.subr.bf16.mxu0 0
      %285 = vmatpush1.bf16.msra.mxu0 0
      %286 = vmatprep.subr.bf16.mxu0 %v263
      %287 = vmatpush1.bf16.msra.mxu0 %v262
      %288 = vmatprep.subr.bf16.mxu0 0
      %289 = vmatpush2.bf16.msra.mxu0 0
      %290 = vmatprep.subr.bf16.mxu0 0
      %291 = vmatpush2.bf16.msra.mxu0 0
      %292 = vmatprep.subr.bf16.mxu0 0
      %293 = vmatpush2.bf16.msra.mxu0 0
      %294 = vmatprep.subr.bf16.mxu0 0
      %295 = vmatpush2.bf16.msra.mxu0 0
      %296 = vmatprep.subr.bf16.mxu0 0
      %297 = vmatpush2.bf16.msra.mxu0 0
      %298 = vmatprep.subr.bf16.mxu0 0
      %299 = vmatpush2.bf16.msra.mxu0 0
      %300 = vmatprep.subr.bf16.mxu0 0
      %301 = vmatpush2.bf16.msra.mxu0 0
      %302 = vmatprep.subr.bf16.mxu0 0
      %303 = vmatpush2.bf16.msra.mxu0 0
      %304 = vmatprep.mubr.bf16.mxu0 0
      %305 = vmatmul.mubr.bf16.gmra.mxu0 %v270
      %v306 = vpop.f32.mrf.mxu0
      %v307 = vadd.f32 0.0, %v306
      %v308 = vpop.f32.mrf.mxu0
      %v309 = vadd.f32 0.0, %v308
      %v310 = vpop.f32.mrf.mxu0
      %v311 = vpop.f32.mrf.mxu0
      %312 = vdwg.mxu0
      %313 = vmatprep.subr.bf16.mxu0 0
      %314 = vmatpush1.bf16.msra.mxu0 0
      %315 = vmatprep.subr.bf16.mxu0 0
      %316 = vmatpush1.bf16.msra.mxu0 0
      %317 = vmatprep.subr.bf16.mxu0 0
      %318 = vmatpush1.bf16.msra.mxu0 0
      %319 = vmatprep.subr.bf16.mxu0 0
      %320 = vmatpush1.bf16.msra.mxu0 0
      %321 = vmatprep.subr.bf16.mxu0 0
      %322 = vmatpush1.bf16.msra.mxu0 0
      %323 = vmatprep.subr.bf16.mxu0 0
      %324 = vmatpush1.bf16.msra.mxu0 0
      %325 = vmatprep.subr.bf16.mxu0 0
      %326 = vmatpush1.bf16.msra.mxu0 0
      %327 = vmatprep.subr.bf16.mxu0 0
      %328 = vmatpush1.bf16.msra.mxu0 %v264
      %329 = vmatprep.subr.bf16.mxu0 0
      %330 = vmatpush2.bf16.msra.mxu0 0
      %331 = vmatprep.subr.bf16.mxu0 0
      %332 = vmatpush2.bf16.msra.mxu0 0
      %333 = vmatprep.subr.bf16.mxu0 0
      %334 = vmatpush2.bf16.msra.mxu0 0
      %335 = vmatprep.subr.bf16.mxu0 0
      %336 = vmatpush2.bf16.msra.mxu0 0
      %337 = vmatprep.subr.bf16.mxu0 0
      %338 = vmatpush2.bf16.msra.mxu0 0
      %339 = vmatprep.subr.bf16.mxu0 0
      %340 = vmatpush2.bf16.msra.mxu0 0
      %341 = vmatprep.subr.bf16.mxu0 0
      %342 = vmatpush2.bf16.msra.mxu0 0
      %343 = vmatprep.subr.bf16.mxu0 0
      %344 = vmatpush2.bf16.msra.mxu0 0
      %345 = vmatprep.mubr.bf16.mxu0 0
      %346 = vmatmul.mubr.bf16.gmra.mxu0 %v270
      %v347 = vpop.f32.mrf.mxu0
      %v348 = vadd.f32 0.0, %v347
      %v349 = vpop.f32.mrf.mxu0
      %v350 = vpop.f32.mrf.mxu0
      %v351 = vpop.f32.mrf.mxu0
      %352 = vdwg.mxu0
      %v357 = vunpack.c.l.b16 %v227
      %v358 = vunpack.c.h.b16 %v227
      %v359 = vunpack.c.l.b16 %v228
      %v360 = vunpack.c.l.b16 %v229
      %v361 = vunpack.c.h.b16 %v229
      %v362 = vunpack.c.l.b16 %v230
      %v363 = vpack.c.b16 %v360, %v357
      %v364 = vpack.c.b16 %v361, %v358
      %v365 = vpack.c.b16 %v362, %v359
      %v370 = vsel %vm268, %v226, 0
      %372 = vmatprep.subr.bf16.mxu0 0
      %373 = vmatpush1.bf16.msra.mxu0 0
      %374 = vmatprep.subr.bf16.mxu0 0
      %375 = vmatpush1.bf16.msra.mxu0 0
      %376 = vmatprep.subr.bf16.mxu0 0
      %377 = vmatpush1.bf16.msra.mxu0 0
      %378 = vmatprep.subr.bf16.mxu0 0
      %379 = vmatpush1.bf16.msra.mxu0 0
      %380 = vmatprep.subr.bf16.mxu0 0
      %381 = vmatpush1.bf16.msra.mxu0 0
      %382 = vmatprep.subr.bf16.mxu0 0
      %383 = vmatpush1.bf16.msra.mxu0 0
      %384 = vmatprep.subr.bf16.mxu0 0
      %385 = vmatpush1.bf16.msra.mxu0 0
      %386 = vmatprep.subr.bf16.mxu0 %v364
      %387 = vmatpush1.bf16.msra.mxu0 %v363
      %388 = vmatprep.subr.bf16.mxu0 0
      %389 = vmatpush2.bf16.msra.mxu0 0
      %390 = vmatprep.subr.bf16.mxu0 0
      %391 = vmatpush2.bf16.msra.mxu0 0
      %392 = vmatprep.subr.bf16.mxu0 0
      %393 = vmatpush2.bf16.msra.mxu0 0
      %394 = vmatprep.subr.bf16.mxu0 0
      %395 = vmatpush2.bf16.msra.mxu0 0
      %396 = vmatprep.subr.bf16.mxu0 0
      %397 = vmatpush2.bf16.msra.mxu0 0
      %398 = vmatprep.subr.bf16.mxu0 0
      %399 = vmatpush2.bf16.msra.mxu0 0
      %400 = vmatprep.subr.bf16.mxu0 0
      %401 = vmatpush2.bf16.msra.mxu0 0
      %402 = vmatprep.subr.bf16.mxu0 0
      %403 = vmatpush2.bf16.msra.mxu0 0
      %404 = vmatprep.mubr.bf16.mxu0 0
      %405 = vmatmul.mubr.bf16.gmra.mxu0 %v370
      %v406 = vpop.f32.mrf.mxu0
      %v407 = vadd.f32 %v307, %v406
      %v408 = vpop.f32.mrf.mxu0
      %v409 = vadd.f32 %v309, %v408
      %v410 = vpop.f32.mrf.mxu0
      %v411 = vpop.f32.mrf.mxu0
      %412 = vdwg.mxu0
      %413 = vmatprep.subr.bf16.mxu0 0
      %414 = vmatpush1.bf16.msra.mxu0 0
      %415 = vmatprep.subr.bf16.mxu0 0
      %416 = vmatpush1.bf16.msra.mxu0 0
      %417 = vmatprep.subr.bf16.mxu0 0
      %418 = vmatpush1.bf16.msra.mxu0 0
      %419 = vmatprep.subr.bf16.mxu0 0
      %420 = vmatpush1.bf16.msra.mxu0 0
      %421 = vmatprep.subr.bf16.mxu0 0
      %422 = vmatpush1.bf16.msra.mxu0 0
      %423 = vmatprep.subr.bf16.mxu0 0
      %424 = vmatpush1.bf16.msra.mxu0 0
      %425 = vmatprep.subr.bf16.mxu0 0
      %426 = vmatpush1.bf16.msra.mxu0 0
      %427 = vmatprep.subr.bf16.mxu0 0
      %428 = vmatpush1.bf16.msra.mxu0 %v365
      %429 = vmatprep.subr.bf16.mxu0 0
      %430 = vmatpush2.bf16.msra.mxu0 0
      %431 = vmatprep.subr.bf16.mxu0 0
      %432 = vmatpush2.bf16.msra.mxu0 0
      %433 = vmatprep.subr.bf16.mxu0 0
      %434 = vmatpush2.bf16.msra.mxu0 0
      %435 = vmatprep.subr.bf16.mxu0 0
      %436 = vmatpush2.bf16.msra.mxu0 0
      %437 = vmatprep.subr.bf16.mxu0 0
      %438 = vmatpush2.bf16.msra.mxu0 0
      %439 = vmatprep.subr.bf16.mxu0 0
      %440 = vmatpush2.bf16.msra.mxu0 0
      %441 = vmatprep.subr.bf16.mxu0 0
      %442 = vmatpush2.bf16.msra.mxu0 0
      %443 = vmatprep.subr.bf16.mxu0 0
      %444 = vmatpush2.bf16.msra.mxu0 0
      %445 = vmatprep.mubr.bf16.mxu0 0
      %446 = vmatmul.mubr.bf16.gmra.mxu0 %v370
      %v447 = vpop.f32.mrf.mxu0
      %v448 = vadd.f32 %v348, %v447
      %v449 = vpop.f32.mrf.mxu0
      %v450 = vpop.f32.mrf.mxu0
      %v451 = vpop.f32.mrf.mxu0
      %452 = vdwg.mxu0
      %s453 = scalar_lea.vmem %s1, 8
      %v454 = vld [vmem:[%s453] sm:$0xf]
      %455 = vrot.lane.b32.xlu0 %v249, 126
      %v456 = vpop.permute.xlu0 %455
      %457 = vrot.lane.b32.xlu0 %v250, 126
      %v458 = vpop.permute.xlu0 %457
      %459 = vrot.lane.b32.xlu0 %v251, 126
      %v460 = vpop.permute.xlu0 %459
      %461 = vrot.lane.b32.xlu0 %v252, 126
      %v462 = vpop.permute.xlu0 %461
      %vm463 = vcmask 1031168
      %v464 = vsel %vm463, %v456, %v458
      %v465 = vsel %vm463, %v458, %v460
      %v466 = vsel %vm463, %v460, %v462
      %v471 = vsel %vm268, %v454, 0
      %473 = vmatprep.subr.bf16.mxu0 0
      %474 = vmatpush1.bf16.msra.mxu0 0
      %475 = vmatprep.subr.bf16.mxu0 0
      %476 = vmatpush1.bf16.msra.mxu0 0
      %477 = vmatprep.subr.bf16.mxu0 0
      %478 = vmatpush1.bf16.msra.mxu0 0
      %479 = vmatprep.subr.bf16.mxu0 0
      %480 = vmatpush1.bf16.msra.mxu0 0
      %481 = vmatprep.subr.bf16.mxu0 0
      %482 = vmatpush1.bf16.msra.mxu0 0
      %483 = vmatprep.subr.bf16.mxu0 0
      %484 = vmatpush1.bf16.msra.mxu0 0
      %485 = vmatprep.subr.bf16.mxu0 0
      %486 = vmatpush1.bf16.msra.mxu0 0
      %487 = vmatprep.subr.bf16.mxu0 %v465
      %488 = vmatpush1.bf16.msra.mxu0 %v464
      %489 = vmatprep.subr.bf16.mxu0 0
      %490 = vmatpush2.bf16.msra.mxu0 0
      %491 = vmatprep.subr.bf16.mxu0 0
      %492 = vmatpush2.bf16.msra.mxu0 0
      %493 = vmatprep.subr.bf16.mxu0 0
      %494 = vmatpush2.bf16.msra.mxu0 0
      %495 = vmatprep.subr.bf16.mxu0 0
      %496 = vmatpush2.bf16.msra.mxu0 0
      %497 = vmatprep.subr.bf16.mxu0 0
      %498 = vmatpush2.bf16.msra.mxu0 0
      %499 = vmatprep.subr.bf16.mxu0 0
      %500 = vmatpush2.bf16.msra.mxu0 0
      %501 = vmatprep.subr.bf16.mxu0 0
      %502 = vmatpush2.bf16.msra.mxu0 0
      %503 = vmatprep.subr.bf16.mxu0 0
      %504 = vmatpush2.bf16.msra.mxu0 0
      %505 = vmatprep.mubr.bf16.mxu0 0
      %506 = vmatmul.mubr.bf16.gmra.mxu0 %v471
      %v507 = vpop.f32.mrf.mxu0
      %v508 = vadd.f32 0.0, %v507
      %v509 = vpop.f32.mrf.mxu0
      %v510 = vadd.f32 0.0, %v509
      %v511 = vpop.f32.mrf.mxu0
      %v512 = vpop.f32.mrf.mxu0
      %513 = vdwg.mxu0
      %514 = vmatprep.subr.bf16.mxu0 0
      %515 = vmatpush1.bf16.msra.mxu0 0
      %516 = vmatprep.subr.bf16.mxu0 0
      %517 = vmatpush1.bf16.msra.mxu0 0
      %518 = vmatprep.subr.bf16.mxu0 0
      %519 = vmatpush1.bf16.msra.mxu0 0
      %520 = vmatprep.subr.bf16.mxu0 0
      %521 = vmatpush1.bf16.msra.mxu0 0
      %522 = vmatprep.subr.bf16.mxu0 0
      %523 = vmatpush1.bf16.msra.mxu0 0
      %524 = vmatprep.subr.bf16.mxu0 0
      %525 = vmatpush1.bf16.msra.mxu0 0
      %526 = vmatprep.subr.bf16.mxu0 0
      %527 = vmatpush1.bf16.msra.mxu0 0
      %528 = vmatprep.subr.bf16.mxu0 0
      %529 = vmatpush1.bf16.msra.mxu0 %v466
      %530 = vmatprep.subr.bf16.mxu0 0
      %531 = vmatpush2.bf16.msra.mxu0 0
      %532 = vmatprep.subr.bf16.mxu0 0
      %533 = vmatpush2.bf16.msra.mxu0 0
      %534 = vmatprep.subr.bf16.mxu0 0
      %535 = vmatpush2.bf16.msra.mxu0 0
      %536 = vmatprep.subr.bf16.mxu0 0
      %537 = vmatpush2.bf16.msra.mxu0 0
      %538 = vmatprep.subr.bf16.mxu0 0
      %539 = vmatpush2.bf16.msra.mxu0 0
      %540 = vmatprep.subr.bf16.mxu0 0
      %541 = vmatpush2.bf16.msra.mxu0 0
      %542 = vmatprep.subr.bf16.mxu0 0
      %543 = vmatpush2.bf16.msra.mxu0 0
      %544 = vmatprep.subr.bf16.mxu0 0
      %545 = vmatpush2.bf16.msra.mxu0 0
      %546 = vmatprep.mubr.bf16.mxu0 0
      %547 = vmatmul.mubr.bf16.gmra.mxu0 %v471
      %v548 = vpop.f32.mrf.mxu0
      %v549 = vadd.f32 0.0, %v548
      %v550 = vpop.f32.mrf.mxu0
      %v551 = vpop.f32.mrf.mxu0
      %v552 = vpop.f32.mrf.mxu0
      %553 = vdwg.mxu0
      %v554 = vadd.f32 %v407, %v508
      %v555 = vadd.f32 %v409, %v510
      %v556 = vadd.f32 %v448, %v549
      %s557 = scalar_lea.vmem %s1, 12
      %v558 = vld [vmem:[%s557] sm:$0xf]
      %559 = vrot.lane.b32.xlu0 %v249, 125
      %v560 = vpop.permute.xlu0 %559
      %561 = vrot.lane.b32.xlu0 %v250, 125
      %v562 = vpop.permute.xlu0 %561
      %563 = vrot.lane.b32.xlu0 %v251, 125
      %v564 = vpop.permute.xlu0 %563
      %565 = vrot.lane.b32.xlu0 %v252, 125
      %v566 = vpop.permute.xlu0 %565
      %vm567 = vcmask 1022976
      %v568 = vsel %vm567, %v560, %v562
      %v569 = vsel %vm567, %v562, %v564
      %v570 = vsel %vm567, %v564, %v566
      %v575 = vsel %vm268, %v558, 0
      %577 = vmatprep.subr.bf16.mxu0 0
      %578 = vmatpush1.bf16.msra.mxu0 0
      %579 = vmatprep.subr.bf16.mxu0 0
      %580 = vmatpush1.bf16.msra.mxu0 0
      %581 = vmatprep.subr.bf16.mxu0 0
      %582 = vmatpush1.bf16.msra.mxu0 0
      %583 = vmatprep.subr.bf16.mxu0 0
      %584 = vmatpush1.bf16.msra.mxu0 0
      %585 = vmatprep.subr.bf16.mxu0 0
      %586 = vmatpush1.bf16.msra.mxu0 0
      %587 = vmatprep.subr.bf16.mxu0 0
      %588 = vmatpush1.bf16.msra.mxu0 0
      %589 = vmatprep.subr.bf16.mxu0 0
      %590 = vmatpush1.bf16.msra.mxu0 0
      %591 = vmatprep.subr.bf16.mxu0 %v569
      %592 = vmatpush1.bf16.msra.mxu0 %v568
      %593 = vmatprep.subr.bf16.mxu0 0
      %594 = vmatpush2.bf16.msra.mxu0 0
      %595 = vmatprep.subr.bf16.mxu0 0
      %596 = vmatpush2.bf16.msra.mxu0 0
      %597 = vmatprep.subr.bf16.mxu0 0
      %598 = vmatpush2.bf16.msra.mxu0 0
      %599 = vmatprep.subr.bf16.mxu0 0
      %600 = vmatpush2.bf16.msra.mxu0 0
      %601 = vmatprep.subr.bf16.mxu0 0
      %602 = vmatpush2.bf16.msra.mxu0 0
      %603 = vmatprep.subr.bf16.mxu0 0
      %604 = vmatpush2.bf16.msra.mxu0 0
      %605 = vmatprep.subr.bf16.mxu0 0
      %606 = vmatpush2.bf16.msra.mxu0 0
      %607 = vmatprep.subr.bf16.mxu0 0
      %608 = vmatpush2.bf16.msra.mxu0 0
      %609 = vmatprep.mubr.bf16.mxu0 0
      %610 = vmatmul.mubr.bf16.gmra.mxu0 %v575
      %v611 = vpop.f32.mrf.mxu0
      %v612 = vadd.f32 0.0, %v611
      %v613 = vpop.f32.mrf.mxu0
      %v614 = vadd.f32 0.0, %v613
      %v615 = vpop.f32.mrf.mxu0
      %v616 = vpop.f32.mrf.mxu0
      %617 = vdwg.mxu0
      %618 = vmatprep.subr.bf16.mxu0 0
      %619 = vmatpush1.bf16.msra.mxu0 0
      %620 = vmatprep.subr.bf16.mxu0 0
      %621 = vmatpush1.bf16.msra.mxu0 0
      %622 = vmatprep.subr.bf16.mxu0 0
      %623 = vmatpush1.bf16.msra.mxu0 0
      %624 = vmatprep.subr.bf16.mxu0 0
      %625 = vmatpush1.bf16.msra.mxu0 0
      %626 = vmatprep.subr.bf16.mxu0 0
      %627 = vmatpush1.bf16.msra.mxu0 0
      %628 = vmatprep.subr.bf16.mxu0 0
      %629 = vmatpush1.bf16.msra.mxu0 0
      %630 = vmatprep.subr.bf16.mxu0 0
      %631 = vmatpush1.bf16.msra.mxu0 0
      %632 = vmatprep.subr.bf16.mxu0 0
      %633 = vmatpush1.bf16.msra.mxu0 %v570
      %634 = vmatprep.subr.bf16.mxu0 0
      %635 = vmatpush2.bf16.msra.mxu0 0
      %636 = vmatprep.subr.bf16.mxu0 0
      %637 = vmatpush2.bf16.msra.mxu0 0
      %638 = vmatprep.subr.bf16.mxu0 0
      %639 = vmatpush2.bf16.msra.mxu0 0
      %640 = vmatprep.subr.bf16.mxu0 0
      %641 = vmatpush2.bf16.msra.mxu0 0
      %642 = vmatprep.subr.bf16.mxu0 0
      %643 = vmatpush2.bf16.msra.mxu0 0
      %644 = vmatprep.subr.bf16.mxu0 0
      %645 = vmatpush2.bf16.msra.mxu0 0
      %646 = vmatprep.subr.bf16.mxu0 0
      %647 = vmatpush2.bf16.msra.mxu0 0
      %648 = vmatprep.subr.bf16.mxu0 0
      %649 = vmatpush2.bf16.msra.mxu0 0
      %650 = vmatprep.mubr.bf16.mxu0 0
      %651 = vmatmul.mubr.bf16.gmra.mxu0 %v575
      %v652 = vpop.f32.mrf.mxu0
      %v653 = vadd.f32 0.0, %v652
      %v654 = vpop.f32.mrf.mxu0
      %v655 = vpop.f32.mrf.mxu0
      %v656 = vpop.f32.mrf.mxu0
      %657 = vdwg.mxu0
      %v658 = vadd.f32 %v554, %v612
      %v659 = vadd.f32 %v555, %v614
      %v660 = vadd.f32 %v556, %v653
      %s661 = scalar_lea.vmem %s1, 16
      %v662 = vld [vmem:[%s661] sm:$0xf]
      %663 = vrot.lane.b32.xlu0 %v249, 109
      %v664 = vpop.permute.xlu0 %663
      %665 = vrot.lane.b32.xlu0 %v250, 109
      %v666 = vpop.permute.xlu0 %665
      %667 = vrot.lane.b32.xlu0 %v251, 109
      %v668 = vpop.permute.xlu0 %667
      %669 = vrot.lane.b32.xlu0 %v252, 109
      %v670 = vpop.permute.xlu0 %669
      %vm671 = vcmask 891904
      %v672 = vsel %vm671, %v664, %v666
      %v673 = vsel %vm671, %v666, %v668
      %v674 = vsel %vm671, %v668, %v670
      %v679 = vsel %vm268, %v662, 0
      %681 = vmatprep.subr.bf16.mxu0 0
      %682 = vmatpush1.bf16.msra.mxu0 0
      %683 = vmatprep.subr.bf16.mxu0 0
      %684 = vmatpush1.bf16.msra.mxu0 0
      %685 = vmatprep.subr.bf16.mxu0 0
      %686 = vmatpush1.bf16.msra.mxu0 0
      %687 = vmatprep.subr.bf16.mxu0 0
      %688 = vmatpush1.bf16.msra.mxu0 0
      %689 = vmatprep.subr.bf16.mxu0 0
      %690 = vmatpush1.bf16.msra.mxu0 0
      %691 = vmatprep.subr.bf16.mxu0 0
      %692 = vmatpush1.bf16.msra.mxu0 0
      %693 = vmatprep.subr.bf16.mxu0 0
      %694 = vmatpush1.bf16.msra.mxu0 0
      %695 = vmatprep.subr.bf16.mxu0 %v673
      %696 = vmatpush1.bf16.msra.mxu0 %v672
      %697 = vmatprep.subr.bf16.mxu0 0
      %698 = vmatpush2.bf16.msra.mxu0 0
      %699 = vmatprep.subr.bf16.mxu0 0
      %700 = vmatpush2.bf16.msra.mxu0 0
      %701 = vmatprep.subr.bf16.mxu0 0
      %702 = vmatpush2.bf16.msra.mxu0 0
      %703 = vmatprep.subr.bf16.mxu0 0
      %704 = vmatpush2.bf16.msra.mxu0 0
      %705 = vmatprep.subr.bf16.mxu0 0
      %706 = vmatpush2.bf16.msra.mxu0 0
      %707 = vmatprep.subr.bf16.mxu0 0
      %708 = vmatpush2.bf16.msra.mxu0 0
      %709 = vmatprep.subr.bf16.mxu0 0
      %710 = vmatpush2.bf16.msra.mxu0 0
      %711 = vmatprep.subr.bf16.mxu0 0
      %712 = vmatpush2.bf16.msra.mxu0 0
      %713 = vmatprep.mubr.bf16.mxu0 0
      %714 = vmatmul.mubr.bf16.gmra.mxu0 %v679
      %v715 = vpop.f32.mrf.mxu0
      %v716 = vadd.f32 0.0, %v715
      %v717 = vpop.f32.mrf.mxu0
      %v718 = vadd.f32 0.0, %v717
      %v719 = vpop.f32.mrf.mxu0
      %v720 = vpop.f32.mrf.mxu0
      %721 = vdwg.mxu0
      %722 = vmatprep.subr.bf16.mxu0 0
      %723 = vmatpush1.bf16.msra.mxu0 0
      %724 = vmatprep.subr.bf16.mxu0 0
      %725 = vmatpush1.bf16.msra.mxu0 0
      %726 = vmatprep.subr.bf16.mxu0 0
      %727 = vmatpush1.bf16.msra.mxu0 0
      %728 = vmatprep.subr.bf16.mxu0 0
      %729 = vmatpush1.bf16.msra.mxu0 0
      %730 = vmatprep.subr.bf16.mxu0 0
      %731 = vmatpush1.bf16.msra.mxu0 0
      %732 = vmatprep.subr.bf16.mxu0 0
      %733 = vmatpush1.bf16.msra.mxu0 0
      %734 = vmatprep.subr.bf16.mxu0 0
      %735 = vmatpush1.bf16.msra.mxu0 0
      %736 = vmatprep.subr.bf16.mxu0 0
      %737 = vmatpush1.bf16.msra.mxu0 %v674
      %738 = vmatprep.subr.bf16.mxu0 0
      %739 = vmatpush2.bf16.msra.mxu0 0
      %740 = vmatprep.subr.bf16.mxu0 0
      %741 = vmatpush2.bf16.msra.mxu0 0
      %742 = vmatprep.subr.bf16.mxu0 0
      %743 = vmatpush2.bf16.msra.mxu0 0
      %744 = vmatprep.subr.bf16.mxu0 0
      %745 = vmatpush2.bf16.msra.mxu0 0
      %746 = vmatprep.subr.bf16.mxu0 0
      %747 = vmatpush2.bf16.msra.mxu0 0
      %748 = vmatprep.subr.bf16.mxu0 0
      %749 = vmatpush2.bf16.msra.mxu0 0
      %750 = vmatprep.subr.bf16.mxu0 0
      %751 = vmatpush2.bf16.msra.mxu0 0
      %752 = vmatprep.subr.bf16.mxu0 0
      %753 = vmatpush2.bf16.msra.mxu0 0
      %754 = vmatprep.mubr.bf16.mxu0 0
      %755 = vmatmul.mubr.bf16.gmra.mxu0 %v679
      %v756 = vpop.f32.mrf.mxu0
      %v757 = vadd.f32 0.0, %v756
      %v758 = vpop.f32.mrf.mxu0
      %v759 = vpop.f32.mrf.mxu0
      %v760 = vpop.f32.mrf.mxu0
      %761 = vdwg.mxu0
      %v762 = vadd.f32 %v658, %v716
      %v763 = vadd.f32 %v659, %v718
      %v764 = vadd.f32 %v660, %v757
      %s765 = scalar_lea.vmem %s1, 20
      %v766 = vld [vmem:[%s765] sm:$0xf]
      %767 = vrot.lane.b32.xlu0 %v249, 108
      %v768 = vpop.permute.xlu0 %767
      %769 = vrot.lane.b32.xlu0 %v250, 108
      %v770 = vpop.permute.xlu0 %769
      %771 = vrot.lane.b32.xlu0 %v251, 108
      %v772 = vpop.permute.xlu0 %771
      %773 = vrot.lane.b32.xlu0 %v252, 108
      %v774 = vpop.permute.xlu0 %773
      %vm775 = vcmask 883712
      %v776 = vsel %vm775, %v768, %v770
      %v777 = vsel %vm775, %v770, %v772
      %v778 = vsel %vm775, %v772, %v774
      %v783 = vsel %vm268, %v766, 0
      %785 = vmatprep.subr.bf16.mxu0 0
      %786 = vmatpush1.bf16.msra.mxu0 0
      %787 = vmatprep.subr.bf16.mxu0 0
      %788 = vmatpush1.bf16.msra.mxu0 0
      %789 = vmatprep.subr.bf16.mxu0 0
      %790 = vmatpush1.bf16.msra.mxu0 0
      %791 = vmatprep.subr.bf16.mxu0 0
      %792 = vmatpush1.bf16.msra.mxu0 0
      %793 = vmatprep.subr.bf16.mxu0 0
      %794 = vmatpush1.bf16.msra.mxu0 0
      %795 = vmatprep.subr.bf16.mxu0 0
      %796 = vmatpush1.bf16.msra.mxu0 0
      %797 = vmatprep.subr.bf16.mxu0 0
      %798 = vmatpush1.bf16.msra.mxu0 0
      %799 = vmatprep.subr.bf16.mxu0 %v777
      %800 = vmatpush1.bf16.msra.mxu0 %v776
      %801 = vmatprep.subr.bf16.mxu0 0
      %802 = vmatpush2.bf16.msra.mxu0 0
      %803 = vmatprep.subr.bf16.mxu0 0
      %804 = vmatpush2.bf16.msra.mxu0 0
      %805 = vmatprep.subr.bf16.mxu0 0
      %806 = vmatpush2.bf16.msra.mxu0 0
      %807 = vmatprep.subr.bf16.mxu0 0
      %808 = vmatpush2.bf16.msra.mxu0 0
      %809 = vmatprep.subr.bf16.mxu0 0
      %810 = vmatpush2.bf16.msra.mxu0 0
      %811 = vmatprep.subr.bf16.mxu0 0
      %812 = vmatpush2.bf16.msra.mxu0 0
      %813 = vmatprep.subr.bf16.mxu0 0
      %814 = vmatpush2.bf16.msra.mxu0 0
      %815 = vmatprep.subr.bf16.mxu0 0
      %816 = vmatpush2.bf16.msra.mxu0 0
      %817 = vmatprep.mubr.bf16.mxu0 0
      %818 = vmatmul.mubr.bf16.gmra.mxu0 %v783
      %v819 = vpop.f32.mrf.mxu0
      %v820 = vadd.f32 0.0, %v819
      %v821 = vpop.f32.mrf.mxu0
      %v822 = vadd.f32 0.0, %v821
      %v823 = vpop.f32.mrf.mxu0
      %v824 = vpop.f32.mrf.mxu0
      %825 = vdwg.mxu0
      %826 = vmatprep.subr.bf16.mxu0 0
      %827 = vmatpush1.bf16.msra.mxu0 0
      %828 = vmatprep.subr.bf16.mxu0 0
      %829 = vmatpush1.bf16.msra.mxu0 0
      %830 = vmatprep.subr.bf16.mxu0 0
      %831 = vmatpush1.bf16.msra.mxu0 0
      %832 = vmatprep.subr.bf16.mxu0 0
      %833 = vmatpush1.bf16.msra.mxu0 0
      %834 = vmatprep.subr.bf16.mxu0 0
      %835 = vmatpush1.bf16.msra.mxu0 0
      %836 = vmatprep.subr.bf16.mxu0 0
      %837 = vmatpush1.bf16.msra.mxu0 0
      %838 = vmatprep.subr.bf16.mxu0 0
      %839 = vmatpush1.bf16.msra.mxu0 0
      %840 = vmatprep.subr.bf16.mxu0 0
      %841 = vmatpush1.bf16.msra.mxu0 %v778
      %842 = vmatprep.subr.bf16.mxu0 0
      %843 = vmatpush2.bf16.msra.mxu0 0
      %844 = vmatprep.subr.bf16.mxu0 0
      %845 = vmatpush2.bf16.msra.mxu0 0
      %846 = vmatprep.subr.bf16.mxu0 0
      %847 = vmatpush2.bf16.msra.mxu0 0
      %848 = vmatprep.subr.bf16.mxu0 0
      %849 = vmatpush2.bf16.msra.mxu0 0
      %850 = vmatprep.subr.bf16.mxu0 0
      %851 = vmatpush2.bf16.msra.mxu0 0
      %852 = vmatprep.subr.bf16.mxu0 0
      %853 = vmatpush2.bf16.msra.mxu0 0
      %854 = vmatprep.subr.bf16.mxu0 0
      %855 = vmatpush2.bf16.msra.mxu0 0
      %856 = vmatprep.subr.bf16.mxu0 0
      %857 = vmatpush2.bf16.msra.mxu0 0
      %858 = vmatprep.mubr.bf16.mxu0 0
      %859 = vmatmul.mubr.bf16.gmra.mxu0 %v783
      %v860 = vpop.f32.mrf.mxu0
      %v861 = vadd.f32 0.0, %v860
      %v862 = vpop.f32.mrf.mxu0
      %v863 = vpop.f32.mrf.mxu0
      %v864 = vpop.f32.mrf.mxu0
      %865 = vdwg.mxu0
      %v866 = vadd.f32 %v762, %v820
      %v867 = vadd.f32 %v763, %v822
      %v868 = vadd.f32 %v764, %v861
      %s869 = scalar_lea.vmem %s1, 24
      %v870 = vld [vmem:[%s869] sm:$0xf]
      %871 = vrot.lane.b32.xlu0 %v249, 107
      %v872 = vpop.permute.xlu0 %871
      %873 = vrot.lane.b32.xlu0 %v250, 107
      %v874 = vpop.permute.xlu0 %873
      %875 = vrot.lane.b32.xlu0 %v251, 107
      %v876 = vpop.permute.xlu0 %875
      %877 = vrot.lane.b32.xlu0 %v252, 107
      %v878 = vpop.permute.xlu0 %877
      %vm879 = vcmask 875520
      %v880 = vsel %vm879, %v872, %v874
      %v881 = vsel %vm879, %v874, %v876
      %v882 = vsel %vm879, %v876, %v878
      %v887 = vsel %vm268, %v870, 0
      %889 = vmatprep.subr.bf16.mxu0 0
      %890 = vmatpush1.bf16.msra.mxu0 0
      %891 = vmatprep.subr.bf16.mxu0 0
      %892 = vmatpush1.bf16.msra.mxu0 0
      %893 = vmatprep.subr.bf16.mxu0 0
      %894 = vmatpush1.bf16.msra.mxu0 0
      %895 = vmatprep.subr.bf16.mxu0 0
      %896 = vmatpush1.bf16.msra.mxu0 0
      %897 = vmatprep.subr.bf16.mxu0 0
      %898 = vmatpush1.bf16.msra.mxu0 0
      %899 = vmatprep.subr.bf16.mxu0 0
      %900 = vmatpush1.bf16.msra.mxu0 0
      %901 = vmatprep.subr.bf16.mxu0 0
      %902 = vmatpush1.bf16.msra.mxu0 0
      %903 = vmatprep.subr.bf16.mxu0 %v881
      %904 = vmatpush1.bf16.msra.mxu0 %v880
      %905 = vmatprep.subr.bf16.mxu0 0
      %906 = vmatpush2.bf16.msra.mxu0 0
      %907 = vmatprep.subr.bf16.mxu0 0
      %908 = vmatpush2.bf16.msra.mxu0 0
      %909 = vmatprep.subr.bf16.mxu0 0
      %910 = vmatpush2.bf16.msra.mxu0 0
      %911 = vmatprep.subr.bf16.mxu0 0
      %912 = vmatpush2.bf16.msra.mxu0 0
      %913 = vmatprep.subr.bf16.mxu0 0
      %914 = vmatpush2.bf16.msra.mxu0 0
      %915 = vmatprep.subr.bf16.mxu0 0
      %916 = vmatpush2.bf16.msra.mxu0 0
      %917 = vmatprep.subr.bf16.mxu0 0
      %918 = vmatpush2.bf16.msra.mxu0 0
      %919 = vmatprep.subr.bf16.mxu0 0
      %920 = vmatpush2.bf16.msra.mxu0 0
      %921 = vmatprep.mubr.bf16.mxu0 0
      %922 = vmatmul.mubr.bf16.gmra.mxu0 %v887
      %v923 = vpop.f32.mrf.mxu0
      %v924 = vadd.f32 0.0, %v923
      %v925 = vpop.f32.mrf.mxu0
      %v926 = vadd.f32 0.0, %v925
      %v927 = vpop.f32.mrf.mxu0
      %v928 = vpop.f32.mrf.mxu0
      %929 = vdwg.mxu0
      %930 = vmatprep.subr.bf16.mxu0 0
      %931 = vmatpush1.bf16.msra.mxu0 0
      %932 = vmatprep.subr.bf16.mxu0 0
      %933 = vmatpush1.bf16.msra.mxu0 0
      %934 = vmatprep.subr.bf16.mxu0 0
      %935 = vmatpush1.bf16.msra.mxu0 0
      %936 = vmatprep.subr.bf16.mxu0 0
      %937 = vmatpush1.bf16.msra.mxu0 0
      %938 = vmatprep.subr.bf16.mxu0 0
      %939 = vmatpush1.bf16.msra.mxu0 0
      %940 = vmatprep.subr.bf16.mxu0 0
      %941 = vmatpush1.bf16.msra.mxu0 0
      %942 = vmatprep.subr.bf16.mxu0 0
      %943 = vmatpush1.bf16.msra.mxu0 0
      %944 = vmatprep.subr.bf16.mxu0 0
      %945 = vmatpush1.bf16.msra.mxu0 %v882
      %946 = vmatprep.subr.bf16.mxu0 0
      %947 = vmatpush2.bf16.msra.mxu0 0
      %948 = vmatprep.subr.bf16.mxu0 0
      %949 = vmatpush2.bf16.msra.mxu0 0
      %950 = vmatprep.subr.bf16.mxu0 0
      %951 = vmatpush2.bf16.msra.mxu0 0
      %952 = vmatprep.subr.bf16.mxu0 0
      %953 = vmatpush2.bf16.msra.mxu0 0
      %954 = vmatprep.subr.bf16.mxu0 0
      %955 = vmatpush2.bf16.msra.mxu0 0
      %956 = vmatprep.subr.bf16.mxu0 0
      %957 = vmatpush2.bf16.msra.mxu0 0
      %958 = vmatprep.subr.bf16.mxu0 0
      %959 = vmatpush2.bf16.msra.mxu0 0
      %960 = vmatprep.subr.bf16.mxu0 0
      %961 = vmatpush2.bf16.msra.mxu0 0
      %962 = vmatprep.mubr.bf16.mxu0 0
      %963 = vmatmul.mubr.bf16.gmra.mxu0 %v887
      %v964 = vpop.f32.mrf.mxu0
      %v965 = vadd.f32 0.0, %v964
      %v966 = vpop.f32.mrf.mxu0
      %v967 = vpop.f32.mrf.mxu0
      %v968 = vpop.f32.mrf.mxu0
      %969 = vdwg.mxu0
      %v970 = vadd.f32 %v866, %v924
      %v971 = vadd.f32 %v867, %v926
      %v972 = vadd.f32 %v868, %v965
      %s973 = scalar_lea.vmem %s1, 28
      %v974 = vld [vmem:[%s973] sm:$0xf]
      %975 = vrot.lane.b32.xlu0 %v249, 106
      %v976 = vpop.permute.xlu0 %975
      %977 = vrot.lane.b32.xlu0 %v250, 106
      %v978 = vpop.permute.xlu0 %977
      %979 = vrot.lane.b32.xlu0 %v251, 106
      %v980 = vpop.permute.xlu0 %979
      %981 = vrot.lane.b32.xlu0 %v252, 106
      %v982 = vpop.permute.xlu0 %981
      %vm983 = vcmask 867328
      %v984 = vsel %vm983, %v976, %v978
      %v985 = vsel %vm983, %v978, %v980
      %v986 = vsel %vm983, %v980, %v982
      %v991 = vsel %vm268, %v974, 0
      %993 = vmatprep.subr.bf16.mxu0 0
      %994 = vmatpush1.bf16.msra.mxu0 0
      %995 = vmatprep.subr.bf16.mxu0 0
      %996 = vmatpush1.bf16.msra.mxu0 0
      %997 = vmatprep.subr.bf16.mxu0 0
      %998 = vmatpush1.bf16.msra.mxu0 0
      %999 = vmatprep.subr.bf16.mxu0 0
      %1000 = vmatpush1.bf16.msra.mxu0 0
      %1001 = vmatprep.subr.bf16.mxu0 0
      %1002 = vmatpush1.bf16.msra.mxu0 0
      %1003 = vmatprep.subr.bf16.mxu0 0
      %1004 = vmatpush1.bf16.msra.mxu0 0
      %1005 = vmatprep.subr.bf16.mxu0 0
      %1006 = vmatpush1.bf16.msra.mxu0 0
      %1007 = vmatprep.subr.bf16.mxu0 %v985
      %1008 = vmatpush1.bf16.msra.mxu0 %v984
      %1009 = vmatprep.subr.bf16.mxu0 0
      %1010 = vmatpush2.bf16.msra.mxu0 0
      %1011 = vmatprep.subr.bf16.mxu0 0
      %1012 = vmatpush2.bf16.msra.mxu0 0
      %1013 = vmatprep.subr.bf16.mxu0 0
      %1014 = vmatpush2.bf16.msra.mxu0 0
      %1015 = vmatprep.subr.bf16.mxu0 0
      %1016 = vmatpush2.bf16.msra.mxu0 0
      %1017 = vmatprep.subr.bf16.mxu0 0
      %1018 = vmatpush2.bf16.msra.mxu0 0
      %1019 = vmatprep.subr.bf16.mxu0 0
      %1020 = vmatpush2.bf16.msra.mxu0 0
      %1021 = vmatprep.subr.bf16.mxu0 0
      %1022 = vmatpush2.bf16.msra.mxu0 0
      %1023 = vmatprep.subr.bf16.mxu0 0
      %1024 = vmatpush2.bf16.msra.mxu0 0
      %1025 = vmatprep.mubr.bf16.mxu0 0
      %1026 = vmatmul.mubr.bf16.gmra.mxu0 %v991
      %v1027 = vpop.f32.mrf.mxu0
      %v1028 = vadd.f32 0.0, %v1027
      %v1029 = vpop.f32.mrf.mxu0
      %v1030 = vadd.f32 0.0, %v1029
      %v1031 = vpop.f32.mrf.mxu0
      %v1032 = vpop.f32.mrf.mxu0
      %1033 = vdwg.mxu0
      %1034 = vmatprep.subr.bf16.mxu0 0
      %1035 = vmatpush1.bf16.msra.mxu0 0
      %1036 = vmatprep.subr.bf16.mxu0 0
      %1037 = vmatpush1.bf16.msra.mxu0 0
      %1038 = vmatprep.subr.bf16.mxu0 0
      %1039 = vmatpush1.bf16.msra.mxu0 0
      %1040 = vmatprep.subr.bf16.mxu0 0
      %1041 = vmatpush1.bf16.msra.mxu0 0
      %1042 = vmatprep.subr.bf16.mxu0 0
      %1043 = vmatpush1.bf16.msra.mxu0 0
      %1044 = vmatprep.subr.bf16.mxu0 0
      %1045 = vmatpush1.bf16.msra.mxu0 0
      %1046 = vmatprep.subr.bf16.mxu0 0
      %1047 = vmatpush1.bf16.msra.mxu0 0
      %1048 = vmatprep.subr.bf16.mxu0 0
      %1049 = vmatpush1.bf16.msra.mxu0 %v986
      %1050 = vmatprep.subr.bf16.mxu0 0
      %1051 = vmatpush2.bf16.msra.mxu0 0
      %1052 = vmatprep.subr.bf16.mxu0 0
      %1053 = vmatpush2.bf16.msra.mxu0 0
      %1054 = vmatprep.subr.bf16.mxu0 0
      %1055 = vmatpush2.bf16.msra.mxu0 0
      %1056 = vmatprep.subr.bf16.mxu0 0
      %1057 = vmatpush2.bf16.msra.mxu0 0
      %1058 = vmatprep.subr.bf16.mxu0 0
      %1059 = vmatpush2.bf16.msra.mxu0 0
      %1060 = vmatprep.subr.bf16.mxu0 0
      %1061 = vmatpush2.bf16.msra.mxu0 0
      %1062 = vmatprep.subr.bf16.mxu0 0
      %1063 = vmatpush2.bf16.msra.mxu0 0
      %1064 = vmatprep.subr.bf16.mxu0 0
      %1065 = vmatpush2.bf16.msra.mxu0 0
      %1066 = vmatprep.mubr.bf16.mxu0 0
      %1067 = vmatmul.mubr.bf16.gmra.mxu0 %v991
      %v1068 = vpop.f32.mrf.mxu0
      %v1069 = vadd.f32 0.0, %v1068
      %v1070 = vpop.f32.mrf.mxu0
      %v1071 = vpop.f32.mrf.mxu0
      %v1072 = vpop.f32.mrf.mxu0
      %1073 = vdwg.mxu0
      %v1074 = vadd.f32 %v970, %v1028
      %v1075 = vadd.f32 %v971, %v1030
      %v1076 = vadd.f32 %v972, %v1069
      %s1077 = scalar_lea.vmem %s1, 32
      %v1078 = vld [vmem:[%s1077] sm:$0xf]
      %1079 = vrot.lane.b32.xlu0 %v249, 90
      %v1080 = vpop.permute.xlu0 %1079
      %1081 = vrot.lane.b32.xlu0 %v250, 90
      %v1082 = vpop.permute.xlu0 %1081
      %1083 = vrot.lane.b32.xlu0 %v251, 90
      %v1084 = vpop.permute.xlu0 %1083
      %1085 = vrot.lane.b32.xlu0 %v252, 90
      %v1086 = vpop.permute.xlu0 %1085
      %vm1087 = vcmask 736256
      %v1088 = vsel %vm1087, %v1080, %v1082
      %v1089 = vsel %vm1087, %v1082, %v1084
      %v1090 = vsel %vm1087, %v1084, %v1086
      %v1095 = vsel %vm268, %v1078, 0
      %1097 = vmatprep.subr.bf16.mxu0 0
      %1098 = vmatpush1.bf16.msra.mxu0 0
      %1099 = vmatprep.subr.bf16.mxu0 0
      %1100 = vmatpush1.bf16.msra.mxu0 0
      %1101 = vmatprep.subr.bf16.mxu0 0
      %1102 = vmatpush1.bf16.msra.mxu0 0
      %1103 = vmatprep.subr.bf16.mxu0 0
      %1104 = vmatpush1.bf16.msra.mxu0 0
      %1105 = vmatprep.subr.bf16.mxu0 0
      %1106 = vmatpush1.bf16.msra.mxu0 0
      %1107 = vmatprep.subr.bf16.mxu0 0
      %1108 = vmatpush1.bf16.msra.mxu0 0
      %1109 = vmatprep.subr.bf16.mxu0 0
      %1110 = vmatpush1.bf16.msra.mxu0 0
      %1111 = vmatprep.subr.bf16.mxu0 %v1089
      %1112 = vmatpush1.bf16.msra.mxu0 %v1088
      %1113 = vmatprep.subr.bf16.mxu0 0
      %1114 = vmatpush2.bf16.msra.mxu0 0
      %1115 = vmatprep.subr.bf16.mxu0 0
      %1116 = vmatpush2.bf16.msra.mxu0 0
      %1117 = vmatprep.subr.bf16.mxu0 0
      %1118 = vmatpush2.bf16.msra.mxu0 0
      %1119 = vmatprep.subr.bf16.mxu0 0
      %1120 = vmatpush2.bf16.msra.mxu0 0
      %1121 = vmatprep.subr.bf16.mxu0 0
      %1122 = vmatpush2.bf16.msra.mxu0 0
      %1123 = vmatprep.subr.bf16.mxu0 0
      %1124 = vmatpush2.bf16.msra.mxu0 0
      %1125 = vmatprep.subr.bf16.mxu0 0
      %1126 = vmatpush2.bf16.msra.mxu0 0
      %1127 = vmatprep.subr.bf16.mxu0 0
      %1128 = vmatpush2.bf16.msra.mxu0 0
      %1129 = vmatprep.mubr.bf16.mxu0 0
      %1130 = vmatmul.mubr.bf16.gmra.mxu0 %v1095
      %v1131 = vpop.f32.mrf.mxu0
      %v1132 = vadd.f32 0.0, %v1131
      %v1133 = vpop.f32.mrf.mxu0
      %v1134 = vadd.f32 0.0, %v1133
      %v1135 = vpop.f32.mrf.mxu0
      %v1136 = vpop.f32.mrf.mxu0
      %1137 = vdwg.mxu0
      %1138 = vmatprep.subr.bf16.mxu0 0
      %1139 = vmatpush1.bf16.msra.mxu0 0
      %1140 = vmatprep.subr.bf16.mxu0 0
      %1141 = vmatpush1.bf16.msra.mxu0 0
      %1142 = vmatprep.subr.bf16.mxu0 0
      %1143 = vmatpush1.bf16.msra.mxu0 0
      %1144 = vmatprep.subr.bf16.mxu0 0
      %1145 = vmatpush1.bf16.msra.mxu0 0
      %1146 = vmatprep.subr.bf16.mxu0 0
      %1147 = vmatpush1.bf16.msra.mxu0 0
      %1148 = vmatprep.subr.bf16.mxu0 0
      %1149 = vmatpush1.bf16.msra.mxu0 0
      %1150 = vmatprep.subr.bf16.mxu0 0
      %1151 = vmatpush1.bf16.msra.mxu0 0
      %1152 = vmatprep.subr.bf16.mxu0 0
      %1153 = vmatpush1.bf16.msra.mxu0 %v1090
      %1154 = vmatprep.subr.bf16.mxu0 0
      %1155 = vmatpush2.bf16.msra.mxu0 0
      %1156 = vmatprep.subr.bf16.mxu0 0
      %1157 = vmatpush2.bf16.msra.mxu0 0
      %1158 = vmatprep.subr.bf16.mxu0 0
      %1159 = vmatpush2.bf16.msra.mxu0 0
      %1160 = vmatprep.subr.bf16.mxu0 0
      %1161 = vmatpush2.bf16.msra.mxu0 0
      %1162 = vmatprep.subr.bf16.mxu0 0
      %1163 = vmatpush2.bf16.msra.mxu0 0
      %1164 = vmatprep.subr.bf16.mxu0 0
      %1165 = vmatpush2.bf16.msra.mxu0 0
      %1166 = vmatprep.subr.bf16.mxu0 0
      %1167 = vmatpush2.bf16.msra.mxu0 0
      %1168 = vmatprep.subr.bf16.mxu0 0
      %1169 = vmatpush2.bf16.msra.mxu0 0
      %1170 = vmatprep.mubr.bf16.mxu0 0
      %1171 = vmatmul.mubr.bf16.gmra.mxu0 %v1095
      %v1172 = vpop.f32.mrf.mxu0
      %v1173 = vadd.f32 0.0, %v1172
      %v1174 = vpop.f32.mrf.mxu0
      %v1175 = vpop.f32.mrf.mxu0
      %v1176 = vpop.f32.mrf.mxu0
      %1177 = vdwg.mxu0
      %v1178 = vadd.f32 %v1074, %v1132
      %v1179 = vadd.f32 %v1075, %v1134
      %v1180 = vadd.f32 %v1076, %v1173
      %s1181 = scalar_lea.vmem %s1, 36
      %v1182 = vld [vmem:[%s1181] sm:$0xf]
      %1183 = vrot.lane.b32.xlu0 %v249, 89
      %v1184 = vpop.permute.xlu0 %1183
      %1185 = vrot.lane.b32.xlu0 %v250, 89
      %v1186 = vpop.permute.xlu0 %1185
      %1187 = vrot.lane.b32.xlu0 %v251, 89
      %v1188 = vpop.permute.xlu0 %1187
      %1189 = vrot.lane.b32.xlu0 %v252, 89
      %v1190 = vpop.permute.xlu0 %1189
      %vm1191 = vcmask 728064
      %v1192 = vsel %vm1191, %v1184, %v1186
      %v1193 = vsel %vm1191, %v1186, %v1188
      %v1194 = vsel %vm1191, %v1188, %v1190
      %v1199 = vsel %vm268, %v1182, 0
      %1201 = vmatprep.subr.bf16.mxu0 0
      %1202 = vmatpush1.bf16.msra.mxu0 0
      %1203 = vmatprep.subr.bf16.mxu0 0
      %1204 = vmatpush1.bf16.msra.mxu0 0
      %1205 = vmatprep.subr.bf16.mxu0 0
      %1206 = vmatpush1.bf16.msra.mxu0 0
      %1207 = vmatprep.subr.bf16.mxu0 0
      %1208 = vmatpush1.bf16.msra.mxu0 0
      %1209 = vmatprep.subr.bf16.mxu0 0
      %1210 = vmatpush1.bf16.msra.mxu0 0
      %1211 = vmatprep.subr.bf16.mxu0 0
      %1212 = vmatpush1.bf16.msra.mxu0 0
      %1213 = vmatprep.subr.bf16.mxu0 0
      %1214 = vmatpush1.bf16.msra.mxu0 0
      %1215 = vmatprep.subr.bf16.mxu0 %v1193
      %1216 = vmatpush1.bf16.msra.mxu0 %v1192
      %1217 = vmatprep.subr.bf16.mxu0 0
      %1218 = vmatpush2.bf16.msra.mxu0 0
      %1219 = vmatprep.subr.bf16.mxu0 0
      %1220 = vmatpush2.bf16.msra.mxu0 0
      %1221 = vmatprep.subr.bf16.mxu0 0
      %1222 = vmatpush2.bf16.msra.mxu0 0
      %1223 = vmatprep.subr.bf16.mxu0 0
      %1224 = vmatpush2.bf16.msra.mxu0 0
      %1225 = vmatprep.subr.bf16.mxu0 0
      %1226 = vmatpush2.bf16.msra.mxu0 0
      %1227 = vmatprep.subr.bf16.mxu0 0
      %1228 = vmatpush2.bf16.msra.mxu0 0
      %1229 = vmatprep.subr.bf16.mxu0 0
      %1230 = vmatpush2.bf16.msra.mxu0 0
      %1231 = vmatprep.subr.bf16.mxu0 0
      %1232 = vmatpush2.bf16.msra.mxu0 0
      %1233 = vmatprep.mubr.bf16.mxu0 0
      %1234 = vmatmul.mubr.bf16.gmra.mxu0 %v1199
      %v1235 = vpop.f32.mrf.mxu0
      %v1236 = vadd.f32 0.0, %v1235
      %v1237 = vpop.f32.mrf.mxu0
      %v1238 = vadd.f32 0.0, %v1237
      %v1239 = vpop.f32.mrf.mxu0
      %v1240 = vpop.f32.mrf.mxu0
      %1241 = vdwg.mxu0
      %1242 = vmatprep.subr.bf16.mxu0 0
      %1243 = vmatpush1.bf16.msra.mxu0 0
      %1244 = vmatprep.subr.bf16.mxu0 0
      %1245 = vmatpush1.bf16.msra.mxu0 0
      %1246 = vmatprep.subr.bf16.mxu0 0
      %1247 = vmatpush1.bf16.msra.mxu0 0
      %1248 = vmatprep.subr.bf16.mxu0 0
      %1249 = vmatpush1.bf16.msra.mxu0 0
      %1250 = vmatprep.subr.bf16.mxu0 0
      %1251 = vmatpush1.bf16.msra.mxu0 0
      %1252 = vmatprep.subr.bf16.mxu0 0
      %1253 = vmatpush1.bf16.msra.mxu0 0
      %1254 = vmatprep.subr.bf16.mxu0 0
      %1255 = vmatpush1.bf16.msra.mxu0 0
      %1256 = vmatprep.subr.bf16.mxu0 0
      %1257 = vmatpush1.bf16.msra.mxu0 %v1194
      %1258 = vmatprep.subr.bf16.mxu0 0
      %1259 = vmatpush2.bf16.msra.mxu0 0
      %1260 = vmatprep.subr.bf16.mxu0 0
      %1261 = vmatpush2.bf16.msra.mxu0 0
      %1262 = vmatprep.subr.bf16.mxu0 0
      %1263 = vmatpush2.bf16.msra.mxu0 0
      %1264 = vmatprep.subr.bf16.mxu0 0
      %1265 = vmatpush2.bf16.msra.mxu0 0
      %1266 = vmatprep.subr.bf16.mxu0 0
      %1267 = vmatpush2.bf16.msra.mxu0 0
      %1268 = vmatprep.subr.bf16.mxu0 0
      %1269 = vmatpush2.bf16.msra.mxu0 0
      %1270 = vmatprep.subr.bf16.mxu0 0
      %1271 = vmatpush2.bf16.msra.mxu0 0
      %1272 = vmatprep.subr.bf16.mxu0 0
      %1273 = vmatpush2.bf16.msra.mxu0 0
      %1274 = vmatprep.mubr.bf16.mxu0 0
      %1275 = vmatmul.mubr.bf16.gmra.mxu0 %v1199
      %v1276 = vpop.f32.mrf.mxu0
      %v1277 = vadd.f32 0.0, %v1276
      %v1278 = vpop.f32.mrf.mxu0
      %v1279 = vpop.f32.mrf.mxu0
      %v1280 = vpop.f32.mrf.mxu0
      %1281 = vdwg.mxu0
      %v1282 = vadd.f32 %v1178, %v1236
      %v1283 = vadd.f32 %v1179, %v1238
      %v1284 = vadd.f32 %v1180, %v1277
      %s1285 = scalar_lea.vmem %s1, 40
      %v1286 = vld [vmem:[%s1285] sm:$0xf]
      %1287 = vrot.lane.b32.xlu0 %v249, 88
      %v1288 = vpop.permute.xlu0 %1287
      %1289 = vrot.lane.b32.xlu0 %v250, 88
      %v1290 = vpop.permute.xlu0 %1289
      %1291 = vrot.lane.b32.xlu0 %v251, 88
      %v1292 = vpop.permute.xlu0 %1291
      %1293 = vrot.lane.b32.xlu0 %v252, 88
      %v1294 = vpop.permute.xlu0 %1293
      %vm1295 = vcmask 719872
      %v1296 = vsel %vm1295, %v1288, %v1290
      %v1297 = vsel %vm1295, %v1290, %v1292
      %v1298 = vsel %vm1295, %v1292, %v1294
      %v1303 = vsel %vm268, %v1286, 0
      %1305 = vmatprep.subr.bf16.mxu0 0
      %1306 = vmatpush1.bf16.msra.mxu0 0
      %1307 = vmatprep.subr.bf16.mxu0 0
      %1308 = vmatpush1.bf16.msra.mxu0 0
      %1309 = vmatprep.subr.bf16.mxu0 0
      %1310 = vmatpush1.bf16.msra.mxu0 0
      %1311 = vmatprep.subr.bf16.mxu0 0
      %1312 = vmatpush1.bf16.msra.mxu0 0
      %1313 = vmatprep.subr.bf16.mxu0 0
      %1314 = vmatpush1.bf16.msra.mxu0 0
      %1315 = vmatprep.subr.bf16.mxu0 0
      %1316 = vmatpush1.bf16.msra.mxu0 0
      %1317 = vmatprep.subr.bf16.mxu0 0
      %1318 = vmatpush1.bf16.msra.mxu0 0
      %1319 = vmatprep.subr.bf16.mxu0 %v1297
      %1320 = vmatpush1.bf16.msra.mxu0 %v1296
      %1321 = vmatprep.subr.bf16.mxu0 0
      %1322 = vmatpush2.bf16.msra.mxu0 0
      %1323 = vmatprep.subr.bf16.mxu0 0
      %1324 = vmatpush2.bf16.msra.mxu0 0
      %1325 = vmatprep.subr.bf16.mxu0 0
      %1326 = vmatpush2.bf16.msra.mxu0 0
      %1327 = vmatprep.subr.bf16.mxu0 0
      %1328 = vmatpush2.bf16.msra.mxu0 0
      %1329 = vmatprep.subr.bf16.mxu0 0
      %1330 = vmatpush2.bf16.msra.mxu0 0
      %1331 = vmatprep.subr.bf16.mxu0 0
      %1332 = vmatpush2.bf16.msra.mxu0 0
      %1333 = vmatprep.subr.bf16.mxu0 0
      %1334 = vmatpush2.bf16.msra.mxu0 0
      %1335 = vmatprep.subr.bf16.mxu0 0
      %1336 = vmatpush2.bf16.msra.mxu0 0
      %1337 = vmatprep.mubr.bf16.mxu0 0
      %1338 = vmatmul.mubr.bf16.gmra.mxu0 %v1303
      %v1339 = vpop.f32.mrf.mxu0
      %v1340 = vadd.f32 0.0, %v1339
      %v1341 = vpop.f32.mrf.mxu0
      %v1342 = vadd.f32 0.0, %v1341
      %v1343 = vpop.f32.mrf.mxu0
      %v1344 = vpop.f32.mrf.mxu0
      %1345 = vdwg.mxu0
      %1346 = vmatprep.subr.bf16.mxu0 0
      %1347 = vmatpush1.bf16.msra.mxu0 0
      %1348 = vmatprep.subr.bf16.mxu0 0
      %1349 = vmatpush1.bf16.msra.mxu0 0
      %1350 = vmatprep.subr.bf16.mxu0 0
      %1351 = vmatpush1.bf16.msra.mxu0 0
      %1352 = vmatprep.subr.bf16.mxu0 0
      %1353 = vmatpush1.bf16.msra.mxu0 0
      %1354 = vmatprep.subr.bf16.mxu0 0
      %1355 = vmatpush1.bf16.msra.mxu0 0
      %1356 = vmatprep.subr.bf16.mxu0 0
      %1357 = vmatpush1.bf16.msra.mxu0 0
      %1358 = vmatprep.subr.bf16.mxu0 0
      %1359 = vmatpush1.bf16.msra.mxu0 0
      %1360 = vmatprep.subr.bf16.mxu0 0
      %1361 = vmatpush1.bf16.msra.mxu0 %v1298
      %1362 = vmatprep.subr.bf16.mxu0 0
      %1363 = vmatpush2.bf16.msra.mxu0 0
      %1364 = vmatprep.subr.bf16.mxu0 0
      %1365 = vmatpush2.bf16.msra.mxu0 0
      %1366 = vmatprep.subr.bf16.mxu0 0
      %1367 = vmatpush2.bf16.msra.mxu0 0
      %1368 = vmatprep.subr.bf16.mxu0 0
      %1369 = vmatpush2.bf16.msra.mxu0 0
      %1370 = vmatprep.subr.bf16.mxu0 0
      %1371 = vmatpush2.bf16.msra.mxu0 0
      %1372 = vmatprep.subr.bf16.mxu0 0
      %1373 = vmatpush2.bf16.msra.mxu0 0
      %1374 = vmatprep.subr.bf16.mxu0 0
      %1375 = vmatpush2.bf16.msra.mxu0 0
      %1376 = vmatprep.subr.bf16.mxu0 0
      %1377 = vmatpush2.bf16.msra.mxu0 0
      %1378 = vmatprep.mubr.bf16.mxu0 0
      %1379 = vmatmul.mubr.bf16.gmra.mxu0 %v1303
      %v1380 = vpop.f32.mrf.mxu0
      %v1381 = vadd.f32 0.0, %v1380
      %v1382 = vpop.f32.mrf.mxu0
      %v1383 = vpop.f32.mrf.mxu0
      %v1384 = vpop.f32.mrf.mxu0
      %1385 = vdwg.mxu0
      %v1386 = vadd.f32 %v1282, %v1340
      %v1387 = vadd.f32 %v1283, %v1342
      %v1388 = vadd.f32 %v1284, %v1381
      %s1389 = scalar_lea.vmem %s1, 44
      %v1390 = vld [vmem:[%s1389] sm:$0xf]
      %1391 = vrot.lane.b32.xlu0 %v249, 87
      %v1392 = vpop.permute.xlu0 %1391
      %1393 = vrot.lane.b32.xlu0 %v250, 87
      %v1394 = vpop.permute.xlu0 %1393
      %1395 = vrot.lane.b32.xlu0 %v251, 87
      %v1396 = vpop.permute.xlu0 %1395
      %1397 = vrot.lane.b32.xlu0 %v252, 87
      %v1398 = vpop.permute.xlu0 %1397
      %vm1399 = vcmask 711680
      %v1400 = vsel %vm1399, %v1392, %v1394
      %v1401 = vsel %vm1399, %v1394, %v1396
      %v1402 = vsel %vm1399, %v1396, %v1398
      %v1407 = vsel %vm268, %v1390, 0
      %1409 = vmatprep.subr.bf16.mxu0 0
      %1410 = vmatpush1.bf16.msra.mxu0 0
      %1411 = vmatprep.subr.bf16.mxu0 0
      %1412 = vmatpush1.bf16.msra.mxu0 0
      %1413 = vmatprep.subr.bf16.mxu0 0
      %1414 = vmatpush1.bf16.msra.mxu0 0
      %1415 = vmatprep.subr.bf16.mxu0 0
      %1416 = vmatpush1.bf16.msra.mxu0 0
      %1417 = vmatprep.subr.bf16.mxu0 0
      %1418 = vmatpush1.bf16.msra.mxu0 0
      %1419 = vmatprep.subr.bf16.mxu0 0
      %1420 = vmatpush1.bf16.msra.mxu0 0
      %1421 = vmatprep.subr.bf16.mxu0 0
      %1422 = vmatpush1.bf16.msra.mxu0 0
      %1423 = vmatprep.subr.bf16.mxu0 %v1401
      %1424 = vmatpush1.bf16.msra.mxu0 %v1400
      %1425 = vmatprep.subr.bf16.mxu0 0
      %1426 = vmatpush2.bf16.msra.mxu0 0
      %1427 = vmatprep.subr.bf16.mxu0 0
      %1428 = vmatpush2.bf16.msra.mxu0 0
      %1429 = vmatprep.subr.bf16.mxu0 0
      %1430 = vmatpush2.bf16.msra.mxu0 0
      %1431 = vmatprep.subr.bf16.mxu0 0
      %1432 = vmatpush2.bf16.msra.mxu0 0
      %1433 = vmatprep.subr.bf16.mxu0 0
      %1434 = vmatpush2.bf16.msra.mxu0 0
      %1435 = vmatprep.subr.bf16.mxu0 0
      %1436 = vmatpush2.bf16.msra.mxu0 0
      %1437 = vmatprep.subr.bf16.mxu0 0
      %1438 = vmatpush2.bf16.msra.mxu0 0
      %1439 = vmatprep.subr.bf16.mxu0 0
      %1440 = vmatpush2.bf16.msra.mxu0 0
      %1441 = vmatprep.mubr.bf16.mxu0 0
      %1442 = vmatmul.mubr.bf16.gmra.mxu0 %v1407
      %v1443 = vpop.f32.mrf.mxu0
      %v1444 = vadd.f32 0.0, %v1443
      %v1445 = vpop.f32.mrf.mxu0
      %v1446 = vadd.f32 0.0, %v1445
      %v1447 = vpop.f32.mrf.mxu0
      %v1448 = vpop.f32.mrf.mxu0
      %1449 = vdwg.mxu0
      %1450 = vmatprep.subr.bf16.mxu0 0
      %1451 = vmatpush1.bf16.msra.mxu0 0
      %1452 = vmatprep.subr.bf16.mxu0 0
      %1453 = vmatpush1.bf16.msra.mxu0 0
      %1454 = vmatprep.subr.bf16.mxu0 0
      %1455 = vmatpush1.bf16.msra.mxu0 0
      %1456 = vmatprep.subr.bf16.mxu0 0
      %1457 = vmatpush1.bf16.msra.mxu0 0
      %1458 = vmatprep.subr.bf16.mxu0 0
      %1459 = vmatpush1.bf16.msra.mxu0 0
      %1460 = vmatprep.subr.bf16.mxu0 0
      %1461 = vmatpush1.bf16.msra.mxu0 0
      %1462 = vmatprep.subr.bf16.mxu0 0
      %1463 = vmatpush1.bf16.msra.mxu0 0
      %1464 = vmatprep.subr.bf16.mxu0 0
      %1465 = vmatpush1.bf16.msra.mxu0 %v1402
      %1466 = vmatprep.subr.bf16.mxu0 0
      %1467 = vmatpush2.bf16.msra.mxu0 0
      %1468 = vmatprep.subr.bf16.mxu0 0
      %1469 = vmatpush2.bf16.msra.mxu0 0
      %1470 = vmatprep.subr.bf16.mxu0 0
      %1471 = vmatpush2.bf16.msra.mxu0 0
      %1472 = vmatprep.subr.bf16.mxu0 0
      %1473 = vmatpush2.bf16.msra.mxu0 0
      %1474 = vmatprep.subr.bf16.mxu0 0
      %1475 = vmatpush2.bf16.msra.mxu0 0
      %1476 = vmatprep.subr.bf16.mxu0 0
      %1477 = vmatpush2.bf16.msra.mxu0 0
      %1478 = vmatprep.subr.bf16.mxu0 0
      %1479 = vmatpush2.bf16.msra.mxu0 0
      %1480 = vmatprep.subr.bf16.mxu0 0
      %1481 = vmatpush2.bf16.msra.mxu0 0
      %1482 = vmatprep.mubr.bf16.mxu0 0
      %1483 = vmatmul.mubr.bf16.gmra.mxu0 %v1407
      %v1484 = vpop.f32.mrf.mxu0
      %v1485 = vadd.f32 0.0, %v1484
      %v1486 = vpop.f32.mrf.mxu0
      %v1487 = vpop.f32.mrf.mxu0
      %v1488 = vpop.f32.mrf.mxu0
      %1489 = vdwg.mxu0
      %v1490 = vadd.f32 %v1386, %v1444
      %v1491 = vadd.f32 %v1387, %v1446
      %v1492 = vadd.f32 %v1388, %v1485
      %s1493 = scalar_lea.vmem %s1, 48
      %v1494 = vld [vmem:[%s1493] sm:$0xf]
      %1495 = vrot.lane.b32.xlu0 %v249, 71
      %v1496 = vpop.permute.xlu0 %1495
      %1497 = vrot.lane.b32.xlu0 %v250, 71
      %v1498 = vpop.permute.xlu0 %1497
      %1499 = vrot.lane.b32.xlu0 %v251, 71
      %v1500 = vpop.permute.xlu0 %1499
      %1501 = vrot.lane.b32.xlu0 %v252, 71
      %v1502 = vpop.permute.xlu0 %1501
      %vm1503 = vcmask 580608
      %v1504 = vsel %vm1503, %v1496, %v1498
      %v1505 = vsel %vm1503, %v1498, %v1500
      %v1506 = vsel %vm1503, %v1500, %v1502
      %v1511 = vsel %vm268, %v1494, 0
      %1513 = vmatprep.subr.bf16.mxu0 0
      %1514 = vmatpush1.bf16.msra.mxu0 0
      %1515 = vmatprep.subr.bf16.mxu0 0
      %1516 = vmatpush1.bf16.msra.mxu0 0
      %1517 = vmatprep.subr.bf16.mxu0 0
      %1518 = vmatpush1.bf16.msra.mxu0 0
      %1519 = vmatprep.subr.bf16.mxu0 0
      %1520 = vmatpush1.bf16.msra.mxu0 0
      %1521 = vmatprep.subr.bf16.mxu0 0
      %1522 = vmatpush1.bf16.msra.mxu0 0
      %1523 = vmatprep.subr.bf16.mxu0 0
      %1524 = vmatpush1.bf16.msra.mxu0 0
      %1525 = vmatprep.subr.bf16.mxu0 0
      %1526 = vmatpush1.bf16.msra.mxu0 0
      %1527 = vmatprep.subr.bf16.mxu0 %v1505
      %1528 = vmatpush1.bf16.msra.mxu0 %v1504
      %1529 = vmatprep.subr.bf16.mxu0 0
      %1530 = vmatpush2.bf16.msra.mxu0 0
      %1531 = vmatprep.subr.bf16.mxu0 0
      %1532 = vmatpush2.bf16.msra.mxu0 0
      %1533 = vmatprep.subr.bf16.mxu0 0
      %1534 = vmatpush2.bf16.msra.mxu0 0
      %1535 = vmatprep.subr.bf16.mxu0 0
      %1536 = vmatpush2.bf16.msra.mxu0 0
      %1537 = vmatprep.subr.bf16.mxu0 0
      %1538 = vmatpush2.bf16.msra.mxu0 0
      %1539 = vmatprep.subr.bf16.mxu0 0
      %1540 = vmatpush2.bf16.msra.mxu0 0
      %1541 = vmatprep.subr.bf16.mxu0 0
      %1542 = vmatpush2.bf16.msra.mxu0 0
      %1543 = vmatprep.subr.bf16.mxu0 0
      %1544 = vmatpush2.bf16.msra.mxu0 0
      %1545 = vmatprep.mubr.bf16.mxu0 0
      %1546 = vmatmul.mubr.bf16.gmra.mxu0 %v1511
      %v1547 = vpop.f32.mrf.mxu0
      %v1548 = vadd.f32 0.0, %v1547
      %v1549 = vpop.f32.mrf.mxu0
      %v1550 = vadd.f32 0.0, %v1549
      %v1551 = vpop.f32.mrf.mxu0
      %v1552 = vpop.f32.mrf.mxu0
      %1553 = vdwg.mxu0
      %1554 = vmatprep.subr.bf16.mxu0 0
      %1555 = vmatpush1.bf16.msra.mxu0 0
      %1556 = vmatprep.subr.bf16.mxu0 0
      %1557 = vmatpush1.bf16.msra.mxu0 0
      %1558 = vmatprep.subr.bf16.mxu0 0
      %1559 = vmatpush1.bf16.msra.mxu0 0
      %1560 = vmatprep.subr.bf16.mxu0 0
      %1561 = vmatpush1.bf16.msra.mxu0 0
      %1562 = vmatprep.subr.bf16.mxu0 0
      %1563 = vmatpush1.bf16.msra.mxu0 0
      %1564 = vmatprep.subr.bf16.mxu0 0
      %1565 = vmatpush1.bf16.msra.mxu0 0
      %1566 = vmatprep.subr.bf16.mxu0 0
      %1567 = vmatpush1.bf16.msra.mxu0 0
      %1568 = vmatprep.subr.bf16.mxu0 0
      %1569 = vmatpush1.bf16.msra.mxu0 %v1506
      %1570 = vmatprep.subr.bf16.mxu0 0
      %1571 = vmatpush2.bf16.msra.mxu0 0
      %1572 = vmatprep.subr.bf16.mxu0 0
      %1573 = vmatpush2.bf16.msra.mxu0 0
      %1574 = vmatprep.subr.bf16.mxu0 0
      %1575 = vmatpush2.bf16.msra.mxu0 0
      %1576 = vmatprep.subr.bf16.mxu0 0
      %1577 = vmatpush2.bf16.msra.mxu0 0
      %1578 = vmatprep.subr.bf16.mxu0 0
      %1579 = vmatpush2.bf16.msra.mxu0 0
      %1580 = vmatprep.subr.bf16.mxu0 0
      %1581 = vmatpush2.bf16.msra.mxu0 0
      %1582 = vmatprep.subr.bf16.mxu0 0
      %1583 = vmatpush2.bf16.msra.mxu0 0
      %1584 = vmatprep.subr.bf16.mxu0 0
      %1585 = vmatpush2.bf16.msra.mxu0 0
      %1586 = vmatprep.mubr.bf16.mxu0 0
      %1587 = vmatmul.mubr.bf16.gmra.mxu0 %v1511
      %v1588 = vpop.f32.mrf.mxu0
      %v1589 = vadd.f32 0.0, %v1588
      %v1590 = vpop.f32.mrf.mxu0
      %v1591 = vpop.f32.mrf.mxu0
      %v1592 = vpop.f32.mrf.mxu0
      %1593 = vdwg.mxu0
      %v1594 = vadd.f32 %v1490, %v1548
      %v1595 = vadd.f32 %v1491, %v1550
      %v1596 = vadd.f32 %v1492, %v1589
      %s1597 = scalar_lea.vmem %s1, 52
      %v1598 = vld [vmem:[%s1597] sm:$0xf]
      %1599 = vrot.lane.b32.xlu0 %v249, 70
      %v1600 = vpop.permute.xlu0 %1599
      %1601 = vrot.lane.b32.xlu0 %v250, 70
      %v1602 = vpop.permute.xlu0 %1601
      %1603 = vrot.lane.b32.xlu0 %v251, 70
      %v1604 = vpop.permute.xlu0 %1603
      %1605 = vrot.lane.b32.xlu0 %v252, 70
      %v1606 = vpop.permute.xlu0 %1605
      %vm1607 = vcmask 572416
      %v1608 = vsel %vm1607, %v1600, %v1602
      %v1609 = vsel %vm1607, %v1602, %v1604
      %v1610 = vsel %vm1607, %v1604, %v1606
      %v1615 = vsel %vm268, %v1598, 0
      %1617 = vmatprep.subr.bf16.mxu0 0
      %1618 = vmatpush1.bf16.msra.mxu0 0
      %1619 = vmatprep.subr.bf16.mxu0 0
      %1620 = vmatpush1.bf16.msra.mxu0 0
      %1621 = vmatprep.subr.bf16.mxu0 0
      %1622 = vmatpush1.bf16.msra.mxu0 0
      %1623 = vmatprep.subr.bf16.mxu0 0
      %1624 = vmatpush1.bf16.msra.mxu0 0
      %1625 = vmatprep.subr.bf16.mxu0 0
      %1626 = vmatpush1.bf16.msra.mxu0 0
      %1627 = vmatprep.subr.bf16.mxu0 0
      %1628 = vmatpush1.bf16.msra.mxu0 0
      %1629 = vmatprep.subr.bf16.mxu0 0
      %1630 = vmatpush1.bf16.msra.mxu0 0
      %1631 = vmatprep.subr.bf16.mxu0 %v1609
      %1632 = vmatpush1.bf16.msra.mxu0 %v1608
      %1633 = vmatprep.subr.bf16.mxu0 0
      %1634 = vmatpush2.bf16.msra.mxu0 0
      %1635 = vmatprep.subr.bf16.mxu0 0
      %1636 = vmatpush2.bf16.msra.mxu0 0
      %1637 = vmatprep.subr.bf16.mxu0 0
      %1638 = vmatpush2.bf16.msra.mxu0 0
      %1639 = vmatprep.subr.bf16.mxu0 0
      %1640 = vmatpush2.bf16.msra.mxu0 0
      %1641 = vmatprep.subr.bf16.mxu0 0
      %1642 = vmatpush2.bf16.msra.mxu0 0
      %1643 = vmatprep.subr.bf16.mxu0 0
      %1644 = vmatpush2.bf16.msra.mxu0 0
      %1645 = vmatprep.subr.bf16.mxu0 0
      %1646 = vmatpush2.bf16.msra.mxu0 0
      %1647 = vmatprep.subr.bf16.mxu0 0
      %1648 = vmatpush2.bf16.msra.mxu0 0
      %1649 = vmatprep.mubr.bf16.mxu0 0
      %1650 = vmatmul.mubr.bf16.gmra.mxu0 %v1615
      %v1651 = vpop.f32.mrf.mxu0
      %v1652 = vadd.f32 0.0, %v1651
      %v1653 = vpop.f32.mrf.mxu0
      %v1654 = vadd.f32 0.0, %v1653
      %v1655 = vpop.f32.mrf.mxu0
      %v1656 = vpop.f32.mrf.mxu0
      %1657 = vdwg.mxu0
      %1658 = vmatprep.subr.bf16.mxu0 0
      %1659 = vmatpush1.bf16.msra.mxu0 0
      %1660 = vmatprep.subr.bf16.mxu0 0
      %1661 = vmatpush1.bf16.msra.mxu0 0
      %1662 = vmatprep.subr.bf16.mxu0 0
      %1663 = vmatpush1.bf16.msra.mxu0 0
      %1664 = vmatprep.subr.bf16.mxu0 0
      %1665 = vmatpush1.bf16.msra.mxu0 0
      %1666 = vmatprep.subr.bf16.mxu0 0
      %1667 = vmatpush1.bf16.msra.mxu0 0
      %1668 = vmatprep.subr.bf16.mxu0 0
      %1669 = vmatpush1.bf16.msra.mxu0 0
      %1670 = vmatprep.subr.bf16.mxu0 0
      %1671 = vmatpush1.bf16.msra.mxu0 0
      %1672 = vmatprep.subr.bf16.mxu0 0
      %1673 = vmatpush1.bf16.msra.mxu0 %v1610
      %1674 = vmatprep.subr.bf16.mxu0 0
      %1675 = vmatpush2.bf16.msra.mxu0 0
      %1676 = vmatprep.subr.bf16.mxu0 0
      %1677 = vmatpush2.bf16.msra.mxu0 0
      %1678 = vmatprep.subr.bf16.mxu0 0
      %1679 = vmatpush2.bf16.msra.mxu0 0
      %1680 = vmatprep.subr.bf16.mxu0 0
      %1681 = vmatpush2.bf16.msra.mxu0 0
      %1682 = vmatprep.subr.bf16.mxu0 0
      %1683 = vmatpush2.bf16.msra.mxu0 0
      %1684 = vmatprep.subr.bf16.mxu0 0
      %1685 = vmatpush2.bf16.msra.mxu0 0
      %1686 = vmatprep.subr.bf16.mxu0 0
      %1687 = vmatpush2.bf16.msra.mxu0 0
      %1688 = vmatprep.subr.bf16.mxu0 0
      %1689 = vmatpush2.bf16.msra.mxu0 0
      %1690 = vmatprep.mubr.bf16.mxu0 0
      %1691 = vmatmul.mubr.bf16.gmra.mxu0 %v1615
      %v1692 = vpop.f32.mrf.mxu0
      %v1693 = vadd.f32 0.0, %v1692
      %v1694 = vpop.f32.mrf.mxu0
      %v1695 = vpop.f32.mrf.mxu0
      %v1696 = vpop.f32.mrf.mxu0
      %1697 = vdwg.mxu0
      %v1698 = vadd.f32 %v1594, %v1652
      %v1699 = vadd.f32 %v1595, %v1654
      %v1700 = vadd.f32 %v1596, %v1693
      %s1701 = scalar_lea.vmem %s1, 56
      %v1702 = vld [vmem:[%s1701] sm:$0xf]
      %1703 = vrot.lane.b32.xlu0 %v249, 69
      %v1704 = vpop.permute.xlu0 %1703
      %1705 = vrot.lane.b32.xlu0 %v250, 69
      %v1706 = vpop.permute.xlu0 %1705
      %1707 = vrot.lane.b32.xlu0 %v251, 69
      %v1708 = vpop.permute.xlu0 %1707
      %1709 = vrot.lane.b32.xlu0 %v252, 69
      %v1710 = vpop.permute.xlu0 %1709
      %vm1711 = vcmask 564224
      %v1712 = vsel %vm1711, %v1704, %v1706
      %v1713 = vsel %vm1711, %v1706, %v1708
      %v1714 = vsel %vm1711, %v1708, %v1710
      %v1719 = vsel %vm268, %v1702, 0
      %1721 = vmatprep.subr.bf16.mxu0 0
      %1722 = vmatpush1.bf16.msra.mxu0 0
      %1723 = vmatprep.subr.bf16.mxu0 0
      %1724 = vmatpush1.bf16.msra.mxu0 0
      %1725 = vmatprep.subr.bf16.mxu0 0
      %1726 = vmatpush1.bf16.msra.mxu0 0
      %1727 = vmatprep.subr.bf16.mxu0 0
      %1728 = vmatpush1.bf16.msra.mxu0 0
      %1729 = vmatprep.subr.bf16.mxu0 0
      %1730 = vmatpush1.bf16.msra.mxu0 0
      %1731 = vmatprep.subr.bf16.mxu0 0
      %1732 = vmatpush1.bf16.msra.mxu0 0
      %1733 = vmatprep.subr.bf16.mxu0 0
      %1734 = vmatpush1.bf16.msra.mxu0 0
      %1735 = vmatprep.subr.bf16.mxu0 %v1713
      %1736 = vmatpush1.bf16.msra.mxu0 %v1712
      %1737 = vmatprep.subr.bf16.mxu0 0
      %1738 = vmatpush2.bf16.msra.mxu0 0
      %1739 = vmatprep.subr.bf16.mxu0 0
      %1740 = vmatpush2.bf16.msra.mxu0 0
      %1741 = vmatprep.subr.bf16.mxu0 0
      %1742 = vmatpush2.bf16.msra.mxu0 0
      %1743 = vmatprep.subr.bf16.mxu0 0
      %1744 = vmatpush2.bf16.msra.mxu0 0
      %1745 = vmatprep.subr.bf16.mxu0 0
      %1746 = vmatpush2.bf16.msra.mxu0 0
      %1747 = vmatprep.subr.bf16.mxu0 0
      %1748 = vmatpush2.bf16.msra.mxu0 0
      %1749 = vmatprep.subr.bf16.mxu0 0
      %1750 = vmatpush2.bf16.msra.mxu0 0
      %1751 = vmatprep.subr.bf16.mxu0 0
      %1752 = vmatpush2.bf16.msra.mxu0 0
      %1753 = vmatprep.mubr.bf16.mxu0 0
      %1754 = vmatmul.mubr.bf16.gmra.mxu0 %v1719
      %v1755 = vpop.f32.mrf.mxu0
      %v1756 = vadd.f32 0.0, %v1755
      %v1757 = vpop.f32.mrf.mxu0
      %v1758 = vadd.f32 0.0, %v1757
      %v1759 = vpop.f32.mrf.mxu0
      %v1760 = vpop.f32.mrf.mxu0
      %1761 = vdwg.mxu0
      %1762 = vmatprep.subr.bf16.mxu0 0
      %1763 = vmatpush1.bf16.msra.mxu0 0
      %1764 = vmatprep.subr.bf16.mxu0 0
      %1765 = vmatpush1.bf16.msra.mxu0 0
      %1766 = vmatprep.subr.bf16.mxu0 0
      %1767 = vmatpush1.bf16.msra.mxu0 0
      %1768 = vmatprep.subr.bf16.mxu0 0
      %1769 = vmatpush1.bf16.msra.mxu0 0
      %1770 = vmatprep.subr.bf16.mxu0 0
      %1771 = vmatpush1.bf16.msra.mxu0 0
      %1772 = vmatprep.subr.bf16.mxu0 0
      %1773 = vmatpush1.bf16.msra.mxu0 0
      %1774 = vmatprep.subr.bf16.mxu0 0
      %1775 = vmatpush1.bf16.msra.mxu0 0
      %1776 = vmatprep.subr.bf16.mxu0 0
      %1777 = vmatpush1.bf16.msra.mxu0 %v1714
      %1778 = vmatprep.subr.bf16.mxu0 0
      %1779 = vmatpush2.bf16.msra.mxu0 0
      %1780 = vmatprep.subr.bf16.mxu0 0
      %1781 = vmatpush2.bf16.msra.mxu0 0
      %1782 = vmatprep.subr.bf16.mxu0 0
      %1783 = vmatpush2.bf16.msra.mxu0 0
      %1784 = vmatprep.subr.bf16.mxu0 0
      %1785 = vmatpush2.bf16.msra.mxu0 0
      %1786 = vmatprep.subr.bf16.mxu0 0
      %1787 = vmatpush2.bf16.msra.mxu0 0
      %1788 = vmatprep.subr.bf16.mxu0 0
      %1789 = vmatpush2.bf16.msra.mxu0 0
      %1790 = vmatprep.subr.bf16.mxu0 0
      %1791 = vmatpush2.bf16.msra.mxu0 0
      %1792 = vmatprep.subr.bf16.mxu0 0
      %1793 = vmatpush2.bf16.msra.mxu0 0
      %1794 = vmatprep.mubr.bf16.mxu0 0
      %1795 = vmatmul.mubr.bf16.gmra.mxu0 %v1719
      %v1796 = vpop.f32.mrf.mxu0
      %v1797 = vadd.f32 0.0, %v1796
      %v1798 = vpop.f32.mrf.mxu0
      %v1799 = vpop.f32.mrf.mxu0
      %v1800 = vpop.f32.mrf.mxu0
      %1801 = vdwg.mxu0
      %v1802 = vadd.f32 %v1698, %v1756
      %v1803 = vadd.f32 %v1699, %v1758
      %v1804 = vadd.f32 %v1700, %v1797
      %s1805 = scalar_lea.vmem %s1, 60
      %v1806 = vld [vmem:[%s1805] sm:$0xf]
      %1807 = vrot.lane.b32.xlu0 %v249, 68
      %v1808 = vpop.permute.xlu0 %1807
      %1809 = vrot.lane.b32.xlu0 %v250, 68
      %v1810 = vpop.permute.xlu0 %1809
      %1811 = vrot.lane.b32.xlu0 %v251, 68
      %v1812 = vpop.permute.xlu0 %1811
      %1813 = vrot.lane.b32.xlu0 %v252, 68
      %v1814 = vpop.permute.xlu0 %1813
      %vm1815 = vcmask 556032
      %v1816 = vsel %vm1815, %v1808, %v1810
      %v1817 = vsel %vm1815, %v1810, %v1812
      %v1818 = vsel %vm1815, %v1812, %v1814
      %v1823 = vsel %vm268, %v1806, 0
      %1825 = vmatprep.subr.bf16.mxu0 0
      %1826 = vmatpush1.bf16.msra.mxu0 0
      %1827 = vmatprep.subr.bf16.mxu0 0
      %1828 = vmatpush1.bf16.msra.mxu0 0
      %1829 = vmatprep.subr.bf16.mxu0 0
      %1830 = vmatpush1.bf16.msra.mxu0 0
      %1831 = vmatprep.subr.bf16.mxu0 0
      %1832 = vmatpush1.bf16.msra.mxu0 0
      %1833 = vmatprep.subr.bf16.mxu0 0
      %1834 = vmatpush1.bf16.msra.mxu0 0
      %1835 = vmatprep.subr.bf16.mxu0 0
      %1836 = vmatpush1.bf16.msra.mxu0 0
      %1837 = vmatprep.subr.bf16.mxu0 0
      %1838 = vmatpush1.bf16.msra.mxu0 0
      %1839 = vmatprep.subr.bf16.mxu0 %v1817
      %1840 = vmatpush1.bf16.msra.mxu0 %v1816
      %1841 = vmatprep.subr.bf16.mxu0 0
      %1842 = vmatpush2.bf16.msra.mxu0 0
      %1843 = vmatprep.subr.bf16.mxu0 0
      %1844 = vmatpush2.bf16.msra.mxu0 0
      %1845 = vmatprep.subr.bf16.mxu0 0
      %1846 = vmatpush2.bf16.msra.mxu0 0
      %1847 = vmatprep.subr.bf16.mxu0 0
      %1848 = vmatpush2.bf16.msra.mxu0 0
      %1849 = vmatprep.subr.bf16.mxu0 0
      %1850 = vmatpush2.bf16.msra.mxu0 0
      %1851 = vmatprep.subr.bf16.mxu0 0
      %1852 = vmatpush2.bf16.msra.mxu0 0
      %1853 = vmatprep.subr.bf16.mxu0 0
      %1854 = vmatpush2.bf16.msra.mxu0 0
      %1855 = vmatprep.subr.bf16.mxu0 0
      %1856 = vmatpush2.bf16.msra.mxu0 0
      %1857 = vmatprep.mubr.bf16.mxu0 0
      %1858 = vmatmul.mubr.bf16.gmra.mxu0 %v1823
      %v1859 = vpop.f32.mrf.mxu0
      %v1860 = vadd.f32 0.0, %v1859
      %v1861 = vpop.f32.mrf.mxu0
      %v1862 = vadd.f32 0.0, %v1861
      %v1863 = vpop.f32.mrf.mxu0
      %v1864 = vpop.f32.mrf.mxu0
      %1865 = vdwg.mxu0
      %1866 = vmatprep.subr.bf16.mxu0 0
      %1867 = vmatpush1.bf16.msra.mxu0 0
      %1868 = vmatprep.subr.bf16.mxu0 0
      %1869 = vmatpush1.bf16.msra.mxu0 0
      %1870 = vmatprep.subr.bf16.mxu0 0
      %1871 = vmatpush1.bf16.msra.mxu0 0
      %1872 = vmatprep.subr.bf16.mxu0 0
      %1873 = vmatpush1.bf16.msra.mxu0 0
      %1874 = vmatprep.subr.bf16.mxu0 0
      %1875 = vmatpush1.bf16.msra.mxu0 0
      %1876 = vmatprep.subr.bf16.mxu0 0
      %1877 = vmatpush1.bf16.msra.mxu0 0
      %1878 = vmatprep.subr.bf16.mxu0 0
      %1879 = vmatpush1.bf16.msra.mxu0 0
      %1880 = vmatprep.subr.bf16.mxu0 0
      %1881 = vmatpush1.bf16.msra.mxu0 %v1818
      %1882 = vmatprep.subr.bf16.mxu0 0
      %1883 = vmatpush2.bf16.msra.mxu0 0
      %1884 = vmatprep.subr.bf16.mxu0 0
      %1885 = vmatpush2.bf16.msra.mxu0 0
      %1886 = vmatprep.subr.bf16.mxu0 0
      %1887 = vmatpush2.bf16.msra.mxu0 0
      %1888 = vmatprep.subr.bf16.mxu0 0
      %1889 = vmatpush2.bf16.msra.mxu0 0
      %1890 = vmatprep.subr.bf16.mxu0 0
      %1891 = vmatpush2.bf16.msra.mxu0 0
      %1892 = vmatprep.subr.bf16.mxu0 0
      %1893 = vmatpush2.bf16.msra.mxu0 0
      %1894 = vmatprep.subr.bf16.mxu0 0
      %1895 = vmatpush2.bf16.msra.mxu0 0
      %1896 = vmatprep.subr.bf16.mxu0 0
      %1897 = vmatpush2.bf16.msra.mxu0 0
      %1898 = vmatprep.mubr.bf16.mxu0 0
      %1899 = vmatmul.mubr.bf16.gmra.mxu0 %v1823
      %v1900 = vpop.f32.mrf.mxu0
      %v1901 = vadd.f32 0.0, %v1900
      %v1902 = vpop.f32.mrf.mxu0
      %v1903 = vpop.f32.mrf.mxu0
      %v1904 = vpop.f32.mrf.mxu0
      %1905 = vdwg.mxu0
      %v1906 = vadd.f32 %v1802, %v1860
      %v1907 = vadd.f32 %v1803, %v1862
      %v1908 = vadd.f32 %v1804, %v1901
      %v1909 = vld [vmem:[%s4] sm:$0x7]
      %v1911 = vlaneseq
      %v1912 = vshrl.u32 %v1911, 7
      %v1913 = vsub.s32 0, %v1912
      %v1914 = vrot.slane %v1909, %v1913
      %v1915 = vlaneseq
      %v1916 = vshrl.u32 %v1915, 7
      %v1917 = vsub.s32 1, %v1916
      %v1918 = vrot.slane %v1909, %v1917
      %v1919 = vlaneseq
      %v1920 = vshrl.u32 %v1919, 7
      %v1921 = vsub.s32 2, %v1920
      %v1922 = vrot.slane %v1909, %v1921
      %v1926 = vmul.f32 %v1906, %v1914
      %v1927 = vmul.f32 %v1907, %v1918
      %v1928 = vmul.f32 %v1908, %v1922
      %v1929 = vadd.f32 %v1926, %v1927
      %v1930 = vadd.f32 %v1929, %v1928
      %1931 = vadd.xlane.f32.xlu0 %v1930
      %v1932 = vpop.xlane.xlu0 %1931
      %v1933 = vmul.f32 %v1926, %v1926
      %v1934 = vmul.f32 %v1927, %v1927
      %v1935 = vmul.f32 %v1928, %v1928
      %v1936 = vadd.f32 %v1933, %v1934
      %v1937 = vadd.f32 %v1936, %v1935
      %1938 = vadd.xlane.f32.xlu0 %v1937
      %v1939 = vpop.xlane.xlu0 %1938
      %v1940 = vmul.f32 %v1932, 0.00390625
      %v1941 = vmul.f32 %v1939, 0.00390625
      %v1942 = vmul.f32 %v1940, %v1940
      %v1943 = vsub.f32 %v1941, %v1942
      %v1944 = vmax.f32 %v1943, 0.0
      %v1945 = vsub.f32 %v1906, %v1940
      %v1946 = vsub.f32 %v1907, %v1940
      %v1947 = vsub.f32 %v1908, %v1940
      %v1948 = vadd.f32 %v1944, 1e-05
      %v1949 = vrsqrt.pop %v1948
      %v1950 = vmul.f32 %v1945, %v1949
      %v1951 = vmul.f32 %v1946, %v1949
      %v1952 = vmul.f32 %v1947, %v1949
      %v1953 = vld [vmem:[%s2] sm:$0xff]
      %1955 = vset.pattern.permute.xlu0 0
      %1956 = vperm.xlu0 %1955, %v1953
      %v1957 = vpop.permute.xlu0 %1956
      %v1959 = vmul.f32 %v1950, %v1957
      %v1960 = vmul.f32 %v1951, %v1957
      %v1961 = vmul.f32 %v1952, %v1957
      %v1962 = vld [vmem:[%s3] sm:$0xff]
      %1964 = vset.pattern.permute.xlu0 0
      %1965 = vperm.xlu0 %1964, %v1962
      %v1966 = vpop.permute.xlu0 %1965
      %v1968 = vadd.f32 %v1959, %v1966
      %v1969 = vadd.f32 %v1960, %v1966
      %v1970 = vadd.f32 %v1961, %v1966
      %v1971 = vmax.f32 %v1968, 0.0
      %v1972 = vmax.f32 %v1969, 0.0
      %v1973 = vmax.f32 %v1970, 0.0
      %1974 = vst [vmem:[%s224] sm:$0xff] %v1971
      %1975 = vst [vmem:[%s224 + $0x8] sm:$0xff] %v1972
      %1976 = vst [vmem:[%s224 + $0x10] sm:$0xff] %v1973
      %p1977 = scmp.lt.s32.totalorder %s16, 1
      %s1978 = scalar_select %p1977, %s16, 1
      %s1979 = smul.addr %s1978, 3
      %s1980 = smul.addr %s1979, 8
      %s1981 = scalar_lea.vmem %s5, %s1980
      // Predicated region
      $region41: #{mask_generator_r.3} parent=39 // pred_check
        %p1982 = pneg %p144
      $region42: #{mask_generator_r.3} parent=39 // pred_check_branch
        %1984 = sbr.rel (%p1982) target = $region44
      $region43: #{mask_generator_r.3} parent=39 // pred_region
        _
      $region44: #{mask_generator_r.3} parent=39 // pred_fallthru
        _
    $region40: #{mask_generator_r.3} parent=5 // pred_fallthru
      _
    %p1985 = scmp.le.s32.totalorder 2, %s11
    // Predicated region
    $region45: #{mask_generator_r.3} parent=5 // pred_check
      %p1986 = pneg %p1985
    $region46: #{mask_generator_r.3} parent=5 // pred_check_branch
      %1988 = sbr.rel (%p1986) target = $region48
    $region47: #{mask_generator_r.3} parent=5 // pred_region
      %s1989 = ssub.s32 %s11, 2
      // Predicated region
      $region49: #{mask_generator_r.3} parent=47 // pred_check
        %p1990 = pneg %p150
      $region50: #{mask_generator_r.3} parent=47 // pred_check_branch
        %1992 = sbr.rel (%p1990) target = $region52
      $region51: #{mask_generator_r.3} parent=47 // pred_region
        %p1993 = scmp.lt.s32.totalorder %s17, 1
        %s1994 = scalar_select %p1993, %s17, 1
        %s1995 = smul.addr %s1994, 3
        %s1996 = smul.addr %s1995, 8
        %s1997 = scalar_lea.vmem %s5, %s1996
      $region52: #{mask_generator_r.3} parent=47 // pred_fallthru
        _
    $region48: #{mask_generator_r.3} parent=5 // pred_fallthru
      _
  $region6: #{mask_generator_r.3} parent=0 // loop_footer
    %s15 = sadd.s32 1, %s11
  $region7: #{mask_generator_r.3} parent=0 // loop_footer_branch
    %10 = sbr.rel target = $region3
  $region8: #{mask_generator_r.3} parent=0 // loop_exit
    _

// kernel: mask_generator_r.4
$region0: #{mask_generator_r.4}
  #allocation0 [shape = 'u32[]', space=smem, size = 0x4, offset = 0x4, fixed_abs, tag = 'smem constant byte address 0x4 - core index']
  #allocation1 [shape = 'u32[144,128]{1,0:T(1,128)}', space=vmem, size = 0x12000, scoped, tag = 'internal scratch']
  %s0 = inlined_call_operand.vmem [shape: bf16[2,8,1280], index: 0, kind: input, shape index: {}]
  %s1 = inlined_call_operand.vmem [shape: bf16[16,4,8], index: 1, kind: input, shape index: {}]
  %s2 = inlined_call_operand.vmem [shape: f32[4,1], index: 2, kind: input, shape index: {}]
  %s3 = inlined_call_operand.vmem [shape: f32[4,1], index: 3, kind: input, shape index: {}]
  %s4 = inlined_call_operand.vmem [shape: f32[1,1152], index: 4, kind: input, shape index: {}]
  %s5 = inlined_call_operand.vmem [shape: f32[2,4,1152], index: 5, kind: output, shape index: {}]
  %s6 = sld [smem:[#allocation0]]
  $region53: #{mask_generator_r.4} parent=0
    _
  %s8 = ssub.s32 1, %s6
  %s9 = scalar_select 0, %s8, %s6
  loop: start=0, step=1, limit=4
  $region2: #{mask_generator_r.4} parent=0 // loop_pre_header
    _
  $region3: #{mask_generator_r.4} parent=0 // loop_header
    %s11 = sphi 0, %s15
    %p12 = scmp.ge.s32.totalorder %s11, 4
    %s21 = sphi 0, %s23
    %s24 = sphi 0, %s21
    %s25 = sphi 0, %s24
    %s41 = sphi 0, %s25
    %s45 = sphi 0, %s45
    %s47 = sphi 0, %s45
    %s48 = sphi 0, %s47
    %s62 = sphi 0, %s48
    %s66 = sphi 0, %s66
    %s68 = sphi 0, %s66
    %s69 = sphi 0, %s68
    %s83 = sphi 0, %s69
    %s87 = sphi 0, %s87
    %s89 = sphi 0, %s87
    %s90 = sphi 0, %s89
    %s104 = sphi 0, %s90
    %s108 = sphi 0, %s108
    %s110 = sphi 0, %s108
    %s111 = sphi 0, %s110
    %s125 = sphi 0, %s111
    %s131 = sphi 0, %s133
    %s134 = sphi 0, %s131
    %s135 = sphi 0, %s134
    %s151 = sphi 0, %s135
  $region4: #{mask_generator_r.4} parent=0 // loop_header_branch
    %14 = sbr.rel (%p12) target = $region8
  $region5: #{mask_generator_r.4} parent=0 // loop_body
    %s16 = ssub.s32 %s11, 1
    %s17 = ssub.s32 %s11, 2
    %s18 = sadd.s32 %s11, 1
    %s19 = ssub.s32 %s11, %s18
    %p20 = scmp.eq.s32.totalorder %s19, 0
    %s22 = sadd.s32 %s21, 1
    %s23 = scalar_select %p20, %s21, %s22
    %p26 = pneg %p20
    %p27 = scmp.eq.s32.totalorder %s11, 1
    %p28 = por %p26, %p27
    %p29 = scmp.ne.s32.totalorder %s21, %s24
    %p30 = scmp.eq.s32.totalorder %s11, 0
    %p31 = por %p29, %p30
    %p32 = scmp.ne.s32.totalorder %s21, %s24
    %p33 = scmp.eq.s32.totalorder %s16, 1
    %p34 = por %p32, %p33
    %p35 = scmp.ne.s32.totalorder %s24, %s25
    %p36 = scmp.eq.s32.totalorder %s16, 0
    %p37 = por %p35, %p36
    %p38 = scmp.ne.s32.totalorder %s24, %s25
    %p39 = scmp.eq.s32.totalorder %s17, 1
    %p40 = por %p38, %p39
    %p42 = scmp.ne.s32.totalorder %s25, %s41
    %p43 = scmp.eq.s32.totalorder %s17, 0
    %p44 = por %p42, %p43
    %s46 = sadd.s32 %s45, 1
    %p49 = scmp.eq.s32.totalorder %s11, 1
    %p50 = scmp.ne.s32.totalorder %s45, %s47
    %p51 = scmp.eq.s32.totalorder %s11, 0
    %p52 = por %p50, %p51
    %p53 = scmp.ne.s32.totalorder %s45, %s47
    %p54 = scmp.eq.s32.totalorder %s16, 1
    %p55 = por %p53, %p54
    %p56 = scmp.ne.s32.totalorder %s47, %s48
    %p57 = scmp.eq.s32.totalorder %s16, 0
    %p58 = por %p56, %p57
    %p59 = scmp.ne.s32.totalorder %s47, %s48
    %p60 = scmp.eq.s32.totalorder %s17, 1
    %p61 = por %p59, %p60
    %p63 = scmp.ne.s32.totalorder %s48, %s62
    %p64 = scmp.eq.s32.totalorder %s17, 0
    %p65 = por %p63, %p64
    %s67 = sadd.s32 %s66, 1
    %p70 = scmp.eq.s32.totalorder %s11, 1
    %p71 = scmp.ne.s32.totalorder %s66, %s68
    %p72 = scmp.eq.s32.totalorder %s11, 0
    %p73 = por %p71, %p72
    %p74 = scmp.ne.s32.totalorder %s66, %s68
    %p75 = scmp.eq.s32.totalorder %s16, 1
    %p76 = por %p74, %p75
    %p77 = scmp.ne.s32.totalorder %s68, %s69
    %p78 = scmp.eq.s32.totalorder %s16, 0
    %p79 = por %p77, %p78
    %p80 = scmp.ne.s32.totalorder %s68, %s69
    %p81 = scmp.eq.s32.totalorder %s17, 1
    %p82 = por %p80, %p81
    %p84 = scmp.ne.s32.totalorder %s69, %s83
    %p85 = scmp.eq.s32.totalorder %s17, 0
    %p86 = por %p84, %p85
    %s88 = sadd.s32 %s87, 1
    %p91 = scmp.eq.s32.totalorder %s11, 1
    %p92 = scmp.ne.s32.totalorder %s87, %s89
    %p93 = scmp.eq.s32.totalorder %s11, 0
    %p94 = por %p92, %p93
    %p95 = scmp.ne.s32.totalorder %s87, %s89
    %p96 = scmp.eq.s32.totalorder %s16, 1
    %p97 = por %p95, %p96
    %p98 = scmp.ne.s32.totalorder %s89, %s90
    %p99 = scmp.eq.s32.totalorder %s16, 0
    %p100 = por %p98, %p99
    %p101 = scmp.ne.s32.totalorder %s89, %s90
    %p102 = scmp.eq.s32.totalorder %s17, 1
    %p103 = por %p101, %p102
    %p105 = scmp.ne.s32.totalorder %s90, %s104
    %p106 = scmp.eq.s32.totalorder %s17, 0
    %p107 = por %p105, %p106
    %s109 = sadd.s32 %s108, 1
    %p112 = scmp.eq.s32.totalorder %s11, 1
    %p113 = scmp.ne.s32.totalorder %s108, %s110
    %p114 = scmp.eq.s32.totalorder %s11, 0
    %p115 = por %p113, %p114
    %p116 = scmp.ne.s32.totalorder %s108, %s110
    %p117 = scmp.eq.s32.totalorder %s16, 1
    %p118 = por %p116, %p117
    %p119 = scmp.ne.s32.totalorder %s110, %s111
    %p120 = scmp.eq.s32.totalorder %s16, 0
    %p121 = por %p119, %p120
    %p122 = scmp.ne.s32.totalorder %s110, %s111
    %p123 = scmp.eq.s32.totalorder %s17, 1
    %p124 = por %p122, %p123
    %p126 = scmp.ne.s32.totalorder %s111, %s125
    %p127 = scmp.eq.s32.totalorder %s17, 0
    %p128 = por %p126, %p127
    %s129 = ssub.s32 %s11, %s18
    %p130 = scmp.eq.s32.totalorder %s129, 0
    %s132 = sadd.s32 %s131, 1
    %s133 = scalar_select %p130, %s131, %s132
    %p136 = pneg %p130
    %p137 = scmp.eq.s32.totalorder %s11, 1
    %p138 = por %p136, %p137
    %p139 = scmp.ne.s32.totalorder %s131, %s134
    %p140 = scmp.eq.s32.totalorder %s11, 0
    %p141 = por %p139, %p140
    %p142 = scmp.ne.s32.totalorder %s131, %s134
    %p143 = scmp.eq.s32.totalorder %s16, 1
    %p144 = por %p142, %p143
    %p145 = scmp.ne.s32.totalorder %s134, %s135
    %p146 = scmp.eq.s32.totalorder %s16, 0
    %p147 = por %p145, %p146
    %p148 = scmp.ne.s32.totalorder %s134, %s135
    %p149 = scmp.eq.s32.totalorder %s17, 1
    %p150 = por %p148, %p149
    %p152 = scmp.ne.s32.totalorder %s135, %s151
    %p153 = scmp.eq.s32.totalorder %s17, 0
    %p154 = por %p152, %p153
    %p155 = scmp.le.s32.totalorder 1, %s11
    %p156 = scmp.lt.s32.totalorder %s11, 3
    %p157 = pnand %p155, %p156
    %p158 = pneg %p157
    // Predicated region
    $region9: #{mask_generator_r.4} parent=5 // pred_check
      _
    $region10: #{mask_generator_r.4} parent=5 // pred_check_branch
      %160 = sbr.rel (%p157) target = $region12
    $region11: #{mask_generator_r.4} parent=5 // pred_region
      %s161 = ssub.s32 %s11, 1
      // Predicated region
      $region13: #{mask_generator_r.4} parent=11 // pred_check
        %p162 = pneg %p58
      $region14: #{mask_generator_r.4} parent=11 // pred_check_branch
        %164 = sbr.rel (%p162) target = $region16
      $region15: #{mask_generator_r.4} parent=11 // pred_region
        _
      $region16: #{mask_generator_r.4} parent=11 // pred_fallthru
        _
      // Predicated region
      $region17: #{mask_generator_r.4} parent=11 // pred_check
        %p165 = pneg %p79
      $region18: #{mask_generator_r.4} parent=11 // pred_check_branch
        %167 = sbr.rel (%p165) target = $region20
      $region19: #{mask_generator_r.4} parent=11 // pred_region
        _
      $region20: #{mask_generator_r.4} parent=11 // pred_fallthru
        _
      // Predicated region
      $region21: #{mask_generator_r.4} parent=11 // pred_check
        %p168 = pneg %p100
      $region22: #{mask_generator_r.4} parent=11 // pred_check_branch
        %170 = sbr.rel (%p168) target = $region24
      $region23: #{mask_generator_r.4} parent=11 // pred_region
        _
      $region24: #{mask_generator_r.4} parent=11 // pred_fallthru
        _
      // Predicated region
      $region25: #{mask_generator_r.4} parent=11 // pred_check
        %p171 = pneg %p121
      $region26: #{mask_generator_r.4} parent=11 // pred_check_branch
        %173 = sbr.rel (%p171) target = $region28
      $region27: #{mask_generator_r.4} parent=11 // pred_region
        _
      $region28: #{mask_generator_r.4} parent=11 // pred_fallthru
        _
    $region12: #{mask_generator_r.4} parent=5 // pred_fallthru
      _
    %p174 = scmp.lt.s32.totalorder %s11, 2
    // Predicated region
    $region29: #{mask_generator_r.4} parent=5 // pred_check
      %p175 = pneg %p174
    $region30: #{mask_generator_r.4} parent=5 // pred_check_branch
      %177 = sbr.rel (%p175) target = $region32
    $region31: #{mask_generator_r.4} parent=5 // pred_region
      // Predicated region
      $region33: #{mask_generator_r.4} parent=31 // pred_check
        %p178 = pneg %p31
      $region34: #{mask_generator_r.4} parent=31 // pred_check_branch
        %180 = sbr.rel (%p178) target = $region36
      $region35: #{mask_generator_r.4} parent=31 // pred_region
        %p181 = scmp.lt.s32.totalorder %s11, 1
        %s182 = scalar_select %p181, %s11, 1
        %s183 = smul.addr %s182, 10
        %s184 = smul.addr %s183, 4
        %s185 = scalar_lea.vmem %s0, %s184
      $region36: #{mask_generator_r.4} parent=31 // pred_fallthru
        _
    $region32: #{mask_generator_r.4} parent=5 // pred_fallthru
      _
    %p186 = scmp.le.s32.totalorder 1, %s11
    %p187 = scmp.lt.s32.totalorder %s11, 3
    %p188 = pnand %p186, %p187
    %p189 = pneg %p188
    // Predicated region
    $region37: #{mask_generator_r.4} parent=5 // pred_check
      _
    $region38: #{mask_generator_r.4} parent=5 // pred_check_branch
      %191 = sbr.rel (%p188) target = $region40
    $region39: #{mask_generator_r.4} parent=5 // pred_region
      %s192 = ssub.s32 %s11, 1
      %p193 = scmp.lt.s32.totalorder %s16, 1
      %s194 = scalar_select %p193, %s16, 1
      %s195 = smul.addr %s194, 10
      %s196 = smul.addr %s195, 4
      %s197 = scalar_lea.vmem %s0, %s196
      %p198 = pneg %p37
      %p199 = pneg %p34
      %p200 = pneg %p58
      %p201 = pneg %p55
      %p202 = pneg %p79
      %p203 = pneg %p76
      %p204 = pneg %p100
      %p205 = pneg %p97
      %p206 = pneg %p121
      %p207 = pneg %p118
      %p208 = pneg %p147
      %p209 = pneg %p144
      %p210 = scmp.lt.s32.totalorder %s16, 1
      %s211 = scalar_select %p210, %s16, 1
      %s212 = smul.addr %s211, 9
      %s213 = smul.addr %s212, 4
      %s214 = scalar_lea.vmem %s5, %s213
      %p215 = scmp.lt.s32.totalorder %s16, 1
      %s216 = scalar_select %p215, %s16, 1
      %s217 = smul.addr %s216, 10
      %s218 = smul.addr %s217, 4
      %s219 = scalar_lea.vmem %s0, %s218
      %p220 = scmp.lt.s32.totalorder %s16, 1
      %s221 = scalar_select %p220, %s16, 1
      %s222 = smul.addr %s221, 9
      %s223 = smul.addr %s222, 4
      %s224 = scalar_lea.vmem %s5, %s223
      %v226 = vld [vmem:[%s1] sm:$0x3]
      %v227 = vld [vmem:[%s219] sm:$0xff]
      %v228 = vld [vmem:[%s219 + $0x8] sm:$0xff]
      %v229 = vld [vmem:[%s219 + $0x10] sm:$0xff]
      %v230 = vld [vmem:[%s219 + $0x18] sm:$0xff]
      %v231 = vld [vmem:[%s219 + $0x20] sm:$0xf]
      %s232 = scalar_lea.vmem %s1, 2
      %v233 = vld [vmem:[%s232] sm:$0x3]
      %v234 = vld [vmem:[%s219] sm:$0xff]
      %v235 = vld [vmem:[%s219 + $0x8] sm:$0xff]
      %v236 = vld [vmem:[%s219 + $0x10] sm:$0xff]
      %v237 = vld [vmem:[%s219 + $0x18] sm:$0xff]
      %v238 = vld [vmem:[%s219 + $0x20] sm:$0xff]
      %v244 = vunpack.c.l.b16 %v234
      %v245 = vunpack.c.h.b16 %v234
      %v246 = vunpack.c.l.b16 %v235
      %v247 = vunpack.c.h.b16 %v235
      %v248 = vunpack.c.l.b16 %v236
      %v249 = vunpack.c.h.b16 %v236
      %v250 = vunpack.c.l.b16 %v237
      %v251 = vunpack.c.h.b16 %v237
      %v252 = vunpack.c.l.b16 %v238
      %v253 = vunpack.c.h.b16 %v238
      %v254 = vpack.c.b16 %v244, %v244
      %v255 = vpack.c.b16 %v245, %v245
      %v256 = vpack.c.b16 %v246, %v246
      %v257 = vpack.c.b16 %v247, %v247
      %v258 = vpack.c.b16 %v248, %v248
      %v259 = vpack.c.b16 %v249, %v249
      %v260 = vpack.c.b16 %v250, %v250
      %v261 = vpack.c.b16 %v251, %v251
      %v262 = vpack.c.b16 %v252, %v252
      %v263 = vpack.c.b16 %v253, %v253
      %264 = vrot.lane.b32.xlu0 %v254, 127
      %v265 = vpop.permute.xlu0 %264
      %266 = vrot.lane.b32.xlu0 %v255, 127
      %v267 = vpop.permute.xlu0 %266
      %268 = vrot.lane.b32.xlu0 %v256, 127
      %v269 = vpop.permute.xlu0 %268
      %270 = vrot.lane.b32.xlu0 %v257, 127
      %v271 = vpop.permute.xlu0 %270
      %272 = vrot.lane.b32.xlu0 %v258, 127
      %v273 = vpop.permute.xlu0 %272
      %274 = vrot.lane.b32.xlu0 %v259, 127
      %v275 = vpop.permute.xlu0 %274
      %276 = vrot.lane.b32.xlu0 %v260, 127
      %v277 = vpop.permute.xlu0 %276
      %278 = vrot.lane.b32.xlu0 %v261, 127
      %v279 = vpop.permute.xlu0 %278
      %280 = vrot.lane.b32.xlu0 %v262, 127
      %v281 = vpop.permute.xlu0 %280
      %282 = vrot.lane.b32.xlu0 %v263, 127
      %v283 = vpop.permute.xlu0 %282
      %vm284 = vcmask 1039360
      %v285 = vsel %vm284, %v265, %v267
      %v286 = vsel %vm284, %v267, %v269
      %v287 = vsel %vm284, %v269, %v271
      %v288 = vsel %vm284, %v271, %v273
      %v289 = vsel %vm284, %v273, %v275
      %v290 = vsel %vm284, %v275, %v277
      %v291 = vsel %vm284, %v277, %v279
      %v292 = vsel %vm284, %v279, %v281
      %v293 = vsel %vm284, %v281, %v283
      %vm294 = vcmask 64512
      %v296 = vsel %vm294, %v233, 0
      %vm298 = vcmask 1043456
      %v300 = vsel %vm298, %v285, 0
      %v303 = vsel %vm298, %v286, 0
      %v306 = vsel %vm298, %v287, 0
      %v309 = vsel %vm298, %v288, 0
      %v312 = vsel %vm298, %v289, 0
      %v315 = vsel %vm298, %v290, 0
      %v318 = vsel %vm298, %v291, 0
      %v321 = vsel %vm298, %v292, 0
      %v324 = vsel %vm298, %v293, 0
      %326 = vmatprep.subr.bf16.mxu0 0
      %327 = vmatpush1.bf16.msra.mxu0 0
      %328 = vmatprep.subr.bf16.mxu0 0
      %329 = vmatpush1.bf16.msra.mxu0 0
      %330 = vmatprep.subr.bf16.mxu0 0
      %331 = vmatpush1.bf16.msra.mxu0 0
      %332 = vmatprep.subr.bf16.mxu0 0
      %333 = vmatpush1.bf16.msra.mxu0 0
      %334 = vmatprep.subr.bf16.mxu0 0
      %335 = vmatpush1.bf16.msra.mxu0 0
      %336 = vmatprep.subr.bf16.mxu0 0
      %337 = vmatpush1.bf16.msra.mxu0 0
      %338 = vmatprep.subr.bf16.mxu0 0
      %339 = vmatpush1.bf16.msra.mxu0 0
      %340 = vmatprep.subr.bf16.mxu0 %v303
      %341 = vmatpush1.bf16.msra.mxu0 %v300
      %342 = vmatprep.subr.bf16.mxu0 0
      %343 = vmatpush2.bf16.msra.mxu0 0
      %344 = vmatprep.subr.bf16.mxu0 0
      %345 = vmatpush2.bf16.msra.mxu0 0
      %346 = vmatprep.subr.bf16.mxu0 0
      %347 = vmatpush2.bf16.msra.mxu0 0
      %348 = vmatprep.subr.bf16.mxu0 0
      %349 = vmatpush2.bf16.msra.mxu0 0
      %350 = vmatprep.subr.bf16.mxu0 0
      %351 = vmatpush2.bf16.msra.mxu0 0
      %352 = vmatprep.subr.bf16.mxu0 0
      %353 = vmatpush2.bf16.msra.mxu0 0
      %354 = vmatprep.subr.bf16.mxu0 0
      %355 = vmatpush2.bf16.msra.mxu0 0
      %356 = vmatprep.subr.bf16.mxu0 0
      %357 = vmatpush2.bf16.msra.mxu0 0
      %358 = vmatprep.mubr.bf16.mxu0 0
      %359 = vmatmul.mubr.bf16.gmra.mxu0 %v296
      %v360 = vpop.f32.mrf.mxu0
      %v361 = vadd.f32 0.0, %v360
      %v362 = vpop.f32.mrf.mxu0
      %v363 = vadd.f32 0.0, %v362
      %v364 = vpop.f32.mrf.mxu0
      %v365 = vpop.f32.mrf.mxu0
      %366 = vdwg.mxu0
      %367 = vmatprep.subr.bf16.mxu0 0
      %368 = vmatpush1.bf16.msra.mxu0 0
      %369 = vmatprep.subr.bf16.mxu0 0
      %370 = vmatpush1.bf16.msra.mxu0 0
      %371 = vmatprep.subr.bf16.mxu0 0
      %372 = vmatpush1.bf16.msra.mxu0 0
      %373 = vmatprep.subr.bf16.mxu0 0
      %374 = vmatpush1.bf16.msra.mxu0 0
      %375 = vmatprep.subr.bf16.mxu0 0
      %376 = vmatpush1.bf16.msra.mxu0 0
      %377 = vmatprep.subr.bf16.mxu0 0
      %378 = vmatpush1.bf16.msra.mxu0 0
      %379 = vmatprep.subr.bf16.mxu0 0
      %380 = vmatpush1.bf16.msra.mxu0 0
      %381 = vmatprep.subr.bf16.mxu0 %v309
      %382 = vmatpush1.bf16.msra.mxu0 %v306
      %383 = vmatprep.subr.bf16.mxu0 0
      %384 = vmatpush2.bf16.msra.mxu0 0
      %385 = vmatprep.subr.bf16.mxu0 0
      %386 = vmatpush2.bf16.msra.mxu0 0
      %387 = vmatprep.subr.bf16.mxu0 0
      %388 = vmatpush2.bf16.msra.mxu0 0
      %389 = vmatprep.subr.bf16.mxu0 0
      %390 = vmatpush2.bf16.msra.mxu0 0
      %391 = vmatprep.subr.bf16.mxu0 0
      %392 = vmatpush2.bf16.msra.mxu0 0
      %393 = vmatprep.subr.bf16.mxu0 0
      %394 = vmatpush2.bf16.msra.mxu0 0
      %395 = vmatprep.subr.bf16.mxu0 0
      %396 = vmatpush2.bf16.msra.mxu0 0
      %397 = vmatprep.subr.bf16.mxu0 0
      %398 = vmatpush2.bf16.msra.mxu0 0
      %399 = vmatprep.mubr.bf16.mxu0 0
      %400 = vmatmul.mubr.bf16.gmra.mxu0 %v296
      %v401 = vpop.f32.mrf.mxu0
      %v402 = vadd.f32 0.0, %v401
      %v403 = vpop.f32.mrf.mxu0
      %v404 = vadd.f32 0.0, %v403
      %v405 = vpop.f32.mrf.mxu0
      %v406 = vpop.f32.mrf.mxu0
      %407 = vdwg.mxu0
      %408 = vmatprep.subr.bf16.mxu0 0
      %409 = vmatpush1.bf16.msra.mxu0 0
      %410 = vmatprep.subr.bf16.mxu0 0
      %411 = vmatpush1.bf16.msra.mxu0 0
      %412 = vmatprep.subr.bf16.mxu0 0
      %413 = vmatpush1.bf16.msra.mxu0 0
      %414 = vmatprep.subr.bf16.mxu0 0
      %415 = vmatpush1.bf16.msra.mxu0 0
      %416 = vmatprep.subr.bf16.mxu0 0
      %417 = vmatpush1.bf16.msra.mxu0 0
      %418 = vmatprep.subr.bf16.mxu0 0
      %419 = vmatpush1.bf16.msra.mxu0 0
      %420 = vmatprep.subr.bf16.mxu0 0
      %421 = vmatpush1.bf16.msra.mxu0 0
      %422 = vmatprep.subr.bf16.mxu0 %v315
      %423 = vmatpush1.bf16.msra.mxu0 %v312
      %424 = vmatprep.subr.bf16.mxu0 0
      %425 = vmatpush2.bf16.msra.mxu0 0
      %426 = vmatprep.subr.bf16.mxu0 0
      %427 = vmatpush2.bf16.msra.mxu0 0
      %428 = vmatprep.subr.bf16.mxu0 0
      %429 = vmatpush2.bf16.msra.mxu0 0
      %430 = vmatprep.subr.bf16.mxu0 0
      %431 = vmatpush2.bf16.msra.mxu0 0
      %432 = vmatprep.subr.bf16.mxu0 0
      %433 = vmatpush2.bf16.msra.mxu0 0
      %434 = vmatprep.subr.bf16.mxu0 0
      %435 = vmatpush2.bf16.msra.mxu0 0
      %436 = vmatprep.subr.bf16.mxu0 0
      %437 = vmatpush2.bf16.msra.mxu0 0
      %438 = vmatprep.subr.bf16.mxu0 0
      %439 = vmatpush2.bf16.msra.mxu0 0
      %440 = vmatprep.mubr.bf16.mxu0 0
      %441 = vmatmul.mubr.bf16.gmra.mxu0 %v296
      %v442 = vpop.f32.mrf.mxu0
      %v443 = vadd.f32 0.0, %v442
      %v444 = vpop.f32.mrf.mxu0
      %v445 = vadd.f32 0.0, %v444
      %v446 = vpop.f32.mrf.mxu0
      %v447 = vpop.f32.mrf.mxu0
      %448 = vdwg.mxu0
      %449 = vmatprep.subr.bf16.mxu0 0
      %450 = vmatpush1.bf16.msra.mxu0 0
      %451 = vmatprep.subr.bf16.mxu0 0
      %452 = vmatpush1.bf16.msra.mxu0 0
      %453 = vmatprep.subr.bf16.mxu0 0
      %454 = vmatpush1.bf16.msra.mxu0 0
      %455 = vmatprep.subr.bf16.mxu0 0
      %456 = vmatpush1.bf16.msra.mxu0 0
      %457 = vmatprep.subr.bf16.mxu0 0
      %458 = vmatpush1.bf16.msra.mxu0 0
      %459 = vmatprep.subr.bf16.mxu0 0
      %460 = vmatpush1.bf16.msra.mxu0 0
      %461 = vmatprep.subr.bf16.mxu0 0
      %462 = vmatpush1.bf16.msra.mxu0 0
      %463 = vmatprep.subr.bf16.mxu0 %v321
      %464 = vmatpush1.bf16.msra.mxu0 %v318
      %465 = vmatprep.subr.bf16.mxu0 0
      %466 = vmatpush2.bf16.msra.mxu0 0
      %467 = vmatprep.subr.bf16.mxu0 0
      %468 = vmatpush2.bf16.msra.mxu0 0
      %469 = vmatprep.subr.bf16.mxu0 0
      %470 = vmatpush2.bf16.msra.mxu0 0
      %471 = vmatprep.subr.bf16.mxu0 0
      %472 = vmatpush2.bf16.msra.mxu0 0
      %473 = vmatprep.subr.bf16.mxu0 0
      %474 = vmatpush2.bf16.msra.mxu0 0
      %475 = vmatprep.subr.bf16.mxu0 0
      %476 = vmatpush2.bf16.msra.mxu0 0
      %477 = vmatprep.subr.bf16.mxu0 0
      %478 = vmatpush2.bf16.msra.mxu0 0
      %479 = vmatprep.subr.bf16.mxu0 0
      %480 = vmatpush2.bf16.msra.mxu0 0
      %481 = vmatprep.mubr.bf16.mxu0 0
      %482 = vmatmul.mubr.bf16.gmra.mxu0 %v296
      %v483 = vpop.f32.mrf.mxu0
      %v484 = vadd.f32 0.0, %v483
      %v485 = vpop.f32.mrf.mxu0
      %v486 = vadd.f32 0.0, %v485
      %v487 = vpop.f32.mrf.mxu0
      %v488 = vpop.f32.mrf.mxu0
      %489 = vdwg.mxu0
      %490 = vmatprep.subr.bf16.mxu0 0
      %491 = vmatpush1.bf16.msra.mxu0 0
      %492 = vmatprep.subr.bf16.mxu0 0
      %493 = vmatpush1.bf16.msra.mxu0 0
      %494 = vmatprep.subr.bf16.mxu0 0
      %495 = vmatpush1.bf16.msra.mxu0 0
      %496 = vmatprep.subr.bf16.mxu0 0
      %497 = vmatpush1.bf16.msra.mxu0 0
      %498 = vmatprep.subr.bf16.mxu0 0
      %499 = vmatpush1.bf16.msra.mxu0 0
      %500 = vmatprep.subr.bf16.mxu0 0
      %501 = vmatpush1.bf16.msra.mxu0 0
      %502 = vmatprep.subr.bf16.mxu0 0
      %503 = vmatpush1.bf16.msra.mxu0 0
      %504 = vmatprep.subr.bf16.mxu0 0
      %505 = vmatpush1.bf16.msra.mxu0 %v324
      %506 = vmatprep.subr.bf16.mxu0 0
      %507 = vmatpush2.bf16.msra.mxu0 0
      %508 = vmatprep.subr.bf16.mxu0 0
      %509 = vmatpush2.bf16.msra.mxu0 0
      %510 = vmatprep.subr.bf16.mxu0 0
      %511 = vmatpush2.bf16.msra.mxu0 0
      %512 = vmatprep.subr.bf16.mxu0 0
      %513 = vmatpush2.bf16.msra.mxu0 0
      %514 = vmatprep.subr.bf16.mxu0 0
      %515 = vmatpush2.bf16.msra.mxu0 0
      %516 = vmatprep.subr.bf16.mxu0 0
      %517 = vmatpush2.bf16.msra.mxu0 0
      %518 = vmatprep.subr.bf16.mxu0 0
      %519 = vmatpush2.bf16.msra.mxu0 0
      %520 = vmatprep.subr.bf16.mxu0 0
      %521 = vmatpush2.bf16.msra.mxu0 0
      %522 = vmatprep.mubr.bf16.mxu0 0
      %523 = vmatmul.mubr.bf16.gmra.mxu0 %v296
      %v524 = vpop.f32.mrf.mxu0
      %v525 = vadd.f32 0.0, %v524
      %v526 = vpop.f32.mrf.mxu0
      %v527 = vpop.f32.mrf.mxu0
      %v528 = vpop.f32.mrf.mxu0
      %529 = vdwg.mxu0
      %v535 = vunpack.c.l.b16 %v227
      %v536 = vunpack.c.h.b16 %v227
      %v537 = vunpack.c.l.b16 %v228
      %v538 = vunpack.c.h.b16 %v228
      %v539 = vunpack.c.l.b16 %v229
      %v540 = vunpack.c.h.b16 %v229
      %v541 = vunpack.c.l.b16 %v230
      %v542 = vunpack.c.h.b16 %v230
      %v543 = vunpack.c.l.b16 %v231
      %v544 = vpack.c.b16 %v535, %v535
      %v545 = vpack.c.b16 %v536, %v536
      %v546 = vpack.c.b16 %v537, %v537
      %v547 = vpack.c.b16 %v538, %v538
      %v548 = vpack.c.b16 %v539, %v539
      %v549 = vpack.c.b16 %v540, %v540
      %v550 = vpack.c.b16 %v541, %v541
      %v551 = vpack.c.b16 %v542, %v542
      %v552 = vpack.c.b16 %v543, %v543
      %v554 = vsel %vm294, %v226, 0
      %v557 = vsel %vm298, %v544, 0
      %v560 = vsel %vm298, %v545, 0
      %v563 = vsel %vm298, %v546, 0
      %v566 = vsel %vm298, %v547, 0
      %v569 = vsel %vm298, %v548, 0
      %v572 = vsel %vm298, %v549, 0
      %v575 = vsel %vm298, %v550, 0
      %v578 = vsel %vm298, %v551, 0
      %v581 = vsel %vm298, %v552, 0
      %583 = vmatprep.subr.bf16.mxu0 0
      %584 = vmatpush1.bf16.msra.mxu0 0
      %585 = vmatprep.subr.bf16.mxu0 0
      %586 = vmatpush1.bf16.msra.mxu0 0
      %587 = vmatprep.subr.bf16.mxu0 0
      %588 = vmatpush1.bf16.msra.mxu0 0
      %589 = vmatprep.subr.bf16.mxu0 0
      %590 = vmatpush1.bf16.msra.mxu0 0
      %591 = vmatprep.subr.bf16.mxu0 0
      %592 = vmatpush1.bf16.msra.mxu0 0
      %593 = vmatprep.subr.bf16.mxu0 0
      %594 = vmatpush1.bf16.msra.mxu0 0
      %595 = vmatprep.subr.bf16.mxu0 0
      %596 = vmatpush1.bf16.msra.mxu0 0
      %597 = vmatprep.subr.bf16.mxu0 %v560
      %598 = vmatpush1.bf16.msra.mxu0 %v557
      %599 = vmatprep.subr.bf16.mxu0 0
      %600 = vmatpush2.bf16.msra.mxu0 0
      %601 = vmatprep.subr.bf16.mxu0 0
      %602 = vmatpush2.bf16.msra.mxu0 0
      %603 = vmatprep.subr.bf16.mxu0 0
      %604 = vmatpush2.bf16.msra.mxu0 0
      %605 = vmatprep.subr.bf16.mxu0 0
      %606 = vmatpush2.bf16.msra.mxu0 0
      %607 = vmatprep.subr.bf16.mxu0 0
      %608 = vmatpush2.bf16.msra.mxu0 0
      %609 = vmatprep.subr.bf16.mxu0 0
      %610 = vmatpush2.bf16.msra.mxu0 0
      %611 = vmatprep.subr.bf16.mxu0 0
      %612 = vmatpush2.bf16.msra.mxu0 0
      %613 = vmatprep.subr.bf16.mxu0 0
      %614 = vmatpush2.bf16.msra.mxu0 0
      %615 = vmatprep.mubr.bf16.mxu0 0
      %616 = vmatmul.mubr.bf16.gmra.mxu0 %v554
      %v617 = vpop.f32.mrf.mxu0
      %v618 = vadd.f32 %v361, %v617
      %v619 = vpop.f32.mrf.mxu0
      %v620 = vadd.f32 %v363, %v619
      %v621 = vpop.f32.mrf.mxu0
      %v622 = vpop.f32.mrf.mxu0
      %623 = vdwg.mxu0
      %624 = vmatprep.subr.bf16.mxu0 0
      %625 = vmatpush1.bf16.msra.mxu0 0
      %626 = vmatprep.subr.bf16.mxu0 0
      %627 = vmatpush1.bf16.msra.mxu0 0
      %628 = vmatprep.subr.bf16.mxu0 0
      %629 = vmatpush1.bf16.msra.mxu0 0
      %630 = vmatprep.subr.bf16.mxu0 0
      %631 = vmatpush1.bf16.msra.mxu0 0
      %632 = vmatprep.subr.bf16.mxu0 0
      %633 = vmatpush1.bf16.msra.mxu0 0
      %634 = vmatprep.subr.bf16.mxu0 0
      %635 = vmatpush1.bf16.msra.mxu0 0
      %636 = vmatprep.subr.bf16.mxu0 0
      %637 = vmatpush1.bf16.msra.mxu0 0
      %638 = vmatprep.subr.bf16.mxu0 %v566
      %639 = vmatpush1.bf16.msra.mxu0 %v563
      %640 = vmatprep.subr.bf16.mxu0 0
      %641 = vmatpush2.bf16.msra.mxu0 0
      %642 = vmatprep.subr.bf16.mxu0 0
      %643 = vmatpush2.bf16.msra.mxu0 0
      %644 = vmatprep.subr.bf16.mxu0 0
      %645 = vmatpush2.bf16.msra.mxu0 0
      %646 = vmatprep.subr.bf16.mxu0 0
      %647 = vmatpush2.bf16.msra.mxu0 0
      %648 = vmatprep.subr.bf16.mxu0 0
      %649 = vmatpush2.bf16.msra.mxu0 0
      %650 = vmatprep.subr.bf16.mxu0 0
      %651 = vmatpush2.bf16.msra.mxu0 0
      %652 = vmatprep.subr.bf16.mxu0 0
      %653 = vmatpush2.bf16.msra.mxu0 0
      %654 = vmatprep.subr.bf16.mxu0 0
      %655 = vmatpush2.bf16.msra.mxu0 0
      %656 = vmatprep.mubr.bf16.mxu0 0
      %657 = vmatmul.mubr.bf16.gmra.mxu0 %v554
      %v658 = vpop.f32.mrf.mxu0
      %v659 = vadd.f32 %v402, %v658
      %v660 = vpop.f32.mrf.mxu0
      %v661 = vadd.f32 %v404, %v660
      %v662 = vpop.f32.mrf.mxu0
      %v663 = vpop.f32.mrf.mxu0
      %664 = vdwg.mxu0
      %665 = vmatprep.subr.bf16.mxu0 0
      %666 = vmatpush1.bf16.msra.mxu0 0
      %667 = vmatprep.subr.bf16.mxu0 0
      %668 = vmatpush1.bf16.msra.mxu0 0
      %669 = vmatprep.subr.bf16.mxu0 0
      %670 = vmatpush1.bf16.msra.mxu0 0
      %671 = vmatprep.subr.bf16.mxu0 0
      %672 = vmatpush1.bf16.msra.mxu0 0
      %673 = vmatprep.subr.bf16.mxu0 0
      %674 = vmatpush1.bf16.msra.mxu0 0
      %675 = vmatprep.subr.bf16.mxu0 0
      %676 = vmatpush1.bf16.msra.mxu0 0
      %677 = vmatprep.subr.bf16.mxu0 0
      %678 = vmatpush1.bf16.msra.mxu0 0
      %679 = vmatprep.subr.bf16.mxu0 %v572
      %680 = vmatpush1.bf16.msra.mxu0 %v569
      %681 = vmatprep.subr.bf16.mxu0 0
      %682 = vmatpush2.bf16.msra.mxu0 0
      %683 = vmatprep.subr.bf16.mxu0 0
      %684 = vmatpush2.bf16.msra.mxu0 0
      %685 = vmatprep.subr.bf16.mxu0 0
      %686 = vmatpush2.bf16.msra.mxu0 0
      %687 = vmatprep.subr.bf16.mxu0 0
      %688 = vmatpush2.bf16.msra.mxu0 0
      %689 = vmatprep.subr.bf16.mxu0 0
      %690 = vmatpush2.bf16.msra.mxu0 0
      %691 = vmatprep.subr.bf16.mxu0 0
      %692 = vmatpush2.bf16.msra.mxu0 0
      %693 = vmatprep.subr.bf16.mxu0 0
      %694 = vmatpush2.bf16.msra.mxu0 0
      %695 = vmatprep.subr.bf16.mxu0 0
      %696 = vmatpush2.bf16.msra.mxu0 0
      %697 = vmatprep.mubr.bf16.mxu0 0
      %698 = vmatmul.mubr.bf16.gmra.mxu0 %v554
      %v699 = vpop.f32.mrf.mxu0
      %v700 = vadd.f32 %v443, %v699
      %v701 = vpop.f32.mrf.mxu0
      %v702 = vadd.f32 %v445, %v701
      %v703 = vpop.f32.mrf.mxu0
      %v704 = vpop.f32.mrf.mxu0
      %705 = vdwg.mxu0
      %706 = vmatprep.subr.bf16.mxu0 0
      %707 = vmatpush1.bf16.msra.mxu0 0
      %708 = vmatprep.subr.bf16.mxu0 0
      %709 = vmatpush1.bf16.msra.mxu0 0
      %710 = vmatprep.subr.bf16.mxu0 0
      %711 = vmatpush1.bf16.msra.mxu0 0
      %712 = vmatprep.subr.bf16.mxu0 0
      %713 = vmatpush1.bf16.msra.mxu0 0
      %714 = vmatprep.subr.bf16.mxu0 0
      %715 = vmatpush1.bf16.msra.mxu0 0
      %716 = vmatprep.subr.bf16.mxu0 0
      %717 = vmatpush1.bf16.msra.mxu0 0
      %718 = vmatprep.subr.bf16.mxu0 0
      %719 = vmatpush1.bf16.msra.mxu0 0
      %720 = vmatprep.subr.bf16.mxu0 %v578
      %721 = vmatpush1.bf16.msra.mxu0 %v575
      %722 = vmatprep.subr.bf16.mxu0 0
      %723 = vmatpush2.bf16.msra.mxu0 0
      %724 = vmatprep.subr.bf16.mxu0 0
      %725 = vmatpush2.bf16.msra.mxu0 0
      %726 = vmatprep.subr.bf16.mxu0 0
      %727 = vmatpush2.bf16.msra.mxu0 0
      %728 = vmatprep.subr.bf16.mxu0 0
      %729 = vmatpush2.bf16.msra.mxu0 0
      %730 = vmatprep.subr.bf16.mxu0 0
      %731 = vmatpush2.bf16.msra.mxu0 0
      %732 = vmatprep.subr.bf16.mxu0 0
      %733 = vmatpush2.bf16.msra.mxu0 0
      %734 = vmatprep.subr.bf16.mxu0 0
      %735 = vmatpush2.bf16.msra.mxu0 0
      %736 = vmatprep.subr.bf16.mxu0 0
      %737 = vmatpush2.bf16.msra.mxu0 0
      %738 = vmatprep.mubr.bf16.mxu0 0
      %739 = vmatmul.mubr.bf16.gmra.mxu0 %v554
      %v740 = vpop.f32.mrf.mxu0
      %v741 = vadd.f32 %v484, %v740
      %v742 = vpop.f32.mrf.mxu0
      %v743 = vadd.f32 %v486, %v742
      %v744 = vpop.f32.mrf.mxu0
      %v745 = vpop.f32.mrf.mxu0
      %746 = vdwg.mxu0
      %747 = vmatprep.subr.bf16.mxu0 0
      %748 = vmatpush1.bf16.msra.mxu0 0
      %749 = vmatprep.subr.bf16.mxu0 0
      %750 = vmatpush1.bf16.msra.mxu0 0
      %751 = vmatprep.subr.bf16.mxu0 0
      %752 = vmatpush1.bf16.msra.mxu0 0
      %753 = vmatprep.subr.bf16.mxu0 0
      %754 = vmatpush1.bf16.msra.mxu0 0
      %755 = vmatprep.subr.bf16.mxu0 0
      %756 = vmatpush1.bf16.msra.mxu0 0
      %757 = vmatprep.subr.bf16.mxu0 0
      %758 = vmatpush1.bf16.msra.mxu0 0
      %759 = vmatprep.subr.bf16.mxu0 0
      %760 = vmatpush1.bf16.msra.mxu0 0
      %761 = vmatprep.subr.bf16.mxu0 0
      %762 = vmatpush1.bf16.msra.mxu0 %v581
      %763 = vmatprep.subr.bf16.mxu0 0
      %764 = vmatpush2.bf16.msra.mxu0 0
      %765 = vmatprep.subr.bf16.mxu0 0
      %766 = vmatpush2.bf16.msra.mxu0 0
      %767 = vmatprep.subr.bf16.mxu0 0
      %768 = vmatpush2.bf16.msra.mxu0 0
      %769 = vmatprep.subr.bf16.mxu0 0
      %770 = vmatpush2.bf16.msra.mxu0 0
      %771 = vmatprep.subr.bf16.mxu0 0
      %772 = vmatpush2.bf16.msra.mxu0 0
      %773 = vmatprep.subr.bf16.mxu0 0
      %774 = vmatpush2.bf16.msra.mxu0 0
      %775 = vmatprep.subr.bf16.mxu0 0
      %776 = vmatpush2.bf16.msra.mxu0 0
      %777 = vmatprep.subr.bf16.mxu0 0
      %778 = vmatpush2.bf16.msra.mxu0 0
      %779 = vmatprep.mubr.bf16.mxu0 0
      %780 = vmatmul.mubr.bf16.gmra.mxu0 %v554
      %v781 = vpop.f32.mrf.mxu0
      %v782 = vadd.f32 %v525, %v781
      %v783 = vpop.f32.mrf.mxu0
      %v784 = vpop.f32.mrf.mxu0
      %v785 = vpop.f32.mrf.mxu0
      %786 = vdwg.mxu0
      %s787 = scalar_lea.vmem %s1, 4
      %v788 = vld [vmem:[%s787] sm:$0x3]
      %789 = vrot.lane.b32.xlu0 %v254, 126
      %v790 = vpop.permute.xlu0 %789
      %791 = vrot.lane.b32.xlu0 %v255, 126
      %v792 = vpop.permute.xlu0 %791
      %793 = vrot.lane.b32.xlu0 %v256, 126
      %v794 = vpop.permute.xlu0 %793
      %795 = vrot.lane.b32.xlu0 %v257, 126
      %v796 = vpop.permute.xlu0 %795
      %797 = vrot.lane.b32.xlu0 %v258, 126
      %v798 = vpop.permute.xlu0 %797
      %799 = vrot.lane.b32.xlu0 %v259, 126
      %v800 = vpop.permute.xlu0 %799
      %801 = vrot.lane.b32.xlu0 %v260, 126
      %v802 = vpop.permute.xlu0 %801
      %803 = vrot.lane.b32.xlu0 %v261, 126
      %v804 = vpop.permute.xlu0 %803
      %805 = vrot.lane.b32.xlu0 %v262, 126
      %v806 = vpop.permute.xlu0 %805
      %807 = vrot.lane.b32.xlu0 %v263, 126
      %v808 = vpop.permute.xlu0 %807
      %vm809 = vcmask 1031168
      %v810 = vsel %vm809, %v790, %v792
      %v811 = vsel %vm809, %v792, %v794
      %v812 = vsel %vm809, %v794, %v796
      %v813 = vsel %vm809, %v796, %v798
      %v814 = vsel %vm809, %v798, %v800
      %v815 = vsel %vm809, %v800, %v802
      %v816 = vsel %vm809, %v802, %v804
      %v817 = vsel %vm809, %v804, %v806
      %v818 = vsel %vm809, %v806, %v808
      %v820 = vsel %vm294, %v788, 0
      %v823 = vsel %vm298, %v810, 0
      %v826 = vsel %vm298, %v811, 0
      %v829 = vsel %vm298, %v812, 0
      %v832 = vsel %vm298, %v813, 0
      %v835 = vsel %vm298, %v814, 0
      %v838 = vsel %vm298, %v815, 0
      %v841 = vsel %vm298, %v816, 0
      %v844 = vsel %vm298, %v817, 0
      %v847 = vsel %vm298, %v818, 0
      %849 = vmatprep.subr.bf16.mxu0 0
      %850 = vmatpush1.bf16.msra.mxu0 0
      %851 = vmatprep.subr.bf16.mxu0 0
      %852 = vmatpush1.bf16.msra.mxu0 0
      %853 = vmatprep.subr.bf16.mxu0 0
      %854 = vmatpush1.bf16.msra.mxu0 0
      %855 = vmatprep.subr.bf16.mxu0 0
      %856 = vmatpush1.bf16.msra.mxu0 0
      %857 = vmatprep.subr.bf16.mxu0 0
      %858 = vmatpush1.bf16.msra.mxu0 0
      %859 = vmatprep.subr.bf16.mxu0 0
      %860 = vmatpush1.bf16.msra.mxu0 0
      %861 = vmatprep.subr.bf16.mxu0 0
      %862 = vmatpush1.bf16.msra.mxu0 0
      %863 = vmatprep.subr.bf16.mxu0 %v826
      %864 = vmatpush1.bf16.msra.mxu0 %v823
      %865 = vmatprep.subr.bf16.mxu0 0
      %866 = vmatpush2.bf16.msra.mxu0 0
      %867 = vmatprep.subr.bf16.mxu0 0
      %868 = vmatpush2.bf16.msra.mxu0 0
      %869 = vmatprep.subr.bf16.mxu0 0
      %870 = vmatpush2.bf16.msra.mxu0 0
      %871 = vmatprep.subr.bf16.mxu0 0
      %872 = vmatpush2.bf16.msra.mxu0 0
      %873 = vmatprep.subr.bf16.mxu0 0
      %874 = vmatpush2.bf16.msra.mxu0 0
      %875 = vmatprep.subr.bf16.mxu0 0
      %876 = vmatpush2.bf16.msra.mxu0 0
      %877 = vmatprep.subr.bf16.mxu0 0
      %878 = vmatpush2.bf16.msra.mxu0 0
      %879 = vmatprep.subr.bf16.mxu0 0
      %880 = vmatpush2.bf16.msra.mxu0 0
      %881 = vmatprep.mubr.bf16.mxu0 0
      %882 = vmatmul.mubr.bf16.gmra.mxu0 %v820
      %v883 = vpop.f32.mrf.mxu0
      %v884 = vadd.f32 0.0, %v883
      %v885 = vpop.f32.mrf.mxu0
      %v886 = vadd.f32 0.0, %v885
      %v887 = vpop.f32.mrf.mxu0
      %v888 = vpop.f32.mrf.mxu0
      %889 = vdwg.mxu0
      %890 = vmatprep.subr.bf16.mxu0 0
      %891 = vmatpush1.bf16.msra.mxu0 0
      %892 = vmatprep.subr.bf16.mxu0 0
      %893 = vmatpush1.bf16.msra.mxu0 0
      %894 = vmatprep.subr.bf16.mxu0 0
      %895 = vmatpush1.bf16.msra.mxu0 0
      %896 = vmatprep.subr.bf16.mxu0 0
      %897 = vmatpush1.bf16.msra.mxu0 0
      %898 = vmatprep.subr.bf16.mxu0 0
      %899 = vmatpush1.bf16.msra.mxu0 0
      %900 = vmatprep.subr.bf16.mxu0 0
      %901 = vmatpush1.bf16.msra.mxu0 0
      %902 = vmatprep.subr.bf16.mxu0 0
      %903 = vmatpush1.bf16.msra.mxu0 0
      %904 = vmatprep.subr.bf16.mxu0 %v832
      %905 = vmatpush1.bf16.msra.mxu0 %v829
      %906 = vmatprep.subr.bf16.mxu0 0
      %907 = vmatpush2.bf16.msra.mxu0 0
      %908 = vmatprep.subr.bf16.mxu0 0
      %909 = vmatpush2.bf16.msra.mxu0 0
      %910 = vmatprep.subr.bf16.mxu0 0
      %911 = vmatpush2.bf16.msra.mxu0 0
      %912 = vmatprep.subr.bf16.mxu0 0
      %913 = vmatpush2.bf16.msra.mxu0 0
      %914 = vmatprep.subr.bf16.mxu0 0
      %915 = vmatpush2.bf16.msra.mxu0 0
      %916 = vmatprep.subr.bf16.mxu0 0
      %917 = vmatpush2.bf16.msra.mxu0 0
      %918 = vmatprep.subr.bf16.mxu0 0
      %919 = vmatpush2.bf16.msra.mxu0 0
      %920 = vmatprep.subr.bf16.mxu0 0
      %921 = vmatpush2.bf16.msra.mxu0 0
      %922 = vmatprep.mubr.bf16.mxu0 0
      %923 = vmatmul.mubr.bf16.gmra.mxu0 %v820
      %v924 = vpop.f32.mrf.mxu0
      %v925 = vadd.f32 0.0, %v924
      %v926 = vpop.f32.mrf.mxu0
      %v927 = vadd.f32 0.0, %v926
      %v928 = vpop.f32.mrf.mxu0
      %v929 = vpop.f32.mrf.mxu0
      %930 = vdwg.mxu0
      %931 = vmatprep.subr.bf16.mxu0 0
      %932 = vmatpush1.bf16.msra.mxu0 0
      %933 = vmatprep.subr.bf16.mxu0 0
      %934 = vmatpush1.bf16.msra.mxu0 0
      %935 = vmatprep.subr.bf16.mxu0 0
      %936 = vmatpush1.bf16.msra.mxu0 0
      %937 = vmatprep.subr.bf16.mxu0 0
      %938 = vmatpush1.bf16.msra.mxu0 0
      %939 = vmatprep.subr.bf16.mxu0 0
      %940 = vmatpush1.bf16.msra.mxu0 0
      %941 = vmatprep.subr.bf16.mxu0 0
      %942 = vmatpush1.bf16.msra.mxu0 0
      %943 = vmatprep.subr.bf16.mxu0 0
      %944 = vmatpush1.bf16.msra.mxu0 0
      %945 = vmatprep.subr.bf16.mxu0 %v838
      %946 = vmatpush1.bf16.msra.mxu0 %v835
      %947 = vmatprep.subr.bf16.mxu0 0
      %948 = vmatpush2.bf16.msra.mxu0 0
      %949 = vmatprep.subr.bf16.mxu0 0
      %950 = vmatpush2.bf16.msra.mxu0 0
      %951 = vmatprep.subr.bf16.mxu0 0
      %952 = vmatpush2.bf16.msra.mxu0 0
      %953 = vmatprep.subr.bf16.mxu0 0
      %954 = vmatpush2.bf16.msra.mxu0 0
      %955 = vmatprep.subr.bf16.mxu0 0
      %956 = vmatpush2.bf16.msra.mxu0 0
      %957 = vmatprep.subr.bf16.mxu0 0
      %958 = vmatpush2.bf16.msra.mxu0 0
      %959 = vmatprep.subr.bf16.mxu0 0
      %960 = vmatpush2.bf16.msra.mxu0 0
      %961 = vmatprep.subr.bf16.mxu0 0
      %962 = vmatpush2.bf16.msra.mxu0 0
      %963 = vmatprep.mubr.bf16.mxu0 0
      %964 = vmatmul.mubr.bf16.gmra.mxu0 %v820
      %v965 = vpop.f32.mrf.mxu0
      %v966 = vadd.f32 0.0, %v965
      %v967 = vpop.f32.mrf.mxu0
      %v968 = vadd.f32 0.0, %v967
      %v969 = vpop.f32.mrf.mxu0
      %v970 = vpop.f32.mrf.mxu0
      %971 = vdwg.mxu0
      %972 = vmatprep.subr.bf16.mxu0 0
      %973 = vmatpush1.bf16.msra.mxu0 0
      %974 = vmatprep.subr.bf16.mxu0 0
      %975 = vmatpush1.bf16.msra.mxu0 0
      %976 = vmatprep.subr.bf16.mxu0 0
      %977 = vmatpush1.bf16.msra.mxu0 0
      %978 = vmatprep.subr.bf16.mxu0 0
      %979 = vmatpush1.bf16.msra.mxu0 0
      %980 = vmatprep.subr.bf16.mxu0 0
      %981 = vmatpush1.bf16.msra.mxu0 0
      %982 = vmatprep.subr.bf16.mxu0 0
      %983 = vmatpush1.bf16.msra.mxu0 0
      %984 = vmatprep.subr.bf16.mxu0 0
      %985 = vmatpush1.bf16.msra.mxu0 0
      %986 = vmatprep.subr.bf16.mxu0 %v844
      %987 = vmatpush1.bf16.msra.mxu0 %v841
      %988 = vmatprep.subr.bf16.mxu0 0
      %989 = vmatpush2.bf16.msra.mxu0 0
      %990 = vmatprep.subr.bf16.mxu0 0
      %991 = vmatpush2.bf16.msra.mxu0 0
      %992 = vmatprep.subr.bf16.mxu0 0
      %993 = vmatpush2.bf16.msra.mxu0 0
      %994 = vmatprep.subr.bf16.mxu0 0
      %995 = vmatpush2.bf16.msra.mxu0 0
      %996 = vmatprep.subr.bf16.mxu0 0
      %997 = vmatpush2.bf16.msra.mxu0 0
      %998 = vmatprep.subr.bf16.mxu0 0
      %999 = vmatpush2.bf16.msra.mxu0 0
      %1000 = vmatprep.subr.bf16.mxu0 0
      %1001 = vmatpush2.bf16.msra.mxu0 0
      %1002 = vmatprep.subr.bf16.mxu0 0
      %1003 = vmatpush2.bf16.msra.mxu0 0
      %1004 = vmatprep.mubr.bf16.mxu0 0
      %1005 = vmatmul.mubr.bf16.gmra.mxu0 %v820
      %v1006 = vpop.f32.mrf.mxu0
      %v1007 = vadd.f32 0.0, %v1006
      %v1008 = vpop.f32.mrf.mxu0
      %v1009 = vadd.f32 0.0, %v1008
      %v1010 = vpop.f32.mrf.mxu0
      %v1011 = vpop.f32.mrf.mxu0
      %1012 = vdwg.mxu0
      %1013 = vmatprep.subr.bf16.mxu0 0
      %1014 = vmatpush1.bf16.msra.mxu0 0
      %1015 = vmatprep.subr.bf16.mxu0 0
      %1016 = vmatpush1.bf16.msra.mxu0 0
      %1017 = vmatprep.subr.bf16.mxu0 0
      %1018 = vmatpush1.bf16.msra.mxu0 0
      %1019 = vmatprep.subr.bf16.mxu0 0
      %1020 = vmatpush1.bf16.msra.mxu0 0
      %1021 = vmatprep.subr.bf16.mxu0 0
      %1022 = vmatpush1.bf16.msra.mxu0 0
      %1023 = vmatprep.subr.bf16.mxu0 0
      %1024 = vmatpush1.bf16.msra.mxu0 0
      %1025 = vmatprep.subr.bf16.mxu0 0
      %1026 = vmatpush1.bf16.msra.mxu0 0
      %1027 = vmatprep.subr.bf16.mxu0 0
      %1028 = vmatpush1.bf16.msra.mxu0 %v847
      %1029 = vmatprep.subr.bf16.mxu0 0
      %1030 = vmatpush2.bf16.msra.mxu0 0
      %1031 = vmatprep.subr.bf16.mxu0 0
      %1032 = vmatpush2.bf16.msra.mxu0 0
      %1033 = vmatprep.subr.bf16.mxu0 0
      %1034 = vmatpush2.bf16.msra.mxu0 0
      %1035 = vmatprep.subr.bf16.mxu0 0
      %1036 = vmatpush2.bf16.msra.mxu0 0
      %1037 = vmatprep.subr.bf16.mxu0 0
      %1038 = vmatpush2.bf16.msra.mxu0 0
      %1039 = vmatprep.subr.bf16.mxu0 0
      %1040 = vmatpush2.bf16.msra.mxu0 0
      %1041 = vmatprep.subr.bf16.mxu0 0
      %1042 = vmatpush2.bf16.msra.mxu0 0
      %1043 = vmatprep.subr.bf16.mxu0 0
      %1044 = vmatpush2.bf16.msra.mxu0 0
      %1045 = vmatprep.mubr.bf16.mxu0 0
      %1046 = vmatmul.mubr.bf16.gmra.mxu0 %v820
      %v1047 = vpop.f32.mrf.mxu0
      %v1048 = vadd.f32 0.0, %v1047
      %v1049 = vpop.f32.mrf.mxu0
      %v1050 = vpop.f32.mrf.mxu0
      %v1051 = vpop.f32.mrf.mxu0
      %1052 = vdwg.mxu0
      %v1053 = vadd.f32 %v618, %v884
      %v1054 = vadd.f32 %v620, %v886
      %v1055 = vadd.f32 %v659, %v925
      %v1056 = vadd.f32 %v661, %v927
      %v1057 = vadd.f32 %v700, %v966
      %v1058 = vadd.f32 %v702, %v968
      %v1059 = vadd.f32 %v741, %v1007
      %v1060 = vadd.f32 %v743, %v1009
      %v1061 = vadd.f32 %v782, %v1048
      %s1062 = scalar_lea.vmem %s1, 6
      %v1063 = vld [vmem:[%s1062] sm:$0x3]
      %1064 = vrot.lane.b32.xlu0 %v254, 125
      %v1065 = vpop.permute.xlu0 %1064
      %1066 = vrot.lane.b32.xlu0 %v255, 125
      %v1067 = vpop.permute.xlu0 %1066
      %1068 = vrot.lane.b32.xlu0 %v256, 125
      %v1069 = vpop.permute.xlu0 %1068
      %1070 = vrot.lane.b32.xlu0 %v257, 125
      %v1071 = vpop.permute.xlu0 %1070
      %1072 = vrot.lane.b32.xlu0 %v258, 125
      %v1073 = vpop.permute.xlu0 %1072
      %1074 = vrot.lane.b32.xlu0 %v259, 125
      %v1075 = vpop.permute.xlu0 %1074
      %1076 = vrot.lane.b32.xlu0 %v260, 125
      %v1077 = vpop.permute.xlu0 %1076
      %1078 = vrot.lane.b32.xlu0 %v261, 125
      %v1079 = vpop.permute.xlu0 %1078
      %1080 = vrot.lane.b32.xlu0 %v262, 125
      %v1081 = vpop.permute.xlu0 %1080
      %1082 = vrot.lane.b32.xlu0 %v263, 125
      %v1083 = vpop.permute.xlu0 %1082
      %vm1084 = vcmask 1022976
      %v1085 = vsel %vm1084, %v1065, %v1067
      %v1086 = vsel %vm1084, %v1067, %v1069
      %v1087 = vsel %vm1084, %v1069, %v1071
      %v1088 = vsel %vm1084, %v1071, %v1073
      %v1089 = vsel %vm1084, %v1073, %v1075
      %v1090 = vsel %vm1084, %v1075, %v1077
      %v1091 = vsel %vm1084, %v1077, %v1079
      %v1092 = vsel %vm1084, %v1079, %v1081
      %v1093 = vsel %vm1084, %v1081, %v1083
      %v1095 = vsel %vm294, %v1063, 0
      %v1098 = vsel %vm298, %v1085, 0
      %v1101 = vsel %vm298, %v1086, 0
      %v1104 = vsel %vm298, %v1087, 0
      %v1107 = vsel %vm298, %v1088, 0
      %v1110 = vsel %vm298, %v1089, 0
      %v1113 = vsel %vm298, %v1090, 0
      %v1116 = vsel %vm298, %v1091, 0
      %v1119 = vsel %vm298, %v1092, 0
      %v1122 = vsel %vm298, %v1093, 0
      %1124 = vmatprep.subr.bf16.mxu0 0
      %1125 = vmatpush1.bf16.msra.mxu0 0
      %1126 = vmatprep.subr.bf16.mxu0 0
      %1127 = vmatpush1.bf16.msra.mxu0 0
      %1128 = vmatprep.subr.bf16.mxu0 0
      %1129 = vmatpush1.bf16.msra.mxu0 0
      %1130 = vmatprep.subr.bf16.mxu0 0
      %1131 = vmatpush1.bf16.msra.mxu0 0
      %1132 = vmatprep.subr.bf16.mxu0 0
      %1133 = vmatpush1.bf16.msra.mxu0 0
      %1134 = vmatprep.subr.bf16.mxu0 0
      %1135 = vmatpush1.bf16.msra.mxu0 0
      %1136 = vmatprep.subr.bf16.mxu0 0
      %1137 = vmatpush1.bf16.msra.mxu0 0
      %1138 = vmatprep.subr.bf16.mxu0 %v1101
      %1139 = vmatpush1.bf16.msra.mxu0 %v1098
      %1140 = vmatprep.subr.bf16.mxu0 0
      %1141 = vmatpush2.bf16.msra.mxu0 0
      %1142 = vmatprep.subr.bf16.mxu0 0
      %1143 = vmatpush2.bf16.msra.mxu0 0
      %1144 = vmatprep.subr.bf16.mxu0 0
      %1145 = vmatpush2.bf16.msra.mxu0 0
      %1146 = vmatprep.subr.bf16.mxu0 0
      %1147 = vmatpush2.bf16.msra.mxu0 0
      %1148 = vmatprep.subr.bf16.mxu0 0
      %1149 = vmatpush2.bf16.msra.mxu0 0
      %1150 = vmatprep.subr.bf16.mxu0 0
      %1151 = vmatpush2.bf16.msra.mxu0 0
      %1152 = vmatprep.subr.bf16.mxu0 0
      %1153 = vmatpush2.bf16.msra.mxu0 0
      %1154 = vmatprep.subr.bf16.mxu0 0
      %1155 = vmatpush2.bf16.msra.mxu0 0
      %1156 = vmatprep.mubr.bf16.mxu0 0
      %1157 = vmatmul.mubr.bf16.gmra.mxu0 %v1095
      %v1158 = vpop.f32.mrf.mxu0
      %v1159 = vadd.f32 0.0, %v1158
      %v1160 = vpop.f32.mrf.mxu0
      %v1161 = vadd.f32 0.0, %v1160
      %v1162 = vpop.f32.mrf.mxu0
      %v1163 = vpop.f32.mrf.mxu0
      %1164 = vdwg.mxu0
      %1165 = vmatprep.subr.bf16.mxu0 0
      %1166 = vmatpush1.bf16.msra.mxu0 0
      %1167 = vmatprep.subr.bf16.mxu0 0
      %1168 = vmatpush1.bf16.msra.mxu0 0
      %1169 = vmatprep.subr.bf16.mxu0 0
      %1170 = vmatpush1.bf16.msra.mxu0 0
      %1171 = vmatprep.subr.bf16.mxu0 0
      %1172 = vmatpush1.bf16.msra.mxu0 0
      %1173 = vmatprep.subr.bf16.mxu0 0
      %1174 = vmatpush1.bf16.msra.mxu0 0
      %1175 = vmatprep.subr.bf16.mxu0 0
      %1176 = vmatpush1.bf16.msra.mxu0 0
      %1177 = vmatprep.subr.bf16.mxu0 0
      %1178 = vmatpush1.bf16.msra.mxu0 0
      %1179 = vmatprep.subr.bf16.mxu0 %v1107
      %1180 = vmatpush1.bf16.msra.mxu0 %v1104
      %1181 = vmatprep.subr.bf16.mxu0 0
      %1182 = vmatpush2.bf16.msra.mxu0 0
      %1183 = vmatprep.subr.bf16.mxu0 0
      %1184 = vmatpush2.bf16.msra.mxu0 0
      %1185 = vmatprep.subr.bf16.mxu0 0
      %1186 = vmatpush2.bf16.msra.mxu0 0
      %1187 = vmatprep.subr.bf16.mxu0 0
      %1188 = vmatpush2.bf16.msra.mxu0 0
      %1189 = vmatprep.subr.bf16.mxu0 0
      %1190 = vmatpush2.bf16.msra.mxu0 0
      %1191 = vmatprep.subr.bf16.mxu0 0
      %1192 = vmatpush2.bf16.msra.mxu0 0
      %1193 = vmatprep.subr.bf16.mxu0 0
      %1194 = vmatpush2.bf16.msra.mxu0 0
      %1195 = vmatprep.subr.bf16.mxu0 0
      %1196 = vmatpush2.bf16.msra.mxu0 0
      %1197 = vmatprep.mubr.bf16.mxu0 0
      %1198 = vmatmul.mubr.bf16.gmra.mxu0 %v1095
      %v1199 = vpop.f32.mrf.mxu0
      %v1200 = vadd.f32 0.0, %v1199
      %v1201 = vpop.f32.mrf.mxu0
      %v1202 = vadd.f32 0.0, %v1201
      %v1203 = vpop.f32.mrf.mxu0
      %v1204 = vpop.f32.mrf.mxu0
      %1205 = vdwg.mxu0
      %1206 = vmatprep.subr.bf16.mxu0 0
      %1207 = vmatpush1.bf16.msra.mxu0 0
      %1208 = vmatprep.subr.bf16.mxu0 0
      %1209 = vmatpush1.bf16.msra.mxu0 0
      %1210 = vmatprep.subr.bf16.mxu0 0
      %1211 = vmatpush1.bf16.msra.mxu0 0
      %1212 = vmatprep.subr.bf16.mxu0 0
      %1213 = vmatpush1.bf16.msra.mxu0 0
      %1214 = vmatprep.subr.bf16.mxu0 0
      %1215 = vmatpush1.bf16.msra.mxu0 0
      %1216 = vmatprep.subr.bf16.mxu0 0
      %1217 = vmatpush1.bf16.msra.mxu0 0
      %1218 = vmatprep.subr.bf16.mxu0 0
      %1219 = vmatpush1.bf16.msra.mxu0 0
      %1220 = vmatprep.subr.bf16.mxu0 %v1113
      %1221 = vmatpush1.bf16.msra.mxu0 %v1110
      %1222 = vmatprep.subr.bf16.mxu0 0
      %1223 = vmatpush2.bf16.msra.mxu0 0
      %1224 = vmatprep.subr.bf16.mxu0 0
      %1225 = vmatpush2.bf16.msra.mxu0 0
      %1226 = vmatprep.subr.bf16.mxu0 0
      %1227 = vmatpush2.bf16.msra.mxu0 0
      %1228 = vmatprep.subr.bf16.mxu0 0
      %1229 = vmatpush2.bf16.msra.mxu0 0
      %1230 = vmatprep.subr.bf16.mxu0 0
      %1231 = vmatpush2.bf16.msra.mxu0 0
      %1232 = vmatprep.subr.bf16.mxu0 0
      %1233 = vmatpush2.bf16.msra.mxu0 0
      %1234 = vmatprep.subr.bf16.mxu0 0
      %1235 = vmatpush2.bf16.msra.mxu0 0
      %1236 = vmatprep.subr.bf16.mxu0 0
      %1237 = vmatpush2.bf16.msra.mxu0 0
      %1238 = vmatprep.mubr.bf16.mxu0 0
      %1239 = vmatmul.mubr.bf16.gmra.mxu0 %v1095
      %v1240 = vpop.f32.mrf.mxu0
      %v1241 = vadd.f32 0.0, %v1240
      %v1242 = vpop.f32.mrf.mxu0
      %v1243 = vadd.f32 0.0, %v1242
      %v1244 = vpop.f32.mrf.mxu0
      %v1245 = vpop.f32.mrf.mxu0
      %1246 = vdwg.mxu0
      %1247 = vmatprep.subr.bf16.mxu0 0
      %1248 = vmatpush1.bf16.msra.mxu0 0
      %1249 = vmatprep.subr.bf16.mxu0 0
      %1250 = vmatpush1.bf16.msra.mxu0 0
      %1251 = vmatprep.subr.bf16.mxu0 0
      %1252 = vmatpush1.bf16.msra.mxu0 0
      %1253 = vmatprep.subr.bf16.mxu0 0
      %1254 = vmatpush1.bf16.msra.mxu0 0
      %1255 = vmatprep.subr.bf16.mxu0 0
      %1256 = vmatpush1.bf16.msra.mxu0 0
      %1257 = vmatprep.subr.bf16.mxu0 0
      %1258 = vmatpush1.bf16.msra.mxu0 0
      %1259 = vmatprep.subr.bf16.mxu0 0
      %1260 = vmatpush1.bf16.msra.mxu0 0
      %1261 = vmatprep.subr.bf16.mxu0 %v1119
      %1262 = vmatpush1.bf16.msra.mxu0 %v1116
      %1263 = vmatprep.subr.bf16.mxu0 0
      %1264 = vmatpush2.bf16.msra.mxu0 0
      %1265 = vmatprep.subr.bf16.mxu0 0
      %1266 = vmatpush2.bf16.msra.mxu0 0
      %1267 = vmatprep.subr.bf16.mxu0 0
      %1268 = vmatpush2.bf16.msra.mxu0 0
      %1269 = vmatprep.subr.bf16.mxu0 0
      %1270 = vmatpush2.bf16.msra.mxu0 0
      %1271 = vmatprep.subr.bf16.mxu0 0
      %1272 = vmatpush2.bf16.msra.mxu0 0
      %1273 = vmatprep.subr.bf16.mxu0 0
      %1274 = vmatpush2.bf16.msra.mxu0 0
      %1275 = vmatprep.subr.bf16.mxu0 0
      %1276 = vmatpush2.bf16.msra.mxu0 0
      %1277 = vmatprep.subr.bf16.mxu0 0
      %1278 = vmatpush2.bf16.msra.mxu0 0
      %1279 = vmatprep.mubr.bf16.mxu0 0
      %1280 = vmatmul.mubr.bf16.gmra.mxu0 %v1095
      %v1281 = vpop.f32.mrf.mxu0
      %v1282 = vadd.f32 0.0, %v1281
      %v1283 = vpop.f32.mrf.mxu0
      %v1284 = vadd.f32 0.0, %v1283
      %v1285 = vpop.f32.mrf.mxu0
      %v1286 = vpop.f32.mrf.mxu0
      %1287 = vdwg.mxu0
      %1288 = vmatprep.subr.bf16.mxu0 0
      %1289 = vmatpush1.bf16.msra.mxu0 0
      %1290 = vmatprep.subr.bf16.mxu0 0
      %1291 = vmatpush1.bf16.msra.mxu0 0
      %1292 = vmatprep.subr.bf16.mxu0 0
      %1293 = vmatpush1.bf16.msra.mxu0 0
      %1294 = vmatprep.subr.bf16.mxu0 0
      %1295 = vmatpush1.bf16.msra.mxu0 0
      %1296 = vmatprep.subr.bf16.mxu0 0
      %1297 = vmatpush1.bf16.msra.mxu0 0
      %1298 = vmatprep.subr.bf16.mxu0 0
      %1299 = vmatpush1.bf16.msra.mxu0 0
      %1300 = vmatprep.subr.bf16.mxu0 0
      %1301 = vmatpush1.bf16.msra.mxu0 0
      %1302 = vmatprep.subr.bf16.mxu0 0
      %1303 = vmatpush1.bf16.msra.mxu0 %v1122
      %1304 = vmatprep.subr.bf16.mxu0 0
      %1305 = vmatpush2.bf16.msra.mxu0 0
      %1306 = vmatprep.subr.bf16.mxu0 0
      %1307 = vmatpush2.bf16.msra.mxu0 0
      %1308 = vmatprep.subr.bf16.mxu0 0
      %1309 = vmatpush2.bf16.msra.mxu0 0
      %1310 = vmatprep.subr.bf16.mxu0 0
      %1311 = vmatpush2.bf16.msra.mxu0 0
      %1312 = vmatprep.subr.bf16.mxu0 0
      %1313 = vmatpush2.bf16.msra.mxu0 0
      %1314 = vmatprep.subr.bf16.mxu0 0
      %1315 = vmatpush2.bf16.msra.mxu0 0
      %1316 = vmatprep.subr.bf16.mxu0 0
      %1317 = vmatpush2.bf16.msra.mxu0 0
      %1318 = vmatprep.subr.bf16.mxu0 0
      %1319 = vmatpush2.bf16.msra.mxu0 0
      %1320 = vmatprep.mubr.bf16.mxu0 0
      %1321 = vmatmul.mubr.bf16.gmra.mxu0 %v1095
      %v1322 = vpop.f32.mrf.mxu0
      %v1323 = vadd.f32 0.0, %v1322
      %v1324 = vpop.f32.mrf.mxu0
      %v1325 = vpop.f32.mrf.mxu0
      %v1326 = vpop.f32.mrf.mxu0
      %1327 = vdwg.mxu0
      %v1328 = vadd.f32 %v1053, %v1159
      %v1329 = vadd.f32 %v1054, %v1161
      %v1330 = vadd.f32 %v1055, %v1200
      %v1331 = vadd.f32 %v1056, %v1202
      %v1332 = vadd.f32 %v1057, %v1241
      %v1333 = vadd.f32 %v1058, %v1243
      %v1334 = vadd.f32 %v1059, %v1282
      %v1335 = vadd.f32 %v1060, %v1284
      %v1336 = vadd.f32 %v1061, %v1323
      %s1337 = scalar_lea.vmem %s1, 8
      %v1338 = vld [vmem:[%s1337] sm:$0x3]
      %1339 = vrot.lane.b32.xlu0 %v254, 93
      %v1340 = vpop.permute.xlu0 %1339
      %1341 = vrot.lane.b32.xlu0 %v255, 93
      %v1342 = vpop.permute.xlu0 %1341
      %1343 = vrot.lane.b32.xlu0 %v256, 93
      %v1344 = vpop.permute.xlu0 %1343
      %1345 = vrot.lane.b32.xlu0 %v257, 93
      %v1346 = vpop.permute.xlu0 %1345
      %1347 = vrot.lane.b32.xlu0 %v258, 93
      %v1348 = vpop.permute.xlu0 %1347
      %1349 = vrot.lane.b32.xlu0 %v259, 93
      %v1350 = vpop.permute.xlu0 %1349
      %1351 = vrot.lane.b32.xlu0 %v260, 93
      %v1352 = vpop.permute.xlu0 %1351
      %1353 = vrot.lane.b32.xlu0 %v261, 93
      %v1354 = vpop.permute.xlu0 %1353
      %1355 = vrot.lane.b32.xlu0 %v262, 93
      %v1356 = vpop.permute.xlu0 %1355
      %1357 = vrot.lane.b32.xlu0 %v263, 93
      %v1358 = vpop.permute.xlu0 %1357
      %vm1359 = vcmask 760832
      %v1360 = vsel %vm1359, %v1340, %v1342
      %v1361 = vsel %vm1359, %v1342, %v1344
      %v1362 = vsel %vm1359, %v1344, %v1346
      %v1363 = vsel %vm1359, %v1346, %v1348
      %v1364 = vsel %vm1359, %v1348, %v1350
      %v1365 = vsel %vm1359, %v1350, %v1352
      %v1366 = vsel %vm1359, %v1352, %v1354
      %v1367 = vsel %vm1359, %v1354, %v1356
      %v1368 = vsel %vm1359, %v1356, %v1358
      %v1370 = vsel %vm294, %v1338, 0
      %v1373 = vsel %vm298, %v1360, 0
      %v1376 = vsel %vm298, %v1361, 0
      %v1379 = vsel %vm298, %v1362, 0
      %v1382 = vsel %vm298, %v1363, 0
      %v1385 = vsel %vm298, %v1364, 0
      %v1388 = vsel %vm298, %v1365, 0
      %v1391 = vsel %vm298, %v1366, 0
      %v1394 = vsel %vm298, %v1367, 0
      %v1397 = vsel %vm298, %v1368, 0
      %1399 = vmatprep.subr.bf16.mxu0 0
      %1400 = vmatpush1.bf16.msra.mxu0 0
      %1401 = vmatprep.subr.bf16.mxu0 0
      %1402 = vmatpush1.bf16.msra.mxu0 0
      %1403 = vmatprep.subr.bf16.mxu0 0
      %1404 = vmatpush1.bf16.msra.mxu0 0
      %1405 = vmatprep.subr.bf16.mxu0 0
      %1406 = vmatpush1.bf16.msra.mxu0 0
      %1407 = vmatprep.subr.bf16.mxu0 0
      %1408 = vmatpush1.bf16.msra.mxu0 0
      %1409 = vmatprep.subr.bf16.mxu0 0
      %1410 = vmatpush1.bf16.msra.mxu0 0
      %1411 = vmatprep.subr.bf16.mxu0 0
      %1412 = vmatpush1.bf16.msra.mxu0 0
      %1413 = vmatprep.subr.bf16.mxu0 %v1376
      %1414 = vmatpush1.bf16.msra.mxu0 %v1373
      %1415 = vmatprep.subr.bf16.mxu0 0
      %1416 = vmatpush2.bf16.msra.mxu0 0
      %1417 = vmatprep.subr.bf16.mxu0 0
      %1418 = vmatpush2.bf16.msra.mxu0 0
      %1419 = vmatprep.subr.bf16.mxu0 0
      %1420 = vmatpush2.bf16.msra.mxu0 0
      %1421 = vmatprep.subr.bf16.mxu0 0
      %1422 = vmatpush2.bf16.msra.mxu0 0
      %1423 = vmatprep.subr.bf16.mxu0 0
      %1424 = vmatpush2.bf16.msra.mxu0 0
      %1425 = vmatprep.subr.bf16.mxu0 0
      %1426 = vmatpush2.bf16.msra.mxu0 0
      %1427 = vmatprep.subr.bf16.mxu0 0
      %1428 = vmatpush2.bf16.msra.mxu0 0
      %1429 = vmatprep.subr.bf16.mxu0 0
      %1430 = vmatpush2.bf16.msra.mxu0 0
      %1431 = vmatprep.mubr.bf16.mxu0 0
      %1432 = vmatmul.mubr.bf16.gmra.mxu0 %v1370
      %v1433 = vpop.f32.mrf.mxu0
      %v1434 = vadd.f32 0.0, %v1433
      %v1435 = vpop.f32.mrf.mxu0
      %v1436 = vadd.f32 0.0, %v1435
      %v1437 = vpop.f32.mrf.mxu0
      %v1438 = vpop.f32.mrf.mxu0
      %1439 = vdwg.mxu0
      %1440 = vmatprep.subr.bf16.mxu0 0
      %1441 = vmatpush1.bf16.msra.mxu0 0
      %1442 = vmatprep.subr.bf16.mxu0 0
      %1443 = vmatpush1.bf16.msra.mxu0 0
      %1444 = vmatprep.subr.bf16.mxu0 0
      %1445 = vmatpush1.bf16.msra.mxu0 0
      %1446 = vmatprep.subr.bf16.mxu0 0
      %1447 = vmatpush1.bf16.msra.mxu0 0
      %1448 = vmatprep.subr.bf16.mxu0 0
      %1449 = vmatpush1.bf16.msra.mxu0 0
      %1450 = vmatprep.subr.bf16.mxu0 0
      %1451 = vmatpush1.bf16.msra.mxu0 0
      %1452 = vmatprep.subr.bf16.mxu0 0
      %1453 = vmatpush1.bf16.msra.mxu0 0
      %1454 = vmatprep.subr.bf16.mxu0 %v1382
      %1455 = vmatpush1.bf16.msra.mxu0 %v1379
      %1456 = vmatprep.subr.bf16.mxu0 0
      %1457 = vmatpush2.bf16.msra.mxu0 0
      %1458 = vmatprep.subr.bf16.mxu0 0
      %1459 = vmatpush2.bf16.msra.mxu0 0
      %1460 = vmatprep.subr.bf16.mxu0 0
      %1461 = vmatpush2.bf16.msra.mxu0 0
      %1462 = vmatprep.subr.bf16.mxu0 0
      %1463 = vmatpush2.bf16.msra.mxu0 0
      %1464 = vmatprep.subr.bf16.mxu0 0
      %1465 = vmatpush2.bf16.msra.mxu0 0
      %1466 = vmatprep.subr.bf16.mxu0 0
      %1467 = vmatpush2.bf16.msra.mxu0 0
      %1468 = vmatprep.subr.bf16.mxu0 0
      %1469 = vmatpush2.bf16.msra.mxu0 0
      %1470 = vmatprep.subr.bf16.mxu0 0
      %1471 = vmatpush2.bf16.msra.mxu0 0
      %1472 = vmatprep.mubr.bf16.mxu0 0
      %1473 = vmatmul.mubr.bf16.gmra.mxu0 %v1370
      %v1474 = vpop.f32.mrf.mxu0
      %v1475 = vadd.f32 0.0, %v1474
      %v1476 = vpop.f32.mrf.mxu0
      %v1477 = vadd.f32 0.0, %v1476
      %v1478 = vpop.f32.mrf.mxu0
      %v1479 = vpop.f32.mrf.mxu0
      %1480 = vdwg.mxu0
      %1481 = vmatprep.subr.bf16.mxu0 0
      %1482 = vmatpush1.bf16.msra.mxu0 0
      %1483 = vmatprep.subr.bf16.mxu0 0
      %1484 = vmatpush1.bf16.msra.mxu0 0
      %1485 = vmatprep.subr.bf16.mxu0 0
      %1486 = vmatpush1.bf16.msra.mxu0 0
      %1487 = vmatprep.subr.bf16.mxu0 0
      %1488 = vmatpush1.bf16.msra.mxu0 0
      %1489 = vmatprep.subr.bf16.mxu0 0
      %1490 = vmatpush1.bf16.msra.mxu0 0
      %1491 = vmatprep.subr.bf16.mxu0 0
      %1492 = vmatpush1.bf16.msra.mxu0 0
      %1493 = vmatprep.subr.bf16.mxu0 0
      %1494 = vmatpush1.bf16.msra.mxu0 0
      %1495 = vmatprep.subr.bf16.mxu0 %v1388
      %1496 = vmatpush1.bf16.msra.mxu0 %v1385
      %1497 = vmatprep.subr.bf16.mxu0 0
      %1498 = vmatpush2.bf16.msra.mxu0 0
      %1499 = vmatprep.subr.bf16.mxu0 0
      %1500 = vmatpush2.bf16.msra.mxu0 0
      %1501 = vmatprep.subr.bf16.mxu0 0
      %1502 = vmatpush2.bf16.msra.mxu0 0
      %1503 = vmatprep.subr.bf16.mxu0 0
      %1504 = vmatpush2.bf16.msra.mxu0 0
      %1505 = vmatprep.subr.bf16.mxu0 0
      %1506 = vmatpush2.bf16.msra.mxu0 0
      %1507 = vmatprep.subr.bf16.mxu0 0
      %1508 = vmatpush2.bf16.msra.mxu0 0
      %1509 = vmatprep.subr.bf16.mxu0 0
      %1510 = vmatpush2.bf16.msra.mxu0 0
      %1511 = vmatprep.subr.bf16.mxu0 0
      %1512 = vmatpush2.bf16.msra.mxu0 0
      %1513 = vmatprep.mubr.bf16.mxu0 0
      %1514 = vmatmul.mubr.bf16.gmra.mxu0 %v1370
      %v1515 = vpop.f32.mrf.mxu0
      %v1516 = vadd.f32 0.0, %v1515
      %v1517 = vpop.f32.mrf.mxu0
      %v1518 = vadd.f32 0.0, %v1517
      %v1519 = vpop.f32.mrf.mxu0
      %v1520 = vpop.f32.mrf.mxu0
      %1521 = vdwg.mxu0
      %1522 = vmatprep.subr.bf16.mxu0 0
      %1523 = vmatpush1.bf16.msra.mxu0 0
      %1524 = vmatprep.subr.bf16.mxu0 0
      %1525 = vmatpush1.bf16.msra.mxu0 0
      %1526 = vmatprep.subr.bf16.mxu0 0
      %1527 = vmatpush1.bf16.msra.mxu0 0
      %1528 = vmatprep.subr.bf16.mxu0 0
      %1529 = vmatpush1.bf16.msra.mxu0 0
      %1530 = vmatprep.subr.bf16.mxu0 0
      %1531 = vmatpush1.bf16.msra.mxu0 0
      %1532 = vmatprep.subr.bf16.mxu0 0
      %1533 = vmatpush1.bf16.msra.mxu0 0
      %1534 = vmatprep.subr.bf16.mxu0 0
      %1535 = vmatpush1.bf16.msra.mxu0 0
      %1536 = vmatprep.subr.bf16.mxu0 %v1394
      %1537 = vmatpush1.bf16.msra.mxu0 %v1391
      %1538 = vmatprep.subr.bf16.mxu0 0
      %1539 = vmatpush2.bf16.msra.mxu0 0
      %1540 = vmatprep.subr.bf16.mxu0 0
      %1541 = vmatpush2.bf16.msra.mxu0 0
      %1542 = vmatprep.subr.bf16.mxu0 0
      %1543 = vmatpush2.bf16.msra.mxu0 0
      %1544 = vmatprep.subr.bf16.mxu0 0
      %1545 = vmatpush2.bf16.msra.mxu0 0
      %1546 = vmatprep.subr.bf16.mxu0 0
      %1547 = vmatpush2.bf16.msra.mxu0 0
      %1548 = vmatprep.subr.bf16.mxu0 0
      %1549 = vmatpush2.bf16.msra.mxu0 0
      %1550 = vmatprep.subr.bf16.mxu0 0
      %1551 = vmatpush2.bf16.msra.mxu0 0
      %1552 = vmatprep.subr.bf16.mxu0 0
      %1553 = vmatpush2.bf16.msra.mxu0 0
      %1554 = vmatprep.mubr.bf16.mxu0 0
      %1555 = vmatmul.mubr.bf16.gmra.mxu0 %v1370
      %v1556 = vpop.f32.mrf.mxu0
      %v1557 = vadd.f32 0.0, %v1556
      %v1558 = vpop.f32.mrf.mxu0
      %v1559 = vadd.f32 0.0, %v1558
      %v1560 = vpop.f32.mrf.mxu0
      %v1561 = vpop.f32.mrf.mxu0
      %1562 = vdwg.mxu0
      %1563 = vmatprep.subr.bf16.mxu0 0
      %1564 = vmatpush1.bf16.msra.mxu0 0
      %1565 = vmatprep.subr.bf16.mxu0 0
      %1566 = vmatpush1.bf16.msra.mxu0 0
      %1567 = vmatprep.subr.bf16.mxu0 0
      %1568 = vmatpush1.bf16.msra.mxu0 0
      %1569 = vmatprep.subr.bf16.mxu0 0
      %1570 = vmatpush1.bf16.msra.mxu0 0
      %1571 = vmatprep.subr.bf16.mxu0 0
      %1572 = vmatpush1.bf16.msra.mxu0 0
      %1573 = vmatprep.subr.bf16.mxu0 0
      %1574 = vmatpush1.bf16.msra.mxu0 0
      %1575 = vmatprep.subr.bf16.mxu0 0
      %1576 = vmatpush1.bf16.msra.mxu0 0
      %1577 = vmatprep.subr.bf16.mxu0 0
      %1578 = vmatpush1.bf16.msra.mxu0 %v1397
      %1579 = vmatprep.subr.bf16.mxu0 0
      %1580 = vmatpush2.bf16.msra.mxu0 0
      %1581 = vmatprep.subr.bf16.mxu0 0
      %1582 = vmatpush2.bf16.msra.mxu0 0
      %1583 = vmatprep.subr.bf16.mxu0 0
      %1584 = vmatpush2.bf16.msra.mxu0 0
      %1585 = vmatprep.subr.bf16.mxu0 0
      %1586 = vmatpush2.bf16.msra.mxu0 0
      %1587 = vmatprep.subr.bf16.mxu0 0
      %1588 = vmatpush2.bf16.msra.mxu0 0
      %1589 = vmatprep.subr.bf16.mxu0 0
      %1590 = vmatpush2.bf16.msra.mxu0 0
      %1591 = vmatprep.subr.bf16.mxu0 0
      %1592 = vmatpush2.bf16.msra.mxu0 0
      %1593 = vmatprep.subr.bf16.mxu0 0
      %1594 = vmatpush2.bf16.msra.mxu0 0
      %1595 = vmatprep.mubr.bf16.mxu0 0
      %1596 = vmatmul.mubr.bf16.gmra.mxu0 %v1370
      %v1597 = vpop.f32.mrf.mxu0
      %v1598 = vadd.f32 0.0, %v1597
      %v1599 = vpop.f32.mrf.mxu0
      %v1600 = vpop.f32.mrf.mxu0
      %v1601 = vpop.f32.mrf.mxu0
      %1602 = vdwg.mxu0
      %v1603 = vadd.f32 %v1328, %v1434
      %v1604 = vadd.f32 %v1329, %v1436
      %v1605 = vadd.f32 %v1330, %v1475
      %v1606 = vadd.f32 %v1331, %v1477
      %v1607 = vadd.f32 %v1332, %v1516
      %v1608 = vadd.f32 %v1333, %v1518
      %v1609 = vadd.f32 %v1334, %v1557
      %v1610 = vadd.f32 %v1335, %v1559
      %v1611 = vadd.f32 %v1336, %v1598
      %s1612 = scalar_lea.vmem %s1, 10
      %v1613 = vld [vmem:[%s1612] sm:$0x3]
      %1614 = vrot.lane.b32.xlu0 %v254, 92
      %v1615 = vpop.permute.xlu0 %1614
      %1616 = vrot.lane.b32.xlu0 %v255, 92
      %v1617 = vpop.permute.xlu0 %1616
      %1618 = vrot.lane.b32.xlu0 %v256, 92
      %v1619 = vpop.permute.xlu0 %1618
      %1620 = vrot.lane.b32.xlu0 %v257, 92
      %v1621 = vpop.permute.xlu0 %1620
      %1622 = vrot.lane.b32.xlu0 %v258, 92
      %v1623 = vpop.permute.xlu0 %1622
      %1624 = vrot.lane.b32.xlu0 %v259, 92
      %v1625 = vpop.permute.xlu0 %1624
      %1626 = vrot.lane.b32.xlu0 %v260, 92
      %v1627 = vpop.permute.xlu0 %1626
      %1628 = vrot.lane.b32.xlu0 %v261, 92
      %v1629 = vpop.permute.xlu0 %1628
      %1630 = vrot.lane.b32.xlu0 %v262, 92
      %v1631 = vpop.permute.xlu0 %1630
      %1632 = vrot.lane.b32.xlu0 %v263, 92
      %v1633 = vpop.permute.xlu0 %1632
      %vm1634 = vcmask 752640
      %v1635 = vsel %vm1634, %v1615, %v1617
      %v1636 = vsel %vm1634, %v1617, %v1619
      %v1637 = vsel %vm1634, %v1619, %v1621
      %v1638 = vsel %vm1634, %v1621, %v1623
      %v1639 = vsel %vm1634, %v1623, %v1625
      %v1640 = vsel %vm1634, %v1625, %v1627
      %v1641 = vsel %vm1634, %v1627, %v1629
      %v1642 = vsel %vm1634, %v1629, %v1631
      %v1643 = vsel %vm1634, %v1631, %v1633
      %v1645 = vsel %vm294, %v1613, 0
      %v1648 = vsel %vm298, %v1635, 0
      %v1651 = vsel %vm298, %v1636, 0
      %v1654 = vsel %vm298, %v1637, 0
      %v1657 = vsel %vm298, %v1638, 0
      %v1660 = vsel %vm298, %v1639, 0
      %v1663 = vsel %vm298, %v1640, 0
      %v1666 = vsel %vm298, %v1641, 0
      %v1669 = vsel %vm298, %v1642, 0
      %v1672 = vsel %vm298, %v1643, 0
      %1674 = vmatprep.subr.bf16.mxu0 0
      %1675 = vmatpush1.bf16.msra.mxu0 0
      %1676 = vmatprep.subr.bf16.mxu0 0
      %1677 = vmatpush1.bf16.msra.mxu0 0
      %1678 = vmatprep.subr.bf16.mxu0 0
      %1679 = vmatpush1.bf16.msra.mxu0 0
      %1680 = vmatprep.subr.bf16.mxu0 0
      %1681 = vmatpush1.bf16.msra.mxu0 0
      %1682 = vmatprep.subr.bf16.mxu0 0
      %1683 = vmatpush1.bf16.msra.mxu0 0
      %1684 = vmatprep.subr.bf16.mxu0 0
      %1685 = vmatpush1.bf16.msra.mxu0 0
      %1686 = vmatprep.subr.bf16.mxu0 0
      %1687 = vmatpush1.bf16.msra.mxu0 0
      %1688 = vmatprep.subr.bf16.mxu0 %v1651
      %1689 = vmatpush1.bf16.msra.mxu0 %v1648
      %1690 = vmatprep.subr.bf16.mxu0 0
      %1691 = vmatpush2.bf16.msra.mxu0 0
      %1692 = vmatprep.subr.bf16.mxu0 0
      %1693 = vmatpush2.bf16.msra.mxu0 0
      %1694 = vmatprep.subr.bf16.mxu0 0
      %1695 = vmatpush2.bf16.msra.mxu0 0
      %1696 = vmatprep.subr.bf16.mxu0 0
      %1697 = vmatpush2.bf16.msra.mxu0 0
      %1698 = vmatprep.subr.bf16.mxu0 0
      %1699 = vmatpush2.bf16.msra.mxu0 0
      %1700 = vmatprep.subr.bf16.mxu0 0
      %1701 = vmatpush2.bf16.msra.mxu0 0
      %1702 = vmatprep.subr.bf16.mxu0 0
      %1703 = vmatpush2.bf16.msra.mxu0 0
      %1704 = vmatprep.subr.bf16.mxu0 0
      %1705 = vmatpush2.bf16.msra.mxu0 0
      %1706 = vmatprep.mubr.bf16.mxu0 0
      %1707 = vmatmul.mubr.bf16.gmra.mxu0 %v1645
      %v1708 = vpop.f32.mrf.mxu0
      %v1709 = vadd.f32 0.0, %v1708
      %v1710 = vpop.f32.mrf.mxu0
      %v1711 = vadd.f32 0.0, %v1710
      %v1712 = vpop.f32.mrf.mxu0
      %v1713 = vpop.f32.mrf.mxu0
      %1714 = vdwg.mxu0
      %1715 = vmatprep.subr.bf16.mxu0 0
      %1716 = vmatpush1.bf16.msra.mxu0 0
      %1717 = vmatprep.subr.bf16.mxu0 0
      %1718 = vmatpush1.bf16.msra.mxu0 0
      %1719 = vmatprep.subr.bf16.mxu0 0
      %1720 = vmatpush1.bf16.msra.mxu0 0
      %1721 = vmatprep.subr.bf16.mxu0 0
      %1722 = vmatpush1.bf16.msra.mxu0 0
      %1723 = vmatprep.subr.bf16.mxu0 0
      %1724 = vmatpush1.bf16.msra.mxu0 0
      %1725 = vmatprep.subr.bf16.mxu0 0
      %1726 = vmatpush1.bf16.msra.mxu0 0
      %1727 = vmatprep.subr.bf16.mxu0 0
      %1728 = vmatpush1.bf16.msra.mxu0 0
      %1729 = vmatprep.subr.bf16.mxu0 %v1657
      %1730 = vmatpush1.bf16.msra.mxu0 %v1654
      %1731 = vmatprep.subr.bf16.mxu0 0
      %1732 = vmatpush2.bf16.msra.mxu0 0
      %1733 = vmatprep.subr.bf16.mxu0 0
      %1734 = vmatpush2.bf16.msra.mxu0 0
      %1735 = vmatprep.subr.bf16.mxu0 0
      %1736 = vmatpush2.bf16.msra.mxu0 0
      %1737 = vmatprep.subr.bf16.mxu0 0
      %1738 = vmatpush2.bf16.msra.mxu0 0
      %1739 = vmatprep.subr.bf16.mxu0 0
      %1740 = vmatpush2.bf16.msra.mxu0 0
      %1741 = vmatprep.subr.bf16.mxu0 0
      %1742 = vmatpush2.bf16.msra.mxu0 0
      %1743 = vmatprep.subr.bf16.mxu0 0
      %1744 = vmatpush2.bf16.msra.mxu0 0
      %1745 = vmatprep.subr.bf16.mxu0 0
      %1746 = vmatpush2.bf16.msra.mxu0 0
      %1747 = vmatprep.mubr.bf16.mxu0 0
      %1748 = vmatmul.mubr.bf16.gmra.mxu0 %v1645
      %v1749 = vpop.f32.mrf.mxu0
      %v1750 = vadd.f32 0.0, %v1749
      %v1751 = vpop.f32.mrf.mxu0
      %v1752 = vadd.f32 0.0, %v1751
      %v1753 = vpop.f32.mrf.mxu0
      %v1754 = vpop.f32.mrf.mxu0
      %1755 = vdwg.mxu0
      %1756 = vmatprep.subr.bf16.mxu0 0
      %1757 = vmatpush1.bf16.msra.mxu0 0
      %1758 = vmatprep.subr.bf16.mxu0 0
      %1759 = vmatpush1.bf16.msra.mxu0 0
      %1760 = vmatprep.subr.bf16.mxu0 0
      %1761 = vmatpush1.bf16.msra.mxu0 0
      %1762 = vmatprep.subr.bf16.mxu0 0
      %1763 = vmatpush1.bf16.msra.mxu0 0
      %1764 = vmatprep.subr.bf16.mxu0 0
      %1765 = vmatpush1.bf16.msra.mxu0 0
      %1766 = vmatprep.subr.bf16.mxu0 0
      %1767 = vmatpush1.bf16.msra.mxu0 0
      %1768 = vmatprep.subr.bf16.mxu0 0
      %1769 = vmatpush1.bf16.msra.mxu0 0
      %1770 = vmatprep.subr.bf16.mxu0 %v1663
      %1771 = vmatpush1.bf16.msra.mxu0 %v1660
      %1772 = vmatprep.subr.bf16.mxu0 0
      %1773 = vmatpush2.bf16.msra.mxu0 0
      %1774 = vmatprep.subr.bf16.mxu0 0
      %1775 = vmatpush2.bf16.msra.mxu0 0
      %1776 = vmatprep.subr.bf16.mxu0 0
      %1777 = vmatpush2.bf16.msra.mxu0 0
      %1778 = vmatprep.subr.bf16.mxu0 0
      %1779 = vmatpush2.bf16.msra.mxu0 0
      %1780 = vmatprep.subr.bf16.mxu0 0
      %1781 = vmatpush2.bf16.msra.mxu0 0
      %1782 = vmatprep.subr.bf16.mxu0 0
      %1783 = vmatpush2.bf16.msra.mxu0 0
      %1784 = vmatprep.subr.bf16.mxu0 0
      %1785 = vmatpush2.bf16.msra.mxu0 0
      %1786 = vmatprep.subr.bf16.mxu0 0
      %1787 = vmatpush2.bf16.msra.mxu0 0
      %1788 = vmatprep.mubr.bf16.mxu0 0
      %1789 = vmatmul.mubr.bf16.gmra.mxu0 %v1645
      %v1790 = vpop.f32.mrf.mxu0
      %v1791 = vadd.f32 0.0, %v1790
      %v1792 = vpop.f32.mrf.mxu0
      %v1793 = vadd.f32 0.0, %v1792
      %v1794 = vpop.f32.mrf.mxu0
      %v1795 = vpop.f32.mrf.mxu0
      %1796 = vdwg.mxu0
      %1797 = vmatprep.subr.bf16.mxu0 0
      %1798 = vmatpush1.bf16.msra.mxu0 0
      %1799 = vmatprep.subr.bf16.mxu0 0
      %1800 = vmatpush1.bf16.msra.mxu0 0
      %1801 = vmatprep.subr.bf16.mxu0 0
      %1802 = vmatpush1.bf16.msra.mxu0 0
      %1803 = vmatprep.subr.bf16.mxu0 0
      %1804 = vmatpush1.bf16.msra.mxu0 0
      %1805 = vmatprep.subr.bf16.mxu0 0
      %1806 = vmatpush1.bf16.msra.mxu0 0
      %1807 = vmatprep.subr.bf16.mxu0 0
      %1808 = vmatpush1.bf16.msra.mxu0 0
      %1809 = vmatprep.subr.bf16.mxu0 0
      %1810 = vmatpush1.bf16.msra.mxu0 0
      %1811 = vmatprep.subr.bf16.mxu0 %v1669
      %1812 = vmatpush1.bf16.msra.mxu0 %v1666
      %1813 = vmatprep.subr.bf16.mxu0 0
      %1814 = vmatpush2.bf16.msra.mxu0 0
      %1815 = vmatprep.subr.bf16.mxu0 0
      %1816 = vmatpush2.bf16.msra.mxu0 0
      %1817 = vmatprep.subr.bf16.mxu0 0
      %1818 = vmatpush2.bf16.msra.mxu0 0
      %1819 = vmatprep.subr.bf16.mxu0 0
      %1820 = vmatpush2.bf16.msra.mxu0 0
      %1821 = vmatprep.subr.bf16.mxu0 0
      %1822 = vmatpush2.bf16.msra.mxu0 0
      %1823 = vmatprep.subr.bf16.mxu0 0
      %1824 = vmatpush2.bf16.msra.mxu0 0
      %1825 = vmatprep.subr.bf16.mxu0 0
      %1826 = vmatpush2.bf16.msra.mxu0 0
      %1827 = vmatprep.subr.bf16.mxu0 0
      %1828 = vmatpush2.bf16.msra.mxu0 0
      %1829 = vmatprep.mubr.bf16.mxu0 0
      %1830 = vmatmul.mubr.bf16.gmra.mxu0 %v1645
      %v1831 = vpop.f32.mrf.mxu0
      %v1832 = vadd.f32 0.0, %v1831
      %v1833 = vpop.f32.mrf.mxu0
      %v1834 = vadd.f32 0.0, %v1833
      %v1835 = vpop.f32.mrf.mxu0
      %v1836 = vpop.f32.mrf.mxu0
      %1837 = vdwg.mxu0
      %1838 = vmatprep.subr.bf16.mxu0 0
      %1839 = vmatpush1.bf16.msra.mxu0 0
      %1840 = vmatprep.subr.bf16.mxu0 0
      %1841 = vmatpush1.bf16.msra.mxu0 0
      %1842 = vmatprep.subr.bf16.mxu0 0
      %1843 = vmatpush1.bf16.msra.mxu0 0
      %1844 = vmatprep.subr.bf16.mxu0 0
      %1845 = vmatpush1.bf16.msra.mxu0 0
      %1846 = vmatprep.subr.bf16.mxu0 0
      %1847 = vmatpush1.bf16.msra.mxu0 0
      %1848 = vmatprep.subr.bf16.mxu0 0
      %1849 = vmatpush1.bf16.msra.mxu0 0
      %1850 = vmatprep.subr.bf16.mxu0 0
      %1851 = vmatpush1.bf16.msra.mxu0 0
      %1852 = vmatprep.subr.bf16.mxu0 0
      %1853 = vmatpush1.bf16.msra.mxu0 %v1672
      %1854 = vmatprep.subr.bf16.mxu0 0
      %1855 = vmatpush2.bf16.msra.mxu0 0
      %1856 = vmatprep.subr.bf16.mxu0 0
      %1857 = vmatpush2.bf16.msra.mxu0 0
      %1858 = vmatprep.subr.bf16.mxu0 0
      %1859 = vmatpush2.bf16.msra.mxu0 0
      %1860 = vmatprep.subr.bf16.mxu0 0
      %1861 = vmatpush2.bf16.msra.mxu0 0
      %1862 = vmatprep.subr.bf16.mxu0 0
      %1863 = vmatpush2.bf16.msra.mxu0 0
      %1864 = vmatprep.subr.bf16.mxu0 0
      %1865 = vmatpush2.bf16.msra.mxu0 0
      %1866 = vmatprep.subr.bf16.mxu0 0
      %1867 = vmatpush2.bf16.msra.mxu0 0
      %1868 = vmatprep.subr.bf16.mxu0 0
      %1869 = vmatpush2.bf16.msra.mxu0 0
      %1870 = vmatprep.mubr.bf16.mxu0 0
      %1871 = vmatmul.mubr.bf16.gmra.mxu0 %v1645
      %v1872 = vpop.f32.mrf.mxu0
      %v1873 = vadd.f32 0.0, %v1872
      %v1874 = vpop.f32.mrf.mxu0
      %v1875 = vpop.f32.mrf.mxu0
      %v1876 = vpop.f32.mrf.mxu0
      %1877 = vdwg.mxu0
      %v1878 = vadd.f32 %v1603, %v1709
      %v1879 = vadd.f32 %v1604, %v1711
      %v1880 = vadd.f32 %v1605, %v1750
      %v1881 = vadd.f32 %v1606, %v1752
      %v1882 = vadd.f32 %v1607, %v1791
      %v1883 = vadd.f32 %v1608, %v1793
      %v1884 = vadd.f32 %v1609, %v1832
      %v1885 = vadd.f32 %v1610, %v1834
      %v1886 = vadd.f32 %v1611, %v1873
      %s1887 = scalar_lea.vmem %s1, 12
      %v1888 = vld [vmem:[%s1887] sm:$0x3]
      %1889 = vrot.lane.b32.xlu0 %v254, 91
      %v1890 = vpop.permute.xlu0 %1889
      %1891 = vrot.lane.b32.xlu0 %v255, 91
      %v1892 = vpop.permute.xlu0 %1891
      %1893 = vrot.lane.b32.xlu0 %v256, 91
      %v1894 = vpop.permute.xlu0 %1893
      %1895 = vrot.lane.b32.xlu0 %v257, 91
      %v1896 = vpop.permute.xlu0 %1895
      %1897 = vrot.lane.b32.xlu0 %v258, 91
      %v1898 = vpop.permute.xlu0 %1897
      %1899 = vrot.lane.b32.xlu0 %v259, 91
      %v1900 = vpop.permute.xlu0 %1899
      %1901 = vrot.lane.b32.xlu0 %v260, 91
      %v1902 = vpop.permute.xlu0 %1901
      %1903 = vrot.lane.b32.xlu0 %v261, 91
      %v1904 = vpop.permute.xlu0 %1903
      %1905 = vrot.lane.b32.xlu0 %v262, 91
      %v1906 = vpop.permute.xlu0 %1905
      %1907 = vrot.lane.b32.xlu0 %v263, 91
      %v1908 = vpop.permute.xlu0 %1907
      %vm1909 = vcmask 744448
      %v1910 = vsel %vm1909, %v1890, %v1892
      %v1911 = vsel %vm1909, %v1892, %v1894
      %v1912 = vsel %vm1909, %v1894, %v1896
      %v1913 = vsel %vm1909, %v1896, %v1898
      %v1914 = vsel %vm1909, %v1898, %v1900
      %v1915 = vsel %vm1909, %v1900, %v1902
      %v1916 = vsel %vm1909, %v1902, %v1904
      %v1917 = vsel %vm1909, %v1904, %v1906
      %v1918 = vsel %vm1909, %v1906, %v1908
      %v1920 = vsel %vm294, %v1888, 0
      %v1923 = vsel %vm298, %v1910, 0
      %v1926 = vsel %vm298, %v1911, 0
      %v1929 = vsel %vm298, %v1912, 0
      %v1932 = vsel %vm298, %v1913, 0
      %v1935 = vsel %vm298, %v1914, 0
      %v1938 = vsel %vm298, %v1915, 0
      %v1941 = vsel %vm298, %v1916, 0
      %v1944 = vsel %vm298, %v1917, 0
      %v1947 = vsel %vm298, %v1918, 0
      %1949 = vmatprep.subr.bf16.mxu0 0
      %1950 = vmatpush1.bf16.msra.mxu0 0
      %1951 = vmatprep.subr.bf16.mxu0 0
      %1952 = vmatpush1.bf16.msra.mxu0 0
      %1953 = vmatprep.subr.bf16.mxu0 0
      %1954 = vmatpush1.bf16.msra.mxu0 0
      %1955 = vmatprep.subr.bf16.mxu0 0
      %1956 = vmatpush1.bf16.msra.mxu0 0
      %1957 = vmatprep.subr.bf16.mxu0 0
      %1958 = vmatpush1.bf16.msra.mxu0 0
      %1959 = vmatprep.subr.bf16.mxu0 0
      %1960 = vmatpush1.bf16.msra.mxu0 0
      %1961 = vmatprep.subr.bf16.mxu0 0
      %1962 = vmatpush1.bf16.msra.mxu0 0
      %1963 = vmatprep.subr.bf16.mxu0 %v1926
      %1964 = vmatpush1.bf16.msra.mxu0 %v1923
      %1965 = vmatprep.subr.bf16.mxu0 0
      %1966 = vmatpush2.bf16.msra.mxu0 0
      %1967 = vmatprep.subr.bf16.mxu0 0
      %1968 = vmatpush2.bf16.msra.mxu0 0
      %1969 = vmatprep.subr.bf16.mxu0 0
      %1970 = vmatpush2.bf16.msra.mxu0 0
      %1971 = vmatprep.subr.bf16.mxu0 0
      %1972 = vmatpush2.bf16.msra.mxu0 0
      %1973 = vmatprep.subr.bf16.mxu0 0
      %1974 = vmatpush2.bf16.msra.mxu0 0
      %1975 = vmatprep.subr.bf16.mxu0 0
      %1976 = vmatpush2.bf16.msra.mxu0 0
      %1977 = vmatprep.subr.bf16.mxu0 0
      %1978 = vmatpush2.bf16.msra.mxu0 0
      %1979 = vmatprep.subr.bf16.mxu0 0
      %1980 = vmatpush2.bf16.msra.mxu0 0
      %1981 = vmatprep.mubr.bf16.mxu0 0
      %1982 = vmatmul.mubr.bf16.gmra.mxu0 %v1920
      %v1983 = vpop.f32.mrf.mxu0
      %v1984 = vadd.f32 0.0, %v1983
      %v1985 = vpop.f32.mrf.mxu0
      %v1986 = vadd.f32 0.0, %v1985
      %v1987 = vpop.f32.mrf.mxu0
      %v1988 = vpop.f32.mrf.mxu0
      %1989 = vdwg.mxu0
      %1990 = vmatprep.subr.bf16.mxu0 0
      %1991 = vmatpush1.bf16.msra.mxu0 0
      %1992 = vmatprep.subr.bf16.mxu0 0
      %1993 = vmatpush1.bf16.msra.mxu0 0
      %1994 = vmatprep.subr.bf16.mxu0 0
      %1995 = vmatpush1.bf16.msra.mxu0 0
      %1996 = vmatprep.subr.bf16.mxu0 0
      %1997 = vmatpush1.bf16.msra.mxu0 0
      %1998 = vmatprep.subr.bf16.mxu0 0
      %1999 = vmatpush1.bf16.msra.mxu0 0
      %2000 = vmatprep.subr.bf16.mxu0 0
      %2001 = vmatpush1.bf16.msra.mxu0 0
      %2002 = vmatprep.subr.bf16.mxu0 0
      %2003 = vmatpush1.bf16.msra.mxu0 0
      %2004 = vmatprep.subr.bf16.mxu0 %v1932
      %2005 = vmatpush1.bf16.msra.mxu0 %v1929
      %2006 = vmatprep.subr.bf16.mxu0 0
      %2007 = vmatpush2.bf16.msra.mxu0 0
      %2008 = vmatprep.subr.bf16.mxu0 0
      %2009 = vmatpush2.bf16.msra.mxu0 0
      %2010 = vmatprep.subr.bf16.mxu0 0
      %2011 = vmatpush2.bf16.msra.mxu0 0
      %2012 = vmatprep.subr.bf16.mxu0 0
      %2013 = vmatpush2.bf16.msra.mxu0 0
      %2014 = vmatprep.subr.bf16.mxu0 0
      %2015 = vmatpush2.bf16.msra.mxu0 0
      %2016 = vmatprep.subr.bf16.mxu0 0
      %2017 = vmatpush2.bf16.msra.mxu0 0
      %2018 = vmatprep.subr.bf16.mxu0 0
      %2019 = vmatpush2.bf16.msra.mxu0 0
      %2020 = vmatprep.subr.bf16.mxu0 0
      %2021 = vmatpush2.bf16.msra.mxu0 0
      %2022 = vmatprep.mubr.bf16.mxu0 0
      %2023 = vmatmul.mubr.bf16.gmra.mxu0 %v1920
      %v2024 = vpop.f32.mrf.mxu0
      %v2025 = vadd.f32 0.0, %v2024
      %v2026 = vpop.f32.mrf.mxu0
      %v2027 = vadd.f32 0.0, %v2026
      %v2028 = vpop.f32.mrf.mxu0
      %v2029 = vpop.f32.mrf.mxu0
      %2030 = vdwg.mxu0
      %2031 = vmatprep.subr.bf16.mxu0 0
      %2032 = vmatpush1.bf16.msra.mxu0 0
      %2033 = vmatprep.subr.bf16.mxu0 0
      %2034 = vmatpush1.bf16.msra.mxu0 0
      %2035 = vmatprep.subr.bf16.mxu0 0
      %2036 = vmatpush1.bf16.msra.mxu0 0
      %2037 = vmatprep.subr.bf16.mxu0 0
      %2038 = vmatpush1.bf16.msra.mxu0 0
      %2039 = vmatprep.subr.bf16.mxu0 0
      %2040 = vmatpush1.bf16.msra.mxu0 0
      %2041 = vmatprep.subr.bf16.mxu0 0
      %2042 = vmatpush1.bf16.msra.mxu0 0
      %2043 = vmatprep.subr.bf16.mxu0 0
      %2044 = vmatpush1.bf16.msra.mxu0 0
      %2045 = vmatprep.subr.bf16.mxu0 %v1938
      %2046 = vmatpush1.bf16.msra.mxu0 %v1935
      %2047 = vmatprep.subr.bf16.mxu0 0
      %2048 = vmatpush2.bf16.msra.mxu0 0
      %2049 = vmatprep.subr.bf16.mxu0 0
      %2050 = vmatpush2.bf16.msra.mxu0 0
      %2051 = vmatprep.subr.bf16.mxu0 0
      %2052 = vmatpush2.bf16.msra.mxu0 0
      %2053 = vmatprep.subr.bf16.mxu0 0
      %2054 = vmatpush2.bf16.msra.mxu0 0
      %2055 = vmatprep.subr.bf16.mxu0 0
      %2056 = vmatpush2.bf16.msra.mxu0 0
      %2057 = vmatprep.subr.bf16.mxu0 0
      %2058 = vmatpush2.bf16.msra.mxu0 0
      %2059 = vmatprep.subr.bf16.mxu0 0
      %2060 = vmatpush2.bf16.msra.mxu0 0
      %2061 = vmatprep.subr.bf16.mxu0 0
      %2062 = vmatpush2.bf16.msra.mxu0 0
      %2063 = vmatprep.mubr.bf16.mxu0 0
      %2064 = vmatmul.mubr.bf16.gmra.mxu0 %v1920
      %v2065 = vpop.f32.mrf.mxu0
      %v2066 = vadd.f32 0.0, %v2065
      %v2067 = vpop.f32.mrf.mxu0
      %v2068 = vadd.f32 0.0, %v2067
      %v2069 = vpop.f32.mrf.mxu0
      %v2070 = vpop.f32.mrf.mxu0
      %2071 = vdwg.mxu0
      %2072 = vmatprep.subr.bf16.mxu0 0
      %2073 = vmatpush1.bf16.msra.mxu0 0
      %2074 = vmatprep.subr.bf16.mxu0 0
      %2075 = vmatpush1.bf16.msra.mxu0 0
      %2076 = vmatprep.subr.bf16.mxu0 0
      %2077 = vmatpush1.bf16.msra.mxu0 0
      %2078 = vmatprep.subr.bf16.mxu0 0
      %2079 = vmatpush1.bf16.msra.mxu0 0
      %2080 = vmatprep.subr.bf16.mxu0 0
      %2081 = vmatpush1.bf16.msra.mxu0 0
      %2082 = vmatprep.subr.bf16.mxu0 0
      %2083 = vmatpush1.bf16.msra.mxu0 0
      %2084 = vmatprep.subr.bf16.mxu0 0
      %2085 = vmatpush1.bf16.msra.mxu0 0
      %2086 = vmatprep.subr.bf16.mxu0 %v1944
      %2087 = vmatpush1.bf16.msra.mxu0 %v1941
      %2088 = vmatprep.subr.bf16.mxu0 0
      %2089 = vmatpush2.bf16.msra.mxu0 0
      %2090 = vmatprep.subr.bf16.mxu0 0
      %2091 = vmatpush2.bf16.msra.mxu0 0
      %2092 = vmatprep.subr.bf16.mxu0 0
      %2093 = vmatpush2.bf16.msra.mxu0 0
      %2094 = vmatprep.subr.bf16.mxu0 0
      %2095 = vmatpush2.bf16.msra.mxu0 0
      %2096 = vmatprep.subr.bf16.mxu0 0
      %2097 = vmatpush2.bf16.msra.mxu0 0
      %2098 = vmatprep.subr.bf16.mxu0 0
      %2099 = vmatpush2.bf16.msra.mxu0 0
      %2100 = vmatprep.subr.bf16.mxu0 0
      %2101 = vmatpush2.bf16.msra.mxu0 0
      %2102 = vmatprep.subr.bf16.mxu0 0
      %2103 = vmatpush2.bf16.msra.mxu0 0
      %2104 = vmatprep.mubr.bf16.mxu0 0
      %2105 = vmatmul.mubr.bf16.gmra.mxu0 %v1920
      %v2106 = vpop.f32.mrf.mxu0
      %v2107 = vadd.f32 0.0, %v2106
      %v2108 = vpop.f32.mrf.mxu0
      %v2109 = vadd.f32 0.0, %v2108
      %v2110 = vpop.f32.mrf.mxu0
      %v2111 = vpop.f32.mrf.mxu0
      %2112 = vdwg.mxu0
      %2113 = vmatprep.subr.bf16.mxu0 0
      %2114 = vmatpush1.bf16.msra.mxu0 0
      %2115 = vmatprep.subr.bf16.mxu0 0
      %2116 = vmatpush1.bf16.msra.mxu0 0
      %2117 = vmatprep.subr.bf16.mxu0 0
      %2118 = vmatpush1.bf16.msra.mxu0 0
      %2119 = vmatprep.subr.bf16.mxu0 0
      %2120 = vmatpush1.bf16.msra.mxu0 0
      %2121 = vmatprep.subr.bf16.mxu0 0
      %2122 = vmatpush1.bf16.msra.mxu0 0
      %2123 = vmatprep.subr.bf16.mxu0 0
      %2124 = vmatpush1.bf16.msra.mxu0 0
      %2125 = vmatprep.subr.bf16.mxu0 0
      %2126 = vmatpush1.bf16.msra.mxu0 0
      %2127 = vmatprep.subr.bf16.mxu0 0
      %2128 = vmatpush1.bf16.msra.mxu0 %v1947
      %2129 = vmatprep.subr.bf16.mxu0 0
      %2130 = vmatpush2.bf16.msra.mxu0 0
      %2131 = vmatprep.subr.bf16.mxu0 0
      %2132 = vmatpush2.bf16.msra.mxu0 0
      %2133 = vmatprep.subr.bf16.mxu0 0
      %2134 = vmatpush2.bf16.msra.mxu0 0
      %2135 = vmatprep.subr.bf16.mxu0 0
      %2136 = vmatpush2.bf16.msra.mxu0 0
      %2137 = vmatprep.subr.bf16.mxu0 0
      %2138 = vmatpush2.bf16.msra.mxu0 0
      %2139 = vmatprep.subr.bf16.mxu0 0
      %2140 = vmatpush2.bf16.msra.mxu0 0
      %2141 = vmatprep.subr.bf16.mxu0 0
      %2142 = vmatpush2.bf16.msra.mxu0 0
      %2143 = vmatprep.subr.bf16.mxu0 0
      %2144 = vmatpush2.bf16.msra.mxu0 0
      %2145 = vmatprep.mubr.bf16.mxu0 0
      %2146 = vmatmul.mubr.bf16.gmra.mxu0 %v1920
      %v2147 = vpop.f32.mrf.mxu0
      %v2148 = vadd.f32 0.0, %v2147
      %v2149 = vpop.f32.mrf.mxu0
      %v2150 = vpop.f32.mrf.mxu0
      %v2151 = vpop.f32.mrf.mxu0
      %2152 = vdwg.mxu0
      %v2153 = vadd.f32 %v1878, %v1984
      %v2154 = vadd.f32 %v1879, %v1986
      %v2155 = vadd.f32 %v1880, %v2025
      %v2156 = vadd.f32 %v1881, %v2027
      %v2157 = vadd.f32 %v1882, %v2066
      %v2158 = vadd.f32 %v1883, %v2068
      %v2159 = vadd.f32 %v1884, %v2107
      %v2160 = vadd.f32 %v1885, %v2109
      %v2161 = vadd.f32 %v1886, %v2148
      %s2162 = scalar_lea.vmem %s1, 14
      %v2163 = vld [vmem:[%s2162] sm:$0x3]
      %2164 = vrot.lane.b32.xlu0 %v254, 90
      %v2165 = vpop.permute.xlu0 %2164
      %2166 = vrot.lane.b32.xlu0 %v255, 90
      %v2167 = vpop.permute.xlu0 %2166
      %2168 = vrot.lane.b32.xlu0 %v256, 90
      %v2169 = vpop.permute.xlu0 %2168
      %2170 = vrot.lane.b32.xlu0 %v257, 90
      %v2171 = vpop.permute.xlu0 %2170
      %2172 = vrot.lane.b32.xlu0 %v258, 90
      %v2173 = vpop.permute.xlu0 %2172
      %2174 = vrot.lane.b32.xlu0 %v259, 90
      %v2175 = vpop.permute.xlu0 %2174
      %2176 = vrot.lane.b32.xlu0 %v260, 90
      %v2177 = vpop.permute.xlu0 %2176
      %2178 = vrot.lane.b32.xlu0 %v261, 90
      %v2179 = vpop.permute.xlu0 %2178
      %2180 = vrot.lane.b32.xlu0 %v262, 90
      %v2181 = vpop.permute.xlu0 %2180
      %2182 = vrot.lane.b32.xlu0 %v263, 90
      %v2183 = vpop.permute.xlu0 %2182
      %vm2184 = vcmask 736256
      %v2185 = vsel %vm2184, %v2165, %v2167
      %v2186 = vsel %vm2184, %v2167, %v2169
      %v2187 = vsel %vm2184, %v2169, %v2171
      %v2188 = vsel %vm2184, %v2171, %v2173
      %v2189 = vsel %vm2184, %v2173, %v2175
      %v2190 = vsel %vm2184, %v2175, %v2177
      %v2191 = vsel %vm2184, %v2177, %v2179
      %v2192 = vsel %vm2184, %v2179, %v2181
      %v2193 = vsel %vm2184, %v2181, %v2183
      %v2195 = vsel %vm294, %v2163, 0
      %v2198 = vsel %vm298, %v2185, 0
      %v2201 = vsel %vm298, %v2186, 0
      %v2204 = vsel %vm298, %v2187, 0
      %v2207 = vsel %vm298, %v2188, 0
      %v2210 = vsel %vm298, %v2189, 0
      %v2213 = vsel %vm298, %v2190, 0
      %v2216 = vsel %vm298, %v2191, 0
      %v2219 = vsel %vm298, %v2192, 0
      %v2222 = vsel %vm298, %v2193, 0
      %2224 = vmatprep.subr.bf16.mxu0 0
      %2225 = vmatpush1.bf16.msra.mxu0 0
      %2226 = vmatprep.subr.bf16.mxu0 0
      %2227 = vmatpush1.bf16.msra.mxu0 0
      %2228 = vmatprep.subr.bf16.mxu0 0
      %2229 = vmatpush1.bf16.msra.mxu0 0
      %2230 = vmatprep.subr.bf16.mxu0 0
      %2231 = vmatpush1.bf16.msra.mxu0 0
      %2232 = vmatprep.subr.bf16.mxu0 0
      %2233 = vmatpush1.bf16.msra.mxu0 0
      %2234 = vmatprep.subr.bf16.mxu0 0
      %2235 = vmatpush1.bf16.msra.mxu0 0
      %2236 = vmatprep.subr.bf16.mxu0 0
      %2237 = vmatpush1.bf16.msra.mxu0 0
      %2238 = vmatprep.subr.bf16.mxu0 %v2201
      %2239 = vmatpush1.bf16.msra.mxu0 %v2198
      %2240 = vmatprep.subr.bf16.mxu0 0
      %2241 = vmatpush2.bf16.msra.mxu0 0
      %2242 = vmatprep.subr.bf16.mxu0 0
      %2243 = vmatpush2.bf16.msra.mxu0 0
      %2244 = vmatprep.subr.bf16.mxu0 0
      %2245 = vmatpush2.bf16.msra.mxu0 0
      %2246 = vmatprep.subr.bf16.mxu0 0
      %2247 = vmatpush2.bf16.msra.mxu0 0
      %2248 = vmatprep.subr.bf16.mxu0 0
      %2249 = vmatpush2.bf16.msra.mxu0 0
      %2250 = vmatprep.subr.bf16.mxu0 0
      %2251 = vmatpush2.bf16.msra.mxu0 0
      %2252 = vmatprep.subr.bf16.mxu0 0
      %2253 = vmatpush2.bf16.msra.mxu0 0
      %2254 = vmatprep.subr.bf16.mxu0 0
      %2255 = vmatpush2.bf16.msra.mxu0 0
      %2256 = vmatprep.mubr.bf16.mxu0 0
      %2257 = vmatmul.mubr.bf16.gmra.mxu0 %v2195
      %v2258 = vpop.f32.mrf.mxu0
      %v2259 = vadd.f32 0.0, %v2258
      %v2260 = vpop.f32.mrf.mxu0
      %v2261 = vadd.f32 0.0, %v2260
      %v2262 = vpop.f32.mrf.mxu0
      %v2263 = vpop.f32.mrf.mxu0
      %2264 = vdwg.mxu0
      %2265 = vmatprep.subr.bf16.mxu0 0
      %2266 = vmatpush1.bf16.msra.mxu0 0
      %2267 = vmatprep.subr.bf16.mxu0 0
      %2268 = vmatpush1.bf16.msra.mxu0 0
      %2269 = vmatprep.subr.bf16.mxu0 0
      %2270 = vmatpush1.bf16.msra.mxu0 0
      %2271 = vmatprep.subr.bf16.mxu0 0
      %2272 = vmatpush1.bf16.msra.mxu0 0
      %2273 = vmatprep.subr.bf16.mxu0 0
      %2274 = vmatpush1.bf16.msra.mxu0 0
      %2275 = vmatprep.subr.bf16.mxu0 0
      %2276 = vmatpush1.bf16.msra.mxu0 0
      %2277 = vmatprep.subr.bf16.mxu0 0
      %2278 = vmatpush1.bf16.msra.mxu0 0
      %2279 = vmatprep.subr.bf16.mxu0 %v2207
      %2280 = vmatpush1.bf16.msra.mxu0 %v2204
      %2281 = vmatprep.subr.bf16.mxu0 0
      %2282 = vmatpush2.bf16.msra.mxu0 0
      %2283 = vmatprep.subr.bf16.mxu0 0
      %2284 = vmatpush2.bf16.msra.mxu0 0
      %2285 = vmatprep.subr.bf16.mxu0 0
      %2286 = vmatpush2.bf16.msra.mxu0 0
      %2287 = vmatprep.subr.bf16.mxu0 0
      %2288 = vmatpush2.bf16.msra.mxu0 0
      %2289 = vmatprep.subr.bf16.mxu0 0
      %2290 = vmatpush2.bf16.msra.mxu0 0
      %2291 = vmatprep.subr.bf16.mxu0 0
      %2292 = vmatpush2.bf16.msra.mxu0 0
      %2293 = vmatprep.subr.bf16.mxu0 0
      %2294 = vmatpush2.bf16.msra.mxu0 0
      %2295 = vmatprep.subr.bf16.mxu0 0
      %2296 = vmatpush2.bf16.msra.mxu0 0
      %2297 = vmatprep.mubr.bf16.mxu0 0
      %2298 = vmatmul.mubr.bf16.gmra.mxu0 %v2195
      %v2299 = vpop.f32.mrf.mxu0
      %v2300 = vadd.f32 0.0, %v2299
      %v2301 = vpop.f32.mrf.mxu0
      %v2302 = vadd.f32 0.0, %v2301
      %v2303 = vpop.f32.mrf.mxu0
      %v2304 = vpop.f32.mrf.mxu0
      %2305 = vdwg.mxu0
      %2306 = vmatprep.subr.bf16.mxu0 0
      %2307 = vmatpush1.bf16.msra.mxu0 0
      %2308 = vmatprep.subr.bf16.mxu0 0
      %2309 = vmatpush1.bf16.msra.mxu0 0
      %2310 = vmatprep.subr.bf16.mxu0 0
      %2311 = vmatpush1.bf16.msra.mxu0 0
      %2312 = vmatprep.subr.bf16.mxu0 0
      %2313 = vmatpush1.bf16.msra.mxu0 0
      %2314 = vmatprep.subr.bf16.mxu0 0
      %2315 = vmatpush1.bf16.msra.mxu0 0
      %2316 = vmatprep.subr.bf16.mxu0 0
      %2317 = vmatpush1.bf16.msra.mxu0 0
      %2318 = vmatprep.subr.bf16.mxu0 0
      %2319 = vmatpush1.bf16.msra.mxu0 0
      %2320 = vmatprep.subr.bf16.mxu0 %v2213
      %2321 = vmatpush1.bf16.msra.mxu0 %v2210
      %2322 = vmatprep.subr.bf16.mxu0 0
      %2323 = vmatpush2.bf16.msra.mxu0 0
      %2324 = vmatprep.subr.bf16.mxu0 0
      %2325 = vmatpush2.bf16.msra.mxu0 0
      %2326 = vmatprep.subr.bf16.mxu0 0
      %2327 = vmatpush2.bf16.msra.mxu0 0
      %2328 = vmatprep.subr.bf16.mxu0 0
      %2329 = vmatpush2.bf16.msra.mxu0 0
      %2330 = vmatprep.subr.bf16.mxu0 0
      %2331 = vmatpush2.bf16.msra.mxu0 0
      %2332 = vmatprep.subr.bf16.mxu0 0
      %2333 = vmatpush2.bf16.msra.mxu0 0
      %2334 = vmatprep.subr.bf16.mxu0 0
      %2335 = vmatpush2.bf16.msra.mxu0 0
      %2336 = vmatprep.subr.bf16.mxu0 0
      %2337 = vmatpush2.bf16.msra.mxu0 0
      %2338 = vmatprep.mubr.bf16.mxu0 0
      %2339 = vmatmul.mubr.bf16.gmra.mxu0 %v2195
      %v2340 = vpop.f32.mrf.mxu0
      %v2341 = vadd.f32 0.0, %v2340
      %v2342 = vpop.f32.mrf.mxu0
      %v2343 = vadd.f32 0.0, %v2342
      %v2344 = vpop.f32.mrf.mxu0
      %v2345 = vpop.f32.mrf.mxu0
      %2346 = vdwg.mxu0
      %2347 = vmatprep.subr.bf16.mxu0 0
      %2348 = vmatpush1.bf16.msra.mxu0 0
      %2349 = vmatprep.subr.bf16.mxu0 0
      %2350 = vmatpush1.bf16.msra.mxu0 0
      %2351 = vmatprep.subr.bf16.mxu0 0
      %2352 = vmatpush1.bf16.msra.mxu0 0
      %2353 = vmatprep.subr.bf16.mxu0 0
      %2354 = vmatpush1.bf16.msra.mxu0 0
      %2355 = vmatprep.subr.bf16.mxu0 0
      %2356 = vmatpush1.bf16.msra.mxu0 0
      %2357 = vmatprep.subr.bf16.mxu0 0
      %2358 = vmatpush1.bf16.msra.mxu0 0
      %2359 = vmatprep.subr.bf16.mxu0 0
      %2360 = vmatpush1.bf16.msra.mxu0 0
      %2361 = vmatprep.subr.bf16.mxu0 %v2219
      %2362 = vmatpush1.bf16.msra.mxu0 %v2216
      %2363 = vmatprep.subr.bf16.mxu0 0
      %2364 = vmatpush2.bf16.msra.mxu0 0
      %2365 = vmatprep.subr.bf16.mxu0 0
      %2366 = vmatpush2.bf16.msra.mxu0 0
      %2367 = vmatprep.subr.bf16.mxu0 0
      %2368 = vmatpush2.bf16.msra.mxu0 0
      %2369 = vmatprep.subr.bf16.mxu0 0
      %2370 = vmatpush2.bf16.msra.mxu0 0
      %2371 = vmatprep.subr.bf16.mxu0 0
      %2372 = vmatpush2.bf16.msra.mxu0 0
      %2373 = vmatprep.subr.bf16.mxu0 0
      %2374 = vmatpush2.bf16.msra.mxu0 0
      %2375 = vmatprep.subr.bf16.mxu0 0
      %2376 = vmatpush2.bf16.msra.mxu0 0
      %2377 = vmatprep.subr.bf16.mxu0 0
      %2378 = vmatpush2.bf16.msra.mxu0 0
      %2379 = vmatprep.mubr.bf16.mxu0 0
      %2380 = vmatmul.mubr.bf16.gmra.mxu0 %v2195
      %v2381 = vpop.f32.mrf.mxu0
      %v2382 = vadd.f32 0.0, %v2381
      %v2383 = vpop.f32.mrf.mxu0
      %v2384 = vadd.f32 0.0, %v2383
      %v2385 = vpop.f32.mrf.mxu0
      %v2386 = vpop.f32.mrf.mxu0
      %2387 = vdwg.mxu0
      %2388 = vmatprep.subr.bf16.mxu0 0
      %2389 = vmatpush1.bf16.msra.mxu0 0
      %2390 = vmatprep.subr.bf16.mxu0 0
      %2391 = vmatpush1.bf16.msra.mxu0 0
      %2392 = vmatprep.subr.bf16.mxu0 0
      %2393 = vmatpush1.bf16.msra.mxu0 0
      %2394 = vmatprep.subr.bf16.mxu0 0
      %2395 = vmatpush1.bf16.msra.mxu0 0
      %2396 = vmatprep.subr.bf16.mxu0 0
      %2397 = vmatpush1.bf16.msra.mxu0 0
      %2398 = vmatprep.subr.bf16.mxu0 0
      %2399 = vmatpush1.bf16.msra.mxu0 0
      %2400 = vmatprep.subr.bf16.mxu0 0
      %2401 = vmatpush1.bf16.msra.mxu0 0
      %2402 = vmatprep.subr.bf16.mxu0 0
      %2403 = vmatpush1.bf16.msra.mxu0 %v2222
      %2404 = vmatprep.subr.bf16.mxu0 0
      %2405 = vmatpush2.bf16.msra.mxu0 0
      %2406 = vmatprep.subr.bf16.mxu0 0
      %2407 = vmatpush2.bf16.msra.mxu0 0
      %2408 = vmatprep.subr.bf16.mxu0 0
      %2409 = vmatpush2.bf16.msra.mxu0 0
      %2410 = vmatprep.subr.bf16.mxu0 0
      %2411 = vmatpush2.bf16.msra.mxu0 0
      %2412 = vmatprep.subr.bf16.mxu0 0
      %2413 = vmatpush2.bf16.msra.mxu0 0
      %2414 = vmatprep.subr.bf16.mxu0 0
      %2415 = vmatpush2.bf16.msra.mxu0 0
      %2416 = vmatprep.subr.bf16.mxu0 0
      %2417 = vmatpush2.bf16.msra.mxu0 0
      %2418 = vmatprep.subr.bf16.mxu0 0
      %2419 = vmatpush2.bf16.msra.mxu0 0
      %2420 = vmatprep.mubr.bf16.mxu0 0
      %2421 = vmatmul.mubr.bf16.gmra.mxu0 %v2195
      %v2422 = vpop.f32.mrf.mxu0
      %v2423 = vadd.f32 0.0, %v2422
      %v2424 = vpop.f32.mrf.mxu0
      %v2425 = vpop.f32.mrf.mxu0
      %v2426 = vpop.f32.mrf.mxu0
      %2427 = vdwg.mxu0
      %v2428 = vadd.f32 %v2153, %v2259
      %v2429 = vadd.f32 %v2154, %v2261
      %v2430 = vadd.f32 %v2155, %v2300
      %v2431 = vadd.f32 %v2156, %v2302
      %v2432 = vadd.f32 %v2157, %v2341
      %v2433 = vadd.f32 %v2158, %v2343
      %v2434 = vadd.f32 %v2159, %v2382
      %v2435 = vadd.f32 %v2160, %v2384
      %v2436 = vadd.f32 %v2161, %v2423
      %s2437 = scalar_lea.vmem %s1, 16
      %v2438 = vld [vmem:[%s2437] sm:$0x3]
      %2439 = vrot.lane.b32.xlu0 %v254, 58
      %v2440 = vpop.permute.xlu0 %2439
      %2441 = vrot.lane.b32.xlu0 %v255, 58
      %v2442 = vpop.permute.xlu0 %2441
      %2443 = vrot.lane.b32.xlu0 %v256, 58
      %v2444 = vpop.permute.xlu0 %2443
      %2445 = vrot.lane.b32.xlu0 %v257, 58
      %v2446 = vpop.permute.xlu0 %2445
      %2447 = vrot.lane.b32.xlu0 %v258, 58
      %v2448 = vpop.permute.xlu0 %2447
      %2449 = vrot.lane.b32.xlu0 %v259, 58
      %v2450 = vpop.permute.xlu0 %2449
      %2451 = vrot.lane.b32.xlu0 %v260, 58
      %v2452 = vpop.permute.xlu0 %2451
      %2453 = vrot.lane.b32.xlu0 %v261, 58
      %v2454 = vpop.permute.xlu0 %2453
      %2455 = vrot.lane.b32.xlu0 %v262, 58
      %v2456 = vpop.permute.xlu0 %2455
      %2457 = vrot.lane.b32.xlu0 %v263, 58
      %v2458 = vpop.permute.xlu0 %2457
      %vm2459 = vcmask 474112
      %v2460 = vsel %vm2459, %v2440, %v2442
      %v2461 = vsel %vm2459, %v2442, %v2444
      %v2462 = vsel %vm2459, %v2444, %v2446
      %v2463 = vsel %vm2459, %v2446, %v2448
      %v2464 = vsel %vm2459, %v2448, %v2450
      %v2465 = vsel %vm2459, %v2450, %v2452
      %v2466 = vsel %vm2459, %v2452, %v2454
      %v2467 = vsel %vm2459, %v2454, %v2456
      %v2468 = vsel %vm2459, %v2456, %v2458
      %v2470 = vsel %vm294, %v2438, 0
      %v2473 = vsel %vm298, %v2460, 0
      %v2476 = vsel %vm298, %v2461, 0
      %v2479 = vsel %vm298, %v2462, 0
      %v2482 = vsel %vm298, %v2463, 0
      %v2485 = vsel %vm298, %v2464, 0
      %v2488 = vsel %vm298, %v2465, 0
      %v2491 = vsel %vm298, %v2466, 0
      %v2494 = vsel %vm298, %v2467, 0
      %v2497 = vsel %vm298, %v2468, 0
      %2499 = vmatprep.subr.bf16.mxu0 0
      %2500 = vmatpush1.bf16.msra.mxu0 0
      %2501 = vmatprep.subr.bf16.mxu0 0
      %2502 = vmatpush1.bf16.msra.mxu0 0
      %2503 = vmatprep.subr.bf16.mxu0 0
      %2504 = vmatpush1.bf16.msra.mxu0 0
      %2505 = vmatprep.subr.bf16.mxu0 0
      %2506 = vmatpush1.bf16.msra.mxu0 0
      %2507 = vmatprep.subr.bf16.mxu0 0
      %2508 = vmatpush1.bf16.msra.mxu0 0
      %2509 = vmatprep.subr.bf16.mxu0 0
      %2510 = vmatpush1.bf16.msra.mxu0 0
      %2511 = vmatprep.subr.bf16.mxu0 0
      %2512 = vmatpush1.bf16.msra.mxu0 0
      %2513 = vmatprep.subr.bf16.mxu0 %v2476
      %2514 = vmatpush1.bf16.msra.mxu0 %v2473
      %2515 = vmatprep.subr.bf16.mxu0 0
      %2516 = vmatpush2.bf16.msra.mxu0 0
      %2517 = vmatprep.subr.bf16.mxu0 0
      %2518 = vmatpush2.bf16.msra.mxu0 0
      %2519 = vmatprep.subr.bf16.mxu0 0
      %2520 = vmatpush2.bf16.msra.mxu0 0
      %2521 = vmatprep.subr.bf16.mxu0 0
      %2522 = vmatpush2.bf16.msra.mxu0 0
      %2523 = vmatprep.subr.bf16.mxu0 0
      %2524 = vmatpush2.bf16.msra.mxu0 0
      %2525 = vmatprep.subr.bf16.mxu0 0
      %2526 = vmatpush2.bf16.msra.mxu0 0
      %2527 = vmatprep.subr.bf16.mxu0 0
      %2528 = vmatpush2.bf16.msra.mxu0 0
      %2529 = vmatprep.subr.bf16.mxu0 0
      %2530 = vmatpush2.bf16.msra.mxu0 0
      %2531 = vmatprep.mubr.bf16.mxu0 0
      %2532 = vmatmul.mubr.bf16.gmra.mxu0 %v2470
      %v2533 = vpop.f32.mrf.mxu0
      %v2534 = vadd.f32 0.0, %v2533
      %v2535 = vpop.f32.mrf.mxu0
      %v2536 = vadd.f32 0.0, %v2535
      %v2537 = vpop.f32.mrf.mxu0
      %v2538 = vpop.f32.mrf.mxu0
      %2539 = vdwg.mxu0
      %2540 = vmatprep.subr.bf16.mxu0 0
      %2541 = vmatpush1.bf16.msra.mxu0 0
      %2542 = vmatprep.subr.bf16.mxu0 0
      %2543 = vmatpush1.bf16.msra.mxu0 0
      %2544 = vmatprep.subr.bf16.mxu0 0
      %2545 = vmatpush1.bf16.msra.mxu0 0
      %2546 = vmatprep.subr.bf16.mxu0 0
      %2547 = vmatpush1.bf16.msra.mxu0 0
      %2548 = vmatprep.subr.bf16.mxu0 0
      %2549 = vmatpush1.bf16.msra.mxu0 0
      %2550 = vmatprep.subr.bf16.mxu0 0
      %2551 = vmatpush1.bf16.msra.mxu0 0
      %2552 = vmatprep.subr.bf16.mxu0 0
      %2553 = vmatpush1.bf16.msra.mxu0 0
      %2554 = vmatprep.subr.bf16.mxu0 %v2482
      %2555 = vmatpush1.bf16.msra.mxu0 %v2479
      %2556 = vmatprep.subr.bf16.mxu0 0
      %2557 = vmatpush2.bf16.msra.mxu0 0
      %2558 = vmatprep.subr.bf16.mxu0 0
      %2559 = vmatpush2.bf16.msra.mxu0 0
      %2560 = vmatprep.subr.bf16.mxu0 0
      %2561 = vmatpush2.bf16.msra.mxu0 0
      %2562 = vmatprep.subr.bf16.mxu0 0
      %2563 = vmatpush2.bf16.msra.mxu0 0
      %2564 = vmatprep.subr.bf16.mxu0 0
      %2565 = vmatpush2.bf16.msra.mxu0 0
      %2566 = vmatprep.subr.bf16.mxu0 0
      %2567 = vmatpush2.bf16.msra.mxu0 0
      %2568 = vmatprep.subr.bf16.mxu0 0
      %2569 = vmatpush2.bf16.msra.mxu0 0
      %2570 = vmatprep.subr.bf16.mxu0 0
      %2571 = vmatpush2.bf16.msra.mxu0 0
      %2572 = vmatprep.mubr.bf16.mxu0 0
      %2573 = vmatmul.mubr.bf16.gmra.mxu0 %v2470
      %v2574 = vpop.f32.mrf.mxu0
      %v2575 = vadd.f32 0.0, %v2574
      %v2576 = vpop.f32.mrf.mxu0
      %v2577 = vadd.f32 0.0, %v2576
      %v2578 = vpop.f32.mrf.mxu0
      %v2579 = vpop.f32.mrf.mxu0
      %2580 = vdwg.mxu0
      %2581 = vmatprep.subr.bf16.mxu0 0
      %2582 = vmatpush1.bf16.msra.mxu0 0
      %2583 = vmatprep.subr.bf16.mxu0 0
      %2584 = vmatpush1.bf16.msra.mxu0 0
      %2585 = vmatprep.subr.bf16.mxu0 0
      %2586 = vmatpush1.bf16.msra.mxu0 0
      %2587 = vmatprep.subr.bf16.mxu0 0
      %2588 = vmatpush1.bf16.msra.mxu0 0
      %2589 = vmatprep.subr.bf16.mxu0 0
      %2590 = vmatpush1.bf16.msra.mxu0 0
      %2591 = vmatprep.subr.bf16.mxu0 0
      %2592 = vmatpush1.bf16.msra.mxu0 0
      %2593 = vmatprep.subr.bf16.mxu0 0
      %2594 = vmatpush1.bf16.msra.mxu0 0
      %2595 = vmatprep.subr.bf16.mxu0 %v2488
      %2596 = vmatpush1.bf16.msra.mxu0 %v2485
      %2597 = vmatprep.subr.bf16.mxu0 0
      %2598 = vmatpush2.bf16.msra.mxu0 0
      %2599 = vmatprep.subr.bf16.mxu0 0
      %2600 = vmatpush2.bf16.msra.mxu0 0
      %2601 = vmatprep.subr.bf16.mxu0 0
      %2602 = vmatpush2.bf16.msra.mxu0 0
      %2603 = vmatprep.subr.bf16.mxu0 0
      %2604 = vmatpush2.bf16.msra.mxu0 0
      %2605 = vmatprep.subr.bf16.mxu0 0
      %2606 = vmatpush2.bf16.msra.mxu0 0
      %2607 = vmatprep.subr.bf16.mxu0 0
      %2608 = vmatpush2.bf16.msra.mxu0 0
      %2609 = vmatprep.subr.bf16.mxu0 0
      %2610 = vmatpush2.bf16.msra.mxu0 0
      %2611 = vmatprep.subr.bf16.mxu0 0
      %2612 = vmatpush2.bf16.msra.mxu0 0
      %2613 = vmatprep.mubr.bf16.mxu0 0
      %2614 = vmatmul.mubr.bf16.gmra.mxu0 %v2470
      %v2615 = vpop.f32.mrf.mxu0
      %v2616 = vadd.f32 0.0, %v2615
      %v2617 = vpop.f32.mrf.mxu0
      %v2618 = vadd.f32 0.0, %v2617
      %v2619 = vpop.f32.mrf.mxu0
      %v2620 = vpop.f32.mrf.mxu0
      %2621 = vdwg.mxu0
      %2622 = vmatprep.subr.bf16.mxu0 0
      %2623 = vmatpush1.bf16.msra.mxu0 0
      %2624 = vmatprep.subr.bf16.mxu0 0
      %2625 = vmatpush1.bf16.msra.mxu0 0
      %2626 = vmatprep.subr.bf16.mxu0 0
      %2627 = vmatpush1.bf16.msra.mxu0 0
      %2628 = vmatprep.subr.bf16.mxu0 0
      %2629 = vmatpush1.bf16.msra.mxu0 0
      %2630 = vmatprep.subr.bf16.mxu0 0
      %2631 = vmatpush1.bf16.msra.mxu0 0
      %2632 = vmatprep.subr.bf16.mxu0 0
      %2633 = vmatpush1.bf16.msra.mxu0 0
      %2634 = vmatprep.subr.bf16.mxu0 0
      %2635 = vmatpush1.bf16.msra.mxu0 0
      %2636 = vmatprep.subr.bf16.mxu0 %v2494
      %2637 = vmatpush1.bf16.msra.mxu0 %v2491
      %2638 = vmatprep.subr.bf16.mxu0 0
      %2639 = vmatpush2.bf16.msra.mxu0 0
      %2640 = vmatprep.subr.bf16.mxu0 0
      %2641 = vmatpush2.bf16.msra.mxu0 0
      %2642 = vmatprep.subr.bf16.mxu0 0
      %2643 = vmatpush2.bf16.msra.mxu0 0
      %2644 = vmatprep.subr.bf16.mxu0 0
      %2645 = vmatpush2.bf16.msra.mxu0 0
      %2646 = vmatprep.subr.bf16.mxu0 0
      %2647 = vmatpush2.bf16.msra.mxu0 0
      %2648 = vmatprep.subr.bf16.mxu0 0
      %2649 = vmatpush2.bf16.msra.mxu0 0
      %2650 = vmatprep.subr.bf16.mxu0 0
      %2651 = vmatpush2.bf16.msra.mxu0 0
      %2652 = vmatprep.subr.bf16.mxu0 0
      %2653 = vmatpush2.bf16.msra.mxu0 0
      %2654 = vmatprep.mubr.bf16.mxu0 0
      %2655 = vmatmul.mubr.bf16.gmra.mxu0 %v2470
      %v2656 = vpop.f32.mrf.mxu0
      %v2657 = vadd.f32 0.0, %v2656
      %v2658 = vpop.f32.mrf.mxu0
      %v2659 = vadd.f32 0.0, %v2658
      %v2660 = vpop.f32.mrf.mxu0
      %v2661 = vpop.f32.mrf.mxu0
      %2662 = vdwg.mxu0
      %2663 = vmatprep.subr.bf16.mxu0 0
      %2664 = vmatpush1.bf16.msra.mxu0 0
      %2665 = vmatprep.subr.bf16.mxu0 0
      %2666 = vmatpush1.bf16.msra.mxu0 0
      %2667 = vmatprep.subr.bf16.mxu0 0
      %2668 = vmatpush1.bf16.msra.mxu0 0
      %2669 = vmatprep.subr.bf16.mxu0 0
      %2670 = vmatpush1.bf16.msra.mxu0 0
      %2671 = vmatprep.subr.bf16.mxu0 0
      %2672 = vmatpush1.bf16.msra.mxu0 0
      %2673 = vmatprep.subr.bf16.mxu0 0
      %2674 = vmatpush1.bf16.msra.mxu0 0
      %2675 = vmatprep.subr.bf16.mxu0 0
      %2676 = vmatpush1.bf16.msra.mxu0 0
      %2677 = vmatprep.subr.bf16.mxu0 0
      %2678 = vmatpush1.bf16.msra.mxu0 %v2497
      %2679 = vmatprep.subr.bf16.mxu0 0
      %2680 = vmatpush2.bf16.msra.mxu0 0
      %2681 = vmatprep.subr.bf16.mxu0 0
      %2682 = vmatpush2.bf16.msra.mxu0 0
      %2683 = vmatprep.subr.bf16.mxu0 0
      %2684 = vmatpush2.bf16.msra.mxu0 0
      %2685 = vmatprep.subr.bf16.mxu0 0
      %2686 = vmatpush2.bf16.msra.mxu0 0
      %2687 = vmatprep.subr.bf16.mxu0 0
      %2688 = vmatpush2.bf16.msra.mxu0 0
      %2689 = vmatprep.subr.bf16.mxu0 0
      %2690 = vmatpush2.bf16.msra.mxu0 0
      %2691 = vmatprep.subr.bf16.mxu0 0
      %2692 = vmatpush2.bf16.msra.mxu0 0
      %2693 = vmatprep.subr.bf16.mxu0 0
      %2694 = vmatpush2.bf16.msra.mxu0 0
      %2695 = vmatprep.mubr.bf16.mxu0 0
      %2696 = vmatmul.mubr.bf16.gmra.mxu0 %v2470
      %v2697 = vpop.f32.mrf.mxu0
      %v2698 = vadd.f32 0.0, %v2697
      %v2699 = vpop.f32.mrf.mxu0
      %v2700 = vpop.f32.mrf.mxu0
      %v2701 = vpop.f32.mrf.mxu0
      %2702 = vdwg.mxu0
      %v2703 = vadd.f32 %v2428, %v2534
      %v2704 = vadd.f32 %v2429, %v2536
      %v2705 = vadd.f32 %v2430, %v2575
      %v2706 = vadd.f32 %v2431, %v2577
      %v2707 = vadd.f32 %v2432, %v2616
      %v2708 = vadd.f32 %v2433, %v2618
      %v2709 = vadd.f32 %v2434, %v2657
      %v2710 = vadd.f32 %v2435, %v2659
      %v2711 = vadd.f32 %v2436, %v2698
      %s2712 = scalar_lea.vmem %s1, 18
      %v2713 = vld [vmem:[%s2712] sm:$0x3]
      %2714 = vrot.lane.b32.xlu0 %v254, 57
      %v2715 = vpop.permute.xlu0 %2714
      %2716 = vrot.lane.b32.xlu0 %v255, 57
      %v2717 = vpop.permute.xlu0 %2716
      %2718 = vrot.lane.b32.xlu0 %v256, 57
      %v2719 = vpop.permute.xlu0 %2718
      %2720 = vrot.lane.b32.xlu0 %v257, 57
      %v2721 = vpop.permute.xlu0 %2720
      %2722 = vrot.lane.b32.xlu0 %v258, 57
      %v2723 = vpop.permute.xlu0 %2722
      %2724 = vrot.lane.b32.xlu0 %v259, 57
      %v2725 = vpop.permute.xlu0 %2724
      %2726 = vrot.lane.b32.xlu0 %v260, 57
      %v2727 = vpop.permute.xlu0 %2726
      %2728 = vrot.lane.b32.xlu0 %v261, 57
      %v2729 = vpop.permute.xlu0 %2728
      %2730 = vrot.lane.b32.xlu0 %v262, 57
      %v2731 = vpop.permute.xlu0 %2730
      %2732 = vrot.lane.b32.xlu0 %v263, 57
      %v2733 = vpop.permute.xlu0 %2732
      %vm2734 = vcmask 465920
      %v2735 = vsel %vm2734, %v2715, %v2717
      %v2736 = vsel %vm2734, %v2717, %v2719
      %v2737 = vsel %vm2734, %v2719, %v2721
      %v2738 = vsel %vm2734, %v2721, %v2723
      %v2739 = vsel %vm2734, %v2723, %v2725
      %v2740 = vsel %vm2734, %v2725, %v2727
      %v2741 = vsel %vm2734, %v2727, %v2729
      %v2742 = vsel %vm2734, %v2729, %v2731
      %v2743 = vsel %vm2734, %v2731, %v2733
      %v2745 = vsel %vm294, %v2713, 0
      %v2748 = vsel %vm298, %v2735, 0
      %v2751 = vsel %vm298, %v2736, 0
      %v2754 = vsel %vm298, %v2737, 0
      %v2757 = vsel %vm298, %v2738, 0
      %v2760 = vsel %vm298, %v2739, 0
      %v2763 = vsel %vm298, %v2740, 0
      %v2766 = vsel %vm298, %v2741, 0
      %v2769 = vsel %vm298, %v2742, 0
      %v2772 = vsel %vm298, %v2743, 0
      %2774 = vmatprep.subr.bf16.mxu0 0
      %2775 = vmatpush1.bf16.msra.mxu0 0
      %2776 = vmatprep.subr.bf16.mxu0 0
      %2777 = vmatpush1.bf16.msra.mxu0 0
      %2778 = vmatprep.subr.bf16.mxu0 0
      %2779 = vmatpush1.bf16.msra.mxu0 0
      %2780 = vmatprep.subr.bf16.mxu0 0
      %2781 = vmatpush1.bf16.msra.mxu0 0
      %2782 = vmatprep.subr.bf16.mxu0 0
      %2783 = vmatpush1.bf16.msra.mxu0 0
      %2784 = vmatprep.subr.bf16.mxu0 0
      %2785 = vmatpush1.bf16.msra.mxu0 0
      %2786 = vmatprep.subr.bf16.mxu0 0
      %2787 = vmatpush1.bf16.msra.mxu0 0
      %2788 = vmatprep.subr.bf16.mxu0 %v2751
      %2789 = vmatpush1.bf16.msra.mxu0 %v2748
      %2790 = vmatprep.subr.bf16.mxu0 0
      %2791 = vmatpush2.bf16.msra.mxu0 0
      %2792 = vmatprep.subr.bf16.mxu0 0
      %2793 = vmatpush2.bf16.msra.mxu0 0
      %2794 = vmatprep.subr.bf16.mxu0 0
      %2795 = vmatpush2.bf16.msra.mxu0 0
      %2796 = vmatprep.subr.bf16.mxu0 0
      %2797 = vmatpush2.bf16.msra.mxu0 0
      %2798 = vmatprep.subr.bf16.mxu0 0
      %2799 = vmatpush2.bf16.msra.mxu0 0
      %2800 = vmatprep.subr.bf16.mxu0 0
      %2801 = vmatpush2.bf16.msra.mxu0 0
      %2802 = vmatprep.subr.bf16.mxu0 0
      %2803 = vmatpush2.bf16.msra.mxu0 0
      %2804 = vmatprep.subr.bf16.mxu0 0
      %2805 = vmatpush2.bf16.msra.mxu0 0
      %2806 = vmatprep.mubr.bf16.mxu0 0
      %2807 = vmatmul.mubr.bf16.gmra.mxu0 %v2745
      %v2808 = vpop.f32.mrf.mxu0
      %v2809 = vadd.f32 0.0, %v2808
      %v2810 = vpop.f32.mrf.mxu0
      %v2811 = vadd.f32 0.0, %v2810
      %v2812 = vpop.f32.mrf.mxu0
      %v2813 = vpop.f32.mrf.mxu0
      %2814 = vdwg.mxu0
      %2815 = vmatprep.subr.bf16.mxu0 0
      %2816 = vmatpush1.bf16.msra.mxu0 0
      %2817 = vmatprep.subr.bf16.mxu0 0
      %2818 = vmatpush1.bf16.msra.mxu0 0
      %2819 = vmatprep.subr.bf16.mxu0 0
      %2820 = vmatpush1.bf16.msra.mxu0 0
      %2821 = vmatprep.subr.bf16.mxu0 0
      %2822 = vmatpush1.bf16.msra.mxu0 0
      %2823 = vmatprep.subr.bf16.mxu0 0
      %2824 = vmatpush1.bf16.msra.mxu0 0
      %2825 = vmatprep.subr.bf16.mxu0 0
      %2826 = vmatpush1.bf16.msra.mxu0 0
      %2827 = vmatprep.subr.bf16.mxu0 0
      %2828 = vmatpush1.bf16.msra.mxu0 0
      %2829 = vmatprep.subr.bf16.mxu0 %v2757
      %2830 = vmatpush1.bf16.msra.mxu0 %v2754
      %2831 = vmatprep.subr.bf16.mxu0 0
      %2832 = vmatpush2.bf16.msra.mxu0 0
      %2833 = vmatprep.subr.bf16.mxu0 0
      %2834 = vmatpush2.bf16.msra.mxu0 0
      %2835 = vmatprep.subr.bf16.mxu0 0
      %2836 = vmatpush2.bf16.msra.mxu0 0
      %2837 = vmatprep.subr.bf16.mxu0 0
      %2838 = vmatpush2.bf16.msra.mxu0 0
      %2839 = vmatprep.subr.bf16.mxu0 0
      %2840 = vmatpush2.bf16.msra.mxu0 0
      %2841 = vmatprep.subr.bf16.mxu0 0
      %2842 = vmatpush2.bf16.msra.mxu0 0
      %2843 = vmatprep.subr.bf16.mxu0 0
      %2844 = vmatpush2.bf16.msra.mxu0 0
      %2845 = vmatprep.subr.bf16.mxu0 0
      %2846 = vmatpush2.bf16.msra.mxu0 0
      %2847 = vmatprep.mubr.bf16.mxu0 0
      %2848 = vmatmul.mubr.bf16.gmra.mxu0 %v2745
      %v2849 = vpop.f32.mrf.mxu0
      %v2850 = vadd.f32 0.0, %v2849
      %v2851 = vpop.f32.mrf.mxu0
      %v2852 = vadd.f32 0.0, %v2851
      %v2853 = vpop.f32.mrf.mxu0
      %v2854 = vpop.f32.mrf.mxu0
      %2855 = vdwg.mxu0
      %2856 = vmatprep.subr.bf16.mxu0 0
      %2857 = vmatpush1.bf16.msra.mxu0 0
      %2858 = vmatprep.subr.bf16.mxu0 0
      %2859 = vmatpush1.bf16.msra.mxu0 0
      %2860 = vmatprep.subr.bf16.mxu0 0
      %2861 = vmatpush1.bf16.msra.mxu0 0
      %2862 = vmatprep.subr.bf16.mxu0 0
      %2863 = vmatpush1.bf16.msra.mxu0 0
      %2864 = vmatprep.subr.bf16.mxu0 0
      %2865 = vmatpush1.bf16.msra.mxu0 0
      %2866 = vmatprep.subr.bf16.mxu0 0
      %2867 = vmatpush1.bf16.msra.mxu0 0
      %2868 = vmatprep.subr.bf16.mxu0 0
      %2869 = vmatpush1.bf16.msra.mxu0 0
      %2870 = vmatprep.subr.bf16.mxu0 %v2763
      %2871 = vmatpush1.bf16.msra.mxu0 %v2760
      %2872 = vmatprep.subr.bf16.mxu0 0
      %2873 = vmatpush2.bf16.msra.mxu0 0
      %2874 = vmatprep.subr.bf16.mxu0 0
      %2875 = vmatpush2.bf16.msra.mxu0 0
      %2876 = vmatprep.subr.bf16.mxu0 0
      %2877 = vmatpush2.bf16.msra.mxu0 0
      %2878 = vmatprep.subr.bf16.mxu0 0
      %2879 = vmatpush2.bf16.msra.mxu0 0
      %2880 = vmatprep.subr.bf16.mxu0 0
      %2881 = vmatpush2.bf16.msra.mxu0 0
      %2882 = vmatprep.subr.bf16.mxu0 0
      %2883 = vmatpush2.bf16.msra.mxu0 0
      %2884 = vmatprep.subr.bf16.mxu0 0
      %2885 = vmatpush2.bf16.msra.mxu0 0
      %2886 = vmatprep.subr.bf16.mxu0 0
      %2887 = vmatpush2.bf16.msra.mxu0 0
      %2888 = vmatprep.mubr.bf16.mxu0 0
      %2889 = vmatmul.mubr.bf16.gmra.mxu0 %v2745
      %v2890 = vpop.f32.mrf.mxu0
      %v2891 = vadd.f32 0.0, %v2890
      %v2892 = vpop.f32.mrf.mxu0
      %v2893 = vadd.f32 0.0, %v2892
      %v2894 = vpop.f32.mrf.mxu0
      %v2895 = vpop.f32.mrf.mxu0
      %2896 = vdwg.mxu0
      %2897 = vmatprep.subr.bf16.mxu0 0
      %2898 = vmatpush1.bf16.msra.mxu0 0
      %2899 = vmatprep.subr.bf16.mxu0 0
      %2900 = vmatpush1.bf16.msra.mxu0 0
      %2901 = vmatprep.subr.bf16.mxu0 0
      %2902 = vmatpush1.bf16.msra.mxu0 0
      %2903 = vmatprep.subr.bf16.mxu0 0
      %2904 = vmatpush1.bf16.msra.mxu0 0
      %2905 = vmatprep.subr.bf16.mxu0 0
      %2906 = vmatpush1.bf16.msra.mxu0 0
      %2907 = vmatprep.subr.bf16.mxu0 0
      %2908 = vmatpush1.bf16.msra.mxu0 0
      %2909 = vmatprep.subr.bf16.mxu0 0
      %2910 = vmatpush1.bf16.msra.mxu0 0
      %2911 = vmatprep.subr.bf16.mxu0 %v2769
      %2912 = vmatpush1.bf16.msra.mxu0 %v2766
      %2913 = vmatprep.subr.bf16.mxu0 0
      %2914 = vmatpush2.bf16.msra.mxu0 0
      %2915 = vmatprep.subr.bf16.mxu0 0
      %2916 = vmatpush2.bf16.msra.mxu0 0
      %2917 = vmatprep.subr.bf16.mxu0 0
      %2918 = vmatpush2.bf16.msra.mxu0 0
      %2919 = vmatprep.subr.bf16.mxu0 0
      %2920 = vmatpush2.bf16.msra.mxu0 0
      %2921 = vmatprep.subr.bf16.mxu0 0
      %2922 = vmatpush2.bf16.msra.mxu0 0
      %2923 = vmatprep.subr.bf16.mxu0 0
      %2924 = vmatpush2.bf16.msra.mxu0 0
      %2925 = vmatprep.subr.bf16.mxu0 0
      %2926 = vmatpush2.bf16.msra.mxu0 0
      %2927 = vmatprep.subr.bf16.mxu0 0
      %2928 = vmatpush2.bf16.msra.mxu0 0
      %2929 = vmatprep.mubr.bf16.mxu0 0
      %2930 = vmatmul.mubr.bf16.gmra.mxu0 %v2745
      %v2931 = vpop.f32.mrf.mxu0
      %v2932 = vadd.f32 0.0, %v2931
      %v2933 = vpop.f32.mrf.mxu0
      %v2934 = vadd.f32 0.0, %v2933
      %v2935 = vpop.f32.mrf.mxu0
      %v2936 = vpop.f32.mrf.mxu0
      %2937 = vdwg.mxu0
      %2938 = vmatprep.subr.bf16.mxu0 0
      %2939 = vmatpush1.bf16.msra.mxu0 0
      %2940 = vmatprep.subr.bf16.mxu0 0
      %2941 = vmatpush1.bf16.msra.mxu0 0
      %2942 = vmatprep.subr.bf16.mxu0 0
      %2943 = vmatpush1.bf16.msra.mxu0 0
      %2944 = vmatprep.subr.bf16.mxu0 0
      %2945 = vmatpush1.bf16.msra.mxu0 0
      %2946 = vmatprep.subr.bf16.mxu0 0
      %2947 = vmatpush1.bf16.msra.mxu0 0
      %2948 = vmatprep.subr.bf16.mxu0 0
      %2949 = vmatpush1.bf16.msra.mxu0 0
      %2950 = vmatprep.subr.bf16.mxu0 0
      %2951 = vmatpush1.bf16.msra.mxu0 0
      %2952 = vmatprep.subr.bf16.mxu0 0
      %2953 = vmatpush1.bf16.msra.mxu0 %v2772
      %2954 = vmatprep.subr.bf16.mxu0 0
      %2955 = vmatpush2.bf16.msra.mxu0 0
      %2956 = vmatprep.subr.bf16.mxu0 0
      %2957 = vmatpush2.bf16.msra.mxu0 0
      %2958 = vmatprep.subr.bf16.mxu0 0
      %2959 = vmatpush2.bf16.msra.mxu0 0
      %2960 = vmatprep.subr.bf16.mxu0 0
      %2961 = vmatpush2.bf16.msra.mxu0 0
      %2962 = vmatprep.subr.bf16.mxu0 0
      %2963 = vmatpush2.bf16.msra.mxu0 0
      %2964 = vmatprep.subr.bf16.mxu0 0
      %2965 = vmatpush2.bf16.msra.mxu0 0
      %2966 = vmatprep.subr.bf16.mxu0 0
      %2967 = vmatpush2.bf16.msra.mxu0 0
      %2968 = vmatprep.subr.bf16.mxu0 0
      %2969 = vmatpush2.bf16.msra.mxu0 0
      %2970 = vmatprep.mubr.bf16.mxu0 0
      %2971 = vmatmul.mubr.bf16.gmra.mxu0 %v2745
      %v2972 = vpop.f32.mrf.mxu0
      %v2973 = vadd.f32 0.0, %v2972
      %v2974 = vpop.f32.mrf.mxu0
      %v2975 = vpop.f32.mrf.mxu0
      %v2976 = vpop.f32.mrf.mxu0
      %2977 = vdwg.mxu0
      %v2978 = vadd.f32 %v2703, %v2809
      %v2979 = vadd.f32 %v2704, %v2811
      %v2980 = vadd.f32 %v2705, %v2850
      %v2981 = vadd.f32 %v2706, %v2852
      %v2982 = vadd.f32 %v2707, %v2891
      %v2983 = vadd.f32 %v2708, %v2893
      %v2984 = vadd.f32 %v2709, %v2932
      %v2985 = vadd.f32 %v2710, %v2934
      %v2986 = vadd.f32 %v2711, %v2973
      %s2987 = scalar_lea.vmem %s1, 20
      %v2988 = vld [vmem:[%s2987] sm:$0x3]
      %2989 = vrot.lane.b32.xlu0 %v254, 56
      %v2990 = vpop.permute.xlu0 %2989
      %2991 = vrot.lane.b32.xlu0 %v255, 56
      %v2992 = vpop.permute.xlu0 %2991
      %2993 = vrot.lane.b32.xlu0 %v256, 56
      %v2994 = vpop.permute.xlu0 %2993
      %2995 = vrot.lane.b32.xlu0 %v257, 56
      %v2996 = vpop.permute.xlu0 %2995
      %2997 = vrot.lane.b32.xlu0 %v258, 56
      %v2998 = vpop.permute.xlu0 %2997
      %2999 = vrot.lane.b32.xlu0 %v259, 56
      %v3000 = vpop.permute.xlu0 %2999
      %3001 = vrot.lane.b32.xlu0 %v260, 56
      %v3002 = vpop.permute.xlu0 %3001
      %3003 = vrot.lane.b32.xlu0 %v261, 56
      %v3004 = vpop.permute.xlu0 %3003
      %3005 = vrot.lane.b32.xlu0 %v262, 56
      %v3006 = vpop.permute.xlu0 %3005
      %3007 = vrot.lane.b32.xlu0 %v263, 56
      %v3008 = vpop.permute.xlu0 %3007
      %vm3009 = vcmask 457728
      %v3010 = vsel %vm3009, %v2990, %v2992
      %v3011 = vsel %vm3009, %v2992, %v2994
      %v3012 = vsel %vm3009, %v2994, %v2996
      %v3013 = vsel %vm3009, %v2996, %v2998
      %v3014 = vsel %vm3009, %v2998, %v3000
      %v3015 = vsel %vm3009, %v3000, %v3002
      %v3016 = vsel %vm3009, %v3002, %v3004
      %v3017 = vsel %vm3009, %v3004, %v3006
      %v3018 = vsel %vm3009, %v3006, %v3008
      %v3020 = vsel %vm294, %v2988, 0
      %v3023 = vsel %vm298, %v3010, 0
      %v3026 = vsel %vm298, %v3011, 0
      %v3029 = vsel %vm298, %v3012, 0
      %v3032 = vsel %vm298, %v3013, 0
      %v3035 = vsel %vm298, %v3014, 0
      %v3038 = vsel %vm298, %v3015, 0
      %v3041 = vsel %vm298, %v3016, 0
      %v3044 = vsel %vm298, %v3017, 0
      %v3047 = vsel %vm298, %v3018, 0
      %3049 = vmatprep.subr.bf16.mxu0 0
      %3050 = vmatpush1.bf16.msra.mxu0 0
      %3051 = vmatprep.subr.bf16.mxu0 0
      %3052 = vmatpush1.bf16.msra.mxu0 0
      %3053 = vmatprep.subr.bf16.mxu0 0
      %3054 = vmatpush1.bf16.msra.mxu0 0
      %3055 = vmatprep.subr.bf16.mxu0 0
      %3056 = vmatpush1.bf16.msra.mxu0 0
      %3057 = vmatprep.subr.bf16.mxu0 0
      %3058 = vmatpush1.bf16.msra.mxu0 0
      %3059 = vmatprep.subr.bf16.mxu0 0
      %3060 = vmatpush1.bf16.msra.mxu0 0
      %3061 = vmatprep.subr.bf16.mxu0 0
      %3062 = vmatpush1.bf16.msra.mxu0 0
      %3063 = vmatprep.subr.bf16.mxu0 %v3026
      %3064 = vmatpush1.bf16.msra.mxu0 %v3023
      %3065 = vmatprep.subr.bf16.mxu0 0
      %3066 = vmatpush2.bf16.msra.mxu0 0
      %3067 = vmatprep.subr.bf16.mxu0 0
      %3068 = vmatpush2.bf16.msra.mxu0 0
      %3069 = vmatprep.subr.bf16.mxu0 0
      %3070 = vmatpush2.bf16.msra.mxu0 0
      %3071 = vmatprep.subr.bf16.mxu0 0
      %3072 = vmatpush2.bf16.msra.mxu0 0
      %3073 = vmatprep.subr.bf16.mxu0 0
      %3074 = vmatpush2.bf16.msra.mxu0 0
      %3075 = vmatprep.subr.bf16.mxu0 0
      %3076 = vmatpush2.bf16.msra.mxu0 0
      %3077 = vmatprep.subr.bf16.mxu0 0
      %3078 = vmatpush2.bf16.msra.mxu0 0
      %3079 = vmatprep.subr.bf16.mxu0 0
      %3080 = vmatpush2.bf16.msra.mxu0 0
      %3081 = vmatprep.mubr.bf16.mxu0 0
      %3082 = vmatmul.mubr.bf16.gmra.mxu0 %v3020
      %v3083 = vpop.f32.mrf.mxu0
      %v3084 = vadd.f32 0.0, %v3083
      %v3085 = vpop.f32.mrf.mxu0
      %v3086 = vadd.f32 0.0, %v3085
      %v3087 = vpop.f32.mrf.mxu0
      %v3088 = vpop.f32.mrf.mxu0
      %3089 = vdwg.mxu0
      %3090 = vmatprep.subr.bf16.mxu0 0
      %3091 = vmatpush1.bf16.msra.mxu0 0
      %3092 = vmatprep.subr.bf16.mxu0 0
      %3093 = vmatpush1.bf16.msra.mxu0 0
      %3094 = vmatprep.subr.bf16.mxu0 0
      %3095 = vmatpush1.bf16.msra.mxu0 0
      %3096 = vmatprep.subr.bf16.mxu0 0
      %3097 = vmatpush1.bf16.msra.mxu0 0
      %3098 = vmatprep.subr.bf16.mxu0 0
      %3099 = vmatpush1.bf16.msra.mxu0 0
      %3100 = vmatprep.subr.bf16.mxu0 0
      %3101 = vmatpush1.bf16.msra.mxu0 0
      %3102 = vmatprep.subr.bf16.mxu0 0
      %3103 = vmatpush1.bf16.msra.mxu0 0
      %3104 = vmatprep.subr.bf16.mxu0 %v3032
      %3105 = vmatpush1.bf16.msra.mxu0 %v3029
      %3106 = vmatprep.subr.bf16.mxu0 0
      %3107 = vmatpush2.bf16.msra.mxu0 0
      %3108 = vmatprep.subr.bf16.mxu0 0
      %3109 = vmatpush2.bf16.msra.mxu0 0
      %3110 = vmatprep.subr.bf16.mxu0 0
      %3111 = vmatpush2.bf16.msra.mxu0 0
      %3112 = vmatprep.subr.bf16.mxu0 0
      %3113 = vmatpush2.bf16.msra.mxu0 0
      %3114 = vmatprep.subr.bf16.mxu0 0
      %3115 = vmatpush2.bf16.msra.mxu0 0
      %3116 = vmatprep.subr.bf16.mxu0 0
      %3117 = vmatpush2.bf16.msra.mxu0 0
      %3118 = vmatprep.subr.bf16.mxu0 0
      %3119 = vmatpush2.bf16.msra.mxu0 0
      %3120 = vmatprep.subr.bf16.mxu0 0
      %3121 = vmatpush2.bf16.msra.mxu0 0
      %3122 = vmatprep.mubr.bf16.mxu0 0
      %3123 = vmatmul.mubr.bf16.gmra.mxu0 %v3020
      %v3124 = vpop.f32.mrf.mxu0
      %v3125 = vadd.f32 0.0, %v3124
      %v3126 = vpop.f32.mrf.mxu0
      %v3127 = vadd.f32 0.0, %v3126
      %v3128 = vpop.f32.mrf.mxu0
      %v3129 = vpop.f32.mrf.mxu0
      %3130 = vdwg.mxu0
      %3131 = vmatprep.subr.bf16.mxu0 0
      %3132 = vmatpush1.bf16.msra.mxu0 0
      %3133 = vmatprep.subr.bf16.mxu0 0
      %3134 = vmatpush1.bf16.msra.mxu0 0
      %3135 = vmatprep.subr.bf16.mxu0 0
      %3136 = vmatpush1.bf16.msra.mxu0 0
      %3137 = vmatprep.subr.bf16.mxu0 0
      %3138 = vmatpush1.bf16.msra.mxu0 0
      %3139 = vmatprep.subr.bf16.mxu0 0
      %3140 = vmatpush1.bf16.msra.mxu0 0
      %3141 = vmatprep.subr.bf16.mxu0 0
      %3142 = vmatpush1.bf16.msra.mxu0 0
      %3143 = vmatprep.subr.bf16.mxu0 0
      %3144 = vmatpush1.bf16.msra.mxu0 0
      %3145 = vmatprep.subr.bf16.mxu0 %v3038
      %3146 = vmatpush1.bf16.msra.mxu0 %v3035
      %3147 = vmatprep.subr.bf16.mxu0 0
      %3148 = vmatpush2.bf16.msra.mxu0 0
      %3149 = vmatprep.subr.bf16.mxu0 0
      %3150 = vmatpush2.bf16.msra.mxu0 0
      %3151 = vmatprep.subr.bf16.mxu0 0
      %3152 = vmatpush2.bf16.msra.mxu0 0
      %3153 = vmatprep.subr.bf16.mxu0 0
      %3154 = vmatpush2.bf16.msra.mxu0 0
      %3155 = vmatprep.subr.bf16.mxu0 0
      %3156 = vmatpush2.bf16.msra.mxu0 0
      %3157 = vmatprep.subr.bf16.mxu0 0
      %3158 = vmatpush2.bf16.msra.mxu0 0
      %3159 = vmatprep.subr.bf16.mxu0 0
      %3160 = vmatpush2.bf16.msra.mxu0 0
      %3161 = vmatprep.subr.bf16.mxu0 0
      %3162 = vmatpush2.bf16.msra.mxu0 0
      %3163 = vmatprep.mubr.bf16.mxu0 0
      %3164 = vmatmul.mubr.bf16.gmra.mxu0 %v3020
      %v3165 = vpop.f32.mrf.mxu0
      %v3166 = vadd.f32 0.0, %v3165
      %v3167 = vpop.f32.mrf.mxu0
      %v3168 = vadd.f32 0.0, %v3167
      %v3169 = vpop.f32.mrf.mxu0
      %v3170 = vpop.f32.mrf.mxu0
      %3171 = vdwg.mxu0
      %3172 = vmatprep.subr.bf16.mxu0 0
      %3173 = vmatpush1.bf16.msra.mxu0 0
      %3174 = vmatprep.subr.bf16.mxu0 0
      %3175 = vmatpush1.bf16.msra.mxu0 0
      %3176 = vmatprep.subr.bf16.mxu0 0
      %3177 = vmatpush1.bf16.msra.mxu0 0
      %3178 = vmatprep.subr.bf16.mxu0 0
      %3179 = vmatpush1.bf16.msra.mxu0 0
      %3180 = vmatprep.subr.bf16.mxu0 0
      %3181 = vmatpush1.bf16.msra.mxu0 0
      %3182 = vmatprep.subr.bf16.mxu0 0
      %3183 = vmatpush1.bf16.msra.mxu0 0
      %3184 = vmatprep.subr.bf16.mxu0 0
      %3185 = vmatpush1.bf16.msra.mxu0 0
      %3186 = vmatprep.subr.bf16.mxu0 %v3044
      %3187 = vmatpush1.bf16.msra.mxu0 %v3041
      %3188 = vmatprep.subr.bf16.mxu0 0
      %3189 = vmatpush2.bf16.msra.mxu0 0
      %3190 = vmatprep.subr.bf16.mxu0 0
      %3191 = vmatpush2.bf16.msra.mxu0 0
      %3192 = vmatprep.subr.bf16.mxu0 0
      %3193 = vmatpush2.bf16.msra.mxu0 0
      %3194 = vmatprep.subr.bf16.mxu0 0
      %3195 = vmatpush2.bf16.msra.mxu0 0
      %3196 = vmatprep.subr.bf16.mxu0 0
      %3197 = vmatpush2.bf16.msra.mxu0 0
      %3198 = vmatprep.subr.bf16.mxu0 0
      %3199 = vmatpush2.bf16.msra.mxu0 0
      %3200 = vmatprep.subr.bf16.mxu0 0
      %3201 = vmatpush2.bf16.msra.mxu0 0
      %3202 = vmatprep.subr.bf16.mxu0 0
      %3203 = vmatpush2.bf16.msra.mxu0 0
      %3204 = vmatprep.mubr.bf16.mxu0 0
      %3205 = vmatmul.mubr.bf16.gmra.mxu0 %v3020
      %v3206 = vpop.f32.mrf.mxu0
      %v3207 = vadd.f32 0.0, %v3206
      %v3208 = vpop.f32.mrf.mxu0
      %v3209 = vadd.f32 0.0, %v3208
      %v3210 = vpop.f32.mrf.mxu0
      %v3211 = vpop.f32.mrf.mxu0
      %3212 = vdwg.mxu0
      %3213 = vmatprep.subr.bf16.mxu0 0
      %3214 = vmatpush1.bf16.msra.mxu0 0
      %3215 = vmatprep.subr.bf16.mxu0 0
      %3216 = vmatpush1.bf16.msra.mxu0 0
      %3217 = vmatprep.subr.bf16.mxu0 0
      %3218 = vmatpush1.bf16.msra.mxu0 0
      %3219 = vmatprep.subr.bf16.mxu0 0
      %3220 = vmatpush1.bf16.msra.mxu0 0
      %3221 = vmatprep.subr.bf16.mxu0 0
      %3222 = vmatpush1.bf16.msra.mxu0 0
      %3223 = vmatprep.subr.bf16.mxu0 0
      %3224 = vmatpush1.bf16.msra.mxu0 0
      %3225 = vmatprep.subr.bf16.mxu0 0
      %3226 = vmatpush1.bf16.msra.mxu0 0
      %3227 = vmatprep.subr.bf16.mxu0 0
      %3228 = vmatpush1.bf16.msra.mxu0 %v3047
      %3229 = vmatprep.subr.bf16.mxu0 0
      %3230 = vmatpush2.bf16.msra.mxu0 0
      %3231 = vmatprep.subr.bf16.mxu0 0
      %3232 = vmatpush2.bf16.msra.mxu0 0
      %3233 = vmatprep.subr.bf16.mxu0 0
      %3234 = vmatpush2.bf16.msra.mxu0 0
      %3235 = vmatprep.subr.bf16.mxu0 0
      %3236 = vmatpush2.bf16.msra.mxu0 0
      %3237 = vmatprep.subr.bf16.mxu0 0
      %3238 = vmatpush2.bf16.msra.mxu0 0
      %3239 = vmatprep.subr.bf16.mxu0 0
      %3240 = vmatpush2.bf16.msra.mxu0 0
      %3241 = vmatprep.subr.bf16.mxu0 0
      %3242 = vmatpush2.bf16.msra.mxu0 0
      %3243 = vmatprep.subr.bf16.mxu0 0
      %3244 = vmatpush2.bf16.msra.mxu0 0
      %3245 = vmatprep.mubr.bf16.mxu0 0
      %3246 = vmatmul.mubr.bf16.gmra.mxu0 %v3020
      %v3247 = vpop.f32.mrf.mxu0
      %v3248 = vadd.f32 0.0, %v3247
      %v3249 = vpop.f32.mrf.mxu0
      %v3250 = vpop.f32.mrf.mxu0
      %v3251 = vpop.f32.mrf.mxu0
      %3252 = vdwg.mxu0
      %v3253 = vadd.f32 %v2978, %v3084
      %v3254 = vadd.f32 %v2979, %v3086
      %v3255 = vadd.f32 %v2980, %v3125
      %v3256 = vadd.f32 %v2981, %v3127
      %v3257 = vadd.f32 %v2982, %v3166
      %v3258 = vadd.f32 %v2983, %v3168
      %v3259 = vadd.f32 %v2984, %v3207
      %v3260 = vadd.f32 %v2985, %v3209
      %v3261 = vadd.f32 %v2986, %v3248
      %s3262 = scalar_lea.vmem %s1, 22
      %v3263 = vld [vmem:[%s3262] sm:$0x3]
      %3264 = vrot.lane.b32.xlu0 %v254, 55
      %v3265 = vpop.permute.xlu0 %3264
      %3266 = vrot.lane.b32.xlu0 %v255, 55
      %v3267 = vpop.permute.xlu0 %3266
      %3268 = vrot.lane.b32.xlu0 %v256, 55
      %v3269 = vpop.permute.xlu0 %3268
      %3270 = vrot.lane.b32.xlu0 %v257, 55
      %v3271 = vpop.permute.xlu0 %3270
      %3272 = vrot.lane.b32.xlu0 %v258, 55
      %v3273 = vpop.permute.xlu0 %3272
      %3274 = vrot.lane.b32.xlu0 %v259, 55
      %v3275 = vpop.permute.xlu0 %3274
      %3276 = vrot.lane.b32.xlu0 %v260, 55
      %v3277 = vpop.permute.xlu0 %3276
      %3278 = vrot.lane.b32.xlu0 %v261, 55
      %v3279 = vpop.permute.xlu0 %3278
      %3280 = vrot.lane.b32.xlu0 %v262, 55
      %v3281 = vpop.permute.xlu0 %3280
      %3282 = vrot.lane.b32.xlu0 %v263, 55
      %v3283 = vpop.permute.xlu0 %3282
      %vm3284 = vcmask 449536
      %v3285 = vsel %vm3284, %v3265, %v3267
      %v3286 = vsel %vm3284, %v3267, %v3269
      %v3287 = vsel %vm3284, %v3269, %v3271
      %v3288 = vsel %vm3284, %v3271, %v3273
      %v3289 = vsel %vm3284, %v3273, %v3275
      %v3290 = vsel %vm3284, %v3275, %v3277
      %v3291 = vsel %vm3284, %v3277, %v3279
      %v3292 = vsel %vm3284, %v3279, %v3281
      %v3293 = vsel %vm3284, %v3281, %v3283
      %v3295 = vsel %vm294, %v3263, 0
      %v3298 = vsel %vm298, %v3285, 0
      %v3301 = vsel %vm298, %v3286, 0
      %v3304 = vsel %vm298, %v3287, 0
      %v3307 = vsel %vm298, %v3288, 0
      %v3310 = vsel %vm298, %v3289, 0
      %v3313 = vsel %vm298, %v3290, 0
      %v3316 = vsel %vm298, %v3291, 0
      %v3319 = vsel %vm298, %v3292, 0
      %v3322 = vsel %vm298, %v3293, 0
      %3324 = vmatprep.subr.bf16.mxu0 0
      %3325 = vmatpush1.bf16.msra.mxu0 0
      %3326 = vmatprep.subr.bf16.mxu0 0
      %3327 = vmatpush1.bf16.msra.mxu0 0
      %3328 = vmatprep.subr.bf16.mxu0 0
      %3329 = vmatpush1.bf16.msra.mxu0 0
      %3330 = vmatprep.subr.bf16.mxu0 0
      %3331 = vmatpush1.bf16.msra.mxu0 0
      %3332 = vmatprep.subr.bf16.mxu0 0
      %3333 = vmatpush1.bf16.msra.mxu0 0
      %3334 = vmatprep.subr.bf16.mxu0 0
      %3335 = vmatpush1.bf16.msra.mxu0 0
      %3336 = vmatprep.subr.bf16.mxu0 0
      %3337 = vmatpush1.bf16.msra.mxu0 0
      %3338 = vmatprep.subr.bf16.mxu0 %v3301
      %3339 = vmatpush1.bf16.msra.mxu0 %v3298
      %3340 = vmatprep.subr.bf16.mxu0 0
      %3341 = vmatpush2.bf16.msra.mxu0 0
      %3342 = vmatprep.subr.bf16.mxu0 0
      %3343 = vmatpush2.bf16.msra.mxu0 0
      %3344 = vmatprep.subr.bf16.mxu0 0
      %3345 = vmatpush2.bf16.msra.mxu0 0
      %3346 = vmatprep.subr.bf16.mxu0 0
      %3347 = vmatpush2.bf16.msra.mxu0 0
      %3348 = vmatprep.subr.bf16.mxu0 0
      %3349 = vmatpush2.bf16.msra.mxu0 0
      %3350 = vmatprep.subr.bf16.mxu0 0
      %3351 = vmatpush2.bf16.msra.mxu0 0
      %3352 = vmatprep.subr.bf16.mxu0 0
      %3353 = vmatpush2.bf16.msra.mxu0 0
      %3354 = vmatprep.subr.bf16.mxu0 0
      %3355 = vmatpush2.bf16.msra.mxu0 0
      %3356 = vmatprep.mubr.bf16.mxu0 0
      %3357 = vmatmul.mubr.bf16.gmra.mxu0 %v3295
      %v3358 = vpop.f32.mrf.mxu0
      %v3359 = vadd.f32 0.0, %v3358
      %v3360 = vpop.f32.mrf.mxu0
      %v3361 = vadd.f32 0.0, %v3360
      %v3362 = vpop.f32.mrf.mxu0
      %v3363 = vpop.f32.mrf.mxu0
      %3364 = vdwg.mxu0
      %3365 = vmatprep.subr.bf16.mxu0 0
      %3366 = vmatpush1.bf16.msra.mxu0 0
      %3367 = vmatprep.subr.bf16.mxu0 0
      %3368 = vmatpush1.bf16.msra.mxu0 0
      %3369 = vmatprep.subr.bf16.mxu0 0
      %3370 = vmatpush1.bf16.msra.mxu0 0
      %3371 = vmatprep.subr.bf16.mxu0 0
      %3372 = vmatpush1.bf16.msra.mxu0 0
      %3373 = vmatprep.subr.bf16.mxu0 0
      %3374 = vmatpush1.bf16.msra.mxu0 0
      %3375 = vmatprep.subr.bf16.mxu0 0
      %3376 = vmatpush1.bf16.msra.mxu0 0
      %3377 = vmatprep.subr.bf16.mxu0 0
      %3378 = vmatpush1.bf16.msra.mxu0 0
      %3379 = vmatprep.subr.bf16.mxu0 %v3307
      %3380 = vmatpush1.bf16.msra.mxu0 %v3304
      %3381 = vmatprep.subr.bf16.mxu0 0
      %3382 = vmatpush2.bf16.msra.mxu0 0
      %3383 = vmatprep.subr.bf16.mxu0 0
      %3384 = vmatpush2.bf16.msra.mxu0 0
      %3385 = vmatprep.subr.bf16.mxu0 0
      %3386 = vmatpush2.bf16.msra.mxu0 0
      %3387 = vmatprep.subr.bf16.mxu0 0
      %3388 = vmatpush2.bf16.msra.mxu0 0
      %3389 = vmatprep.subr.bf16.mxu0 0
      %3390 = vmatpush2.bf16.msra.mxu0 0
      %3391 = vmatprep.subr.bf16.mxu0 0
      %3392 = vmatpush2.bf16.msra.mxu0 0
      %3393 = vmatprep.subr.bf16.mxu0 0
      %3394 = vmatpush2.bf16.msra.mxu0 0
      %3395 = vmatprep.subr.bf16.mxu0 0
      %3396 = vmatpush2.bf16.msra.mxu0 0
      %3397 = vmatprep.mubr.bf16.mxu0 0
      %3398 = vmatmul.mubr.bf16.gmra.mxu0 %v3295
      %v3399 = vpop.f32.mrf.mxu0
      %v3400 = vadd.f32 0.0, %v3399
      %v3401 = vpop.f32.mrf.mxu0
      %v3402 = vadd.f32 0.0, %v3401
      %v3403 = vpop.f32.mrf.mxu0
      %v3404 = vpop.f32.mrf.mxu0
      %3405 = vdwg.mxu0
      %3406 = vmatprep.subr.bf16.mxu0 0
      %3407 = vmatpush1.bf16.msra.mxu0 0
      %3408 = vmatprep.subr.bf16.mxu0 0
      %3409 = vmatpush1.bf16.msra.mxu0 0
      %3410 = vmatprep.subr.bf16.mxu0 0
      %3411 = vmatpush1.bf16.msra.mxu0 0
      %3412 = vmatprep.subr.bf16.mxu0 0
      %3413 = vmatpush1.bf16.msra.mxu0 0
      %3414 = vmatprep.subr.bf16.mxu0 0
      %3415 = vmatpush1.bf16.msra.mxu0 0
      %3416 = vmatprep.subr.bf16.mxu0 0
      %3417 = vmatpush1.bf16.msra.mxu0 0
      %3418 = vmatprep.subr.bf16.mxu0 0
      %3419 = vmatpush1.bf16.msra.mxu0 0
      %3420 = vmatprep.subr.bf16.mxu0 %v3313
      %3421 = vmatpush1.bf16.msra.mxu0 %v3310
      %3422 = vmatprep.subr.bf16.mxu0 0
      %3423 = vmatpush2.bf16.msra.mxu0 0
      %3424 = vmatprep.subr.bf16.mxu0 0
      %3425 = vmatpush2.bf16.msra.mxu0 0
      %3426 = vmatprep.subr.bf16.mxu0 0
      %3427 = vmatpush2.bf16.msra.mxu0 0
      %3428 = vmatprep.subr.bf16.mxu0 0
      %3429 = vmatpush2.bf16.msra.mxu0 0
      %3430 = vmatprep.subr.bf16.mxu0 0
      %3431 = vmatpush2.bf16.msra.mxu0 0
      %3432 = vmatprep.subr.bf16.mxu0 0
      %3433 = vmatpush2.bf16.msra.mxu0 0
      %3434 = vmatprep.subr.bf16.mxu0 0
      %3435 = vmatpush2.bf16.msra.mxu0 0
      %3436 = vmatprep.subr.bf16.mxu0 0
      %3437 = vmatpush2.bf16.msra.mxu0 0
      %3438 = vmatprep.mubr.bf16.mxu0 0
      %3439 = vmatmul.mubr.bf16.gmra.mxu0 %v3295
      %v3440 = vpop.f32.mrf.mxu0
      %v3441 = vadd.f32 0.0, %v3440
      %v3442 = vpop.f32.mrf.mxu0
      %v3443 = vadd.f32 0.0, %v3442
      %v3444 = vpop.f32.mrf.mxu0
      %v3445 = vpop.f32.mrf.mxu0
      %3446 = vdwg.mxu0
      %3447 = vmatprep.subr.bf16.mxu0 0
      %3448 = vmatpush1.bf16.msra.mxu0 0
      %3449 = vmatprep.subr.bf16.mxu0 0
      %3450 = vmatpush1.bf16.msra.mxu0 0
      %3451 = vmatprep.subr.bf16.mxu0 0
      %3452 = vmatpush1.bf16.msra.mxu0 0
      %3453 = vmatprep.subr.bf16.mxu0 0
      %3454 = vmatpush1.bf16.msra.mxu0 0
      %3455 = vmatprep.subr.bf16.mxu0 0
      %3456 = vmatpush1.bf16.msra.mxu0 0
      %3457 = vmatprep.subr.bf16.mxu0 0
      %3458 = vmatpush1.bf16.msra.mxu0 0
      %3459 = vmatprep.subr.bf16.mxu0 0
      %3460 = vmatpush1.bf16.msra.mxu0 0
      %3461 = vmatprep.subr.bf16.mxu0 %v3319
      %3462 = vmatpush1.bf16.msra.mxu0 %v3316
      %3463 = vmatprep.subr.bf16.mxu0 0
      %3464 = vmatpush2.bf16.msra.mxu0 0
      %3465 = vmatprep.subr.bf16.mxu0 0
      %3466 = vmatpush2.bf16.msra.mxu0 0
      %3467 = vmatprep.subr.bf16.mxu0 0
      %3468 = vmatpush2.bf16.msra.mxu0 0
      %3469 = vmatprep.subr.bf16.mxu0 0
      %3470 = vmatpush2.bf16.msra.mxu0 0
      %3471 = vmatprep.subr.bf16.mxu0 0
      %3472 = vmatpush2.bf16.msra.mxu0 0
      %3473 = vmatprep.subr.bf16.mxu0 0
      %3474 = vmatpush2.bf16.msra.mxu0 0
      %3475 = vmatprep.subr.bf16.mxu0 0
      %3476 = vmatpush2.bf16.msra.mxu0 0
      %3477 = vmatprep.subr.bf16.mxu0 0
      %3478 = vmatpush2.bf16.msra.mxu0 0
      %3479 = vmatprep.mubr.bf16.mxu0 0
      %3480 = vmatmul.mubr.bf16.gmra.mxu0 %v3295
      %v3481 = vpop.f32.mrf.mxu0
      %v3482 = vadd.f32 0.0, %v3481
      %v3483 = vpop.f32.mrf.mxu0
      %v3484 = vadd.f32 0.0, %v3483
      %v3485 = vpop.f32.mrf.mxu0
      %v3486 = vpop.f32.mrf.mxu0
      %3487 = vdwg.mxu0
      %3488 = vmatprep.subr.bf16.mxu0 0
      %3489 = vmatpush1.bf16.msra.mxu0 0
      %3490 = vmatprep.subr.bf16.mxu0 0
      %3491 = vmatpush1.bf16.msra.mxu0 0
      %3492 = vmatprep.subr.bf16.mxu0 0
      %3493 = vmatpush1.bf16.msra.mxu0 0
      %3494 = vmatprep.subr.bf16.mxu0 0
      %3495 = vmatpush1.bf16.msra.mxu0 0
      %3496 = vmatprep.subr.bf16.mxu0 0
      %3497 = vmatpush1.bf16.msra.mxu0 0
      %3498 = vmatprep.subr.bf16.mxu0 0
      %3499 = vmatpush1.bf16.msra.mxu0 0
      %3500 = vmatprep.subr.bf16.mxu0 0
      %3501 = vmatpush1.bf16.msra.mxu0 0
      %3502 = vmatprep.subr.bf16.mxu0 0
      %3503 = vmatpush1.bf16.msra.mxu0 %v3322
      %3504 = vmatprep.subr.bf16.mxu0 0
      %3505 = vmatpush2.bf16.msra.mxu0 0
      %3506 = vmatprep.subr.bf16.mxu0 0
      %3507 = vmatpush2.bf16.msra.mxu0 0
      %3508 = vmatprep.subr.bf16.mxu0 0
      %3509 = vmatpush2.bf16.msra.mxu0 0
      %3510 = vmatprep.subr.bf16.mxu0 0
      %3511 = vmatpush2.bf16.msra.mxu0 0
      %3512 = vmatprep.subr.bf16.mxu0 0
      %3513 = vmatpush2.bf16.msra.mxu0 0
      %3514 = vmatprep.subr.bf16.mxu0 0
      %3515 = vmatpush2.bf16.msra.mxu0 0
      %3516 = vmatprep.subr.bf16.mxu0 0
      %3517 = vmatpush2.bf16.msra.mxu0 0
      %3518 = vmatprep.subr.bf16.mxu0 0
      %3519 = vmatpush2.bf16.msra.mxu0 0
      %3520 = vmatprep.mubr.bf16.mxu0 0
      %3521 = vmatmul.mubr.bf16.gmra.mxu0 %v3295
      %v3522 = vpop.f32.mrf.mxu0
      %v3523 = vadd.f32 0.0, %v3522
      %v3524 = vpop.f32.mrf.mxu0
      %v3525 = vpop.f32.mrf.mxu0
      %v3526 = vpop.f32.mrf.mxu0
      %3527 = vdwg.mxu0
      %v3528 = vadd.f32 %v3253, %v3359
      %v3529 = vadd.f32 %v3254, %v3361
      %v3530 = vadd.f32 %v3255, %v3400
      %v3531 = vadd.f32 %v3256, %v3402
      %v3532 = vadd.f32 %v3257, %v3441
      %v3533 = vadd.f32 %v3258, %v3443
      %v3534 = vadd.f32 %v3259, %v3482
      %v3535 = vadd.f32 %v3260, %v3484
      %v3536 = vadd.f32 %v3261, %v3523
      %s3537 = scalar_lea.vmem %s1, 24
      %v3538 = vld [vmem:[%s3537] sm:$0x3]
      %3539 = vrot.lane.b32.xlu0 %v254, 23
      %v3540 = vpop.permute.xlu0 %3539
      %3541 = vrot.lane.b32.xlu0 %v255, 23
      %v3542 = vpop.permute.xlu0 %3541
      %3543 = vrot.lane.b32.xlu0 %v256, 23
      %v3544 = vpop.permute.xlu0 %3543
      %3545 = vrot.lane.b32.xlu0 %v257, 23
      %v3546 = vpop.permute.xlu0 %3545
      %3547 = vrot.lane.b32.xlu0 %v258, 23
      %v3548 = vpop.permute.xlu0 %3547
      %3549 = vrot.lane.b32.xlu0 %v259, 23
      %v3550 = vpop.permute.xlu0 %3549
      %3551 = vrot.lane.b32.xlu0 %v260, 23
      %v3552 = vpop.permute.xlu0 %3551
      %3553 = vrot.lane.b32.xlu0 %v261, 23
      %v3554 = vpop.permute.xlu0 %3553
      %3555 = vrot.lane.b32.xlu0 %v262, 23
      %v3556 = vpop.permute.xlu0 %3555
      %3557 = vrot.lane.b32.xlu0 %v263, 23
      %v3558 = vpop.permute.xlu0 %3557
      %vm3559 = vcmask 187392
      %v3560 = vsel %vm3559, %v3540, %v3542
      %v3561 = vsel %vm3559, %v3542, %v3544
      %v3562 = vsel %vm3559, %v3544, %v3546
      %v3563 = vsel %vm3559, %v3546, %v3548
      %v3564 = vsel %vm3559, %v3548, %v3550
      %v3565 = vsel %vm3559, %v3550, %v3552
      %v3566 = vsel %vm3559, %v3552, %v3554
      %v3567 = vsel %vm3559, %v3554, %v3556
      %v3568 = vsel %vm3559, %v3556, %v3558
      %v3570 = vsel %vm294, %v3538, 0
      %v3573 = vsel %vm298, %v3560, 0
      %v3576 = vsel %vm298, %v3561, 0
      %v3579 = vsel %vm298, %v3562, 0
      %v3582 = vsel %vm298, %v3563, 0
      %v3585 = vsel %vm298, %v3564, 0
      %v3588 = vsel %vm298, %v3565, 0
      %v3591 = vsel %vm298, %v3566, 0
      %v3594 = vsel %vm298, %v3567, 0
      %v3597 = vsel %vm298, %v3568, 0
      %3599 = vmatprep.subr.bf16.mxu0 0
      %3600 = vmatpush1.bf16.msra.mxu0 0
      %3601 = vmatprep.subr.bf16.mxu0 0
      %3602 = vmatpush1.bf16.msra.mxu0 0
      %3603 = vmatprep.subr.bf16.mxu0 0
      %3604 = vmatpush1.bf16.msra.mxu0 0
      %3605 = vmatprep.subr.bf16.mxu0 0
      %3606 = vmatpush1.bf16.msra.mxu0 0
      %3607 = vmatprep.subr.bf16.mxu0 0
      %3608 = vmatpush1.bf16.msra.mxu0 0
      %3609 = vmatprep.subr.bf16.mxu0 0
      %3610 = vmatpush1.bf16.msra.mxu0 0
      %3611 = vmatprep.subr.bf16.mxu0 0
      %3612 = vmatpush1.bf16.msra.mxu0 0
      %3613 = vmatprep.subr.bf16.mxu0 %v3576
      %3614 = vmatpush1.bf16.msra.mxu0 %v3573
      %3615 = vmatprep.subr.bf16.mxu0 0
      %3616 = vmatpush2.bf16.msra.mxu0 0
      %3617 = vmatprep.subr.bf16.mxu0 0
      %3618 = vmatpush2.bf16.msra.mxu0 0
      %3619 = vmatprep.subr.bf16.mxu0 0
      %3620 = vmatpush2.bf16.msra.mxu0 0
      %3621 = vmatprep.subr.bf16.mxu0 0
      %3622 = vmatpush2.bf16.msra.mxu0 0
      %3623 = vmatprep.subr.bf16.mxu0 0
      %3624 = vmatpush2.bf16.msra.mxu0 0
      %3625 = vmatprep.subr.bf16.mxu0 0
      %3626 = vmatpush2.bf16.msra.mxu0 0
      %3627 = vmatprep.subr.bf16.mxu0 0
      %3628 = vmatpush2.bf16.msra.mxu0 0
      %3629 = vmatprep.subr.bf16.mxu0 0
      %3630 = vmatpush2.bf16.msra.mxu0 0
      %3631 = vmatprep.mubr.bf16.mxu0 0
      %3632 = vmatmul.mubr.bf16.gmra.mxu0 %v3570
      %v3633 = vpop.f32.mrf.mxu0
      %v3634 = vadd.f32 0.0, %v3633
      %v3635 = vpop.f32.mrf.mxu0
      %v3636 = vadd.f32 0.0, %v3635
      %v3637 = vpop.f32.mrf.mxu0
      %v3638 = vpop.f32.mrf.mxu0
      %3639 = vdwg.mxu0
      %3640 = vmatprep.subr.bf16.mxu0 0
      %3641 = vmatpush1.bf16.msra.mxu0 0
      %3642 = vmatprep.subr.bf16.mxu0 0
      %3643 = vmatpush1.bf16.msra.mxu0 0
      %3644 = vmatprep.subr.bf16.mxu0 0
      %3645 = vmatpush1.bf16.msra.mxu0 0
      %3646 = vmatprep.subr.bf16.mxu0 0
      %3647 = vmatpush1.bf16.msra.mxu0 0
      %3648 = vmatprep.subr.bf16.mxu0 0
      %3649 = vmatpush1.bf16.msra.mxu0 0
      %3650 = vmatprep.subr.bf16.mxu0 0
      %3651 = vmatpush1.bf16.msra.mxu0 0
      %3652 = vmatprep.subr.bf16.mxu0 0
      %3653 = vmatpush1.bf16.msra.mxu0 0
      %3654 = vmatprep.subr.bf16.mxu0 %v3582
      %3655 = vmatpush1.bf16.msra.mxu0 %v3579
      %3656 = vmatprep.subr.bf16.mxu0 0
      %3657 = vmatpush2.bf16.msra.mxu0 0
      %3658 = vmatprep.subr.bf16.mxu0 0
      %3659 = vmatpush2.bf16.msra.mxu0 0
      %3660 = vmatprep.subr.bf16.mxu0 0
      %3661 = vmatpush2.bf16.msra.mxu0 0
      %3662 = vmatprep.subr.bf16.mxu0 0
      %3663 = vmatpush2.bf16.msra.mxu0 0
      %3664 = vmatprep.subr.bf16.mxu0 0
      %3665 = vmatpush2.bf16.msra.mxu0 0
      %3666 = vmatprep.subr.bf16.mxu0 0
      %3667 = vmatpush2.bf16.msra.mxu0 0
      %3668 = vmatprep.subr.bf16.mxu0 0
      %3669 = vmatpush2.bf16.msra.mxu0 0
      %3670 = vmatprep.subr.bf16.mxu0 0
      %3671 = vmatpush2.bf16.msra.mxu0 0
      %3672 = vmatprep.mubr.bf16.mxu0 0
      %3673 = vmatmul.mubr.bf16.gmra.mxu0 %v3570
      %v3674 = vpop.f32.mrf.mxu0
      %v3675 = vadd.f32 0.0, %v3674
      %v3676 = vpop.f32.mrf.mxu0
      %v3677 = vadd.f32 0.0, %v3676
      %v3678 = vpop.f32.mrf.mxu0
      %v3679 = vpop.f32.mrf.mxu0
      %3680 = vdwg.mxu0
      %3681 = vmatprep.subr.bf16.mxu0 0
      %3682 = vmatpush1.bf16.msra.mxu0 0
      %3683 = vmatprep.subr.bf16.mxu0 0
      %3684 = vmatpush1.bf16.msra.mxu0 0
      %3685 = vmatprep.subr.bf16.mxu0 0
      %3686 = vmatpush1.bf16.msra.mxu0 0
      %3687 = vmatprep.subr.bf16.mxu0 0
      %3688 = vmatpush1.bf16.msra.mxu0 0
      %3689 = vmatprep.subr.bf16.mxu0 0
      %3690 = vmatpush1.bf16.msra.mxu0 0
      %3691 = vmatprep.subr.bf16.mxu0 0
      %3692 = vmatpush1.bf16.msra.mxu0 0
      %3693 = vmatprep.subr.bf16.mxu0 0
      %3694 = vmatpush1.bf16.msra.mxu0 0
      %3695 = vmatprep.subr.bf16.mxu0 %v3588
      %3696 = vmatpush1.bf16.msra.mxu0 %v3585
      %3697 = vmatprep.subr.bf16.mxu0 0
      %3698 = vmatpush2.bf16.msra.mxu0 0
      %3699 = vmatprep.subr.bf16.mxu0 0
      %3700 = vmatpush2.bf16.msra.mxu0 0
      %3701 = vmatprep.subr.bf16.mxu0 0
      %3702 = vmatpush2.bf16.msra.mxu0 0
      %3703 = vmatprep.subr.bf16.mxu0 0
      %3704 = vmatpush2.bf16.msra.mxu0 0
      %3705 = vmatprep.subr.bf16.mxu0 0
      %3706 = vmatpush2.bf16.msra.mxu0 0
      %3707 = vmatprep.subr.bf16.mxu0 0
      %3708 = vmatpush2.bf16.msra.mxu0 0
      %3709 = vmatprep.subr.bf16.mxu0 0
      %3710 = vmatpush2.bf16.msra.mxu0 0
      %3711 = vmatprep.subr.bf16.mxu0 0
      %3712 = vmatpush2.bf16.msra.mxu0 0
      %3713 = vmatprep.mubr.bf16.mxu0 0
      %3714 = vmatmul.mubr.bf16.gmra.mxu0 %v3570
      %v3715 = vpop.f32.mrf.mxu0
      %v3716 = vadd.f32 0.0, %v3715
      %v3717 = vpop.f32.mrf.mxu0
      %v3718 = vadd.f32 0.0, %v3717
      %v3719 = vpop.f32.mrf.mxu0
      %v3720 = vpop.f32.mrf.mxu0
      %3721 = vdwg.mxu0
      %3722 = vmatprep.subr.bf16.mxu0 0
      %3723 = vmatpush1.bf16.msra.mxu0 0
      %3724 = vmatprep.subr.bf16.mxu0 0
      %3725 = vmatpush1.bf16.msra.mxu0 0
      %3726 = vmatprep.subr.bf16.mxu0 0
      %3727 = vmatpush1.bf16.msra.mxu0 0
      %3728 = vmatprep.subr.bf16.mxu0 0
      %3729 = vmatpush1.bf16.msra.mxu0 0
      %3730 = vmatprep.subr.bf16.mxu0 0
      %3731 = vmatpush1.bf16.msra.mxu0 0
      %3732 = vmatprep.subr.bf16.mxu0 0
      %3733 = vmatpush1.bf16.msra.mxu0 0
      %3734 = vmatprep.subr.bf16.mxu0 0
      %3735 = vmatpush1.bf16.msra.mxu0 0
      %3736 = vmatprep.subr.bf16.mxu0 %v3594
      %3737 = vmatpush1.bf16.msra.mxu0 %v3591
      %3738 = vmatprep.subr.bf16.mxu0 0
      %3739 = vmatpush2.bf16.msra.mxu0 0
      %3740 = vmatprep.subr.bf16.mxu0 0
      %3741 = vmatpush2.bf16.msra.mxu0 0
      %3742 = vmatprep.subr.bf16.mxu0 0
      %3743 = vmatpush2.bf16.msra.mxu0 0
      %3744 = vmatprep.subr.bf16.mxu0 0
      %3745 = vmatpush2.bf16.msra.mxu0 0
      %3746 = vmatprep.subr.bf16.mxu0 0
      %3747 = vmatpush2.bf16.msra.mxu0 0
      %3748 = vmatprep.subr.bf16.mxu0 0
      %3749 = vmatpush2.bf16.msra.mxu0 0
      %3750 = vmatprep.subr.bf16.mxu0 0
      %3751 = vmatpush2.bf16.msra.mxu0 0
      %3752 = vmatprep.subr.bf16.mxu0 0
      %3753 = vmatpush2.bf16.msra.mxu0 0
      %3754 = vmatprep.mubr.bf16.mxu0 0
      %3755 = vmatmul.mubr.bf16.gmra.mxu0 %v3570
      %v3756 = vpop.f32.mrf.mxu0
      %v3757 = vadd.f32 0.0, %v3756
      %v3758 = vpop.f32.mrf.mxu0
      %v3759 = vadd.f32 0.0, %v3758
      %v3760 = vpop.f32.mrf.mxu0
      %v3761 = vpop.f32.mrf.mxu0
      %3762 = vdwg.mxu0
      %3763 = vmatprep.subr.bf16.mxu0 0
      %3764 = vmatpush1.bf16.msra.mxu0 0
      %3765 = vmatprep.subr.bf16.mxu0 0
      %3766 = vmatpush1.bf16.msra.mxu0 0
      %3767 = vmatprep.subr.bf16.mxu0 0
      %3768 = vmatpush1.bf16.msra.mxu0 0
      %3769 = vmatprep.subr.bf16.mxu0 0
      %3770 = vmatpush1.bf16.msra.mxu0 0
      %3771 = vmatprep.subr.bf16.mxu0 0
      %3772 = vmatpush1.bf16.msra.mxu0 0
      %3773 = vmatprep.subr.bf16.mxu0 0
      %3774 = vmatpush1.bf16.msra.mxu0 0
      %3775 = vmatprep.subr.bf16.mxu0 0
      %3776 = vmatpush1.bf16.msra.mxu0 0
      %3777 = vmatprep.subr.bf16.mxu0 0
      %3778 = vmatpush1.bf16.msra.mxu0 %v3597
      %3779 = vmatprep.subr.bf16.mxu0 0
      %3780 = vmatpush2.bf16.msra.mxu0 0
      %3781 = vmatprep.subr.bf16.mxu0 0
      %3782 = vmatpush2.bf16.msra.mxu0 0
      %3783 = vmatprep.subr.bf16.mxu0 0
      %3784 = vmatpush2.bf16.msra.mxu0 0
      %3785 = vmatprep.subr.bf16.mxu0 0
      %3786 = vmatpush2.bf16.msra.mxu0 0
      %3787 = vmatprep.subr.bf16.mxu0 0
      %3788 = vmatpush2.bf16.msra.mxu0 0
      %3789 = vmatprep.subr.bf16.mxu0 0
      %3790 = vmatpush2.bf16.msra.mxu0 0
      %3791 = vmatprep.subr.bf16.mxu0 0
      %3792 = vmatpush2.bf16.msra.mxu0 0
      %3793 = vmatprep.subr.bf16.mxu0 0
      %3794 = vmatpush2.bf16.msra.mxu0 0
      %3795 = vmatprep.mubr.bf16.mxu0 0
      %3796 = vmatmul.mubr.bf16.gmra.mxu0 %v3570
      %v3797 = vpop.f32.mrf.mxu0
      %v3798 = vadd.f32 0.0, %v3797
      %v3799 = vpop.f32.mrf.mxu0
      %v3800 = vpop.f32.mrf.mxu0
      %v3801 = vpop.f32.mrf.mxu0
      %3802 = vdwg.mxu0
      %v3803 = vadd.f32 %v3528, %v3634
      %v3804 = vadd.f32 %v3529, %v3636
      %v3805 = vadd.f32 %v3530, %v3675
      %v3806 = vadd.f32 %v3531, %v3677
      %v3807 = vadd.f32 %v3532, %v3716
      %v3808 = vadd.f32 %v3533, %v3718
      %v3809 = vadd.f32 %v3534, %v3757
      %v3810 = vadd.f32 %v3535, %v3759
      %v3811 = vadd.f32 %v3536, %v3798
      %s3812 = scalar_lea.vmem %s1, 26
      %v3813 = vld [vmem:[%s3812] sm:$0x3]
      %3814 = vrot.lane.b32.xlu0 %v254, 22
      %v3815 = vpop.permute.xlu0 %3814
      %3816 = vrot.lane.b32.xlu0 %v255, 22
      %v3817 = vpop.permute.xlu0 %3816
      %3818 = vrot.lane.b32.xlu0 %v256, 22
      %v3819 = vpop.permute.xlu0 %3818
      %3820 = vrot.lane.b32.xlu0 %v257, 22
      %v3821 = vpop.permute.xlu0 %3820
      %3822 = vrot.lane.b32.xlu0 %v258, 22
      %v3823 = vpop.permute.xlu0 %3822
      %3824 = vrot.lane.b32.xlu0 %v259, 22
      %v3825 = vpop.permute.xlu0 %3824
      %3826 = vrot.lane.b32.xlu0 %v260, 22
      %v3827 = vpop.permute.xlu0 %3826
      %3828 = vrot.lane.b32.xlu0 %v261, 22
      %v3829 = vpop.permute.xlu0 %3828
      %3830 = vrot.lane.b32.xlu0 %v262, 22
      %v3831 = vpop.permute.xlu0 %3830
      %3832 = vrot.lane.b32.xlu0 %v263, 22
      %v3833 = vpop.permute.xlu0 %3832
      %vm3834 = vcmask 179200
      %v3835 = vsel %vm3834, %v3815, %v3817
      %v3836 = vsel %vm3834, %v3817, %v3819
      %v3837 = vsel %vm3834, %v3819, %v3821
      %v3838 = vsel %vm3834, %v3821, %v3823
      %v3839 = vsel %vm3834, %v3823, %v3825
      %v3840 = vsel %vm3834, %v3825, %v3827
      %v3841 = vsel %vm3834, %v3827, %v3829
      %v3842 = vsel %vm3834, %v3829, %v3831
      %v3843 = vsel %vm3834, %v3831, %v3833
      %v3845 = vsel %vm294, %v3813, 0
      %v3848 = vsel %vm298, %v3835, 0
      %v3851 = vsel %vm298, %v3836, 0
      %v3854 = vsel %vm298, %v3837, 0
      %v3857 = vsel %vm298, %v3838, 0
      %v3860 = vsel %vm298, %v3839, 0
      %v3863 = vsel %vm298, %v3840, 0
      %v3866 = vsel %vm298, %v3841, 0
      %v3869 = vsel %vm298, %v3842, 0
      %v3872 = vsel %vm298, %v3843, 0
      %3874 = vmatprep.subr.bf16.mxu0 0
      %3875 = vmatpush1.bf16.msra.mxu0 0
      %3876 = vmatprep.subr.bf16.mxu0 0
      %3877 = vmatpush1.bf16.msra.mxu0 0
      %3878 = vmatprep.subr.bf16.mxu0 0
      %3879 = vmatpush1.bf16.msra.mxu0 0
      %3880 = vmatprep.subr.bf16.mxu0 0
      %3881 = vmatpush1.bf16.msra.mxu0 0
      %3882 = vmatprep.subr.bf16.mxu0 0
      %3883 = vmatpush1.bf16.msra.mxu0 0
      %3884 = vmatprep.subr.bf16.mxu0 0
      %3885 = vmatpush1.bf16.msra.mxu0 0
      %3886 = vmatprep.subr.bf16.mxu0 0
      %3887 = vmatpush1.bf16.msra.mxu0 0
      %3888 = vmatprep.subr.bf16.mxu0 %v3851
      %3889 = vmatpush1.bf16.msra.mxu0 %v3848
      %3890 = vmatprep.subr.bf16.mxu0 0
      %3891 = vmatpush2.bf16.msra.mxu0 0
      %3892 = vmatprep.subr.bf16.mxu0 0
      %3893 = vmatpush2.bf16.msra.mxu0 0
      %3894 = vmatprep.subr.bf16.mxu0 0
      %3895 = vmatpush2.bf16.msra.mxu0 0
      %3896 = vmatprep.subr.bf16.mxu0 0
      %3897 = vmatpush2.bf16.msra.mxu0 0
      %3898 = vmatprep.subr.bf16.mxu0 0
      %3899 = vmatpush2.bf16.msra.mxu0 0
      %3900 = vmatprep.subr.bf16.mxu0 0
      %3901 = vmatpush2.bf16.msra.mxu0 0
      %3902 = vmatprep.subr.bf16.mxu0 0
      %3903 = vmatpush2.bf16.msra.mxu0 0
      %3904 = vmatprep.subr.bf16.mxu0 0
      %3905 = vmatpush2.bf16.msra.mxu0 0
      %3906 = vmatprep.mubr.bf16.mxu0 0
      %3907 = vmatmul.mubr.bf16.gmra.mxu0 %v3845
      %v3908 = vpop.f32.mrf.mxu0
      %v3909 = vadd.f32 0.0, %v3908
      %v3910 = vpop.f32.mrf.mxu0
      %v3911 = vadd.f32 0.0, %v3910
      %v3912 = vpop.f32.mrf.mxu0
      %v3913 = vpop.f32.mrf.mxu0
      %3914 = vdwg.mxu0
      %3915 = vmatprep.subr.bf16.mxu0 0
      %3916 = vmatpush1.bf16.msra.mxu0 0
      %3917 = vmatprep.subr.bf16.mxu0 0
      %3918 = vmatpush1.bf16.msra.mxu0 0
      %3919 = vmatprep.subr.bf16.mxu0 0
      %3920 = vmatpush1.bf16.msra.mxu0 0
      %3921 = vmatprep.subr.bf16.mxu0 0
      %3922 = vmatpush1.bf16.msra.mxu0 0
      %3923 = vmatprep.subr.bf16.mxu0 0
      %3924 = vmatpush1.bf16.msra.mxu0 0
      %3925 = vmatprep.subr.bf16.mxu0 0
      %3926 = vmatpush1.bf16.msra.mxu0 0
      %3927 = vmatprep.subr.bf16.mxu0 0
      %3928 = vmatpush1.bf16.msra.mxu0 0
      %3929 = vmatprep.subr.bf16.mxu0 %v3857
      %3930 = vmatpush1.bf16.msra.mxu0 %v3854
      %3931 = vmatprep.subr.bf16.mxu0 0
      %3932 = vmatpush2.bf16.msra.mxu0 0
      %3933 = vmatprep.subr.bf16.mxu0 0
      %3934 = vmatpush2.bf16.msra.mxu0 0
      %3935 = vmatprep.subr.bf16.mxu0 0
      %3936 = vmatpush2.bf16.msra.mxu0 0
      %3937 = vmatprep.subr.bf16.mxu0 0
      %3938 = vmatpush2.bf16.msra.mxu0 0
      %3939 = vmatprep.subr.bf16.mxu0 0
      %3940 = vmatpush2.bf16.msra.mxu0 0
      %3941 = vmatprep.subr.bf16.mxu0 0
      %3942 = vmatpush2.bf16.msra.mxu0 0
      %3943 = vmatprep.subr.bf16.mxu0 0
      %3944 = vmatpush2.bf16.msra.mxu0 0
      %3945 = vmatprep.subr.bf16.mxu0 0
      %3946 = vmatpush2.bf16.msra.mxu0 0
      %3947 = vmatprep.mubr.bf16.mxu0 0
      %3948 = vmatmul.mubr.bf16.gmra.mxu0 %v3845
      %v3949 = vpop.f32.mrf.mxu0
      %v3950 = vadd.f32 0.0, %v3949
      %v3951 = vpop.f32.mrf.mxu0
      %v3952 = vadd.f32 0.0, %v3951
      %v3953 = vpop.f32.mrf.mxu0
      %v3954 = vpop.f32.mrf.mxu0
      %3955 = vdwg.mxu0
      %3956 = vmatprep.subr.bf16.mxu0 0
      %3957 = vmatpush1.bf16.msra.mxu0 0
      %3958 = vmatprep.subr.bf16.mxu0 0
      %3959 = vmatpush1.bf16.msra.mxu0 0
      %3960 = vmatprep.subr.bf16.mxu0 0
      %3961 = vmatpush1.bf16.msra.mxu0 0
      %3962 = vmatprep.subr.bf16.mxu0 0
      %3963 = vmatpush1.bf16.msra.mxu0 0
      %3964 = vmatprep.subr.bf16.mxu0 0
      %3965 = vmatpush1.bf16.msra.mxu0 0
      %3966 = vmatprep.subr.bf16.mxu0 0
      %3967 = vmatpush1.bf16.msra.mxu0 0
      %3968 = vmatprep.subr.bf16.mxu0 0
      %3969 = vmatpush1.bf16.msra.mxu0 0
      %3970 = vmatprep.subr.bf16.mxu0 %v3863
      %3971 = vmatpush1.bf16.msra.mxu0 %v3860
      %3972 = vmatprep.subr.bf16.mxu0 0
      %3973 = vmatpush2.bf16.msra.mxu0 0
      %3974 = vmatprep.subr.bf16.mxu0 0
      %3975 = vmatpush2.bf16.msra.mxu0 0
      %3976 = vmatprep.subr.bf16.mxu0 0
      %3977 = vmatpush2.bf16.msra.mxu0 0
      %3978 = vmatprep.subr.bf16.mxu0 0
      %3979 = vmatpush2.bf16.msra.mxu0 0
      %3980 = vmatprep.subr.bf16.mxu0 0
      %3981 = vmatpush2.bf16.msra.mxu0 0
      %3982 = vmatprep.subr.bf16.mxu0 0
      %3983 = vmatpush2.bf16.msra.mxu0 0
      %3984 = vmatprep.subr.bf16.mxu0 0
      %3985 = vmatpush2.bf16.msra.mxu0 0
      %3986 = vmatprep.subr.bf16.mxu0 0
      %3987 = vmatpush2.bf16.msra.mxu0 0
      %3988 = vmatprep.mubr.bf16.mxu0 0
      %3989 = vmatmul.mubr.bf16.gmra.mxu0 %v3845
      %v3990 = vpop.f32.mrf.mxu0
      %v3991 = vadd.f32 0.0, %v3990
      %v3992 = vpop.f32.mrf.mxu0
      %v3993 = vadd.f32 0.0, %v3992
      %v3994 = vpop.f32.mrf.mxu0
      %v3995 = vpop.f32.mrf.mxu0
      %3996 = vdwg.mxu0
      %3997 = vmatprep.subr.bf16.mxu0 0
      %3998 = vmatpush1.bf16.msra.mxu0 0
      %3999 = vmatprep.subr.bf16.mxu0 0
      %4000 = vmatpush1.bf16.msra.mxu0 0
      %4001 = vmatprep.subr.bf16.mxu0 0
      %4002 = vmatpush1.bf16.msra.mxu0 0
      %4003 = vmatprep.subr.bf16.mxu0 0
      %4004 = vmatpush1.bf16.msra.mxu0 0
      %4005 = vmatprep.subr.bf16.mxu0 0
      %4006 = vmatpush1.bf16.msra.mxu0 0
      %4007 = vmatprep.subr.bf16.mxu0 0
      %4008 = vmatpush1.bf16.msra.mxu0 0
      %4009 = vmatprep.subr.bf16.mxu0 0
      %4010 = vmatpush1.bf16.msra.mxu0 0
      %4011 = vmatprep.subr.bf16.mxu0 %v3869
      %4012 = vmatpush1.bf16.msra.mxu0 %v3866
      %4013 = vmatprep.subr.bf16.mxu0 0
      %4014 = vmatpush2.bf16.msra.mxu0 0
      %4015 = vmatprep.subr.bf16.mxu0 0
      %4016 = vmatpush2.bf16.msra.mxu0 0
      %4017 = vmatprep.subr.bf16.mxu0 0
      %4018 = vmatpush2.bf16.msra.mxu0 0
      %4019 = vmatprep.subr.bf16.mxu0 0
      %4020 = vmatpush2.bf16.msra.mxu0 0
      %4021 = vmatprep.subr.bf16.mxu0 0
      %4022 = vmatpush2.bf16.msra.mxu0 0
      %4023 = vmatprep.subr.bf16.mxu0 0
      %4024 = vmatpush2.bf16.msra.mxu0 0
      %4025 = vmatprep.subr.bf16.mxu0 0
      %4026 = vmatpush2.bf16.msra.mxu0 0
      %4027 = vmatprep.subr.bf16.mxu0 0
      %4028 = vmatpush2.bf16.msra.mxu0 0
      %4029 = vmatprep.mubr.bf16.mxu0 0
      %4030 = vmatmul.mubr.bf16.gmra.mxu0 %v3845
      %v4031 = vpop.f32.mrf.mxu0
      %v4032 = vadd.f32 0.0, %v4031
      %v4033 = vpop.f32.mrf.mxu0
      %v4034 = vadd.f32 0.0, %v4033
      %v4035 = vpop.f32.mrf.mxu0
      %v4036 = vpop.f32.mrf.mxu0
      %4037 = vdwg.mxu0
      %4038 = vmatprep.subr.bf16.mxu0 0
      %4039 = vmatpush1.bf16.msra.mxu0 0
      %4040 = vmatprep.subr.bf16.mxu0 0
      %4041 = vmatpush1.bf16.msra.mxu0 0
      %4042 = vmatprep.subr.bf16.mxu0 0
      %4043 = vmatpush1.bf16.msra.mxu0 0
      %4044 = vmatprep.subr.bf16.mxu0 0
      %4045 = vmatpush1.bf16.msra.mxu0 0
      %4046 = vmatprep.subr.bf16.mxu0 0
      %4047 = vmatpush1.bf16.msra.mxu0 0
      %4048 = vmatprep.subr.bf16.mxu0 0
      %4049 = vmatpush1.bf16.msra.mxu0 0
      %4050 = vmatprep.subr.bf16.mxu0 0
      %4051 = vmatpush1.bf16.msra.mxu0 0
      %4052 = vmatprep.subr.bf16.mxu0 0
      %4053 = vmatpush1.bf16.msra.mxu0 %v3872
      %4054 = vmatprep.subr.bf16.mxu0 0
      %4055 = vmatpush2.bf16.msra.mxu0 0
      %4056 = vmatprep.subr.bf16.mxu0 0
      %4057 = vmatpush2.bf16.msra.mxu0 0
      %4058 = vmatprep.subr.bf16.mxu0 0
      %4059 = vmatpush2.bf16.msra.mxu0 0
      %4060 = vmatprep.subr.bf16.mxu0 0
      %4061 = vmatpush2.bf16.msra.mxu0 0
      %4062 = vmatprep.subr.bf16.mxu0 0
      %4063 = vmatpush2.bf16.msra.mxu0 0
      %4064 = vmatprep.subr.bf16.mxu0 0
      %4065 = vmatpush2.bf16.msra.mxu0 0
      %4066 = vmatprep.subr.bf16.mxu0 0
      %4067 = vmatpush2.bf16.msra.mxu0 0
      %4068 = vmatprep.subr.bf16.mxu0 0
      %4069 = vmatpush2.bf16.msra.mxu0 0
      %4070 = vmatprep.mubr.bf16.mxu0 0
      %4071 = vmatmul.mubr.bf16.gmra.mxu0 %v3845
      %v4072 = vpop.f32.mrf.mxu0
      %v4073 = vadd.f32 0.0, %v4072
      %v4074 = vpop.f32.mrf.mxu0
      %v4075 = vpop.f32.mrf.mxu0
      %v4076 = vpop.f32.mrf.mxu0
      %4077 = vdwg.mxu0
      %v4078 = vadd.f32 %v3803, %v3909
      %v4079 = vadd.f32 %v3804, %v3911
      %v4080 = vadd.f32 %v3805, %v3950
      %v4081 = vadd.f32 %v3806, %v3952
      %v4082 = vadd.f32 %v3807, %v3991
      %v4083 = vadd.f32 %v3808, %v3993
      %v4084 = vadd.f32 %v3809, %v4032
      %v4085 = vadd.f32 %v3810, %v4034
      %v4086 = vadd.f32 %v3811, %v4073
      %s4087 = scalar_lea.vmem %s1, 28
      %v4088 = vld [vmem:[%s4087] sm:$0x3]
      %4089 = vrot.lane.b32.xlu0 %v254, 21
      %v4090 = vpop.permute.xlu0 %4089
      %4091 = vrot.lane.b32.xlu0 %v255, 21
      %v4092 = vpop.permute.xlu0 %4091
      %4093 = vrot.lane.b32.xlu0 %v256, 21
      %v4094 = vpop.permute.xlu0 %4093
      %4095 = vrot.lane.b32.xlu0 %v257, 21
      %v4096 = vpop.permute.xlu0 %4095
      %4097 = vrot.lane.b32.xlu0 %v258, 21
      %v4098 = vpop.permute.xlu0 %4097
      %4099 = vrot.lane.b32.xlu0 %v259, 21
      %v4100 = vpop.permute.xlu0 %4099
      %4101 = vrot.lane.b32.xlu0 %v260, 21
      %v4102 = vpop.permute.xlu0 %4101
      %4103 = vrot.lane.b32.xlu0 %v261, 21
      %v4104 = vpop.permute.xlu0 %4103
      %4105 = vrot.lane.b32.xlu0 %v262, 21
      %v4106 = vpop.permute.xlu0 %4105
      %4107 = vrot.lane.b32.xlu0 %v263, 21
      %v4108 = vpop.permute.xlu0 %4107
      %vm4109 = vcmask 171008
      %v4110 = vsel %vm4109, %v4090, %v4092
      %v4111 = vsel %vm4109, %v4092, %v4094
      %v4112 = vsel %vm4109, %v4094, %v4096
      %v4113 = vsel %vm4109, %v4096, %v4098
      %v4114 = vsel %vm4109, %v4098, %v4100
      %v4115 = vsel %vm4109, %v4100, %v4102
      %v4116 = vsel %vm4109, %v4102, %v4104
      %v4117 = vsel %vm4109, %v4104, %v4106
      %v4118 = vsel %vm4109, %v4106, %v4108
      %v4120 = vsel %vm294, %v4088, 0
      %v4123 = vsel %vm298, %v4110, 0
      %v4126 = vsel %vm298, %v4111, 0
      %v4129 = vsel %vm298, %v4112, 0
      %v4132 = vsel %vm298, %v4113, 0
      %v4135 = vsel %vm298, %v4114, 0
      %v4138 = vsel %vm298, %v4115, 0
      %v4141 = vsel %vm298, %v4116, 0
      %v4144 = vsel %vm298, %v4117, 0
      %v4147 = vsel %vm298, %v4118, 0
      %4149 = vmatprep.subr.bf16.mxu0 0
      %4150 = vmatpush1.bf16.msra.mxu0 0
      %4151 = vmatprep.subr.bf16.mxu0 0
      %4152 = vmatpush1.bf16.msra.mxu0 0
      %4153 = vmatprep.subr.bf16.mxu0 0
      %4154 = vmatpush1.bf16.msra.mxu0 0
      %4155 = vmatprep.subr.bf16.mxu0 0
      %4156 = vmatpush1.bf16.msra.mxu0 0
      %4157 = vmatprep.subr.bf16.mxu0 0
      %4158 = vmatpush1.bf16.msra.mxu0 0
      %4159 = vmatprep.subr.bf16.mxu0 0
      %4160 = vmatpush1.bf16.msra.mxu0 0
      %4161 = vmatprep.subr.bf16.mxu0 0
      %4162 = vmatpush1.bf16.msra.mxu0 0
      %4163 = vmatprep.subr.bf16.mxu0 %v4126
      %4164 = vmatpush1.bf16.msra.mxu0 %v4123
      %4165 = vmatprep.subr.bf16.mxu0 0
      %4166 = vmatpush2.bf16.msra.mxu0 0
      %4167 = vmatprep.subr.bf16.mxu0 0
      %4168 = vmatpush2.bf16.msra.mxu0 0
      %4169 = vmatprep.subr.bf16.mxu0 0
      %4170 = vmatpush2.bf16.msra.mxu0 0
      %4171 = vmatprep.subr.bf16.mxu0 0
      %4172 = vmatpush2.bf16.msra.mxu0 0
      %4173 = vmatprep.subr.bf16.mxu0 0
      %4174 = vmatpush2.bf16.msra.mxu0 0
      %4175 = vmatprep.subr.bf16.mxu0 0
      %4176 = vmatpush2.bf16.msra.mxu0 0
      %4177 = vmatprep.subr.bf16.mxu0 0
      %4178 = vmatpush2.bf16.msra.mxu0 0
      %4179 = vmatprep.subr.bf16.mxu0 0
      %4180 = vmatpush2.bf16.msra.mxu0 0
      %4181 = vmatprep.mubr.bf16.mxu0 0
      %4182 = vmatmul.mubr.bf16.gmra.mxu0 %v4120
      %v4183 = vpop.f32.mrf.mxu0
      %v4184 = vadd.f32 0.0, %v4183
      %v4185 = vpop.f32.mrf.mxu0
      %v4186 = vadd.f32 0.0, %v4185
      %v4187 = vpop.f32.mrf.mxu0
      %v4188 = vpop.f32.mrf.mxu0
      %4189 = vdwg.mxu0
      %4190 = vmatprep.subr.bf16.mxu0 0
      %4191 = vmatpush1.bf16.msra.mxu0 0
      %4192 = vmatprep.subr.bf16.mxu0 0
      %4193 = vmatpush1.bf16.msra.mxu0 0
      %4194 = vmatprep.subr.bf16.mxu0 0
      %4195 = vmatpush1.bf16.msra.mxu0 0
      %4196 = vmatprep.subr.bf16.mxu0 0
      %4197 = vmatpush1.bf16.msra.mxu0 0
      %4198 = vmatprep.subr.bf16.mxu0 0
      %4199 = vmatpush1.bf16.msra.mxu0 0
      %4200 = vmatprep.subr.bf16.mxu0 0
      %4201 = vmatpush1.bf16.msra.mxu0 0
      %4202 = vmatprep.subr.bf16.mxu0 0
      %4203 = vmatpush1.bf16.msra.mxu0 0
      %4204 = vmatprep.subr.bf16.mxu0 %v4132
      %4205 = vmatpush1.bf16.msra.mxu0 %v4129
      %4206 = vmatprep.subr.bf16.mxu0 0
      %4207 = vmatpush2.bf16.msra.mxu0 0
      %4208 = vmatprep.subr.bf16.mxu0 0
      %4209 = vmatpush2.bf16.msra.mxu0 0
      %4210 = vmatprep.subr.bf16.mxu0 0
      %4211 = vmatpush2.bf16.msra.mxu0 0
      %4212 = vmatprep.subr.bf16.mxu0 0
      %4213 = vmatpush2.bf16.msra.mxu0 0
      %4214 = vmatprep.subr.bf16.mxu0 0
      %4215 = vmatpush2.bf16.msra.mxu0 0
      %4216 = vmatprep.subr.bf16.mxu0 0
      %4217 = vmatpush2.bf16.msra.mxu0 0
      %4218 = vmatprep.subr.bf16.mxu0 0
      %4219 = vmatpush2.bf16.msra.mxu0 0
      %4220 = vmatprep.subr.bf16.mxu0 0
      %4221 = vmatpush2.bf16.msra.mxu0 0
      %4222 = vmatprep.mubr.bf16.mxu0 0
      %4223 = vmatmul.mubr.bf16.gmra.mxu0 %v4120
      %v4224 = vpop.f32.mrf.mxu0
      %v4225 = vadd.f32 0.0, %v4224
      %v4226 = vpop.f32.mrf.mxu0
      %v4227 = vadd.f32 0.0, %v4226
      %v4228 = vpop.f32.mrf.mxu0
      %v4229 = vpop.f32.mrf.mxu0
      %4230 = vdwg.mxu0
      %4231 = vmatprep.subr.bf16.mxu0 0
      %4232 = vmatpush1.bf16.msra.mxu0 0
      %4233 = vmatprep.subr.bf16.mxu0 0
      %4234 = vmatpush1.bf16.msra.mxu0 0
      %4235 = vmatprep.subr.bf16.mxu0 0
      %4236 = vmatpush1.bf16.msra.mxu0 0
      %4237 = vmatprep.subr.bf16.mxu0 0
      %4238 = vmatpush1.bf16.msra.mxu0 0
      %4239 = vmatprep.subr.bf16.mxu0 0
      %4240 = vmatpush1.bf16.msra.mxu0 0
      %4241 = vmatprep.subr.bf16.mxu0 0
      %4242 = vmatpush1.bf16.msra.mxu0 0
      %4243 = vmatprep.subr.bf16.mxu0 0
      %4244 = vmatpush1.bf16.msra.mxu0 0
      %4245 = vmatprep.subr.bf16.mxu0 %v4138
      %4246 = vmatpush1.bf16.msra.mxu0 %v4135
      %4247 = vmatprep.subr.bf16.mxu0 0
      %4248 = vmatpush2.bf16.msra.mxu0 0
      %4249 = vmatprep.subr.bf16.mxu0 0
      %4250 = vmatpush2.bf16.msra.mxu0 0
      %4251 = vmatprep.subr.bf16.mxu0 0
      %4252 = vmatpush2.bf16.msra.mxu0 0
      %4253 = vmatprep.subr.bf16.mxu0 0
      %4254 = vmatpush2.bf16.msra.mxu0 0
      %4255 = vmatprep.subr.bf16.mxu0 0
      %4256 = vmatpush2.bf16.msra.mxu0 0
      %4257 = vmatprep.subr.bf16.mxu0 0
      %4258 = vmatpush2.bf16.msra.mxu0 0
      %4259 = vmatprep.subr.bf16.mxu0 0
      %4260 = vmatpush2.bf16.msra.mxu0 0
      %4261 = vmatprep.subr.bf16.mxu0 0
      %4262 = vmatpush2.bf16.msra.mxu0 0
      %4263 = vmatprep.mubr.bf16.mxu0 0
      %4264 = vmatmul.mubr.bf16.gmra.mxu0 %v4120
      %v4265 = vpop.f32.mrf.mxu0
      %v4266 = vadd.f32 0.0, %v4265
      %v4267 = vpop.f32.mrf.mxu0
      %v4268 = vadd.f32 0.0, %v4267
      %v4269 = vpop.f32.mrf.mxu0
      %v4270 = vpop.f32.mrf.mxu0
      %4271 = vdwg.mxu0
      %4272 = vmatprep.subr.bf16.mxu0 0
      %4273 = vmatpush1.bf16.msra.mxu0 0
      %4274 = vmatprep.subr.bf16.mxu0 0
      %4275 = vmatpush1.bf16.msra.mxu0 0
      %4276 = vmatprep.subr.bf16.mxu0 0
      %4277 = vmatpush1.bf16.msra.mxu0 0
      %4278 = vmatprep.subr.bf16.mxu0 0
      %4279 = vmatpush1.bf16.msra.mxu0 0
      %4280 = vmatprep.subr.bf16.mxu0 0
      %4281 = vmatpush1.bf16.msra.mxu0 0
      %4282 = vmatprep.subr.bf16.mxu0 0
      %4283 = vmatpush1.bf16.msra.mxu0 0
      %4284 = vmatprep.subr.bf16.mxu0 0
      %4285 = vmatpush1.bf16.msra.mxu0 0
      %4286 = vmatprep.subr.bf16.mxu0 %v4144
      %4287 = vmatpush1.bf16.msra.mxu0 %v4141
      %4288 = vmatprep.subr.bf16.mxu0 0
      %4289 = vmatpush2.bf16.msra.mxu0 0
      %4290 = vmatprep.subr.bf16.mxu0 0
      %4291 = vmatpush2.bf16.msra.mxu0 0
      %4292 = vmatprep.subr.bf16.mxu0 0
      %4293 = vmatpush2.bf16.msra.mxu0 0
      %4294 = vmatprep.subr.bf16.mxu0 0
      %4295 = vmatpush2.bf16.msra.mxu0 0
      %4296 = vmatprep.subr.bf16.mxu0 0
      %4297 = vmatpush2.bf16.msra.mxu0 0
      %4298 = vmatprep.subr.bf16.mxu0 0
      %4299 = vmatpush2.bf16.msra.mxu0 0
      %4300 = vmatprep.subr.bf16.mxu0 0
      %4301 = vmatpush2.bf16.msra.mxu0 0
      %4302 = vmatprep.subr.bf16.mxu0 0
      %4303 = vmatpush2.bf16.msra.mxu0 0
      %4304 = vmatprep.mubr.bf16.mxu0 0
      %4305 = vmatmul.mubr.bf16.gmra.mxu0 %v4120
      %v4306 = vpop.f32.mrf.mxu0
      %v4307 = vadd.f32 0.0, %v4306
      %v4308 = vpop.f32.mrf.mxu0
      %v4309 = vadd.f32 0.0, %v4308
      %v4310 = vpop.f32.mrf.mxu0
      %v4311 = vpop.f32.mrf.mxu0
      %4312 = vdwg.mxu0
      %4313 = vmatprep.subr.bf16.mxu0 0
      %4314 = vmatpush1.bf16.msra.mxu0 0
      %4315 = vmatprep.subr.bf16.mxu0 0
      %4316 = vmatpush1.bf16.msra.mxu0 0
      %4317 = vmatprep.subr.bf16.mxu0 0
      %4318 = vmatpush1.bf16.msra.mxu0 0
      %4319 = vmatprep.subr.bf16.mxu0 0
      %4320 = vmatpush1.bf16.msra.mxu0 0
      %4321 = vmatprep.subr.bf16.mxu0 0
      %4322 = vmatpush1.bf16.msra.mxu0 0
      %4323 = vmatprep.subr.bf16.mxu0 0
      %4324 = vmatpush1.bf16.msra.mxu0 0
      %4325 = vmatprep.subr.bf16.mxu0 0
      %4326 = vmatpush1.bf16.msra.mxu0 0
      %4327 = vmatprep.subr.bf16.mxu0 0
      %4328 = vmatpush1.bf16.msra.mxu0 %v4147
      %4329 = vmatprep.subr.bf16.mxu0 0
      %4330 = vmatpush2.bf16.msra.mxu0 0
      %4331 = vmatprep.subr.bf16.mxu0 0
      %4332 = vmatpush2.bf16.msra.mxu0 0
      %4333 = vmatprep.subr.bf16.mxu0 0
      %4334 = vmatpush2.bf16.msra.mxu0 0
      %4335 = vmatprep.subr.bf16.mxu0 0
      %4336 = vmatpush2.bf16.msra.mxu0 0
      %4337 = vmatprep.subr.bf16.mxu0 0
      %4338 = vmatpush2.bf16.msra.mxu0 0
      %4339 = vmatprep.subr.bf16.mxu0 0
      %4340 = vmatpush2.bf16.msra.mxu0 0
      %4341 = vmatprep.subr.bf16.mxu0 0
      %4342 = vmatpush2.bf16.msra.mxu0 0
      %4343 = vmatprep.subr.bf16.mxu0 0
      %4344 = vmatpush2.bf16.msra.mxu0 0
      %4345 = vmatprep.mubr.bf16.mxu0 0
      %4346 = vmatmul.mubr.bf16.gmra.mxu0 %v4120
      %v4347 = vpop.f32.mrf.mxu0
      %v4348 = vadd.f32 0.0, %v4347
      %v4349 = vpop.f32.mrf.mxu0
      %v4350 = vpop.f32.mrf.mxu0
      %v4351 = vpop.f32.mrf.mxu0
      %4352 = vdwg.mxu0
      %v4353 = vadd.f32 %v4078, %v4184
      %v4354 = vadd.f32 %v4079, %v4186
      %v4355 = vadd.f32 %v4080, %v4225
      %v4356 = vadd.f32 %v4081, %v4227
      %v4357 = vadd.f32 %v4082, %v4266
      %v4358 = vadd.f32 %v4083, %v4268
      %v4359 = vadd.f32 %v4084, %v4307
      %v4360 = vadd.f32 %v4085, %v4309
      %v4361 = vadd.f32 %v4086, %v4348
      %s4362 = scalar_lea.vmem %s1, 30
      %v4363 = vld [vmem:[%s4362] sm:$0x3]
      %4364 = vrot.lane.b32.xlu0 %v254, 20
      %v4365 = vpop.permute.xlu0 %4364
      %4366 = vrot.lane.b32.xlu0 %v255, 20
      %v4367 = vpop.permute.xlu0 %4366
      %4368 = vrot.lane.b32.xlu0 %v256, 20
      %v4369 = vpop.permute.xlu0 %4368
      %4370 = vrot.lane.b32.xlu0 %v257, 20
      %v4371 = vpop.permute.xlu0 %4370
      %4372 = vrot.lane.b32.xlu0 %v258, 20
      %v4373 = vpop.permute.xlu0 %4372
      %4374 = vrot.lane.b32.xlu0 %v259, 20
      %v4375 = vpop.permute.xlu0 %4374
      %4376 = vrot.lane.b32.xlu0 %v260, 20
      %v4377 = vpop.permute.xlu0 %4376
      %4378 = vrot.lane.b32.xlu0 %v261, 20
      %v4379 = vpop.permute.xlu0 %4378
      %4380 = vrot.lane.b32.xlu0 %v262, 20
      %v4381 = vpop.permute.xlu0 %4380
      %4382 = vrot.lane.b32.xlu0 %v263, 20
      %v4383 = vpop.permute.xlu0 %4382
      %vm4384 = vcmask 162816
      %v4385 = vsel %vm4384, %v4365, %v4367
      %v4386 = vsel %vm4384, %v4367, %v4369
      %v4387 = vsel %vm4384, %v4369, %v4371
      %v4388 = vsel %vm4384, %v4371, %v4373
      %v4389 = vsel %vm4384, %v4373, %v4375
      %v4390 = vsel %vm4384, %v4375, %v4377
      %v4391 = vsel %vm4384, %v4377, %v4379
      %v4392 = vsel %vm4384, %v4379, %v4381
      %v4393 = vsel %vm4384, %v4381, %v4383
      %v4395 = vsel %vm294, %v4363, 0
      %v4398 = vsel %vm298, %v4385, 0
      %v4401 = vsel %vm298, %v4386, 0
      %v4404 = vsel %vm298, %v4387, 0
      %v4407 = vsel %vm298, %v4388, 0
      %v4410 = vsel %vm298, %v4389, 0
      %v4413 = vsel %vm298, %v4390, 0
      %v4416 = vsel %vm298, %v4391, 0
      %v4419 = vsel %vm298, %v4392, 0
      %v4422 = vsel %vm298, %v4393, 0
      %4424 = vmatprep.subr.bf16.mxu0 0
      %4425 = vmatpush1.bf16.msra.mxu0 0
      %4426 = vmatprep.subr.bf16.mxu0 0
      %4427 = vmatpush1.bf16.msra.mxu0 0
      %4428 = vmatprep.subr.bf16.mxu0 0
      %4429 = vmatpush1.bf16.msra.mxu0 0
      %4430 = vmatprep.subr.bf16.mxu0 0
      %4431 = vmatpush1.bf16.msra.mxu0 0
      %4432 = vmatprep.subr.bf16.mxu0 0
      %4433 = vmatpush1.bf16.msra.mxu0 0
      %4434 = vmatprep.subr.bf16.mxu0 0
      %4435 = vmatpush1.bf16.msra.mxu0 0
      %4436 = vmatprep.subr.bf16.mxu0 0
      %4437 = vmatpush1.bf16.msra.mxu0 0
      %4438 = vmatprep.subr.bf16.mxu0 %v4401
      %4439 = vmatpush1.bf16.msra.mxu0 %v4398
      %4440 = vmatprep.subr.bf16.mxu0 0
      %4441 = vmatpush2.bf16.msra.mxu0 0
      %4442 = vmatprep.subr.bf16.mxu0 0
      %4443 = vmatpush2.bf16.msra.mxu0 0
      %4444 = vmatprep.subr.bf16.mxu0 0
      %4445 = vmatpush2.bf16.msra.mxu0 0
      %4446 = vmatprep.subr.bf16.mxu0 0
      %4447 = vmatpush2.bf16.msra.mxu0 0
      %4448 = vmatprep.subr.bf16.mxu0 0
      %4449 = vmatpush2.bf16.msra.mxu0 0
      %4450 = vmatprep.subr.bf16.mxu0 0
      %4451 = vmatpush2.bf16.msra.mxu0 0
      %4452 = vmatprep.subr.bf16.mxu0 0
      %4453 = vmatpush2.bf16.msra.mxu0 0
      %4454 = vmatprep.subr.bf16.mxu0 0
      %4455 = vmatpush2.bf16.msra.mxu0 0
      %4456 = vmatprep.mubr.bf16.mxu0 0
      %4457 = vmatmul.mubr.bf16.gmra.mxu0 %v4395
      %v4458 = vpop.f32.mrf.mxu0
      %v4459 = vadd.f32 0.0, %v4458
      %v4460 = vpop.f32.mrf.mxu0
      %v4461 = vadd.f32 0.0, %v4460
      %v4462 = vpop.f32.mrf.mxu0
      %v4463 = vpop.f32.mrf.mxu0
      %4464 = vdwg.mxu0
      %4465 = vmatprep.subr.bf16.mxu0 0
      %4466 = vmatpush1.bf16.msra.mxu0 0
      %4467 = vmatprep.subr.bf16.mxu0 0
      %4468 = vmatpush1.bf16.msra.mxu0 0
      %4469 = vmatprep.subr.bf16.mxu0 0
      %4470 = vmatpush1.bf16.msra.mxu0 0
      %4471 = vmatprep.subr.bf16.mxu0 0
      %4472 = vmatpush1.bf16.msra.mxu0 0
      %4473 = vmatprep.subr.bf16.mxu0 0
      %4474 = vmatpush1.bf16.msra.mxu0 0
      %4475 = vmatprep.subr.bf16.mxu0 0
      %4476 = vmatpush1.bf16.msra.mxu0 0
      %4477 = vmatprep.subr.bf16.mxu0 0
      %4478 = vmatpush1.bf16.msra.mxu0 0
      %4479 = vmatprep.subr.bf16.mxu0 %v4407
      %4480 = vmatpush1.bf16.msra.mxu0 %v4404
      %4481 = vmatprep.subr.bf16.mxu0 0
      %4482 = vmatpush2.bf16.msra.mxu0 0
      %4483 = vmatprep.subr.bf16.mxu0 0
      %4484 = vmatpush2.bf16.msra.mxu0 0
      %4485 = vmatprep.subr.bf16.mxu0 0
      %4486 = vmatpush2.bf16.msra.mxu0 0
      %4487 = vmatprep.subr.bf16.mxu0 0
      %4488 = vmatpush2.bf16.msra.mxu0 0
      %4489 = vmatprep.subr.bf16.mxu0 0
      %4490 = vmatpush2.bf16.msra.mxu0 0
      %4491 = vmatprep.subr.bf16.mxu0 0
      %4492 = vmatpush2.bf16.msra.mxu0 0
      %4493 = vmatprep.subr.bf16.mxu0 0
      %4494 = vmatpush2.bf16.msra.mxu0 0
      %4495 = vmatprep.subr.bf16.mxu0 0
      %4496 = vmatpush2.bf16.msra.mxu0 0
      %4497 = vmatprep.mubr.bf16.mxu0 0
      %4498 = vmatmul.mubr.bf16.gmra.mxu0 %v4395
      %v4499 = vpop.f32.mrf.mxu0
      %v4500 = vadd.f32 0.0, %v4499
      %v4501 = vpop.f32.mrf.mxu0
      %v4502 = vadd.f32 0.0, %v4501
      %v4503 = vpop.f32.mrf.mxu0
      %v4504 = vpop.f32.mrf.mxu0
      %4505 = vdwg.mxu0
      %4506 = vmatprep.subr.bf16.mxu0 0
      %4507 = vmatpush1.bf16.msra.mxu0 0
      %4508 = vmatprep.subr.bf16.mxu0 0
      %4509 = vmatpush1.bf16.msra.mxu0 0
      %4510 = vmatprep.subr.bf16.mxu0 0
      %4511 = vmatpush1.bf16.msra.mxu0 0
      %4512 = vmatprep.subr.bf16.mxu0 0
      %4513 = vmatpush1.bf16.msra.mxu0 0
      %4514 = vmatprep.subr.bf16.mxu0 0
      %4515 = vmatpush1.bf16.msra.mxu0 0
      %4516 = vmatprep.subr.bf16.mxu0 0
      %4517 = vmatpush1.bf16.msra.mxu0 0
      %4518 = vmatprep.subr.bf16.mxu0 0
      %4519 = vmatpush1.bf16.msra.mxu0 0
      %4520 = vmatprep.subr.bf16.mxu0 %v4413
      %4521 = vmatpush1.bf16.msra.mxu0 %v4410
      %4522 = vmatprep.subr.bf16.mxu0 0
      %4523 = vmatpush2.bf16.msra.mxu0 0
      %4524 = vmatprep.subr.bf16.mxu0 0
      %4525 = vmatpush2.bf16.msra.mxu0 0
      %4526 = vmatprep.subr.bf16.mxu0 0
      %4527 = vmatpush2.bf16.msra.mxu0 0
      %4528 = vmatprep.subr.bf16.mxu0 0
      %4529 = vmatpush2.bf16.msra.mxu0 0
      %4530 = vmatprep.subr.bf16.mxu0 0
      %4531 = vmatpush2.bf16.msra.mxu0 0
      %4532 = vmatprep.subr.bf16.mxu0 0
      %4533 = vmatpush2.bf16.msra.mxu0 0
      %4534 = vmatprep.subr.bf16.mxu0 0
      %4535 = vmatpush2.bf16.msra.mxu0 0
      %4536 = vmatprep.subr.bf16.mxu0 0
      %4537 = vmatpush2.bf16.msra.mxu0 0
      %4538 = vmatprep.mubr.bf16.mxu0 0
      %4539 = vmatmul.mubr.bf16.gmra.mxu0 %v4395
      %v4540 = vpop.f32.mrf.mxu0
      %v4541 = vadd.f32 0.0, %v4540
      %v4542 = vpop.f32.mrf.mxu0
      %v4543 = vadd.f32 0.0, %v4542
      %v4544 = vpop.f32.mrf.mxu0
      %v4545 = vpop.f32.mrf.mxu0
      %4546 = vdwg.mxu0
      %4547 = vmatprep.subr.bf16.mxu0 0
      %4548 = vmatpush1.bf16.msra.mxu0 0
      %4549 = vmatprep.subr.bf16.mxu0 0
      %4550 = vmatpush1.bf16.msra.mxu0 0
      %4551 = vmatprep.subr.bf16.mxu0 0
      %4552 = vmatpush1.bf16.msra.mxu0 0
      %4553 = vmatprep.subr.bf16.mxu0 0
      %4554 = vmatpush1.bf16.msra.mxu0 0
      %4555 = vmatprep.subr.bf16.mxu0 0
      %4556 = vmatpush1.bf16.msra.mxu0 0
      %4557 = vmatprep.subr.bf16.mxu0 0
      %4558 = vmatpush1.bf16.msra.mxu0 0
      %4559 = vmatprep.subr.bf16.mxu0 0
      %4560 = vmatpush1.bf16.msra.mxu0 0
      %4561 = vmatprep.subr.bf16.mxu0 %v4419
      %4562 = vmatpush1.bf16.msra.mxu0 %v4416
      %4563 = vmatprep.subr.bf16.mxu0 0
      %4564 = vmatpush2.bf16.msra.mxu0 0
      %4565 = vmatprep.subr.bf16.mxu0 0
      %4566 = vmatpush2.bf16.msra.mxu0 0
      %4567 = vmatprep.subr.bf16.mxu0 0
      %4568 = vmatpush2.bf16.msra.mxu0 0
      %4569 = vmatprep.subr.bf16.mxu0 0
      %4570 = vmatpush2.bf16.msra.mxu0 0
      %4571 = vmatprep.subr.bf16.mxu0 0
      %4572 = vmatpush2.bf16.msra.mxu0 0
      %4573 = vmatprep.subr.bf16.mxu0 0
      %4574 = vmatpush2.bf16.msra.mxu0 0
      %4575 = vmatprep.subr.bf16.mxu0 0
      %4576 = vmatpush2.bf16.msra.mxu0 0
      %4577 = vmatprep.subr.bf16.mxu0 0
      %4578 = vmatpush2.bf16.msra.mxu0 0
      %4579 = vmatprep.mubr.bf16.mxu0 0
      %4580 = vmatmul.mubr.bf16.gmra.mxu0 %v4395
      %v4581 = vpop.f32.mrf.mxu0
      %v4582 = vadd.f32 0.0, %v4581
      %v4583 = vpop.f32.mrf.mxu0
      %v4584 = vadd.f32 0.0, %v4583
      %v4585 = vpop.f32.mrf.mxu0
      %v4586 = vpop.f32.mrf.mxu0
      %4587 = vdwg.mxu0
      %4588 = vmatprep.subr.bf16.mxu0 0
      %4589 = vmatpush1.bf16.msra.mxu0 0
      %4590 = vmatprep.subr.bf16.mxu0 0
      %4591 = vmatpush1.bf16.msra.mxu0 0
      %4592 = vmatprep.subr.bf16.mxu0 0
      %4593 = vmatpush1.bf16.msra.mxu0 0
      %4594 = vmatprep.subr.bf16.mxu0 0
      %4595 = vmatpush1.bf16.msra.mxu0 0
      %4596 = vmatprep.subr.bf16.mxu0 0
      %4597 = vmatpush1.bf16.msra.mxu0 0
      %4598 = vmatprep.subr.bf16.mxu0 0
      %4599 = vmatpush1.bf16.msra.mxu0 0
      %4600 = vmatprep.subr.bf16.mxu0 0
      %4601 = vmatpush1.bf16.msra.mxu0 0
      %4602 = vmatprep.subr.bf16.mxu0 0
      %4603 = vmatpush1.bf16.msra.mxu0 %v4422
      %4604 = vmatprep.subr.bf16.mxu0 0
      %4605 = vmatpush2.bf16.msra.mxu0 0
      %4606 = vmatprep.subr.bf16.mxu0 0
      %4607 = vmatpush2.bf16.msra.mxu0 0
      %4608 = vmatprep.subr.bf16.mxu0 0
      %4609 = vmatpush2.bf16.msra.mxu0 0
      %4610 = vmatprep.subr.bf16.mxu0 0
      %4611 = vmatpush2.bf16.msra.mxu0 0
      %4612 = vmatprep.subr.bf16.mxu0 0
      %4613 = vmatpush2.bf16.msra.mxu0 0
      %4614 = vmatprep.subr.bf16.mxu0 0
      %4615 = vmatpush2.bf16.msra.mxu0 0
      %4616 = vmatprep.subr.bf16.mxu0 0
      %4617 = vmatpush2.bf16.msra.mxu0 0
      %4618 = vmatprep.subr.bf16.mxu0 0
      %4619 = vmatpush2.bf16.msra.mxu0 0
      %4620 = vmatprep.mubr.bf16.mxu0 0
      %4621 = vmatmul.mubr.bf16.gmra.mxu0 %v4395
      %v4622 = vpop.f32.mrf.mxu0
      %v4623 = vadd.f32 0.0, %v4622
      %v4624 = vpop.f32.mrf.mxu0
      %v4625 = vpop.f32.mrf.mxu0
      %v4626 = vpop.f32.mrf.mxu0
      %4627 = vdwg.mxu0
      %v4628 = vadd.f32 %v4353, %v4459
      %v4629 = vadd.f32 %v4354, %v4461
      %v4630 = vadd.f32 %v4355, %v4500
      %v4631 = vadd.f32 %v4356, %v4502
      %v4632 = vadd.f32 %v4357, %v4541
      %v4633 = vadd.f32 %v4358, %v4543
      %v4634 = vadd.f32 %v4359, %v4582
      %v4635 = vadd.f32 %v4360, %v4584
      %v4636 = vadd.f32 %v4361, %v4623
      %v4637 = vld [vmem:[%s4] sm:$0xff]
      %v4638 = vld [vmem:[%s4 + $0x8] sm:$0x1]
      %v4641 = vlaneseq
      %v4642 = vshrl.u32 %v4641, 7
      %v4643 = vsub.s32 0, %v4642
      %v4644 = vrot.slane %v4637, %v4643
      %v4645 = vlaneseq
      %v4646 = vshrl.u32 %v4645, 7
      %v4647 = vsub.s32 1, %v4646
      %v4648 = vrot.slane %v4637, %v4647
      %v4649 = vlaneseq
      %v4650 = vshrl.u32 %v4649, 7
      %v4651 = vsub.s32 2, %v4650
      %v4652 = vrot.slane %v4637, %v4651
      %v4653 = vlaneseq
      %v4654 = vshrl.u32 %v4653, 7
      %v4655 = vsub.s32 3, %v4654
      %v4656 = vrot.slane %v4637, %v4655
      %v4657 = vlaneseq
      %v4658 = vshrl.u32 %v4657, 7
      %v4659 = vsub.s32 4, %v4658
      %v4660 = vrot.slane %v4637, %v4659
      %v4661 = vlaneseq
      %v4662 = vshrl.u32 %v4661, 7
      %v4663 = vsub.s32 5, %v4662
      %v4664 = vrot.slane %v4637, %v4663
      %v4665 = vlaneseq
      %v4666 = vshrl.u32 %v4665, 7
      %v4667 = vsub.s32 6, %v4666
      %v4668 = vrot.slane %v4637, %v4667
      %v4669 = vlaneseq
      %v4670 = vshrl.u32 %v4669, 7
      %v4671 = vsub.s32 7, %v4670
      %v4672 = vrot.slane %v4637, %v4671
      %v4673 = vlaneseq
      %v4674 = vshrl.u32 %v4673, 7
      %v4675 = vsub.s32 0, %v4674
      %v4676 = vrot.slane %v4638, %v4675
      %v4686 = vmul.f32 %v4628, %v4644
      %v4687 = vmul.f32 %v4629, %v4648
      %v4688 = vmul.f32 %v4630, %v4652
      %v4689 = vmul.f32 %v4631, %v4656
      %v4690 = vmul.f32 %v4632, %v4660
      %v4691 = vmul.f32 %v4633, %v4664
      %v4692 = vmul.f32 %v4634, %v4668
      %v4693 = vmul.f32 %v4635, %v4672
      %v4694 = vmul.f32 %v4636, %v4676
      %v4695 = vsel %vm298, %v4686, 0.0
      %v4696 = vsel %vm298, %v4687, 0.0
      %v4697 = vadd.f32 %v4695, %v4696
      %v4698 = vsel %vm298, %v4688, 0.0
      %v4699 = vadd.f32 %v4697, %v4698
      %v4700 = vsel %vm298, %v4689, 0.0
      %v4701 = vadd.f32 %v4699, %v4700
      %v4702 = vsel %vm298, %v4690, 0.0
      %v4703 = vadd.f32 %v4701, %v4702
      %v4704 = vsel %vm298, %v4691, 0.0
      %v4705 = vadd.f32 %v4703, %v4704
      %v4706 = vsel %vm298, %v4692, 0.0
      %v4707 = vadd.f32 %v4705, %v4706
      %v4708 = vsel %vm298, %v4693, 0.0
      %v4709 = vadd.f32 %v4707, %v4708
      %v4710 = vsel %vm298, %v4694, 0.0
      %v4711 = vadd.f32 %v4709, %v4710
      %4712 = vadd.xlane.f32.xlu0 %v4711
      %v4713 = vpop.xlane.xlu0 %4712
      %v4714 = vmul.f32 %v4686, %v4686
      %v4715 = vmul.f32 %v4687, %v4687
      %v4716 = vmul.f32 %v4688, %v4688
      %v4717 = vmul.f32 %v4689, %v4689
      %v4718 = vmul.f32 %v4690, %v4690
      %v4719 = vmul.f32 %v4691, %v4691
      %v4720 = vmul.f32 %v4692, %v4692
      %v4721 = vmul.f32 %v4693, %v4693
      %v4722 = vmul.f32 %v4694, %v4694
      %v4723 = vsel %vm298, %v4714, 0.0
      %v4724 = vsel %vm298, %v4715, 0.0
      %v4725 = vadd.f32 %v4723, %v4724
      %v4726 = vsel %vm298, %v4716, 0.0
      %v4727 = vadd.f32 %v4725, %v4726
      %v4728 = vsel %vm298, %v4717, 0.0
      %v4729 = vadd.f32 %v4727, %v4728
      %v4730 = vsel %vm298, %v4718, 0.0
      %v4731 = vadd.f32 %v4729, %v4730
      %v4732 = vsel %vm298, %v4719, 0.0
      %v4733 = vadd.f32 %v4731, %v4732
      %v4734 = vsel %vm298, %v4720, 0.0
      %v4735 = vadd.f32 %v4733, %v4734
      %v4736 = vsel %vm298, %v4721, 0.0
      %v4737 = vadd.f32 %v4735, %v4736
      %v4738 = vsel %vm298, %v4722, 0.0
      %v4739 = vadd.f32 %v4737, %v4738
      %4740 = vadd.xlane.f32.xlu0 %v4739
      %v4741 = vpop.xlane.xlu0 %4740
      %v4742 = vmul.f32 %v4713, 0.0009765625
      %v4743 = vmul.f32 %v4741, 0.0009765625
      %v4744 = vmul.f32 %v4742, %v4742
      %v4745 = vsub.f32 %v4743, %v4744
      %v4746 = vmax.f32 %v4745, 0.0
      %v4747 = vsub.f32 %v4628, %v4742
      %v4748 = vsub.f32 %v4629, %v4742
      %v4749 = vsub.f32 %v4630, %v4742
      %v4750 = vsub.f32 %v4631, %v4742
      %v4751 = vsub.f32 %v4632, %v4742
      %v4752 = vsub.f32 %v4633, %v4742
      %v4753 = vsub.f32 %v4634, %v4742
      %v4754 = vsub.f32 %v4635, %v4742
      %v4755 = vsub.f32 %v4636, %v4742
      %v4756 = vadd.f32 %v4746, 1e-05
      %v4757 = vrsqrt.pop %v4756
      %v4758 = vmul.f32 %v4747, %v4757
      %v4759 = vmul.f32 %v4748, %v4757
      %v4760 = vmul.f32 %v4749, %v4757
      %v4761 = vmul.f32 %v4750, %v4757
      %v4762 = vmul.f32 %v4751, %v4757
      %v4763 = vmul.f32 %v4752, %v4757
      %v4764 = vmul.f32 %v4753, %v4757
      %v4765 = vmul.f32 %v4754, %v4757
      %v4766 = vmul.f32 %v4755, %v4757
      %v4767 = vld [vmem:[%s2] sm:$0xf]
      %4769 = vset.pattern.permute.xlu0 0
      %4770 = vperm.xlu0 %4769, %v4767
      %v4771 = vpop.permute.xlu0 %4770
      %v4773 = vmul.f32 %v4758, %v4771
      %v4774 = vmul.f32 %v4759, %v4771
      %v4775 = vmul.f32 %v4760, %v4771
      %v4776 = vmul.f32 %v4761, %v4771
      %v4777 = vmul.f32 %v4762, %v4771
      %v4778 = vmul.f32 %v4763, %v4771
      %v4779 = vmul.f32 %v4764, %v4771
      %v4780 = vmul.f32 %v4765, %v4771
      %v4781 = vmul.f32 %v4766, %v4771
      %v4782 = vld [vmem:[%s3] sm:$0xf]
      %4784 = vset.pattern.permute.xlu0 0
      %4785 = vperm.xlu0 %4784, %v4782
      %v4786 = vpop.permute.xlu0 %4785
      %v4788 = vadd.f32 %v4773, %v4786
      %v4789 = vadd.f32 %v4774, %v4786
      %v4790 = vadd.f32 %v4775, %v4786
      %v4791 = vadd.f32 %v4776, %v4786
      %v4792 = vadd.f32 %v4777, %v4786
      %v4793 = vadd.f32 %v4778, %v4786
      %v4794 = vadd.f32 %v4779, %v4786
      %v4795 = vadd.f32 %v4780, %v4786
      %v4796 = vadd.f32 %v4781, %v4786
      %v4797 = vmax.f32 %v4788, 0.0
      %v4798 = vmax.f32 %v4789, 0.0
      %v4799 = vmax.f32 %v4790, 0.0
      %v4800 = vmax.f32 %v4791, 0.0
      %v4801 = vmax.f32 %v4792, 0.0
      %v4802 = vmax.f32 %v4793, 0.0
      %v4803 = vmax.f32 %v4794, 0.0
      %v4804 = vmax.f32 %v4795, 0.0
      %v4805 = vmax.f32 %v4796, 0.0
      %v4814 = vcombine.low %v4797, %v4798
      %v4815 = vcombine.low %v4799, %v4800
      %v4816 = vcombine.low %v4801, %v4802
      %v4817 = vcombine.low %v4803, %v4804
      %4822 = vst [vmem:[%s224] sm:$0xff] %v4814
      %4823 = vst [vmem:[%s224 + $0x8] sm:$0xff] %v4815
      %4824 = vst [vmem:[%s224 + $0x10] sm:$0xff] %v4816
      %4825 = vst [vmem:[%s224 + $0x18] sm:$0xff] %v4817
      %4826 = vst [vmem:[%s224 + $0x20] sm:$0xf] %v4805
      %p4827 = scmp.lt.s32.totalorder %s16, 1
      %s4828 = scalar_select %p4827, %s16, 1
      %s4829 = smul.addr %s4828, 9
      %s4830 = smul.addr %s4829, 4
      %s4831 = scalar_lea.vmem %s5, %s4830
      // Predicated region
      $region41: #{mask_generator_r.4} parent=39 // pred_check
        %p4832 = pneg %p144
      $region42: #{mask_generator_r.4} parent=39 // pred_check_branch
        %4834 = sbr.rel (%p4832) target = $region44
      $region43: #{mask_generator_r.4} parent=39 // pred_region
        _
      $region44: #{mask_generator_r.4} parent=39 // pred_fallthru
        _
    $region40: #{mask_generator_r.4} parent=5 // pred_fallthru
      _
    %p4835 = scmp.le.s32.totalorder 2, %s11
    // Predicated region
    $region45: #{mask_generator_r.4} parent=5 // pred_check
      %p4836 = pneg %p4835
    $region46: #{mask_generator_r.4} parent=5 // pred_check_branch
      %4838 = sbr.rel (%p4836) target = $region48
    $region47: #{mask_generator_r.4} parent=5 // pred_region
      %s4839 = ssub.s32 %s11, 2
      // Predicated region
      $region49: #{mask_generator_r.4} parent=47 // pred_check
        %p4840 = pneg %p150
      $region50: #{mask_generator_r.4} parent=47 // pred_check_branch
        %4842 = sbr.rel (%p4840) target = $region52
      $region51: #{mask_generator_r.4} parent=47 // pred_region
        %p4843 = scmp.lt.s32.totalorder %s17, 1
        %s4844 = scalar_select %p4843, %s17, 1
        %s4845 = smul.addr %s4844, 9
        %s4846 = smul.addr %s4845, 4
        %s4847 = scalar_lea.vmem %s5, %s4846
      $region52: #{mask_generator_r.4} parent=47 // pred_fallthru
        _
    $region48: #{mask_generator_r.4} parent=5 // pred_fallthru
      _
  $region6: #{mask_generator_r.4} parent=0 // loop_footer
    %s15 = sadd.s32 1, %s11
  $region7: #{mask_generator_r.4} parent=0 // loop_footer_branch
    %10 = sbr.rel target = $region3
  $region8: #{mask_generator_r.4} parent=0 // loop_exit
    _

// kernel: mask_generator_r.5
$region0: #{mask_generator_r.5}
  #allocation0 [shape = 'u32[]', space=smem, size = 0x4, offset = 0x4, fixed_abs, tag = 'smem constant byte address 0x4 - core index']
  #allocation1 [shape = 'u32[144,128]{1,0:T(1,128)}', space=vmem, size = 0x12000, scoped, tag = 'internal scratch']
  %s0 = inlined_call_operand.vmem [shape: bf16[2,4,1536], index: 0, kind: input, shape index: {}]
  %s1 = inlined_call_operand.vmem [shape: f32[49,4,1], index: 1, kind: input, shape index: {}]
  %s2 = inlined_call_operand.vmem [shape: f32[2,1,1280], index: 2, kind: output, shape index: {}]
  %s3 = sld [smem:[#allocation0]]
  $region41: #{mask_generator_r.5} parent=0
    _
  %s5 = ssub.s32 1, %s3
  %s6 = scalar_select 0, %s5, %s3
  loop: start=0, step=1, limit=4
  $region2: #{mask_generator_r.5} parent=0 // loop_pre_header
    _
  $region3: #{mask_generator_r.5} parent=0 // loop_header
    %s8 = sphi 0, %s12
    %p9 = scmp.ge.s32.totalorder %s8, 4
    %s18 = sphi 0, %s20
    %s21 = sphi 0, %s18
    %s22 = sphi 0, %s21
    %s38 = sphi 0, %s22
    %s42 = sphi 0, %s42
    %s44 = sphi 0, %s42
    %s45 = sphi 0, %s44
    %s59 = sphi 0, %s45
    %s65 = sphi 0, %s67
    %s68 = sphi 0, %s65
    %s69 = sphi 0, %s68
    %s85 = sphi 0, %s69
  $region4: #{mask_generator_r.5} parent=0 // loop_header_branch
    %11 = sbr.rel (%p9) target = $region8
  $region5: #{mask_generator_r.5} parent=0 // loop_body
    %s13 = ssub.s32 %s8, 1
    %s14 = ssub.s32 %s8, 2
    %s15 = sadd.s32 %s8, 1
    %s16 = ssub.s32 %s8, %s15
    %p17 = scmp.eq.s32.totalorder %s16, 0
    %s19 = sadd.s32 %s18, 1
    %s20 = scalar_select %p17, %s18, %s19
    %p23 = pneg %p17
    %p24 = scmp.eq.s32.totalorder %s8, 1
    %p25 = por %p23, %p24
    %p26 = scmp.ne.s32.totalorder %s18, %s21
    %p27 = scmp.eq.s32.totalorder %s8, 0
    %p28 = por %p26, %p27
    %p29 = scmp.ne.s32.totalorder %s18, %s21
    %p30 = scmp.eq.s32.totalorder %s13, 1
    %p31 = por %p29, %p30
    %p32 = scmp.ne.s32.totalorder %s21, %s22
    %p33 = scmp.eq.s32.totalorder %s13, 0
    %p34 = por %p32, %p33
    %p35 = scmp.ne.s32.totalorder %s21, %s22
    %p36 = scmp.eq.s32.totalorder %s14, 1
    %p37 = por %p35, %p36
    %p39 = scmp.ne.s32.totalorder %s22, %s38
    %p40 = scmp.eq.s32.totalorder %s14, 0
    %p41 = por %p39, %p40
    %s43 = sadd.s32 %s42, 1
    %p46 = scmp.eq.s32.totalorder %s8, 1
    %p47 = scmp.ne.s32.totalorder %s42, %s44
    %p48 = scmp.eq.s32.totalorder %s8, 0
    %p49 = por %p47, %p48
    %p50 = scmp.ne.s32.totalorder %s42, %s44
    %p51 = scmp.eq.s32.totalorder %s13, 1
    %p52 = por %p50, %p51
    %p53 = scmp.ne.s32.totalorder %s44, %s45
    %p54 = scmp.eq.s32.totalorder %s13, 0
    %p55 = por %p53, %p54
    %p56 = scmp.ne.s32.totalorder %s44, %s45
    %p57 = scmp.eq.s32.totalorder %s14, 1
    %p58 = por %p56, %p57
    %p60 = scmp.ne.s32.totalorder %s45, %s59
    %p61 = scmp.eq.s32.totalorder %s14, 0
    %p62 = por %p60, %p61
    %s63 = ssub.s32 %s8, %s15
    %p64 = scmp.eq.s32.totalorder %s63, 0
    %s66 = sadd.s32 %s65, 1
    %s67 = scalar_select %p64, %s65, %s66
    %p70 = pneg %p64
    %p71 = scmp.eq.s32.totalorder %s8, 1
    %p72 = por %p70, %p71
    %p73 = scmp.ne.s32.totalorder %s65, %s68
    %p74 = scmp.eq.s32.totalorder %s8, 0
    %p75 = por %p73, %p74
    %p76 = scmp.ne.s32.totalorder %s65, %s68
    %p77 = scmp.eq.s32.totalorder %s13, 1
    %p78 = por %p76, %p77
    %p79 = scmp.ne.s32.totalorder %s68, %s69
    %p80 = scmp.eq.s32.totalorder %s13, 0
    %p81 = por %p79, %p80
    %p82 = scmp.ne.s32.totalorder %s68, %s69
    %p83 = scmp.eq.s32.totalorder %s14, 1
    %p84 = por %p82, %p83
    %p86 = scmp.ne.s32.totalorder %s69, %s85
    %p87 = scmp.eq.s32.totalorder %s14, 0
    %p88 = por %p86, %p87
    %p89 = scmp.le.s32.totalorder 1, %s8
    %p90 = scmp.lt.s32.totalorder %s8, 3
    %p91 = pnand %p89, %p90
    %p92 = pneg %p91
    // Predicated region
    $region9: #{mask_generator_r.5} parent=5 // pred_check
      _
    $region10: #{mask_generator_r.5} parent=5 // pred_check_branch
      %94 = sbr.rel (%p91) target = $region12
    $region11: #{mask_generator_r.5} parent=5 // pred_region
      %s95 = ssub.s32 %s8, 1
      // Predicated region
      $region13: #{mask_generator_r.5} parent=11 // pred_check
        %p96 = pneg %p55
      $region14: #{mask_generator_r.5} parent=11 // pred_check_branch
        %98 = sbr.rel (%p96) target = $region16
      $region15: #{mask_generator_r.5} parent=11 // pred_region
        _
      $region16: #{mask_generator_r.5} parent=11 // pred_fallthru
        _
    $region12: #{mask_generator_r.5} parent=5 // pred_fallthru
      _
    %p99 = scmp.lt.s32.totalorder %s8, 2
    // Predicated region
    $region17: #{mask_generator_r.5} parent=5 // pred_check
      %p100 = pneg %p99
    $region18: #{mask_generator_r.5} parent=5 // pred_check_branch
      %102 = sbr.rel (%p100) target = $region20
    $region19: #{mask_generator_r.5} parent=5 // pred_region
      // Predicated region
      $region21: #{mask_generator_r.5} parent=19 // pred_check
        %p103 = pneg %p28
      $region22: #{mask_generator_r.5} parent=19 // pred_check_branch
        %105 = sbr.rel (%p103) target = $region24
      $region23: #{mask_generator_r.5} parent=19 // pred_region
        %p106 = scmp.lt.s32.totalorder %s8, 1
        %s107 = scalar_select %p106, %s8, 1
        %s108 = smul.addr %s107, 12
        %s109 = smul.addr %s108, 2
        %s110 = scalar_lea.vmem %s0, %s109
      $region24: #{mask_generator_r.5} parent=19 // pred_fallthru
        _
    $region20: #{mask_generator_r.5} parent=5 // pred_fallthru
      _
    %p111 = scmp.le.s32.totalorder 1, %s8
    %p112 = scmp.lt.s32.totalorder %s8, 3
    %p113 = pnand %p111, %p112
    %p114 = pneg %p113
    // Predicated region
    $region25: #{mask_generator_r.5} parent=5 // pred_check
      _
    $region26: #{mask_generator_r.5} parent=5 // pred_check_branch
      %116 = sbr.rel (%p113) target = $region28
    $region27: #{mask_generator_r.5} parent=5 // pred_region
      %s117 = ssub.s32 %s8, 1
      %p118 = scmp.lt.s32.totalorder %s13, 1
      %s119 = scalar_select %p118, %s13, 1
      %s120 = smul.addr %s119, 12
      %s121 = smul.addr %s120, 2
      %s122 = scalar_lea.vmem %s0, %s121
      %p123 = pneg %p34
      %p124 = pneg %p31
      %p125 = pneg %p55
      %p126 = pneg %p52
      %p127 = pneg %p81
      %p128 = pneg %p78
      %p129 = scmp.lt.s32.totalorder %s13, 1
      %s130 = scalar_select %p129, %s13, 1
      %s131 = smul.addr %s130, 10
      %s132 = scalar_lea.vmem %s2, %s131
      %p133 = scmp.lt.s32.totalorder %s13, 1
      %s134 = scalar_select %p133, %s13, 1
      %s135 = smul.addr %s134, 12
      %s136 = smul.addr %s135, 2
      %s137 = scalar_lea.vmem %s0, %s136
      %p138 = scmp.lt.s32.totalorder %s13, 1
      %s139 = scalar_select %p138, %s13, 1
      %s140 = smul.addr %s139, 10
      %s141 = scalar_lea.vmem %s2, %s140
      %v142 = vld [vmem:[%s137] sm:$0xff]
      %v143 = vld [vmem:[%s137 + $0x8] sm:$0xff]
      %v144 = vld [vmem:[%s137 + $0x10] sm:$0xf]
      %v145 = vunpack.c.l.bf16 %v142
      %v146 = vunpack.c.h.bf16 %v142
      %v147 = vunpack.c.l.bf16 %v143
      %v148 = vunpack.c.h.bf16 %v143
      %v149 = vunpack.c.l.bf16 %v144
      %v150 = vld [vmem:[%s1] sm:$0xf]
      %152 = vset.pattern.permute.xlu0 0
      %153 = vperm.xlu0 %152, %v150
      %v154 = vpop.permute.xlu0 %153
      %v156 = vunpack.c.l.s4 839922192
      %v157 = vunpack.c.0.s8 %v156
      %v158 = vlaneseq
      %v159 = vshrl.u32 %v158, 7
      %v160 = vsub.s32 %v157, %v159
      %v161 = vrot.slane %v154, %v160
      %v163 = vmul.f32 %v145, %v161
      %v164 = vmul.f32 %v146, %v161
      %v165 = vmul.f32 %v147, %v161
      %v166 = vmul.f32 %v148, %v161
      %v167 = vmul.f32 %v149, %v161
      %v168 = vld [vmem:[%s137] sm:$0xff]
      %v169 = vld [vmem:[%s137 + $0x8] sm:$0xff]
      %v170 = vld [vmem:[%s137 + $0x10] sm:$0x3f]
      %v171 = vunpack.c.l.bf16 %v168
      %v172 = vunpack.c.h.bf16 %v168
      %v173 = vunpack.c.l.bf16 %v169
      %v174 = vunpack.c.h.bf16 %v169
      %v175 = vunpack.c.l.bf16 %v170
      %v176 = vunpack.c.h.bf16 %v170
      %s177 = scalar_lea.vmem %s1, 4
      %v178 = vld [vmem:[%s177] sm:$0xf]
      %180 = vset.pattern.permute.xlu0 0
      %181 = vperm.xlu0 %180, %v178
      %v182 = vpop.permute.xlu0 %181
      %v184 = vunpack.c.l.s4 839922192
      %v185 = vunpack.c.0.s8 %v184
      %v186 = vlaneseq
      %v187 = vshrl.u32 %v186, 7
      %v188 = vsub.s32 %v185, %v187
      %v189 = vrot.slane %v182, %v188
      %v191 = vmul.f32 %v171, %v189
      %v192 = vmul.f32 %v172, %v189
      %v193 = vmul.f32 %v173, %v189
      %v194 = vmul.f32 %v174, %v189
      %v195 = vmul.f32 %v175, %v189
      %v196 = vmul.f32 %v176, %v189
      %203 = vrot.lane.b32.xlu0 %v191, 127
      %v204 = vpop.permute.xlu0 %203
      %205 = vrot.lane.b32.xlu0 %v192, 127
      %v206 = vpop.permute.xlu0 %205
      %207 = vrot.lane.b32.xlu0 %v193, 127
      %v208 = vpop.permute.xlu0 %207
      %209 = vrot.lane.b32.xlu0 %v194, 127
      %v210 = vpop.permute.xlu0 %209
      %211 = vrot.lane.b32.xlu0 %v195, 127
      %v212 = vpop.permute.xlu0 %211
      %213 = vrot.lane.b32.xlu0 %v196, 127
      %v214 = vpop.permute.xlu0 %213
      %v215 = vrot.slane %v204, 4
      %v216 = vrot.slane %v206, 4
      %v217 = vrot.slane %v208, 4
      %v218 = vrot.slane %v210, 4
      %v219 = vrot.slane %v212, 4
      %v220 = vrot.slane %v214, 4
      %vm221 = vcmask 1043456
      %v222 = vsel %vm221, %v215, %v216
      %vm223 = vcmask 1039360
      %v224 = vsel %vm223, %v204, %v222
      %v225 = vsel %vm221, %v216, %v217
      %v226 = vsel %vm223, %v206, %v225
      %v227 = vsel %vm221, %v217, %v218
      %v228 = vsel %vm223, %v208, %v227
      %v229 = vsel %vm221, %v218, %v219
      %v230 = vsel %vm223, %v210, %v229
      %v231 = vsel %vm221, %v219, %v220
      %v232 = vsel %vm223, %v212, %v231
      %v238 = vadd.f32 %v163, %v224
      %v239 = vadd.f32 %v164, %v226
      %v240 = vadd.f32 %v165, %v228
      %v241 = vadd.f32 %v166, %v230
      %v242 = vadd.f32 %v167, %v232
      %s243 = scalar_lea.vmem %s1, 8
      %v244 = vld [vmem:[%s243] sm:$0xf]
      %246 = vset.pattern.permute.xlu0 0
      %247 = vperm.xlu0 %246, %v244
      %v248 = vpop.permute.xlu0 %247
      %v250 = vunpack.c.l.s4 839922192
      %v251 = vunpack.c.0.s8 %v250
      %v252 = vlaneseq
      %v253 = vshrl.u32 %v252, 7
      %v254 = vsub.s32 %v251, %v253
      %v255 = vrot.slane %v248, %v254
      %v257 = vmul.f32 %v171, %v255
      %v258 = vmul.f32 %v172, %v255
      %v259 = vmul.f32 %v173, %v255
      %v260 = vmul.f32 %v174, %v255
      %v261 = vmul.f32 %v175, %v255
      %v262 = vmul.f32 %v176, %v255
      %269 = vrot.lane.b32.xlu0 %v257, 126
      %v270 = vpop.permute.xlu0 %269
      %271 = vrot.lane.b32.xlu0 %v258, 126
      %v272 = vpop.permute.xlu0 %271
      %273 = vrot.lane.b32.xlu0 %v259, 126
      %v274 = vpop.permute.xlu0 %273
      %275 = vrot.lane.b32.xlu0 %v260, 126
      %v276 = vpop.permute.xlu0 %275
      %277 = vrot.lane.b32.xlu0 %v261, 126
      %v278 = vpop.permute.xlu0 %277
      %279 = vrot.lane.b32.xlu0 %v262, 126
      %v280 = vpop.permute.xlu0 %279
      %v281 = vrot.slane %v270, 4
      %v282 = vrot.slane %v272, 4
      %v283 = vrot.slane %v274, 4
      %v284 = vrot.slane %v276, 4
      %v285 = vrot.slane %v278, 4
      %v286 = vrot.slane %v280, 4
      %v287 = vsel %vm221, %v281, %v282
      %vm288 = vcmask 1031168
      %v289 = vsel %vm288, %v270, %v287
      %v290 = vsel %vm221, %v282, %v283
      %v291 = vsel %vm288, %v272, %v290
      %v292 = vsel %vm221, %v283, %v284
      %v293 = vsel %vm288, %v274, %v292
      %v294 = vsel %vm221, %v284, %v285
      %v295 = vsel %vm288, %v276, %v294
      %v296 = vsel %vm221, %v285, %v286
      %v297 = vsel %vm288, %v278, %v296
      %v303 = vadd.f32 %v238, %v289
      %v304 = vadd.f32 %v239, %v291
      %v305 = vadd.f32 %v240, %v293
      %v306 = vadd.f32 %v241, %v295
      %v307 = vadd.f32 %v242, %v297
      %s308 = scalar_lea.vmem %s1, 12
      %v309 = vld [vmem:[%s308] sm:$0xf]
      %311 = vset.pattern.permute.xlu0 0
      %312 = vperm.xlu0 %311, %v309
      %v313 = vpop.permute.xlu0 %312
      %v315 = vunpack.c.l.s4 839922192
      %v316 = vunpack.c.0.s8 %v315
      %v317 = vlaneseq
      %v318 = vshrl.u32 %v317, 7
      %v319 = vsub.s32 %v316, %v318
      %v320 = vrot.slane %v313, %v319
      %v322 = vmul.f32 %v171, %v320
      %v323 = vmul.f32 %v172, %v320
      %v324 = vmul.f32 %v173, %v320
      %v325 = vmul.f32 %v174, %v320
      %v326 = vmul.f32 %v175, %v320
      %v327 = vmul.f32 %v176, %v320
      %334 = vrot.lane.b32.xlu0 %v322, 125
      %v335 = vpop.permute.xlu0 %334
      %336 = vrot.lane.b32.xlu0 %v323, 125
      %v337 = vpop.permute.xlu0 %336
      %338 = vrot.lane.b32.xlu0 %v324, 125
      %v339 = vpop.permute.xlu0 %338
      %340 = vrot.lane.b32.xlu0 %v325, 125
      %v341 = vpop.permute.xlu0 %340
      %342 = vrot.lane.b32.xlu0 %v326, 125
      %v343 = vpop.permute.xlu0 %342
      %344 = vrot.lane.b32.xlu0 %v327, 125
      %v345 = vpop.permute.xlu0 %344
      %v346 = vrot.slane %v335, 4
      %v347 = vrot.slane %v337, 4
      %v348 = vrot.slane %v339, 4
      %v349 = vrot.slane %v341, 4
      %v350 = vrot.slane %v343, 4
      %v351 = vrot.slane %v345, 4
      %v352 = vsel %vm221, %v346, %v347
      %vm353 = vcmask 1022976
      %v354 = vsel %vm353, %v335, %v352
      %v355 = vsel %vm221, %v347, %v348
      %v356 = vsel %vm353, %v337, %v355
      %v357 = vsel %vm221, %v348, %v349
      %v358 = vsel %vm353, %v339, %v357
      %v359 = vsel %vm221, %v349, %v350
      %v360 = vsel %vm353, %v341, %v359
      %v361 = vsel %vm221, %v350, %v351
      %v362 = vsel %vm353, %v343, %v361
      %v368 = vadd.f32 %v303, %v354
      %v369 = vadd.f32 %v304, %v356
      %v370 = vadd.f32 %v305, %v358
      %v371 = vadd.f32 %v306, %v360
      %v372 = vadd.f32 %v307, %v362
      %s373 = scalar_lea.vmem %s1, 16
      %v374 = vld [vmem:[%s373] sm:$0xf]
      %376 = vset.pattern.permute.xlu0 0
      %377 = vperm.xlu0 %376, %v374
      %v378 = vpop.permute.xlu0 %377
      %v380 = vunpack.c.l.s4 839922192
      %v381 = vunpack.c.0.s8 %v380
      %v382 = vlaneseq
      %v383 = vshrl.u32 %v382, 7
      %v384 = vsub.s32 %v381, %v383
      %v385 = vrot.slane %v378, %v384
      %v387 = vmul.f32 %v171, %v385
      %v388 = vmul.f32 %v172, %v385
      %v389 = vmul.f32 %v173, %v385
      %v390 = vmul.f32 %v174, %v385
      %v391 = vmul.f32 %v175, %v385
      %v392 = vmul.f32 %v176, %v385
      %399 = vrot.lane.b32.xlu0 %v387, 124
      %v400 = vpop.permute.xlu0 %399
      %401 = vrot.lane.b32.xlu0 %v388, 124
      %v402 = vpop.permute.xlu0 %401
      %403 = vrot.lane.b32.xlu0 %v389, 124
      %v404 = vpop.permute.xlu0 %403
      %405 = vrot.lane.b32.xlu0 %v390, 124
      %v406 = vpop.permute.xlu0 %405
      %407 = vrot.lane.b32.xlu0 %v391, 124
      %v408 = vpop.permute.xlu0 %407
      %409 = vrot.lane.b32.xlu0 %v392, 124
      %v410 = vpop.permute.xlu0 %409
      %v411 = vrot.slane %v400, 4
      %v412 = vrot.slane %v402, 4
      %v413 = vrot.slane %v404, 4
      %v414 = vrot.slane %v406, 4
      %v415 = vrot.slane %v408, 4
      %v416 = vrot.slane %v410, 4
      %v417 = vsel %vm221, %v411, %v412
      %vm418 = vcmask 1014784
      %v419 = vsel %vm418, %v400, %v417
      %v420 = vsel %vm221, %v412, %v413
      %v421 = vsel %vm418, %v402, %v420
      %v422 = vsel %vm221, %v413, %v414
      %v423 = vsel %vm418, %v404, %v422
      %v424 = vsel %vm221, %v414, %v415
      %v425 = vsel %vm418, %v406, %v424
      %v426 = vsel %vm221, %v415, %v416
      %v427 = vsel %vm418, %v408, %v426
      %v433 = vadd.f32 %v368, %v419
      %v434 = vadd.f32 %v369, %v421
      %v435 = vadd.f32 %v370, %v423
      %v436 = vadd.f32 %v371, %v425
      %v437 = vadd.f32 %v372, %v427
      %s438 = scalar_lea.vmem %s1, 20
      %v439 = vld [vmem:[%s438] sm:$0xf]
      %441 = vset.pattern.permute.xlu0 0
      %442 = vperm.xlu0 %441, %v439
      %v443 = vpop.permute.xlu0 %442
      %v445 = vunpack.c.l.s4 839922192
      %v446 = vunpack.c.0.s8 %v445
      %v447 = vlaneseq
      %v448 = vshrl.u32 %v447, 7
      %v449 = vsub.s32 %v446, %v448
      %v450 = vrot.slane %v443, %v449
      %v452 = vmul.f32 %v171, %v450
      %v453 = vmul.f32 %v172, %v450
      %v454 = vmul.f32 %v173, %v450
      %v455 = vmul.f32 %v174, %v450
      %v456 = vmul.f32 %v175, %v450
      %v457 = vmul.f32 %v176, %v450
      %464 = vrot.lane.b32.xlu0 %v452, 123
      %v465 = vpop.permute.xlu0 %464
      %466 = vrot.lane.b32.xlu0 %v453, 123
      %v467 = vpop.permute.xlu0 %466
      %468 = vrot.lane.b32.xlu0 %v454, 123
      %v469 = vpop.permute.xlu0 %468
      %470 = vrot.lane.b32.xlu0 %v455, 123
      %v471 = vpop.permute.xlu0 %470
      %472 = vrot.lane.b32.xlu0 %v456, 123
      %v473 = vpop.permute.xlu0 %472
      %474 = vrot.lane.b32.xlu0 %v457, 123
      %v475 = vpop.permute.xlu0 %474
      %v476 = vrot.slane %v465, 4
      %v477 = vrot.slane %v467, 4
      %v478 = vrot.slane %v469, 4
      %v479 = vrot.slane %v471, 4
      %v480 = vrot.slane %v473, 4
      %v481 = vrot.slane %v475, 4
      %v482 = vsel %vm221, %v476, %v477
      %vm483 = vcmask 1006592
      %v484 = vsel %vm483, %v465, %v482
      %v485 = vsel %vm221, %v477, %v478
      %v486 = vsel %vm483, %v467, %v485
      %v487 = vsel %vm221, %v478, %v479
      %v488 = vsel %vm483, %v469, %v487
      %v489 = vsel %vm221, %v479, %v480
      %v490 = vsel %vm483, %v471, %v489
      %v491 = vsel %vm221, %v480, %v481
      %v492 = vsel %vm483, %v473, %v491
      %v498 = vadd.f32 %v433, %v484
      %v499 = vadd.f32 %v434, %v486
      %v500 = vadd.f32 %v435, %v488
      %v501 = vadd.f32 %v436, %v490
      %v502 = vadd.f32 %v437, %v492
      %s503 = scalar_lea.vmem %s1, 24
      %v504 = vld [vmem:[%s503] sm:$0xf]
      %506 = vset.pattern.permute.xlu0 0
      %507 = vperm.xlu0 %506, %v504
      %v508 = vpop.permute.xlu0 %507
      %v510 = vunpack.c.l.s4 839922192
      %v511 = vunpack.c.0.s8 %v510
      %v512 = vlaneseq
      %v513 = vshrl.u32 %v512, 7
      %v514 = vsub.s32 %v511, %v513
      %v515 = vrot.slane %v508, %v514
      %v517 = vmul.f32 %v171, %v515
      %v518 = vmul.f32 %v172, %v515
      %v519 = vmul.f32 %v173, %v515
      %v520 = vmul.f32 %v174, %v515
      %v521 = vmul.f32 %v175, %v515
      %v522 = vmul.f32 %v176, %v515
      %529 = vrot.lane.b32.xlu0 %v517, 122
      %v530 = vpop.permute.xlu0 %529
      %531 = vrot.lane.b32.xlu0 %v518, 122
      %v532 = vpop.permute.xlu0 %531
      %533 = vrot.lane.b32.xlu0 %v519, 122
      %v534 = vpop.permute.xlu0 %533
      %535 = vrot.lane.b32.xlu0 %v520, 122
      %v536 = vpop.permute.xlu0 %535
      %537 = vrot.lane.b32.xlu0 %v521, 122
      %v538 = vpop.permute.xlu0 %537
      %539 = vrot.lane.b32.xlu0 %v522, 122
      %v540 = vpop.permute.xlu0 %539
      %v541 = vrot.slane %v530, 4
      %v542 = vrot.slane %v532, 4
      %v543 = vrot.slane %v534, 4
      %v544 = vrot.slane %v536, 4
      %v545 = vrot.slane %v538, 4
      %v546 = vrot.slane %v540, 4
      %v547 = vsel %vm221, %v541, %v542
      %vm548 = vcmask 998400
      %v549 = vsel %vm548, %v530, %v547
      %v550 = vsel %vm221, %v542, %v543
      %v551 = vsel %vm548, %v532, %v550
      %v552 = vsel %vm221, %v543, %v544
      %v553 = vsel %vm548, %v534, %v552
      %v554 = vsel %vm221, %v544, %v545
      %v555 = vsel %vm548, %v536, %v554
      %v556 = vsel %vm221, %v545, %v546
      %v557 = vsel %vm548, %v538, %v556
      %v563 = vadd.f32 %v498, %v549
      %v564 = vadd.f32 %v499, %v551
      %v565 = vadd.f32 %v500, %v553
      %v566 = vadd.f32 %v501, %v555
      %v567 = vadd.f32 %v502, %v557
      %s568 = scalar_lea.vmem %s1, 28
      %v569 = vld [vmem:[%s568] sm:$0xf]
      %571 = vset.pattern.permute.xlu0 0
      %572 = vperm.xlu0 %571, %v569
      %v573 = vpop.permute.xlu0 %572
      %v575 = vunpack.c.l.s4 839922192
      %v576 = vunpack.c.0.s8 %v575
      %v577 = vlaneseq
      %v578 = vshrl.u32 %v577, 7
      %v579 = vsub.s32 %v576, %v578
      %v580 = vrot.slane %v573, %v579
      %v582 = vmul.f32 %v171, %v580
      %v583 = vmul.f32 %v172, %v580
      %v584 = vmul.f32 %v173, %v580
      %v585 = vmul.f32 %v174, %v580
      %v586 = vmul.f32 %v175, %v580
      %v587 = vmul.f32 %v176, %v580
      %594 = vrot.lane.b32.xlu0 %v582, 90
      %v595 = vpop.permute.xlu0 %594
      %596 = vrot.lane.b32.xlu0 %v583, 90
      %v597 = vpop.permute.xlu0 %596
      %598 = vrot.lane.b32.xlu0 %v584, 90
      %v599 = vpop.permute.xlu0 %598
      %600 = vrot.lane.b32.xlu0 %v585, 90
      %v601 = vpop.permute.xlu0 %600
      %602 = vrot.lane.b32.xlu0 %v586, 90
      %v603 = vpop.permute.xlu0 %602
      %604 = vrot.lane.b32.xlu0 %v587, 90
      %v605 = vpop.permute.xlu0 %604
      %v606 = vrot.slane %v595, 4
      %v607 = vrot.slane %v597, 4
      %v608 = vrot.slane %v599, 4
      %v609 = vrot.slane %v601, 4
      %v610 = vrot.slane %v603, 4
      %v611 = vrot.slane %v605, 4
      %v612 = vsel %vm221, %v606, %v607
      %vm613 = vcmask 736256
      %v614 = vsel %vm613, %v595, %v612
      %v615 = vsel %vm221, %v607, %v608
      %v616 = vsel %vm613, %v597, %v615
      %v617 = vsel %vm221, %v608, %v609
      %v618 = vsel %vm613, %v599, %v617
      %v619 = vsel %vm221, %v609, %v610
      %v620 = vsel %vm613, %v601, %v619
      %v621 = vsel %vm221, %v610, %v611
      %v622 = vsel %vm613, %v603, %v621
      %v628 = vadd.f32 %v563, %v614
      %v629 = vadd.f32 %v564, %v616
      %v630 = vadd.f32 %v565, %v618
      %v631 = vadd.f32 %v566, %v620
      %v632 = vadd.f32 %v567, %v622
      %s633 = scalar_lea.vmem %s1, 32
      %v634 = vld [vmem:[%s633] sm:$0xf]
      %636 = vset.pattern.permute.xlu0 0
      %637 = vperm.xlu0 %636, %v634
      %v638 = vpop.permute.xlu0 %637
      %v640 = vunpack.c.l.s4 839922192
      %v641 = vunpack.c.0.s8 %v640
      %v642 = vlaneseq
      %v643 = vshrl.u32 %v642, 7
      %v644 = vsub.s32 %v641, %v643
      %v645 = vrot.slane %v638, %v644
      %v647 = vmul.f32 %v171, %v645
      %v648 = vmul.f32 %v172, %v645
      %v649 = vmul.f32 %v173, %v645
      %v650 = vmul.f32 %v174, %v645
      %v651 = vmul.f32 %v175, %v645
      %v652 = vmul.f32 %v176, %v645
      %659 = vrot.lane.b32.xlu0 %v647, 89
      %v660 = vpop.permute.xlu0 %659
      %661 = vrot.lane.b32.xlu0 %v648, 89
      %v662 = vpop.permute.xlu0 %661
      %663 = vrot.lane.b32.xlu0 %v649, 89
      %v664 = vpop.permute.xlu0 %663
      %665 = vrot.lane.b32.xlu0 %v650, 89
      %v666 = vpop.permute.xlu0 %665
      %667 = vrot.lane.b32.xlu0 %v651, 89
      %v668 = vpop.permute.xlu0 %667
      %669 = vrot.lane.b32.xlu0 %v652, 89
      %v670 = vpop.permute.xlu0 %669
      %v671 = vrot.slane %v660, 4
      %v672 = vrot.slane %v662, 4
      %v673 = vrot.slane %v664, 4
      %v674 = vrot.slane %v666, 4
      %v675 = vrot.slane %v668, 4
      %v676 = vrot.slane %v670, 4
      %v677 = vsel %vm221, %v671, %v672
      %vm678 = vcmask 728064
      %v679 = vsel %vm678, %v660, %v677
      %v680 = vsel %vm221, %v672, %v673
      %v681 = vsel %vm678, %v662, %v680
      %v682 = vsel %vm221, %v673, %v674
      %v683 = vsel %vm678, %v664, %v682
      %v684 = vsel %vm221, %v674, %v675
      %v685 = vsel %vm678, %v666, %v684
      %v686 = vsel %vm221, %v675, %v676
      %v687 = vsel %vm678, %v668, %v686
      %v693 = vadd.f32 %v628, %v679
      %v694 = vadd.f32 %v629, %v681
      %v695 = vadd.f32 %v630, %v683
      %v696 = vadd.f32 %v631, %v685
      %v697 = vadd.f32 %v632, %v687
      %s698 = scalar_lea.vmem %s1, 36
      %v699 = vld [vmem:[%s698] sm:$0xf]
      %701 = vset.pattern.permute.xlu0 0
      %702 = vperm.xlu0 %701, %v699
      %v703 = vpop.permute.xlu0 %702
      %v705 = vunpack.c.l.s4 839922192
      %v706 = vunpack.c.0.s8 %v705
      %v707 = vlaneseq
      %v708 = vshrl.u32 %v707, 7
      %v709 = vsub.s32 %v706, %v708
      %v710 = vrot.slane %v703, %v709
      %v712 = vmul.f32 %v171, %v710
      %v713 = vmul.f32 %v172, %v710
      %v714 = vmul.f32 %v173, %v710
      %v715 = vmul.f32 %v174, %v710
      %v716 = vmul.f32 %v175, %v710
      %v717 = vmul.f32 %v176, %v710
      %724 = vrot.lane.b32.xlu0 %v712, 88
      %v725 = vpop.permute.xlu0 %724
      %726 = vrot.lane.b32.xlu0 %v713, 88
      %v727 = vpop.permute.xlu0 %726
      %728 = vrot.lane.b32.xlu0 %v714, 88
      %v729 = vpop.permute.xlu0 %728
      %730 = vrot.lane.b32.xlu0 %v715, 88
      %v731 = vpop.permute.xlu0 %730
      %732 = vrot.lane.b32.xlu0 %v716, 88
      %v733 = vpop.permute.xlu0 %732
      %734 = vrot.lane.b32.xlu0 %v717, 88
      %v735 = vpop.permute.xlu0 %734
      %v736 = vrot.slane %v725, 4
      %v737 = vrot.slane %v727, 4
      %v738 = vrot.slane %v729, 4
      %v739 = vrot.slane %v731, 4
      %v740 = vrot.slane %v733, 4
      %v741 = vrot.slane %v735, 4
      %v742 = vsel %vm221, %v736, %v737
      %vm743 = vcmask 719872
      %v744 = vsel %vm743, %v725, %v742
      %v745 = vsel %vm221, %v737, %v738
      %v746 = vsel %vm743, %v727, %v745
      %v747 = vsel %vm221, %v738, %v739
      %v748 = vsel %vm743, %v729, %v747
      %v749 = vsel %vm221, %v739, %v740
      %v750 = vsel %vm743, %v731, %v749
      %v751 = vsel %vm221, %v740, %v741
      %v752 = vsel %vm743, %v733, %v751
      %v758 = vadd.f32 %v693, %v744
      %v759 = vadd.f32 %v694, %v746
      %v760 = vadd.f32 %v695, %v748
      %v761 = vadd.f32 %v696, %v750
      %v762 = vadd.f32 %v697, %v752
      %s763 = scalar_lea.vmem %s1, 40
      %v764 = vld [vmem:[%s763] sm:$0xf]
      %766 = vset.pattern.permute.xlu0 0
      %767 = vperm.xlu0 %766, %v764
      %v768 = vpop.permute.xlu0 %767
      %v770 = vunpack.c.l.s4 839922192
      %v771 = vunpack.c.0.s8 %v770
      %v772 = vlaneseq
      %v773 = vshrl.u32 %v772, 7
      %v774 = vsub.s32 %v771, %v773
      %v775 = vrot.slane %v768, %v774
      %v777 = vmul.f32 %v171, %v775
      %v778 = vmul.f32 %v172, %v775
      %v779 = vmul.f32 %v173, %v775
      %v780 = vmul.f32 %v174, %v775
      %v781 = vmul.f32 %v175, %v775
      %v782 = vmul.f32 %v176, %v775
      %789 = vrot.lane.b32.xlu0 %v777, 87
      %v790 = vpop.permute.xlu0 %789
      %791 = vrot.lane.b32.xlu0 %v778, 87
      %v792 = vpop.permute.xlu0 %791
      %793 = vrot.lane.b32.xlu0 %v779, 87
      %v794 = vpop.permute.xlu0 %793
      %795 = vrot.lane.b32.xlu0 %v780, 87
      %v796 = vpop.permute.xlu0 %795
      %797 = vrot.lane.b32.xlu0 %v781, 87
      %v798 = vpop.permute.xlu0 %797
      %799 = vrot.lane.b32.xlu0 %v782, 87
      %v800 = vpop.permute.xlu0 %799
      %v801 = vrot.slane %v790, 4
      %v802 = vrot.slane %v792, 4
      %v803 = vrot.slane %v794, 4
      %v804 = vrot.slane %v796, 4
      %v805 = vrot.slane %v798, 4
      %v806 = vrot.slane %v800, 4
      %v807 = vsel %vm221, %v801, %v802
      %vm808 = vcmask 711680
      %v809 = vsel %vm808, %v790, %v807
      %v810 = vsel %vm221, %v802, %v803
      %v811 = vsel %vm808, %v792, %v810
      %v812 = vsel %vm221, %v803, %v804
      %v813 = vsel %vm808, %v794, %v812
      %v814 = vsel %vm221, %v804, %v805
      %v815 = vsel %vm808, %v796, %v814
      %v816 = vsel %vm221, %v805, %v806
      %v817 = vsel %vm808, %v798, %v816
      %v823 = vadd.f32 %v758, %v809
      %v824 = vadd.f32 %v759, %v811
      %v825 = vadd.f32 %v760, %v813
      %v826 = vadd.f32 %v761, %v815
      %v827 = vadd.f32 %v762, %v817
      %s828 = scalar_lea.vmem %s1, 44
      %v829 = vld [vmem:[%s828] sm:$0xf]
      %831 = vset.pattern.permute.xlu0 0
      %832 = vperm.xlu0 %831, %v829
      %v833 = vpop.permute.xlu0 %832
      %v835 = vunpack.c.l.s4 839922192
      %v836 = vunpack.c.0.s8 %v835
      %v837 = vlaneseq
      %v838 = vshrl.u32 %v837, 7
      %v839 = vsub.s32 %v836, %v838
      %v840 = vrot.slane %v833, %v839
      %v842 = vmul.f32 %v171, %v840
      %v843 = vmul.f32 %v172, %v840
      %v844 = vmul.f32 %v173, %v840
      %v845 = vmul.f32 %v174, %v840
      %v846 = vmul.f32 %v175, %v840
      %v847 = vmul.f32 %v176, %v840
      %854 = vrot.lane.b32.xlu0 %v842, 86
      %v855 = vpop.permute.xlu0 %854
      %856 = vrot.lane.b32.xlu0 %v843, 86
      %v857 = vpop.permute.xlu0 %856
      %858 = vrot.lane.b32.xlu0 %v844, 86
      %v859 = vpop.permute.xlu0 %858
      %860 = vrot.lane.b32.xlu0 %v845, 86
      %v861 = vpop.permute.xlu0 %860
      %862 = vrot.lane.b32.xlu0 %v846, 86
      %v863 = vpop.permute.xlu0 %862
      %864 = vrot.lane.b32.xlu0 %v847, 86
      %v865 = vpop.permute.xlu0 %864
      %v866 = vrot.slane %v855, 4
      %v867 = vrot.slane %v857, 4
      %v868 = vrot.slane %v859, 4
      %v869 = vrot.slane %v861, 4
      %v870 = vrot.slane %v863, 4
      %v871 = vrot.slane %v865, 4
      %v872 = vsel %vm221, %v866, %v867
      %vm873 = vcmask 703488
      %v874 = vsel %vm873, %v855, %v872
      %v875 = vsel %vm221, %v867, %v868
      %v876 = vsel %vm873, %v857, %v875
      %v877 = vsel %vm221, %v868, %v869
      %v878 = vsel %vm873, %v859, %v877
      %v879 = vsel %vm221, %v869, %v870
      %v880 = vsel %vm873, %v861, %v879
      %v881 = vsel %vm221, %v870, %v871
      %v882 = vsel %vm873, %v863, %v881
      %v888 = vadd.f32 %v823, %v874
      %v889 = vadd.f32 %v824, %v876
      %v890 = vadd.f32 %v825, %v878
      %v891 = vadd.f32 %v826, %v880
      %v892 = vadd.f32 %v827, %v882
      %s893 = scalar_lea.vmem %s1, 48
      %v894 = vld [vmem:[%s893] sm:$0xf]
      %896 = vset.pattern.permute.xlu0 0
      %897 = vperm.xlu0 %896, %v894
      %v898 = vpop.permute.xlu0 %897
      %v900 = vunpack.c.l.s4 839922192
      %v901 = vunpack.c.0.s8 %v900
      %v902 = vlaneseq
      %v903 = vshrl.u32 %v902, 7
      %v904 = vsub.s32 %v901, %v903
      %v905 = vrot.slane %v898, %v904
      %v907 = vmul.f32 %v171, %v905
      %v908 = vmul.f32 %v172, %v905
      %v909 = vmul.f32 %v173, %v905
      %v910 = vmul.f32 %v174, %v905
      %v911 = vmul.f32 %v175, %v905
      %v912 = vmul.f32 %v176, %v905
      %919 = vrot.lane.b32.xlu0 %v907, 85
      %v920 = vpop.permute.xlu0 %919
      %921 = vrot.lane.b32.xlu0 %v908, 85
      %v922 = vpop.permute.xlu0 %921
      %923 = vrot.lane.b32.xlu0 %v909, 85
      %v924 = vpop.permute.xlu0 %923
      %925 = vrot.lane.b32.xlu0 %v910, 85
      %v926 = vpop.permute.xlu0 %925
      %927 = vrot.lane.b32.xlu0 %v911, 85
      %v928 = vpop.permute.xlu0 %927
      %929 = vrot.lane.b32.xlu0 %v912, 85
      %v930 = vpop.permute.xlu0 %929
      %v931 = vrot.slane %v920, 4
      %v932 = vrot.slane %v922, 4
      %v933 = vrot.slane %v924, 4
      %v934 = vrot.slane %v926, 4
      %v935 = vrot.slane %v928, 4
      %v936 = vrot.slane %v930, 4
      %v937 = vsel %vm221, %v931, %v932
      %vm938 = vcmask 695296
      %v939 = vsel %vm938, %v920, %v937
      %v940 = vsel %vm221, %v932, %v933
      %v941 = vsel %vm938, %v922, %v940
      %v942 = vsel %vm221, %v933, %v934
      %v943 = vsel %vm938, %v924, %v942
      %v944 = vsel %vm221, %v934, %v935
      %v945 = vsel %vm938, %v926, %v944
      %v946 = vsel %vm221, %v935, %v936
      %v947 = vsel %vm938, %v928, %v946
      %v953 = vadd.f32 %v888, %v939
      %v954 = vadd.f32 %v889, %v941
      %v955 = vadd.f32 %v890, %v943
      %v956 = vadd.f32 %v891, %v945
      %v957 = vadd.f32 %v892, %v947
      %s958 = scalar_lea.vmem %s1, 52
      %v959 = vld [vmem:[%s958] sm:$0xf]
      %961 = vset.pattern.permute.xlu0 0
      %962 = vperm.xlu0 %961, %v959
      %v963 = vpop.permute.xlu0 %962
      %v965 = vunpack.c.l.s4 839922192
      %v966 = vunpack.c.0.s8 %v965
      %v967 = vlaneseq
      %v968 = vshrl.u32 %v967, 7
      %v969 = vsub.s32 %v966, %v968
      %v970 = vrot.slane %v963, %v969
      %v972 = vmul.f32 %v171, %v970
      %v973 = vmul.f32 %v172, %v970
      %v974 = vmul.f32 %v173, %v970
      %v975 = vmul.f32 %v174, %v970
      %v976 = vmul.f32 %v175, %v970
      %v977 = vmul.f32 %v176, %v970
      %984 = vrot.lane.b32.xlu0 %v972, 84
      %v985 = vpop.permute.xlu0 %984
      %986 = vrot.lane.b32.xlu0 %v973, 84
      %v987 = vpop.permute.xlu0 %986
      %988 = vrot.lane.b32.xlu0 %v974, 84
      %v989 = vpop.permute.xlu0 %988
      %990 = vrot.lane.b32.xlu0 %v975, 84
      %v991 = vpop.permute.xlu0 %990
      %992 = vrot.lane.b32.xlu0 %v976, 84
      %v993 = vpop.permute.xlu0 %992
      %994 = vrot.lane.b32.xlu0 %v977, 84
      %v995 = vpop.permute.xlu0 %994
      %v996 = vrot.slane %v985, 4
      %v997 = vrot.slane %v987, 4
      %v998 = vrot.slane %v989, 4
      %v999 = vrot.slane %v991, 4
      %v1000 = vrot.slane %v993, 4
      %v1001 = vrot.slane %v995, 4
      %v1002 = vsel %vm221, %v996, %v997
      %vm1003 = vcmask 687104
      %v1004 = vsel %vm1003, %v985, %v1002
      %v1005 = vsel %vm221, %v997, %v998
      %v1006 = vsel %vm1003, %v987, %v1005
      %v1007 = vsel %vm221, %v998, %v999
      %v1008 = vsel %vm1003, %v989, %v1007
      %v1009 = vsel %vm221, %v999, %v1000
      %v1010 = vsel %vm1003, %v991, %v1009
      %v1011 = vsel %vm221, %v1000, %v1001
      %v1012 = vsel %vm1003, %v993, %v1011
      %v1018 = vadd.f32 %v953, %v1004
      %v1019 = vadd.f32 %v954, %v1006
      %v1020 = vadd.f32 %v955, %v1008
      %v1021 = vadd.f32 %v956, %v1010
      %v1022 = vadd.f32 %v957, %v1012
      %s1023 = scalar_lea.vmem %s1, 56
      %v1024 = vld [vmem:[%s1023] sm:$0xf]
      %1026 = vset.pattern.permute.xlu0 0
      %1027 = vperm.xlu0 %1026, %v1024
      %v1028 = vpop.permute.xlu0 %1027
      %v1030 = vunpack.c.l.s4 839922192
      %v1031 = vunpack.c.0.s8 %v1030
      %v1032 = vlaneseq
      %v1033 = vshrl.u32 %v1032, 7
      %v1034 = vsub.s32 %v1031, %v1033
      %v1035 = vrot.slane %v1028, %v1034
      %v1037 = vmul.f32 %v171, %v1035
      %v1038 = vmul.f32 %v172, %v1035
      %v1039 = vmul.f32 %v173, %v1035
      %v1040 = vmul.f32 %v174, %v1035
      %v1041 = vmul.f32 %v175, %v1035
      %v1042 = vmul.f32 %v176, %v1035
      %1049 = vrot.lane.b32.xlu0 %v1037, 52
      %v1050 = vpop.permute.xlu0 %1049
      %1051 = vrot.lane.b32.xlu0 %v1038, 52
      %v1052 = vpop.permute.xlu0 %1051
      %1053 = vrot.lane.b32.xlu0 %v1039, 52
      %v1054 = vpop.permute.xlu0 %1053
      %1055 = vrot.lane.b32.xlu0 %v1040, 52
      %v1056 = vpop.permute.xlu0 %1055
      %1057 = vrot.lane.b32.xlu0 %v1041, 52
      %v1058 = vpop.permute.xlu0 %1057
      %1059 = vrot.lane.b32.xlu0 %v1042, 52
      %v1060 = vpop.permute.xlu0 %1059
      %v1061 = vrot.slane %v1050, 4
      %v1062 = vrot.slane %v1052, 4
      %v1063 = vrot.slane %v1054, 4
      %v1064 = vrot.slane %v1056, 4
      %v1065 = vrot.slane %v1058, 4
      %v1066 = vrot.slane %v1060, 4
      %v1067 = vsel %vm221, %v1061, %v1062
      %vm1068 = vcmask 424960
      %v1069 = vsel %vm1068, %v1050, %v1067
      %v1070 = vsel %vm221, %v1062, %v1063
      %v1071 = vsel %vm1068, %v1052, %v1070
      %v1072 = vsel %vm221, %v1063, %v1064
      %v1073 = vsel %vm1068, %v1054, %v1072
      %v1074 = vsel %vm221, %v1064, %v1065
      %v1075 = vsel %vm1068, %v1056, %v1074
      %v1076 = vsel %vm221, %v1065, %v1066
      %v1077 = vsel %vm1068, %v1058, %v1076
      %v1083 = vadd.f32 %v1018, %v1069
      %v1084 = vadd.f32 %v1019, %v1071
      %v1085 = vadd.f32 %v1020, %v1073
      %v1086 = vadd.f32 %v1021, %v1075
      %v1087 = vadd.f32 %v1022, %v1077
      %s1088 = scalar_lea.vmem %s1, 60
      %v1089 = vld [vmem:[%s1088] sm:$0xf]
      %1091 = vset.pattern.permute.xlu0 0
      %1092 = vperm.xlu0 %1091, %v1089
      %v1093 = vpop.permute.xlu0 %1092
      %v1095 = vunpack.c.l.s4 839922192
      %v1096 = vunpack.c.0.s8 %v1095
      %v1097 = vlaneseq
      %v1098 = vshrl.u32 %v1097, 7
      %v1099 = vsub.s32 %v1096, %v1098
      %v1100 = vrot.slane %v1093, %v1099
      %v1102 = vmul.f32 %v171, %v1100
      %v1103 = vmul.f32 %v172, %v1100
      %v1104 = vmul.f32 %v173, %v1100
      %v1105 = vmul.f32 %v174, %v1100
      %v1106 = vmul.f32 %v175, %v1100
      %v1107 = vmul.f32 %v176, %v1100
      %1114 = vrot.lane.b32.xlu0 %v1102, 51
      %v1115 = vpop.permute.xlu0 %1114
      %1116 = vrot.lane.b32.xlu0 %v1103, 51
      %v1117 = vpop.permute.xlu0 %1116
      %1118 = vrot.lane.b32.xlu0 %v1104, 51
      %v1119 = vpop.permute.xlu0 %1118
      %1120 = vrot.lane.b32.xlu0 %v1105, 51
      %v1121 = vpop.permute.xlu0 %1120
      %1122 = vrot.lane.b32.xlu0 %v1106, 51
      %v1123 = vpop.permute.xlu0 %1122
      %1124 = vrot.lane.b32.xlu0 %v1107, 51
      %v1125 = vpop.permute.xlu0 %1124
      %v1126 = vrot.slane %v1115, 4
      %v1127 = vrot.slane %v1117, 4
      %v1128 = vrot.slane %v1119, 4
      %v1129 = vrot.slane %v1121, 4
      %v1130 = vrot.slane %v1123, 4
      %v1131 = vrot.slane %v1125, 4
      %v1132 = vsel %vm221, %v1126, %v1127
      %vm1133 = vcmask 416768
      %v1134 = vsel %vm1133, %v1115, %v1132
      %v1135 = vsel %vm221, %v1127, %v1128
      %v1136 = vsel %vm1133, %v1117, %v1135
      %v1137 = vsel %vm221, %v1128, %v1129
      %v1138 = vsel %vm1133, %v1119, %v1137
      %v1139 = vsel %vm221, %v1129, %v1130
      %v1140 = vsel %vm1133, %v1121, %v1139
      %v1141 = vsel %vm221, %v1130, %v1131
      %v1142 = vsel %vm1133, %v1123, %v1141
      %v1148 = vadd.f32 %v1083, %v1134
      %v1149 = vadd.f32 %v1084, %v1136
      %v1150 = vadd.f32 %v1085, %v1138
      %v1151 = vadd.f32 %v1086, %v1140
      %v1152 = vadd.f32 %v1087, %v1142
      %s1153 = scalar_lea.vmem %s1, 64
      %v1154 = vld [vmem:[%s1153] sm:$0xf]
      %1156 = vset.pattern.permute.xlu0 0
      %1157 = vperm.xlu0 %1156, %v1154
      %v1158 = vpop.permute.xlu0 %1157
      %v1160 = vunpack.c.l.s4 839922192
      %v1161 = vunpack.c.0.s8 %v1160
      %v1162 = vlaneseq
      %v1163 = vshrl.u32 %v1162, 7
      %v1164 = vsub.s32 %v1161, %v1163
      %v1165 = vrot.slane %v1158, %v1164
      %v1167 = vmul.f32 %v171, %v1165
      %v1168 = vmul.f32 %v172, %v1165
      %v1169 = vmul.f32 %v173, %v1165
      %v1170 = vmul.f32 %v174, %v1165
      %v1171 = vmul.f32 %v175, %v1165
      %v1172 = vmul.f32 %v176, %v1165
      %1179 = vrot.lane.b32.xlu0 %v1167, 50
      %v1180 = vpop.permute.xlu0 %1179
      %1181 = vrot.lane.b32.xlu0 %v1168, 50
      %v1182 = vpop.permute.xlu0 %1181
      %1183 = vrot.lane.b32.xlu0 %v1169, 50
      %v1184 = vpop.permute.xlu0 %1183
      %1185 = vrot.lane.b32.xlu0 %v1170, 50
      %v1186 = vpop.permute.xlu0 %1185
      %1187 = vrot.lane.b32.xlu0 %v1171, 50
      %v1188 = vpop.permute.xlu0 %1187
      %1189 = vrot.lane.b32.xlu0 %v1172, 50
      %v1190 = vpop.permute.xlu0 %1189
      %v1191 = vrot.slane %v1180, 4
      %v1192 = vrot.slane %v1182, 4
      %v1193 = vrot.slane %v1184, 4
      %v1194 = vrot.slane %v1186, 4
      %v1195 = vrot.slane %v1188, 4
      %v1196 = vrot.slane %v1190, 4
      %v1197 = vsel %vm221, %v1191, %v1192
      %vm1198 = vcmask 408576
      %v1199 = vsel %vm1198, %v1180, %v1197
      %v1200 = vsel %vm221, %v1192, %v1193
      %v1201 = vsel %vm1198, %v1182, %v1200
      %v1202 = vsel %vm221, %v1193, %v1194
      %v1203 = vsel %vm1198, %v1184, %v1202
      %v1204 = vsel %vm221, %v1194, %v1195
      %v1205 = vsel %vm1198, %v1186, %v1204
      %v1206 = vsel %vm221, %v1195, %v1196
      %v1207 = vsel %vm1198, %v1188, %v1206
      %v1213 = vadd.f32 %v1148, %v1199
      %v1214 = vadd.f32 %v1149, %v1201
      %v1215 = vadd.f32 %v1150, %v1203
      %v1216 = vadd.f32 %v1151, %v1205
      %v1217 = vadd.f32 %v1152, %v1207
      %s1218 = scalar_lea.vmem %s1, 68
      %v1219 = vld [vmem:[%s1218] sm:$0xf]
      %1221 = vset.pattern.permute.xlu0 0
      %1222 = vperm.xlu0 %1221, %v1219
      %v1223 = vpop.permute.xlu0 %1222
      %v1225 = vunpack.c.l.s4 839922192
      %v1226 = vunpack.c.0.s8 %v1225
      %v1227 = vlaneseq
      %v1228 = vshrl.u32 %v1227, 7
      %v1229 = vsub.s32 %v1226, %v1228
      %v1230 = vrot.slane %v1223, %v1229
      %v1232 = vmul.f32 %v171, %v1230
      %v1233 = vmul.f32 %v172, %v1230
      %v1234 = vmul.f32 %v173, %v1230
      %v1235 = vmul.f32 %v174, %v1230
      %v1236 = vmul.f32 %v175, %v1230
      %v1237 = vmul.f32 %v176, %v1230
      %1244 = vrot.lane.b32.xlu0 %v1232, 49
      %v1245 = vpop.permute.xlu0 %1244
      %1246 = vrot.lane.b32.xlu0 %v1233, 49
      %v1247 = vpop.permute.xlu0 %1246
      %1248 = vrot.lane.b32.xlu0 %v1234, 49
      %v1249 = vpop.permute.xlu0 %1248
      %1250 = vrot.lane.b32.xlu0 %v1235, 49
      %v1251 = vpop.permute.xlu0 %1250
      %1252 = vrot.lane.b32.xlu0 %v1236, 49
      %v1253 = vpop.permute.xlu0 %1252
      %1254 = vrot.lane.b32.xlu0 %v1237, 49
      %v1255 = vpop.permute.xlu0 %1254
      %v1256 = vrot.slane %v1245, 4
      %v1257 = vrot.slane %v1247, 4
      %v1258 = vrot.slane %v1249, 4
      %v1259 = vrot.slane %v1251, 4
      %v1260 = vrot.slane %v1253, 4
      %v1261 = vrot.slane %v1255, 4
      %v1262 = vsel %vm221, %v1256, %v1257
      %vm1263 = vcmask 400384
      %v1264 = vsel %vm1263, %v1245, %v1262
      %v1265 = vsel %vm221, %v1257, %v1258
      %v1266 = vsel %vm1263, %v1247, %v1265
      %v1267 = vsel %vm221, %v1258, %v1259
      %v1268 = vsel %vm1263, %v1249, %v1267
      %v1269 = vsel %vm221, %v1259, %v1260
      %v1270 = vsel %vm1263, %v1251, %v1269
      %v1271 = vsel %vm221, %v1260, %v1261
      %v1272 = vsel %vm1263, %v1253, %v1271
      %v1278 = vadd.f32 %v1213, %v1264
      %v1279 = vadd.f32 %v1214, %v1266
      %v1280 = vadd.f32 %v1215, %v1268
      %v1281 = vadd.f32 %v1216, %v1270
      %v1282 = vadd.f32 %v1217, %v1272
      %s1283 = scalar_lea.vmem %s1, 72
      %v1284 = vld [vmem:[%s1283] sm:$0xf]
      %1286 = vset.pattern.permute.xlu0 0
      %1287 = vperm.xlu0 %1286, %v1284
      %v1288 = vpop.permute.xlu0 %1287
      %v1290 = vunpack.c.l.s4 839922192
      %v1291 = vunpack.c.0.s8 %v1290
      %v1292 = vlaneseq
      %v1293 = vshrl.u32 %v1292, 7
      %v1294 = vsub.s32 %v1291, %v1293
      %v1295 = vrot.slane %v1288, %v1294
      %v1297 = vmul.f32 %v171, %v1295
      %v1298 = vmul.f32 %v172, %v1295
      %v1299 = vmul.f32 %v173, %v1295
      %v1300 = vmul.f32 %v174, %v1295
      %v1301 = vmul.f32 %v175, %v1295
      %v1302 = vmul.f32 %v176, %v1295
      %1309 = vrot.lane.b32.xlu0 %v1297, 48
      %v1310 = vpop.permute.xlu0 %1309
      %1311 = vrot.lane.b32.xlu0 %v1298, 48
      %v1312 = vpop.permute.xlu0 %1311
      %1313 = vrot.lane.b32.xlu0 %v1299, 48
      %v1314 = vpop.permute.xlu0 %1313
      %1315 = vrot.lane.b32.xlu0 %v1300, 48
      %v1316 = vpop.permute.xlu0 %1315
      %1317 = vrot.lane.b32.xlu0 %v1301, 48
      %v1318 = vpop.permute.xlu0 %1317
      %1319 = vrot.lane.b32.xlu0 %v1302, 48
      %v1320 = vpop.permute.xlu0 %1319
      %v1321 = vrot.slane %v1310, 4
      %v1322 = vrot.slane %v1312, 4
      %v1323 = vrot.slane %v1314, 4
      %v1324 = vrot.slane %v1316, 4
      %v1325 = vrot.slane %v1318, 4
      %v1326 = vrot.slane %v1320, 4
      %v1327 = vsel %vm221, %v1321, %v1322
      %vm1328 = vcmask 392192
      %v1329 = vsel %vm1328, %v1310, %v1327
      %v1330 = vsel %vm221, %v1322, %v1323
      %v1331 = vsel %vm1328, %v1312, %v1330
      %v1332 = vsel %vm221, %v1323, %v1324
      %v1333 = vsel %vm1328, %v1314, %v1332
      %v1334 = vsel %vm221, %v1324, %v1325
      %v1335 = vsel %vm1328, %v1316, %v1334
      %v1336 = vsel %vm221, %v1325, %v1326
      %v1337 = vsel %vm1328, %v1318, %v1336
      %v1343 = vadd.f32 %v1278, %v1329
      %v1344 = vadd.f32 %v1279, %v1331
      %v1345 = vadd.f32 %v1280, %v1333
      %v1346 = vadd.f32 %v1281, %v1335
      %v1347 = vadd.f32 %v1282, %v1337
      %s1348 = scalar_lea.vmem %s1, 76
      %v1349 = vld [vmem:[%s1348] sm:$0xf]
      %1351 = vset.pattern.permute.xlu0 0
      %1352 = vperm.xlu0 %1351, %v1349
      %v1353 = vpop.permute.xlu0 %1352
      %v1355 = vunpack.c.l.s4 839922192
      %v1356 = vunpack.c.0.s8 %v1355
      %v1357 = vlaneseq
      %v1358 = vshrl.u32 %v1357, 7
      %v1359 = vsub.s32 %v1356, %v1358
      %v1360 = vrot.slane %v1353, %v1359
      %v1362 = vmul.f32 %v171, %v1360
      %v1363 = vmul.f32 %v172, %v1360
      %v1364 = vmul.f32 %v173, %v1360
      %v1365 = vmul.f32 %v174, %v1360
      %v1366 = vmul.f32 %v175, %v1360
      %v1367 = vmul.f32 %v176, %v1360
      %1374 = vrot.lane.b32.xlu0 %v1362, 47
      %v1375 = vpop.permute.xlu0 %1374
      %1376 = vrot.lane.b32.xlu0 %v1363, 47
      %v1377 = vpop.permute.xlu0 %1376
      %1378 = vrot.lane.b32.xlu0 %v1364, 47
      %v1379 = vpop.permute.xlu0 %1378
      %1380 = vrot.lane.b32.xlu0 %v1365, 47
      %v1381 = vpop.permute.xlu0 %1380
      %1382 = vrot.lane.b32.xlu0 %v1366, 47
      %v1383 = vpop.permute.xlu0 %1382
      %1384 = vrot.lane.b32.xlu0 %v1367, 47
      %v1385 = vpop.permute.xlu0 %1384
      %v1386 = vrot.slane %v1375, 4
      %v1387 = vrot.slane %v1377, 4
      %v1388 = vrot.slane %v1379, 4
      %v1389 = vrot.slane %v1381, 4
      %v1390 = vrot.slane %v1383, 4
      %v1391 = vrot.slane %v1385, 4
      %v1392 = vsel %vm221, %v1386, %v1387
      %vm1393 = vcmask 384000
      %v1394 = vsel %vm1393, %v1375, %v1392
      %v1395 = vsel %vm221, %v1387, %v1388
      %v1396 = vsel %vm1393, %v1377, %v1395
      %v1397 = vsel %vm221, %v1388, %v1389
      %v1398 = vsel %vm1393, %v1379, %v1397
      %v1399 = vsel %vm221, %v1389, %v1390
      %v1400 = vsel %vm1393, %v1381, %v1399
      %v1401 = vsel %vm221, %v1390, %v1391
      %v1402 = vsel %vm1393, %v1383, %v1401
      %v1408 = vadd.f32 %v1343, %v1394
      %v1409 = vadd.f32 %v1344, %v1396
      %v1410 = vadd.f32 %v1345, %v1398
      %v1411 = vadd.f32 %v1346, %v1400
      %v1412 = vadd.f32 %v1347, %v1402
      %s1413 = scalar_lea.vmem %s1, 80
      %v1414 = vld [vmem:[%s1413] sm:$0xf]
      %1416 = vset.pattern.permute.xlu0 0
      %1417 = vperm.xlu0 %1416, %v1414
      %v1418 = vpop.permute.xlu0 %1417
      %v1420 = vunpack.c.l.s4 839922192
      %v1421 = vunpack.c.0.s8 %v1420
      %v1422 = vlaneseq
      %v1423 = vshrl.u32 %v1422, 7
      %v1424 = vsub.s32 %v1421, %v1423
      %v1425 = vrot.slane %v1418, %v1424
      %v1427 = vmul.f32 %v171, %v1425
      %v1428 = vmul.f32 %v172, %v1425
      %v1429 = vmul.f32 %v173, %v1425
      %v1430 = vmul.f32 %v174, %v1425
      %v1431 = vmul.f32 %v175, %v1425
      %v1432 = vmul.f32 %v176, %v1425
      %1439 = vrot.lane.b32.xlu0 %v1427, 46
      %v1440 = vpop.permute.xlu0 %1439
      %1441 = vrot.lane.b32.xlu0 %v1428, 46
      %v1442 = vpop.permute.xlu0 %1441
      %1443 = vrot.lane.b32.xlu0 %v1429, 46
      %v1444 = vpop.permute.xlu0 %1443
      %1445 = vrot.lane.b32.xlu0 %v1430, 46
      %v1446 = vpop.permute.xlu0 %1445
      %1447 = vrot.lane.b32.xlu0 %v1431, 46
      %v1448 = vpop.permute.xlu0 %1447
      %1449 = vrot.lane.b32.xlu0 %v1432, 46
      %v1450 = vpop.permute.xlu0 %1449
      %v1451 = vrot.slane %v1440, 4
      %v1452 = vrot.slane %v1442, 4
      %v1453 = vrot.slane %v1444, 4
      %v1454 = vrot.slane %v1446, 4
      %v1455 = vrot.slane %v1448, 4
      %v1456 = vrot.slane %v1450, 4
      %v1457 = vsel %vm221, %v1451, %v1452
      %vm1458 = vcmask 375808
      %v1459 = vsel %vm1458, %v1440, %v1457
      %v1460 = vsel %vm221, %v1452, %v1453
      %v1461 = vsel %vm1458, %v1442, %v1460
      %v1462 = vsel %vm221, %v1453, %v1454
      %v1463 = vsel %vm1458, %v1444, %v1462
      %v1464 = vsel %vm221, %v1454, %v1455
      %v1465 = vsel %vm1458, %v1446, %v1464
      %v1466 = vsel %vm221, %v1455, %v1456
      %v1467 = vsel %vm1458, %v1448, %v1466
      %v1473 = vadd.f32 %v1408, %v1459
      %v1474 = vadd.f32 %v1409, %v1461
      %v1475 = vadd.f32 %v1410, %v1463
      %v1476 = vadd.f32 %v1411, %v1465
      %v1477 = vadd.f32 %v1412, %v1467
      %s1478 = scalar_lea.vmem %s1, 84
      %v1479 = vld [vmem:[%s1478] sm:$0xf]
      %1481 = vset.pattern.permute.xlu0 0
      %1482 = vperm.xlu0 %1481, %v1479
      %v1483 = vpop.permute.xlu0 %1482
      %v1485 = vunpack.c.l.s4 839922192
      %v1486 = vunpack.c.0.s8 %v1485
      %v1487 = vlaneseq
      %v1488 = vshrl.u32 %v1487, 7
      %v1489 = vsub.s32 %v1486, %v1488
      %v1490 = vrot.slane %v1483, %v1489
      %v1492 = vmul.f32 %v171, %v1490
      %v1493 = vmul.f32 %v172, %v1490
      %v1494 = vmul.f32 %v173, %v1490
      %v1495 = vmul.f32 %v174, %v1490
      %v1496 = vmul.f32 %v175, %v1490
      %v1497 = vmul.f32 %v176, %v1490
      %1504 = vrot.lane.b32.xlu0 %v1492, 14
      %v1505 = vpop.permute.xlu0 %1504
      %1506 = vrot.lane.b32.xlu0 %v1493, 14
      %v1507 = vpop.permute.xlu0 %1506
      %1508 = vrot.lane.b32.xlu0 %v1494, 14
      %v1509 = vpop.permute.xlu0 %1508
      %1510 = vrot.lane.b32.xlu0 %v1495, 14
      %v1511 = vpop.permute.xlu0 %1510
      %1512 = vrot.lane.b32.xlu0 %v1496, 14
      %v1513 = vpop.permute.xlu0 %1512
      %1514 = vrot.lane.b32.xlu0 %v1497, 14
      %v1515 = vpop.permute.xlu0 %1514
      %v1516 = vrot.slane %v1505, 4
      %v1517 = vrot.slane %v1507, 4
      %v1518 = vrot.slane %v1509, 4
      %v1519 = vrot.slane %v1511, 4
      %v1520 = vrot.slane %v1513, 4
      %v1521 = vrot.slane %v1515, 4
      %v1522 = vsel %vm221, %v1516, %v1517
      %vm1523 = vcmask 113664
      %v1524 = vsel %vm1523, %v1505, %v1522
      %v1525 = vsel %vm221, %v1517, %v1518
      %v1526 = vsel %vm1523, %v1507, %v1525
      %v1527 = vsel %vm221, %v1518, %v1519
      %v1528 = vsel %vm1523, %v1509, %v1527
      %v1529 = vsel %vm221, %v1519, %v1520
      %v1530 = vsel %vm1523, %v1511, %v1529
      %v1531 = vsel %vm221, %v1520, %v1521
      %v1532 = vsel %vm1523, %v1513, %v1531
      %v1538 = vadd.f32 %v1473, %v1524
      %v1539 = vadd.f32 %v1474, %v1526
      %v1540 = vadd.f32 %v1475, %v1528
      %v1541 = vadd.f32 %v1476, %v1530
      %v1542 = vadd.f32 %v1477, %v1532
      %s1543 = scalar_lea.vmem %s1, 88
      %v1544 = vld [vmem:[%s1543] sm:$0xf]
      %1546 = vset.pattern.permute.xlu0 0
      %1547 = vperm.xlu0 %1546, %v1544
      %v1548 = vpop.permute.xlu0 %1547
      %v1550 = vunpack.c.l.s4 839922192
      %v1551 = vunpack.c.0.s8 %v1550
      %v1552 = vlaneseq
      %v1553 = vshrl.u32 %v1552, 7
      %v1554 = vsub.s32 %v1551, %v1553
      %v1555 = vrot.slane %v1548, %v1554
      %v1557 = vmul.f32 %v171, %v1555
      %v1558 = vmul.f32 %v172, %v1555
      %v1559 = vmul.f32 %v173, %v1555
      %v1560 = vmul.f32 %v174, %v1555
      %v1561 = vmul.f32 %v175, %v1555
      %v1562 = vmul.f32 %v176, %v1555
      %1569 = vrot.lane.b32.xlu0 %v1557, 13
      %v1570 = vpop.permute.xlu0 %1569
      %1571 = vrot.lane.b32.xlu0 %v1558, 13
      %v1572 = vpop.permute.xlu0 %1571
      %1573 = vrot.lane.b32.xlu0 %v1559, 13
      %v1574 = vpop.permute.xlu0 %1573
      %1575 = vrot.lane.b32.xlu0 %v1560, 13
      %v1576 = vpop.permute.xlu0 %1575
      %1577 = vrot.lane.b32.xlu0 %v1561, 13
      %v1578 = vpop.permute.xlu0 %1577
      %1579 = vrot.lane.b32.xlu0 %v1562, 13
      %v1580 = vpop.permute.xlu0 %1579
      %v1581 = vrot.slane %v1570, 4
      %v1582 = vrot.slane %v1572, 4
      %v1583 = vrot.slane %v1574, 4
      %v1584 = vrot.slane %v1576, 4
      %v1585 = vrot.slane %v1578, 4
      %v1586 = vrot.slane %v1580, 4
      %v1587 = vsel %vm221, %v1581, %v1582
      %vm1588 = vcmask 105472
      %v1589 = vsel %vm1588, %v1570, %v1587
      %v1590 = vsel %vm221, %v1582, %v1583
      %v1591 = vsel %vm1588, %v1572, %v1590
      %v1592 = vsel %vm221, %v1583, %v1584
      %v1593 = vsel %vm1588, %v1574, %v1592
      %v1594 = vsel %vm221, %v1584, %v1585
      %v1595 = vsel %vm1588, %v1576, %v1594
      %v1596 = vsel %vm221, %v1585, %v1586
      %v1597 = vsel %vm1588, %v1578, %v1596
      %v1603 = vadd.f32 %v1538, %v1589
      %v1604 = vadd.f32 %v1539, %v1591
      %v1605 = vadd.f32 %v1540, %v1593
      %v1606 = vadd.f32 %v1541, %v1595
      %v1607 = vadd.f32 %v1542, %v1597
      %s1608 = scalar_lea.vmem %s1, 92
      %v1609 = vld [vmem:[%s1608] sm:$0xf]
      %1611 = vset.pattern.permute.xlu0 0
      %1612 = vperm.xlu0 %1611, %v1609
      %v1613 = vpop.permute.xlu0 %1612
      %v1615 = vunpack.c.l.s4 839922192
      %v1616 = vunpack.c.0.s8 %v1615
      %v1617 = vlaneseq
      %v1618 = vshrl.u32 %v1617, 7
      %v1619 = vsub.s32 %v1616, %v1618
      %v1620 = vrot.slane %v1613, %v1619
      %v1622 = vmul.f32 %v171, %v1620
      %v1623 = vmul.f32 %v172, %v1620
      %v1624 = vmul.f32 %v173, %v1620
      %v1625 = vmul.f32 %v174, %v1620
      %v1626 = vmul.f32 %v175, %v1620
      %v1627 = vmul.f32 %v176, %v1620
      %1634 = vrot.lane.b32.xlu0 %v1622, 12
      %v1635 = vpop.permute.xlu0 %1634
      %1636 = vrot.lane.b32.xlu0 %v1623, 12
      %v1637 = vpop.permute.xlu0 %1636
      %1638 = vrot.lane.b32.xlu0 %v1624, 12
      %v1639 = vpop.permute.xlu0 %1638
      %1640 = vrot.lane.b32.xlu0 %v1625, 12
      %v1641 = vpop.permute.xlu0 %1640
      %1642 = vrot.lane.b32.xlu0 %v1626, 12
      %v1643 = vpop.permute.xlu0 %1642
      %1644 = vrot.lane.b32.xlu0 %v1627, 12
      %v1645 = vpop.permute.xlu0 %1644
      %v1646 = vrot.slane %v1635, 4
      %v1647 = vrot.slane %v1637, 4
      %v1648 = vrot.slane %v1639, 4
      %v1649 = vrot.slane %v1641, 4
      %v1650 = vrot.slane %v1643, 4
      %v1651 = vrot.slane %v1645, 4
      %v1652 = vsel %vm221, %v1646, %v1647
      %vm1653 = vcmask 97280
      %v1654 = vsel %vm1653, %v1635, %v1652
      %v1655 = vsel %vm221, %v1647, %v1648
      %v1656 = vsel %vm1653, %v1637, %v1655
      %v1657 = vsel %vm221, %v1648, %v1649
      %v1658 = vsel %vm1653, %v1639, %v1657
      %v1659 = vsel %vm221, %v1649, %v1650
      %v1660 = vsel %vm1653, %v1641, %v1659
      %v1661 = vsel %vm221, %v1650, %v1651
      %v1662 = vsel %vm1653, %v1643, %v1661
      %v1668 = vadd.f32 %v1603, %v1654
      %v1669 = vadd.f32 %v1604, %v1656
      %v1670 = vadd.f32 %v1605, %v1658
      %v1671 = vadd.f32 %v1606, %v1660
      %v1672 = vadd.f32 %v1607, %v1662
      %s1673 = scalar_lea.vmem %s1, 96
      %v1674 = vld [vmem:[%s1673] sm:$0xf]
      %1676 = vset.pattern.permute.xlu0 0
      %1677 = vperm.xlu0 %1676, %v1674
      %v1678 = vpop.permute.xlu0 %1677
      %v1680 = vunpack.c.l.s4 839922192
      %v1681 = vunpack.c.0.s8 %v1680
      %v1682 = vlaneseq
      %v1683 = vshrl.u32 %v1682, 7
      %v1684 = vsub.s32 %v1681, %v1683
      %v1685 = vrot.slane %v1678, %v1684
      %v1687 = vmul.f32 %v171, %v1685
      %v1688 = vmul.f32 %v172, %v1685
      %v1689 = vmul.f32 %v173, %v1685
      %v1690 = vmul.f32 %v174, %v1685
      %v1691 = vmul.f32 %v175, %v1685
      %v1692 = vmul.f32 %v176, %v1685
      %1699 = vrot.lane.b32.xlu0 %v1687, 11
      %v1700 = vpop.permute.xlu0 %1699
      %1701 = vrot.lane.b32.xlu0 %v1688, 11
      %v1702 = vpop.permute.xlu0 %1701
      %1703 = vrot.lane.b32.xlu0 %v1689, 11
      %v1704 = vpop.permute.xlu0 %1703
      %1705 = vrot.lane.b32.xlu0 %v1690, 11
      %v1706 = vpop.permute.xlu0 %1705
      %1707 = vrot.lane.b32.xlu0 %v1691, 11
      %v1708 = vpop.permute.xlu0 %1707
      %1709 = vrot.lane.b32.xlu0 %v1692, 11
      %v1710 = vpop.permute.xlu0 %1709
      %v1711 = vrot.slane %v1700, 4
      %v1712 = vrot.slane %v1702, 4
      %v1713 = vrot.slane %v1704, 4
      %v1714 = vrot.slane %v1706, 4
      %v1715 = vrot.slane %v1708, 4
      %v1716 = vrot.slane %v1710, 4
      %v1717 = vsel %vm221, %v1711, %v1712
      %vm1718 = vcmask 89088
      %v1719 = vsel %vm1718, %v1700, %v1717
      %v1720 = vsel %vm221, %v1712, %v1713
      %v1721 = vsel %vm1718, %v1702, %v1720
      %v1722 = vsel %vm221, %v1713, %v1714
      %v1723 = vsel %vm1718, %v1704, %v1722
      %v1724 = vsel %vm221, %v1714, %v1715
      %v1725 = vsel %vm1718, %v1706, %v1724
      %v1726 = vsel %vm221, %v1715, %v1716
      %v1727 = vsel %vm1718, %v1708, %v1726
      %v1733 = vadd.f32 %v1668, %v1719
      %v1734 = vadd.f32 %v1669, %v1721
      %v1735 = vadd.f32 %v1670, %v1723
      %v1736 = vadd.f32 %v1671, %v1725
      %v1737 = vadd.f32 %v1672, %v1727
      %s1738 = scalar_lea.vmem %s1, 100
      %v1739 = vld [vmem:[%s1738] sm:$0xf]
      %1741 = vset.pattern.permute.xlu0 0
      %1742 = vperm.xlu0 %1741, %v1739
      %v1743 = vpop.permute.xlu0 %1742
      %v1745 = vunpack.c.l.s4 839922192
      %v1746 = vunpack.c.0.s8 %v1745
      %v1747 = vlaneseq
      %v1748 = vshrl.u32 %v1747, 7
      %v1749 = vsub.s32 %v1746, %v1748
      %v1750 = vrot.slane %v1743, %v1749
      %v1752 = vmul.f32 %v171, %v1750
      %v1753 = vmul.f32 %v172, %v1750
      %v1754 = vmul.f32 %v173, %v1750
      %v1755 = vmul.f32 %v174, %v1750
      %v1756 = vmul.f32 %v175, %v1750
      %v1757 = vmul.f32 %v176, %v1750
      %1764 = vrot.lane.b32.xlu0 %v1752, 10
      %v1765 = vpop.permute.xlu0 %1764
      %1766 = vrot.lane.b32.xlu0 %v1753, 10
      %v1767 = vpop.permute.xlu0 %1766
      %1768 = vrot.lane.b32.xlu0 %v1754, 10
      %v1769 = vpop.permute.xlu0 %1768
      %1770 = vrot.lane.b32.xlu0 %v1755, 10
      %v1771 = vpop.permute.xlu0 %1770
      %1772 = vrot.lane.b32.xlu0 %v1756, 10
      %v1773 = vpop.permute.xlu0 %1772
      %1774 = vrot.lane.b32.xlu0 %v1757, 10
      %v1775 = vpop.permute.xlu0 %1774
      %v1776 = vrot.slane %v1765, 4
      %v1777 = vrot.slane %v1767, 4
      %v1778 = vrot.slane %v1769, 4
      %v1779 = vrot.slane %v1771, 4
      %v1780 = vrot.slane %v1773, 4
      %v1781 = vrot.slane %v1775, 4
      %v1782 = vsel %vm221, %v1776, %v1777
      %vm1783 = vcmask 80896
      %v1784 = vsel %vm1783, %v1765, %v1782
      %v1785 = vsel %vm221, %v1777, %v1778
      %v1786 = vsel %vm1783, %v1767, %v1785
      %v1787 = vsel %vm221, %v1778, %v1779
      %v1788 = vsel %vm1783, %v1769, %v1787
      %v1789 = vsel %vm221, %v1779, %v1780
      %v1790 = vsel %vm1783, %v1771, %v1789
      %v1791 = vsel %vm221, %v1780, %v1781
      %v1792 = vsel %vm1783, %v1773, %v1791
      %v1798 = vadd.f32 %v1733, %v1784
      %v1799 = vadd.f32 %v1734, %v1786
      %v1800 = vadd.f32 %v1735, %v1788
      %v1801 = vadd.f32 %v1736, %v1790
      %v1802 = vadd.f32 %v1737, %v1792
      %s1803 = scalar_lea.vmem %s1, 104
      %v1804 = vld [vmem:[%s1803] sm:$0xf]
      %1806 = vset.pattern.permute.xlu0 0
      %1807 = vperm.xlu0 %1806, %v1804
      %v1808 = vpop.permute.xlu0 %1807
      %v1810 = vunpack.c.l.s4 839922192
      %v1811 = vunpack.c.0.s8 %v1810
      %v1812 = vlaneseq
      %v1813 = vshrl.u32 %v1812, 7
      %v1814 = vsub.s32 %v1811, %v1813
      %v1815 = vrot.slane %v1808, %v1814
      %v1817 = vmul.f32 %v171, %v1815
      %v1818 = vmul.f32 %v172, %v1815
      %v1819 = vmul.f32 %v173, %v1815
      %v1820 = vmul.f32 %v174, %v1815
      %v1821 = vmul.f32 %v175, %v1815
      %v1822 = vmul.f32 %v176, %v1815
      %1829 = vrot.lane.b32.xlu0 %v1817, 9
      %v1830 = vpop.permute.xlu0 %1829
      %1831 = vrot.lane.b32.xlu0 %v1818, 9
      %v1832 = vpop.permute.xlu0 %1831
      %1833 = vrot.lane.b32.xlu0 %v1819, 9
      %v1834 = vpop.permute.xlu0 %1833
      %1835 = vrot.lane.b32.xlu0 %v1820, 9
      %v1836 = vpop.permute.xlu0 %1835
      %1837 = vrot.lane.b32.xlu0 %v1821, 9
      %v1838 = vpop.permute.xlu0 %1837
      %1839 = vrot.lane.b32.xlu0 %v1822, 9
      %v1840 = vpop.permute.xlu0 %1839
      %v1841 = vrot.slane %v1830, 4
      %v1842 = vrot.slane %v1832, 4
      %v1843 = vrot.slane %v1834, 4
      %v1844 = vrot.slane %v1836, 4
      %v1845 = vrot.slane %v1838, 4
      %v1846 = vrot.slane %v1840, 4
      %v1847 = vsel %vm221, %v1841, %v1842
      %vm1848 = vcmask 72704
      %v1849 = vsel %vm1848, %v1830, %v1847
      %v1850 = vsel %vm221, %v1842, %v1843
      %v1851 = vsel %vm1848, %v1832, %v1850
      %v1852 = vsel %vm221, %v1843, %v1844
      %v1853 = vsel %vm1848, %v1834, %v1852
      %v1854 = vsel %vm221, %v1844, %v1845
      %v1855 = vsel %vm1848, %v1836, %v1854
      %v1856 = vsel %vm221, %v1845, %v1846
      %v1857 = vsel %vm1848, %v1838, %v1856
      %v1863 = vadd.f32 %v1798, %v1849
      %v1864 = vadd.f32 %v1799, %v1851
      %v1865 = vadd.f32 %v1800, %v1853
      %v1866 = vadd.f32 %v1801, %v1855
      %v1867 = vadd.f32 %v1802, %v1857
      %s1868 = scalar_lea.vmem %s1, 108
      %v1869 = vld [vmem:[%s1868] sm:$0xf]
      %1871 = vset.pattern.permute.xlu0 0
      %1872 = vperm.xlu0 %1871, %v1869
      %v1873 = vpop.permute.xlu0 %1872
      %v1875 = vunpack.c.l.s4 839922192
      %v1876 = vunpack.c.0.s8 %v1875
      %v1877 = vlaneseq
      %v1878 = vshrl.u32 %v1877, 7
      %v1879 = vsub.s32 %v1876, %v1878
      %v1880 = vrot.slane %v1873, %v1879
      %v1882 = vmul.f32 %v171, %v1880
      %v1883 = vmul.f32 %v172, %v1880
      %v1884 = vmul.f32 %v173, %v1880
      %v1885 = vmul.f32 %v174, %v1880
      %v1886 = vmul.f32 %v175, %v1880
      %v1887 = vmul.f32 %v176, %v1880
      %1894 = vrot.lane.b32.xlu0 %v1882, 8
      %v1895 = vpop.permute.xlu0 %1894
      %1896 = vrot.lane.b32.xlu0 %v1883, 8
      %v1897 = vpop.permute.xlu0 %1896
      %1898 = vrot.lane.b32.xlu0 %v1884, 8
      %v1899 = vpop.permute.xlu0 %1898
      %1900 = vrot.lane.b32.xlu0 %v1885, 8
      %v1901 = vpop.permute.xlu0 %1900
      %1902 = vrot.lane.b32.xlu0 %v1886, 8
      %v1903 = vpop.permute.xlu0 %1902
      %1904 = vrot.lane.b32.xlu0 %v1887, 8
      %v1905 = vpop.permute.xlu0 %1904
      %v1906 = vrot.slane %v1895, 4
      %v1907 = vrot.slane %v1897, 4
      %v1908 = vrot.slane %v1899, 4
      %v1909 = vrot.slane %v1901, 4
      %v1910 = vrot.slane %v1903, 4
      %v1911 = vrot.slane %v1905, 4
      %v1912 = vsel %vm221, %v1906, %v1907
      %vm1913 = vcmask 64512
      %v1914 = vsel %vm1913, %v1895, %v1912
      %v1915 = vsel %vm221, %v1907, %v1908
      %v1916 = vsel %vm1913, %v1897, %v1915
      %v1917 = vsel %vm221, %v1908, %v1909
      %v1918 = vsel %vm1913, %v1899, %v1917
      %v1919 = vsel %vm221, %v1909, %v1910
      %v1920 = vsel %vm1913, %v1901, %v1919
      %v1921 = vsel %vm221, %v1910, %v1911
      %v1922 = vsel %vm1913, %v1903, %v1921
      %v1928 = vadd.f32 %v1863, %v1914
      %v1929 = vadd.f32 %v1864, %v1916
      %v1930 = vadd.f32 %v1865, %v1918
      %v1931 = vadd.f32 %v1866, %v1920
      %v1932 = vadd.f32 %v1867, %v1922
      %v1933 = vld [vmem:[%s137 + $0x2] sm:$0xff]
      %v1934 = vld [vmem:[%s137 + $0xa] sm:$0xff]
      %v1935 = vld [vmem:[%s137 + $0x12] sm:$0x3f]
      %v1936 = vunpack.c.l.bf16 %v1933
      %v1937 = vunpack.c.h.bf16 %v1933
      %v1938 = vunpack.c.l.bf16 %v1934
      %v1939 = vunpack.c.h.bf16 %v1934
      %v1940 = vunpack.c.l.bf16 %v1935
      %v1941 = vunpack.c.h.bf16 %v1935
      %s1942 = scalar_lea.vmem %s1, 112
      %v1943 = vld [vmem:[%s1942] sm:$0xf]
      %1945 = vset.pattern.permute.xlu0 0
      %1946 = vperm.xlu0 %1945, %v1943
      %v1947 = vpop.permute.xlu0 %1946
      %v1949 = vunpack.c.l.s4 839922192
      %v1950 = vunpack.c.0.s8 %v1949
      %v1951 = vlaneseq
      %v1952 = vshrl.u32 %v1951, 7
      %v1953 = vsub.s32 %v1950, %v1952
      %v1954 = vrot.slane %v1947, %v1953
      %v1956 = vmul.f32 %v1936, %v1954
      %v1957 = vmul.f32 %v1937, %v1954
      %v1958 = vmul.f32 %v1938, %v1954
      %v1959 = vmul.f32 %v1939, %v1954
      %v1960 = vmul.f32 %v1940, %v1954
      %v1961 = vmul.f32 %v1941, %v1954
      %1968 = vrot.lane.b32.xlu0 %v1956, 104
      %v1969 = vpop.permute.xlu0 %1968
      %1970 = vrot.lane.b32.xlu0 %v1957, 104
      %v1971 = vpop.permute.xlu0 %1970
      %1972 = vrot.lane.b32.xlu0 %v1958, 104
      %v1973 = vpop.permute.xlu0 %1972
      %1974 = vrot.lane.b32.xlu0 %v1959, 104
      %v1975 = vpop.permute.xlu0 %1974
      %1976 = vrot.lane.b32.xlu0 %v1960, 104
      %v1977 = vpop.permute.xlu0 %1976
      %1978 = vrot.lane.b32.xlu0 %v1961, 104
      %v1979 = vpop.permute.xlu0 %1978
      %v1980 = vrot.slane %v1969, 4
      %v1981 = vrot.slane %v1971, 4
      %v1982 = vrot.slane %v1973, 4
      %v1983 = vrot.slane %v1975, 4
      %v1984 = vrot.slane %v1977, 4
      %v1985 = vrot.slane %v1979, 4
      %v1986 = vsel %vm221, %v1980, %v1981
      %vm1987 = vcmask 850944
      %v1988 = vsel %vm1987, %v1969, %v1986
      %v1989 = vsel %vm221, %v1981, %v1982
      %v1990 = vsel %vm1987, %v1971, %v1989
      %v1991 = vsel %vm221, %v1982, %v1983
      %v1992 = vsel %vm1987, %v1973, %v1991
      %v1993 = vsel %vm221, %v1983, %v1984
      %v1994 = vsel %vm1987, %v1975, %v1993
      %v1995 = vsel %vm221, %v1984, %v1985
      %v1996 = vsel %vm1987, %v1977, %v1995
      %v2002 = vadd.f32 %v1928, %v1988
      %v2003 = vadd.f32 %v1929, %v1990
      %v2004 = vadd.f32 %v1930, %v1992
      %v2005 = vadd.f32 %v1931, %v1994
      %v2006 = vadd.f32 %v1932, %v1996
      %s2007 = scalar_lea.vmem %s1, 116
      %v2008 = vld [vmem:[%s2007] sm:$0xf]
      %2010 = vset.pattern.permute.xlu0 0
      %2011 = vperm.xlu0 %2010, %v2008
      %v2012 = vpop.permute.xlu0 %2011
      %v2014 = vunpack.c.l.s4 839922192
      %v2015 = vunpack.c.0.s8 %v2014
      %v2016 = vlaneseq
      %v2017 = vshrl.u32 %v2016, 7
      %v2018 = vsub.s32 %v2015, %v2017
      %v2019 = vrot.slane %v2012, %v2018
      %v2021 = vmul.f32 %v1936, %v2019
      %v2022 = vmul.f32 %v1937, %v2019
      %v2023 = vmul.f32 %v1938, %v2019
      %v2024 = vmul.f32 %v1939, %v2019
      %v2025 = vmul.f32 %v1940, %v2019
      %v2026 = vmul.f32 %v1941, %v2019
      %2033 = vrot.lane.b32.xlu0 %v2021, 103
      %v2034 = vpop.permute.xlu0 %2033
      %2035 = vrot.lane.b32.xlu0 %v2022, 103
      %v2036 = vpop.permute.xlu0 %2035
      %2037 = vrot.lane.b32.xlu0 %v2023, 103
      %v2038 = vpop.permute.xlu0 %2037
      %2039 = vrot.lane.b32.xlu0 %v2024, 103
      %v2040 = vpop.permute.xlu0 %2039
      %2041 = vrot.lane.b32.xlu0 %v2025, 103
      %v2042 = vpop.permute.xlu0 %2041
      %2043 = vrot.lane.b32.xlu0 %v2026, 103
      %v2044 = vpop.permute.xlu0 %2043
      %v2045 = vrot.slane %v2034, 4
      %v2046 = vrot.slane %v2036, 4
      %v2047 = vrot.slane %v2038, 4
      %v2048 = vrot.slane %v2040, 4
      %v2049 = vrot.slane %v2042, 4
      %v2050 = vrot.slane %v2044, 4
      %v2051 = vsel %vm221, %v2045, %v2046
      %vm2052 = vcmask 842752
      %v2053 = vsel %vm2052, %v2034, %v2051
      %v2054 = vsel %vm221, %v2046, %v2047
      %v2055 = vsel %vm2052, %v2036, %v2054
      %v2056 = vsel %vm221, %v2047, %v2048
      %v2057 = vsel %vm2052, %v2038, %v2056
      %v2058 = vsel %vm221, %v2048, %v2049
      %v2059 = vsel %vm2052, %v2040, %v2058
      %v2060 = vsel %vm221, %v2049, %v2050
      %v2061 = vsel %vm2052, %v2042, %v2060
      %v2067 = vadd.f32 %v2002, %v2053
      %v2068 = vadd.f32 %v2003, %v2055
      %v2069 = vadd.f32 %v2004, %v2057
      %v2070 = vadd.f32 %v2005, %v2059
      %v2071 = vadd.f32 %v2006, %v2061
      %s2072 = scalar_lea.vmem %s1, 120
      %v2073 = vld [vmem:[%s2072] sm:$0xf]
      %2075 = vset.pattern.permute.xlu0 0
      %2076 = vperm.xlu0 %2075, %v2073
      %v2077 = vpop.permute.xlu0 %2076
      %v2079 = vunpack.c.l.s4 839922192
      %v2080 = vunpack.c.0.s8 %v2079
      %v2081 = vlaneseq
      %v2082 = vshrl.u32 %v2081, 7
      %v2083 = vsub.s32 %v2080, %v2082
      %v2084 = vrot.slane %v2077, %v2083
      %v2086 = vmul.f32 %v1936, %v2084
      %v2087 = vmul.f32 %v1937, %v2084
      %v2088 = vmul.f32 %v1938, %v2084
      %v2089 = vmul.f32 %v1939, %v2084
      %v2090 = vmul.f32 %v1940, %v2084
      %v2091 = vmul.f32 %v1941, %v2084
      %2098 = vrot.lane.b32.xlu0 %v2086, 102
      %v2099 = vpop.permute.xlu0 %2098
      %2100 = vrot.lane.b32.xlu0 %v2087, 102
      %v2101 = vpop.permute.xlu0 %2100
      %2102 = vrot.lane.b32.xlu0 %v2088, 102
      %v2103 = vpop.permute.xlu0 %2102
      %2104 = vrot.lane.b32.xlu0 %v2089, 102
      %v2105 = vpop.permute.xlu0 %2104
      %2106 = vrot.lane.b32.xlu0 %v2090, 102
      %v2107 = vpop.permute.xlu0 %2106
      %2108 = vrot.lane.b32.xlu0 %v2091, 102
      %v2109 = vpop.permute.xlu0 %2108
      %v2110 = vrot.slane %v2099, 4
      %v2111 = vrot.slane %v2101, 4
      %v2112 = vrot.slane %v2103, 4
      %v2113 = vrot.slane %v2105, 4
      %v2114 = vrot.slane %v2107, 4
      %v2115 = vrot.slane %v2109, 4
      %v2116 = vsel %vm221, %v2110, %v2111
      %vm2117 = vcmask 834560
      %v2118 = vsel %vm2117, %v2099, %v2116
      %v2119 = vsel %vm221, %v2111, %v2112
      %v2120 = vsel %vm2117, %v2101, %v2119
      %v2121 = vsel %vm221, %v2112, %v2113
      %v2122 = vsel %vm2117, %v2103, %v2121
      %v2123 = vsel %vm221, %v2113, %v2114
      %v2124 = vsel %vm2117, %v2105, %v2123
      %v2125 = vsel %vm221, %v2114, %v2115
      %v2126 = vsel %vm2117, %v2107, %v2125
      %v2132 = vadd.f32 %v2067, %v2118
      %v2133 = vadd.f32 %v2068, %v2120
      %v2134 = vadd.f32 %v2069, %v2122
      %v2135 = vadd.f32 %v2070, %v2124
      %v2136 = vadd.f32 %v2071, %v2126
      %s2137 = scalar_lea.vmem %s1, 124
      %v2138 = vld [vmem:[%s2137] sm:$0xf]
      %2140 = vset.pattern.permute.xlu0 0
      %2141 = vperm.xlu0 %2140, %v2138
      %v2142 = vpop.permute.xlu0 %2141
      %v2144 = vunpack.c.l.s4 839922192
      %v2145 = vunpack.c.0.s8 %v2144
      %v2146 = vlaneseq
      %v2147 = vshrl.u32 %v2146, 7
      %v2148 = vsub.s32 %v2145, %v2147
      %v2149 = vrot.slane %v2142, %v2148
      %v2151 = vmul.f32 %v1936, %v2149
      %v2152 = vmul.f32 %v1937, %v2149
      %v2153 = vmul.f32 %v1938, %v2149
      %v2154 = vmul.f32 %v1939, %v2149
      %v2155 = vmul.f32 %v1940, %v2149
      %v2156 = vmul.f32 %v1941, %v2149
      %2163 = vrot.lane.b32.xlu0 %v2151, 101
      %v2164 = vpop.permute.xlu0 %2163
      %2165 = vrot.lane.b32.xlu0 %v2152, 101
      %v2166 = vpop.permute.xlu0 %2165
      %2167 = vrot.lane.b32.xlu0 %v2153, 101
      %v2168 = vpop.permute.xlu0 %2167
      %2169 = vrot.lane.b32.xlu0 %v2154, 101
      %v2170 = vpop.permute.xlu0 %2169
      %2171 = vrot.lane.b32.xlu0 %v2155, 101
      %v2172 = vpop.permute.xlu0 %2171
      %2173 = vrot.lane.b32.xlu0 %v2156, 101
      %v2174 = vpop.permute.xlu0 %2173
      %v2175 = vrot.slane %v2164, 4
      %v2176 = vrot.slane %v2166, 4
      %v2177 = vrot.slane %v2168, 4
      %v2178 = vrot.slane %v2170, 4
      %v2179 = vrot.slane %v2172, 4
      %v2180 = vrot.slane %v2174, 4
      %v2181 = vsel %vm221, %v2175, %v2176
      %vm2182 = vcmask 826368
      %v2183 = vsel %vm2182, %v2164, %v2181
      %v2184 = vsel %vm221, %v2176, %v2177
      %v2185 = vsel %vm2182, %v2166, %v2184
      %v2186 = vsel %vm221, %v2177, %v2178
      %v2187 = vsel %vm2182, %v2168, %v2186
      %v2188 = vsel %vm221, %v2178, %v2179
      %v2189 = vsel %vm2182, %v2170, %v2188
      %v2190 = vsel %vm221, %v2179, %v2180
      %v2191 = vsel %vm2182, %v2172, %v2190
      %v2197 = vadd.f32 %v2132, %v2183
      %v2198 = vadd.f32 %v2133, %v2185
      %v2199 = vadd.f32 %v2134, %v2187
      %v2200 = vadd.f32 %v2135, %v2189
      %v2201 = vadd.f32 %v2136, %v2191
      %s2202 = scalar_lea.vmem %s1, 128
      %v2203 = vld [vmem:[%s2202] sm:$0xf]
      %2205 = vset.pattern.permute.xlu0 0
      %2206 = vperm.xlu0 %2205, %v2203
      %v2207 = vpop.permute.xlu0 %2206
      %v2209 = vunpack.c.l.s4 839922192
      %v2210 = vunpack.c.0.s8 %v2209
      %v2211 = vlaneseq
      %v2212 = vshrl.u32 %v2211, 7
      %v2213 = vsub.s32 %v2210, %v2212
      %v2214 = vrot.slane %v2207, %v2213
      %v2216 = vmul.f32 %v1936, %v2214
      %v2217 = vmul.f32 %v1937, %v2214
      %v2218 = vmul.f32 %v1938, %v2214
      %v2219 = vmul.f32 %v1939, %v2214
      %v2220 = vmul.f32 %v1940, %v2214
      %v2221 = vmul.f32 %v1941, %v2214
      %2228 = vrot.lane.b32.xlu0 %v2216, 100
      %v2229 = vpop.permute.xlu0 %2228
      %2230 = vrot.lane.b32.xlu0 %v2217, 100
      %v2231 = vpop.permute.xlu0 %2230
      %2232 = vrot.lane.b32.xlu0 %v2218, 100
      %v2233 = vpop.permute.xlu0 %2232
      %2234 = vrot.lane.b32.xlu0 %v2219, 100
      %v2235 = vpop.permute.xlu0 %2234
      %2236 = vrot.lane.b32.xlu0 %v2220, 100
      %v2237 = vpop.permute.xlu0 %2236
      %2238 = vrot.lane.b32.xlu0 %v2221, 100
      %v2239 = vpop.permute.xlu0 %2238
      %v2240 = vrot.slane %v2229, 4
      %v2241 = vrot.slane %v2231, 4
      %v2242 = vrot.slane %v2233, 4
      %v2243 = vrot.slane %v2235, 4
      %v2244 = vrot.slane %v2237, 4
      %v2245 = vrot.slane %v2239, 4
      %v2246 = vsel %vm221, %v2240, %v2241
      %vm2247 = vcmask 818176
      %v2248 = vsel %vm2247, %v2229, %v2246
      %v2249 = vsel %vm221, %v2241, %v2242
      %v2250 = vsel %vm2247, %v2231, %v2249
      %v2251 = vsel %vm221, %v2242, %v2243
      %v2252 = vsel %vm2247, %v2233, %v2251
      %v2253 = vsel %vm221, %v2243, %v2244
      %v2254 = vsel %vm2247, %v2235, %v2253
      %v2255 = vsel %vm221, %v2244, %v2245
      %v2256 = vsel %vm2247, %v2237, %v2255
      %v2262 = vadd.f32 %v2197, %v2248
      %v2263 = vadd.f32 %v2198, %v2250
      %v2264 = vadd.f32 %v2199, %v2252
      %v2265 = vadd.f32 %v2200, %v2254
      %v2266 = vadd.f32 %v2201, %v2256
      %s2267 = scalar_lea.vmem %s1, 132
      %v2268 = vld [vmem:[%s2267] sm:$0xf]
      %2270 = vset.pattern.permute.xlu0 0
      %2271 = vperm.xlu0 %2270, %v2268
      %v2272 = vpop.permute.xlu0 %2271
      %v2274 = vunpack.c.l.s4 839922192
      %v2275 = vunpack.c.0.s8 %v2274
      %v2276 = vlaneseq
      %v2277 = vshrl.u32 %v2276, 7
      %v2278 = vsub.s32 %v2275, %v2277
      %v2279 = vrot.slane %v2272, %v2278
      %v2281 = vmul.f32 %v1936, %v2279
      %v2282 = vmul.f32 %v1937, %v2279
      %v2283 = vmul.f32 %v1938, %v2279
      %v2284 = vmul.f32 %v1939, %v2279
      %v2285 = vmul.f32 %v1940, %v2279
      %v2286 = vmul.f32 %v1941, %v2279
      %2293 = vrot.lane.b32.xlu0 %v2281, 99
      %v2294 = vpop.permute.xlu0 %2293
      %2295 = vrot.lane.b32.xlu0 %v2282, 99
      %v2296 = vpop.permute.xlu0 %2295
      %2297 = vrot.lane.b32.xlu0 %v2283, 99
      %v2298 = vpop.permute.xlu0 %2297
      %2299 = vrot.lane.b32.xlu0 %v2284, 99
      %v2300 = vpop.permute.xlu0 %2299
      %2301 = vrot.lane.b32.xlu0 %v2285, 99
      %v2302 = vpop.permute.xlu0 %2301
      %2303 = vrot.lane.b32.xlu0 %v2286, 99
      %v2304 = vpop.permute.xlu0 %2303
      %v2305 = vrot.slane %v2294, 4
      %v2306 = vrot.slane %v2296, 4
      %v2307 = vrot.slane %v2298, 4
      %v2308 = vrot.slane %v2300, 4
      %v2309 = vrot.slane %v2302, 4
      %v2310 = vrot.slane %v2304, 4
      %v2311 = vsel %vm221, %v2305, %v2306
      %vm2312 = vcmask 809984
      %v2313 = vsel %vm2312, %v2294, %v2311
      %v2314 = vsel %vm221, %v2306, %v2307
      %v2315 = vsel %vm2312, %v2296, %v2314
      %v2316 = vsel %vm221, %v2307, %v2308
      %v2317 = vsel %vm2312, %v2298, %v2316
      %v2318 = vsel %vm221, %v2308, %v2309
      %v2319 = vsel %vm2312, %v2300, %v2318
      %v2320 = vsel %vm221, %v2309, %v2310
      %v2321 = vsel %vm2312, %v2302, %v2320
      %v2327 = vadd.f32 %v2262, %v2313
      %v2328 = vadd.f32 %v2263, %v2315
      %v2329 = vadd.f32 %v2264, %v2317
      %v2330 = vadd.f32 %v2265, %v2319
      %v2331 = vadd.f32 %v2266, %v2321
      %s2332 = scalar_lea.vmem %s1, 136
      %v2333 = vld [vmem:[%s2332] sm:$0xf]
      %2335 = vset.pattern.permute.xlu0 0
      %2336 = vperm.xlu0 %2335, %v2333
      %v2337 = vpop.permute.xlu0 %2336
      %v2339 = vunpack.c.l.s4 839922192
      %v2340 = vunpack.c.0.s8 %v2339
      %v2341 = vlaneseq
      %v2342 = vshrl.u32 %v2341, 7
      %v2343 = vsub.s32 %v2340, %v2342
      %v2344 = vrot.slane %v2337, %v2343
      %v2346 = vmul.f32 %v1936, %v2344
      %v2347 = vmul.f32 %v1937, %v2344
      %v2348 = vmul.f32 %v1938, %v2344
      %v2349 = vmul.f32 %v1939, %v2344
      %v2350 = vmul.f32 %v1940, %v2344
      %v2351 = vmul.f32 %v1941, %v2344
      %2358 = vrot.lane.b32.xlu0 %v2346, 98
      %v2359 = vpop.permute.xlu0 %2358
      %2360 = vrot.lane.b32.xlu0 %v2347, 98
      %v2361 = vpop.permute.xlu0 %2360
      %2362 = vrot.lane.b32.xlu0 %v2348, 98
      %v2363 = vpop.permute.xlu0 %2362
      %2364 = vrot.lane.b32.xlu0 %v2349, 98
      %v2365 = vpop.permute.xlu0 %2364
      %2366 = vrot.lane.b32.xlu0 %v2350, 98
      %v2367 = vpop.permute.xlu0 %2366
      %2368 = vrot.lane.b32.xlu0 %v2351, 98
      %v2369 = vpop.permute.xlu0 %2368
      %v2370 = vrot.slane %v2359, 4
      %v2371 = vrot.slane %v2361, 4
      %v2372 = vrot.slane %v2363, 4
      %v2373 = vrot.slane %v2365, 4
      %v2374 = vrot.slane %v2367, 4
      %v2375 = vrot.slane %v2369, 4
      %v2376 = vsel %vm221, %v2370, %v2371
      %vm2377 = vcmask 801792
      %v2378 = vsel %vm2377, %v2359, %v2376
      %v2379 = vsel %vm221, %v2371, %v2372
      %v2380 = vsel %vm2377, %v2361, %v2379
      %v2381 = vsel %vm221, %v2372, %v2373
      %v2382 = vsel %vm2377, %v2363, %v2381
      %v2383 = vsel %vm221, %v2373, %v2374
      %v2384 = vsel %vm2377, %v2365, %v2383
      %v2385 = vsel %vm221, %v2374, %v2375
      %v2386 = vsel %vm2377, %v2367, %v2385
      %v2392 = vadd.f32 %v2327, %v2378
      %v2393 = vadd.f32 %v2328, %v2380
      %v2394 = vadd.f32 %v2329, %v2382
      %v2395 = vadd.f32 %v2330, %v2384
      %v2396 = vadd.f32 %v2331, %v2386
      %s2397 = scalar_lea.vmem %s1, 140
      %v2398 = vld [vmem:[%s2397] sm:$0xf]
      %2400 = vset.pattern.permute.xlu0 0
      %2401 = vperm.xlu0 %2400, %v2398
      %v2402 = vpop.permute.xlu0 %2401
      %v2404 = vunpack.c.l.s4 839922192
      %v2405 = vunpack.c.0.s8 %v2404
      %v2406 = vlaneseq
      %v2407 = vshrl.u32 %v2406, 7
      %v2408 = vsub.s32 %v2405, %v2407
      %v2409 = vrot.slane %v2402, %v2408
      %v2411 = vmul.f32 %v1936, %v2409
      %v2412 = vmul.f32 %v1937, %v2409
      %v2413 = vmul.f32 %v1938, %v2409
      %v2414 = vmul.f32 %v1939, %v2409
      %v2415 = vmul.f32 %v1940, %v2409
      %v2416 = vmul.f32 %v1941, %v2409
      %2423 = vrot.lane.b32.xlu0 %v2411, 66
      %v2424 = vpop.permute.xlu0 %2423
      %2425 = vrot.lane.b32.xlu0 %v2412, 66
      %v2426 = vpop.permute.xlu0 %2425
      %2427 = vrot.lane.b32.xlu0 %v2413, 66
      %v2428 = vpop.permute.xlu0 %2427
      %2429 = vrot.lane.b32.xlu0 %v2414, 66
      %v2430 = vpop.permute.xlu0 %2429
      %2431 = vrot.lane.b32.xlu0 %v2415, 66
      %v2432 = vpop.permute.xlu0 %2431
      %2433 = vrot.lane.b32.xlu0 %v2416, 66
      %v2434 = vpop.permute.xlu0 %2433
      %v2435 = vrot.slane %v2424, 4
      %v2436 = vrot.slane %v2426, 4
      %v2437 = vrot.slane %v2428, 4
      %v2438 = vrot.slane %v2430, 4
      %v2439 = vrot.slane %v2432, 4
      %v2440 = vrot.slane %v2434, 4
      %v2441 = vsel %vm221, %v2435, %v2436
      %vm2442 = vcmask 539648
      %v2443 = vsel %vm2442, %v2424, %v2441
      %v2444 = vsel %vm221, %v2436, %v2437
      %v2445 = vsel %vm2442, %v2426, %v2444
      %v2446 = vsel %vm221, %v2437, %v2438
      %v2447 = vsel %vm2442, %v2428, %v2446
      %v2448 = vsel %vm221, %v2438, %v2439
      %v2449 = vsel %vm2442, %v2430, %v2448
      %v2450 = vsel %vm221, %v2439, %v2440
      %v2451 = vsel %vm2442, %v2432, %v2450
      %v2457 = vadd.f32 %v2392, %v2443
      %v2458 = vadd.f32 %v2393, %v2445
      %v2459 = vadd.f32 %v2394, %v2447
      %v2460 = vadd.f32 %v2395, %v2449
      %v2461 = vadd.f32 %v2396, %v2451
      %s2462 = scalar_lea.vmem %s1, 144
      %v2463 = vld [vmem:[%s2462] sm:$0xf]
      %2465 = vset.pattern.permute.xlu0 0
      %2466 = vperm.xlu0 %2465, %v2463
      %v2467 = vpop.permute.xlu0 %2466
      %v2469 = vunpack.c.l.s4 839922192
      %v2470 = vunpack.c.0.s8 %v2469
      %v2471 = vlaneseq
      %v2472 = vshrl.u32 %v2471, 7
      %v2473 = vsub.s32 %v2470, %v2472
      %v2474 = vrot.slane %v2467, %v2473
      %v2476 = vmul.f32 %v1936, %v2474
      %v2477 = vmul.f32 %v1937, %v2474
      %v2478 = vmul.f32 %v1938, %v2474
      %v2479 = vmul.f32 %v1939, %v2474
      %v2480 = vmul.f32 %v1940, %v2474
      %v2481 = vmul.f32 %v1941, %v2474
      %2488 = vrot.lane.b32.xlu0 %v2476, 65
      %v2489 = vpop.permute.xlu0 %2488
      %2490 = vrot.lane.b32.xlu0 %v2477, 65
      %v2491 = vpop.permute.xlu0 %2490
      %2492 = vrot.lane.b32.xlu0 %v2478, 65
      %v2493 = vpop.permute.xlu0 %2492
      %2494 = vrot.lane.b32.xlu0 %v2479, 65
      %v2495 = vpop.permute.xlu0 %2494
      %2496 = vrot.lane.b32.xlu0 %v2480, 65
      %v2497 = vpop.permute.xlu0 %2496
      %2498 = vrot.lane.b32.xlu0 %v2481, 65
      %v2499 = vpop.permute.xlu0 %2498
      %v2500 = vrot.slane %v2489, 4
      %v2501 = vrot.slane %v2491, 4
      %v2502 = vrot.slane %v2493, 4
      %v2503 = vrot.slane %v2495, 4
      %v2504 = vrot.slane %v2497, 4
      %v2505 = vrot.slane %v2499, 4
      %v2506 = vsel %vm221, %v2500, %v2501
      %vm2507 = vcmask 531456
      %v2508 = vsel %vm2507, %v2489, %v2506
      %v2509 = vsel %vm221, %v2501, %v2502
      %v2510 = vsel %vm2507, %v2491, %v2509
      %v2511 = vsel %vm221, %v2502, %v2503
      %v2512 = vsel %vm2507, %v2493, %v2511
      %v2513 = vsel %vm221, %v2503, %v2504
      %v2514 = vsel %vm2507, %v2495, %v2513
      %v2515 = vsel %vm221, %v2504, %v2505
      %v2516 = vsel %vm2507, %v2497, %v2515
      %v2522 = vadd.f32 %v2457, %v2508
      %v2523 = vadd.f32 %v2458, %v2510
      %v2524 = vadd.f32 %v2459, %v2512
      %v2525 = vadd.f32 %v2460, %v2514
      %v2526 = vadd.f32 %v2461, %v2516
      %s2527 = scalar_lea.vmem %s1, 148
      %v2528 = vld [vmem:[%s2527] sm:$0xf]
      %2530 = vset.pattern.permute.xlu0 0
      %2531 = vperm.xlu0 %2530, %v2528
      %v2532 = vpop.permute.xlu0 %2531
      %v2534 = vunpack.c.l.s4 839922192
      %v2535 = vunpack.c.0.s8 %v2534
      %v2536 = vlaneseq
      %v2537 = vshrl.u32 %v2536, 7
      %v2538 = vsub.s32 %v2535, %v2537
      %v2539 = vrot.slane %v2532, %v2538
      %v2541 = vmul.f32 %v1936, %v2539
      %v2542 = vmul.f32 %v1937, %v2539
      %v2543 = vmul.f32 %v1938, %v2539
      %v2544 = vmul.f32 %v1939, %v2539
      %v2545 = vmul.f32 %v1940, %v2539
      %v2546 = vmul.f32 %v1941, %v2539
      %2553 = vrot.lane.b32.xlu0 %v2541, 64
      %v2554 = vpop.permute.xlu0 %2553
      %2555 = vrot.lane.b32.xlu0 %v2542, 64
      %v2556 = vpop.permute.xlu0 %2555
      %2557 = vrot.lane.b32.xlu0 %v2543, 64
      %v2558 = vpop.permute.xlu0 %2557
      %2559 = vrot.lane.b32.xlu0 %v2544, 64
      %v2560 = vpop.permute.xlu0 %2559
      %2561 = vrot.lane.b32.xlu0 %v2545, 64
      %v2562 = vpop.permute.xlu0 %2561
      %2563 = vrot.lane.b32.xlu0 %v2546, 64
      %v2564 = vpop.permute.xlu0 %2563
      %v2565 = vrot.slane %v2554, 4
      %v2566 = vrot.slane %v2556, 4
      %v2567 = vrot.slane %v2558, 4
      %v2568 = vrot.slane %v2560, 4
      %v2569 = vrot.slane %v2562, 4
      %v2570 = vrot.slane %v2564, 4
      %v2571 = vsel %vm221, %v2565, %v2566
      %vm2572 = vcmask 523264
      %v2573 = vsel %vm2572, %v2554, %v2571
      %v2574 = vsel %vm221, %v2566, %v2567
      %v2575 = vsel %vm2572, %v2556, %v2574
      %v2576 = vsel %vm221, %v2567, %v2568
      %v2577 = vsel %vm2572, %v2558, %v2576
      %v2578 = vsel %vm221, %v2568, %v2569
      %v2579 = vsel %vm2572, %v2560, %v2578
      %v2580 = vsel %vm221, %v2569, %v2570
      %v2581 = vsel %vm2572, %v2562, %v2580
      %v2587 = vadd.f32 %v2522, %v2573
      %v2588 = vadd.f32 %v2523, %v2575
      %v2589 = vadd.f32 %v2524, %v2577
      %v2590 = vadd.f32 %v2525, %v2579
      %v2591 = vadd.f32 %v2526, %v2581
      %s2592 = scalar_lea.vmem %s1, 152
      %v2593 = vld [vmem:[%s2592] sm:$0xf]
      %2595 = vset.pattern.permute.xlu0 0
      %2596 = vperm.xlu0 %2595, %v2593
      %v2597 = vpop.permute.xlu0 %2596
      %v2599 = vunpack.c.l.s4 839922192
      %v2600 = vunpack.c.0.s8 %v2599
      %v2601 = vlaneseq
      %v2602 = vshrl.u32 %v2601, 7
      %v2603 = vsub.s32 %v2600, %v2602
      %v2604 = vrot.slane %v2597, %v2603
      %v2606 = vmul.f32 %v1936, %v2604
      %v2607 = vmul.f32 %v1937, %v2604
      %v2608 = vmul.f32 %v1938, %v2604
      %v2609 = vmul.f32 %v1939, %v2604
      %v2610 = vmul.f32 %v1940, %v2604
      %v2611 = vmul.f32 %v1941, %v2604
      %2618 = vrot.lane.b32.xlu0 %v2606, 63
      %v2619 = vpop.permute.xlu0 %2618
      %2620 = vrot.lane.b32.xlu0 %v2607, 63
      %v2621 = vpop.permute.xlu0 %2620
      %2622 = vrot.lane.b32.xlu0 %v2608, 63
      %v2623 = vpop.permute.xlu0 %2622
      %2624 = vrot.lane.b32.xlu0 %v2609, 63
      %v2625 = vpop.permute.xlu0 %2624
      %2626 = vrot.lane.b32.xlu0 %v2610, 63
      %v2627 = vpop.permute.xlu0 %2626
      %2628 = vrot.lane.b32.xlu0 %v2611, 63
      %v2629 = vpop.permute.xlu0 %2628
      %v2630 = vrot.slane %v2619, 4
      %v2631 = vrot.slane %v2621, 4
      %v2632 = vrot.slane %v2623, 4
      %v2633 = vrot.slane %v2625, 4
      %v2634 = vrot.slane %v2627, 4
      %v2635 = vrot.slane %v2629, 4
      %v2636 = vsel %vm221, %v2630, %v2631
      %vm2637 = vcmask 515072
      %v2638 = vsel %vm2637, %v2619, %v2636
      %v2639 = vsel %vm221, %v2631, %v2632
      %v2640 = vsel %vm2637, %v2621, %v2639
      %v2641 = vsel %vm221, %v2632, %v2633
      %v2642 = vsel %vm2637, %v2623, %v2641
      %v2643 = vsel %vm221, %v2633, %v2634
      %v2644 = vsel %vm2637, %v2625, %v2643
      %v2645 = vsel %vm221, %v2634, %v2635
      %v2646 = vsel %vm2637, %v2627, %v2645
      %v2652 = vadd.f32 %v2587, %v2638
      %v2653 = vadd.f32 %v2588, %v2640
      %v2654 = vadd.f32 %v2589, %v2642
      %v2655 = vadd.f32 %v2590, %v2644
      %v2656 = vadd.f32 %v2591, %v2646
      %s2657 = scalar_lea.vmem %s1, 156
      %v2658 = vld [vmem:[%s2657] sm:$0xf]
      %2660 = vset.pattern.permute.xlu0 0
      %2661 = vperm.xlu0 %2660, %v2658
      %v2662 = vpop.permute.xlu0 %2661
      %v2664 = vunpack.c.l.s4 839922192
      %v2665 = vunpack.c.0.s8 %v2664
      %v2666 = vlaneseq
      %v2667 = vshrl.u32 %v2666, 7
      %v2668 = vsub.s32 %v2665, %v2667
      %v2669 = vrot.slane %v2662, %v2668
      %v2671 = vmul.f32 %v1936, %v2669
      %v2672 = vmul.f32 %v1937, %v2669
      %v2673 = vmul.f32 %v1938, %v2669
      %v2674 = vmul.f32 %v1939, %v2669
      %v2675 = vmul.f32 %v1940, %v2669
      %v2676 = vmul.f32 %v1941, %v2669
      %2683 = vrot.lane.b32.xlu0 %v2671, 62
      %v2684 = vpop.permute.xlu0 %2683
      %2685 = vrot.lane.b32.xlu0 %v2672, 62
      %v2686 = vpop.permute.xlu0 %2685
      %2687 = vrot.lane.b32.xlu0 %v2673, 62
      %v2688 = vpop.permute.xlu0 %2687
      %2689 = vrot.lane.b32.xlu0 %v2674, 62
      %v2690 = vpop.permute.xlu0 %2689
      %2691 = vrot.lane.b32.xlu0 %v2675, 62
      %v2692 = vpop.permute.xlu0 %2691
      %2693 = vrot.lane.b32.xlu0 %v2676, 62
      %v2694 = vpop.permute.xlu0 %2693
      %v2695 = vrot.slane %v2684, 4
      %v2696 = vrot.slane %v2686, 4
      %v2697 = vrot.slane %v2688, 4
      %v2698 = vrot.slane %v2690, 4
      %v2699 = vrot.slane %v2692, 4
      %v2700 = vrot.slane %v2694, 4
      %v2701 = vsel %vm221, %v2695, %v2696
      %vm2702 = vcmask 506880
      %v2703 = vsel %vm2702, %v2684, %v2701
      %v2704 = vsel %vm221, %v2696, %v2697
      %v2705 = vsel %vm2702, %v2686, %v2704
      %v2706 = vsel %vm221, %v2697, %v2698
      %v2707 = vsel %vm2702, %v2688, %v2706
      %v2708 = vsel %vm221, %v2698, %v2699
      %v2709 = vsel %vm2702, %v2690, %v2708
      %v2710 = vsel %vm221, %v2699, %v2700
      %v2711 = vsel %vm2702, %v2692, %v2710
      %v2717 = vadd.f32 %v2652, %v2703
      %v2718 = vadd.f32 %v2653, %v2705
      %v2719 = vadd.f32 %v2654, %v2707
      %v2720 = vadd.f32 %v2655, %v2709
      %v2721 = vadd.f32 %v2656, %v2711
      %s2722 = scalar_lea.vmem %s1, 160
      %v2723 = vld [vmem:[%s2722] sm:$0xf]
      %2725 = vset.pattern.permute.xlu0 0
      %2726 = vperm.xlu0 %2725, %v2723
      %v2727 = vpop.permute.xlu0 %2726
      %v2729 = vunpack.c.l.s4 839922192
      %v2730 = vunpack.c.0.s8 %v2729
      %v2731 = vlaneseq
      %v2732 = vshrl.u32 %v2731, 7
      %v2733 = vsub.s32 %v2730, %v2732
      %v2734 = vrot.slane %v2727, %v2733
      %v2736 = vmul.f32 %v1936, %v2734
      %v2737 = vmul.f32 %v1937, %v2734
      %v2738 = vmul.f32 %v1938, %v2734
      %v2739 = vmul.f32 %v1939, %v2734
      %v2740 = vmul.f32 %v1940, %v2734
      %v2741 = vmul.f32 %v1941, %v2734
      %2748 = vrot.lane.b32.xlu0 %v2736, 61
      %v2749 = vpop.permute.xlu0 %2748
      %2750 = vrot.lane.b32.xlu0 %v2737, 61
      %v2751 = vpop.permute.xlu0 %2750
      %2752 = vrot.lane.b32.xlu0 %v2738, 61
      %v2753 = vpop.permute.xlu0 %2752
      %2754 = vrot.lane.b32.xlu0 %v2739, 61
      %v2755 = vpop.permute.xlu0 %2754
      %2756 = vrot.lane.b32.xlu0 %v2740, 61
      %v2757 = vpop.permute.xlu0 %2756
      %2758 = vrot.lane.b32.xlu0 %v2741, 61
      %v2759 = vpop.permute.xlu0 %2758
      %v2760 = vrot.slane %v2749, 4
      %v2761 = vrot.slane %v2751, 4
      %v2762 = vrot.slane %v2753, 4
      %v2763 = vrot.slane %v2755, 4
      %v2764 = vrot.slane %v2757, 4
      %v2765 = vrot.slane %v2759, 4
      %v2766 = vsel %vm221, %v2760, %v2761
      %vm2767 = vcmask 498688
      %v2768 = vsel %vm2767, %v2749, %v2766
      %v2769 = vsel %vm221, %v2761, %v2762
      %v2770 = vsel %vm2767, %v2751, %v2769
      %v2771 = vsel %vm221, %v2762, %v2763
      %v2772 = vsel %vm2767, %v2753, %v2771
      %v2773 = vsel %vm221, %v2763, %v2764
      %v2774 = vsel %vm2767, %v2755, %v2773
      %v2775 = vsel %vm221, %v2764, %v2765
      %v2776 = vsel %vm2767, %v2757, %v2775
      %v2782 = vadd.f32 %v2717, %v2768
      %v2783 = vadd.f32 %v2718, %v2770
      %v2784 = vadd.f32 %v2719, %v2772
      %v2785 = vadd.f32 %v2720, %v2774
      %v2786 = vadd.f32 %v2721, %v2776
      %s2787 = scalar_lea.vmem %s1, 164
      %v2788 = vld [vmem:[%s2787] sm:$0xf]
      %2790 = vset.pattern.permute.xlu0 0
      %2791 = vperm.xlu0 %2790, %v2788
      %v2792 = vpop.permute.xlu0 %2791
      %v2794 = vunpack.c.l.s4 839922192
      %v2795 = vunpack.c.0.s8 %v2794
      %v2796 = vlaneseq
      %v2797 = vshrl.u32 %v2796, 7
      %v2798 = vsub.s32 %v2795, %v2797
      %v2799 = vrot.slane %v2792, %v2798
      %v2801 = vmul.f32 %v1936, %v2799
      %v2802 = vmul.f32 %v1937, %v2799
      %v2803 = vmul.f32 %v1938, %v2799
      %v2804 = vmul.f32 %v1939, %v2799
      %v2805 = vmul.f32 %v1940, %v2799
      %v2806 = vmul.f32 %v1941, %v2799
      %2813 = vrot.lane.b32.xlu0 %v2801, 60
      %v2814 = vpop.permute.xlu0 %2813
      %2815 = vrot.lane.b32.xlu0 %v2802, 60
      %v2816 = vpop.permute.xlu0 %2815
      %2817 = vrot.lane.b32.xlu0 %v2803, 60
      %v2818 = vpop.permute.xlu0 %2817
      %2819 = vrot.lane.b32.xlu0 %v2804, 60
      %v2820 = vpop.permute.xlu0 %2819
      %2821 = vrot.lane.b32.xlu0 %v2805, 60
      %v2822 = vpop.permute.xlu0 %2821
      %2823 = vrot.lane.b32.xlu0 %v2806, 60
      %v2824 = vpop.permute.xlu0 %2823
      %v2825 = vrot.slane %v2814, 4
      %v2826 = vrot.slane %v2816, 4
      %v2827 = vrot.slane %v2818, 4
      %v2828 = vrot.slane %v2820, 4
      %v2829 = vrot.slane %v2822, 4
      %v2830 = vrot.slane %v2824, 4
      %v2831 = vsel %vm221, %v2825, %v2826
      %vm2832 = vcmask 490496
      %v2833 = vsel %vm2832, %v2814, %v2831
      %v2834 = vsel %vm221, %v2826, %v2827
      %v2835 = vsel %vm2832, %v2816, %v2834
      %v2836 = vsel %vm221, %v2827, %v2828
      %v2837 = vsel %vm2832, %v2818, %v2836
      %v2838 = vsel %vm221, %v2828, %v2829
      %v2839 = vsel %vm2832, %v2820, %v2838
      %v2840 = vsel %vm221, %v2829, %v2830
      %v2841 = vsel %vm2832, %v2822, %v2840
      %v2847 = vadd.f32 %v2782, %v2833
      %v2848 = vadd.f32 %v2783, %v2835
      %v2849 = vadd.f32 %v2784, %v2837
      %v2850 = vadd.f32 %v2785, %v2839
      %v2851 = vadd.f32 %v2786, %v2841
      %s2852 = scalar_lea.vmem %s1, 168
      %v2853 = vld [vmem:[%s2852] sm:$0xf]
      %2855 = vset.pattern.permute.xlu0 0
      %2856 = vperm.xlu0 %2855, %v2853
      %v2857 = vpop.permute.xlu0 %2856
      %v2859 = vunpack.c.l.s4 839922192
      %v2860 = vunpack.c.0.s8 %v2859
      %v2861 = vlaneseq
      %v2862 = vshrl.u32 %v2861, 7
      %v2863 = vsub.s32 %v2860, %v2862
      %v2864 = vrot.slane %v2857, %v2863
      %v2866 = vmul.f32 %v1936, %v2864
      %v2867 = vmul.f32 %v1937, %v2864
      %v2868 = vmul.f32 %v1938, %v2864
      %v2869 = vmul.f32 %v1939, %v2864
      %v2870 = vmul.f32 %v1940, %v2864
      %v2871 = vmul.f32 %v1941, %v2864
      %2878 = vrot.lane.b32.xlu0 %v2866, 28
      %v2879 = vpop.permute.xlu0 %2878
      %2880 = vrot.lane.b32.xlu0 %v2867, 28
      %v2881 = vpop.permute.xlu0 %2880
      %2882 = vrot.lane.b32.xlu0 %v2868, 28
      %v2883 = vpop.permute.xlu0 %2882
      %2884 = vrot.lane.b32.xlu0 %v2869, 28
      %v2885 = vpop.permute.xlu0 %2884
      %2886 = vrot.lane.b32.xlu0 %v2870, 28
      %v2887 = vpop.permute.xlu0 %2886
      %2888 = vrot.lane.b32.xlu0 %v2871, 28
      %v2889 = vpop.permute.xlu0 %2888
      %v2890 = vrot.slane %v2879, 4
      %v2891 = vrot.slane %v2881, 4
      %v2892 = vrot.slane %v2883, 4
      %v2893 = vrot.slane %v2885, 4
      %v2894 = vrot.slane %v2887, 4
      %v2895 = vrot.slane %v2889, 4
      %v2896 = vsel %vm221, %v2890, %v2891
      %vm2897 = vcmask 228352
      %v2898 = vsel %vm2897, %v2879, %v2896
      %v2899 = vsel %vm221, %v2891, %v2892
      %v2900 = vsel %vm2897, %v2881, %v2899
      %v2901 = vsel %vm221, %v2892, %v2893
      %v2902 = vsel %vm2897, %v2883, %v2901
      %v2903 = vsel %vm221, %v2893, %v2894
      %v2904 = vsel %vm2897, %v2885, %v2903
      %v2905 = vsel %vm221, %v2894, %v2895
      %v2906 = vsel %vm2897, %v2887, %v2905
      %v2912 = vadd.f32 %v2847, %v2898
      %v2913 = vadd.f32 %v2848, %v2900
      %v2914 = vadd.f32 %v2849, %v2902
      %v2915 = vadd.f32 %v2850, %v2904
      %v2916 = vadd.f32 %v2851, %v2906
      %s2917 = scalar_lea.vmem %s1, 172
      %v2918 = vld [vmem:[%s2917] sm:$0xf]
      %2920 = vset.pattern.permute.xlu0 0
      %2921 = vperm.xlu0 %2920, %v2918
      %v2922 = vpop.permute.xlu0 %2921
      %v2924 = vunpack.c.l.s4 839922192
      %v2925 = vunpack.c.0.s8 %v2924
      %v2926 = vlaneseq
      %v2927 = vshrl.u32 %v2926, 7
      %v2928 = vsub.s32 %v2925, %v2927
      %v2929 = vrot.slane %v2922, %v2928
      %v2931 = vmul.f32 %v1936, %v2929
      %v2932 = vmul.f32 %v1937, %v2929
      %v2933 = vmul.f32 %v1938, %v2929
      %v2934 = vmul.f32 %v1939, %v2929
      %v2935 = vmul.f32 %v1940, %v2929
      %v2936 = vmul.f32 %v1941, %v2929
      %2943 = vrot.lane.b32.xlu0 %v2931, 27
      %v2944 = vpop.permute.xlu0 %2943
      %2945 = vrot.lane.b32.xlu0 %v2932, 27
      %v2946 = vpop.permute.xlu0 %2945
      %2947 = vrot.lane.b32.xlu0 %v2933, 27
      %v2948 = vpop.permute.xlu0 %2947
      %2949 = vrot.lane.b32.xlu0 %v2934, 27
      %v2950 = vpop.permute.xlu0 %2949
      %2951 = vrot.lane.b32.xlu0 %v2935, 27
      %v2952 = vpop.permute.xlu0 %2951
      %2953 = vrot.lane.b32.xlu0 %v2936, 27
      %v2954 = vpop.permute.xlu0 %2953
      %v2955 = vrot.slane %v2944, 4
      %v2956 = vrot.slane %v2946, 4
      %v2957 = vrot.slane %v2948, 4
      %v2958 = vrot.slane %v2950, 4
      %v2959 = vrot.slane %v2952, 4
      %v2960 = vrot.slane %v2954, 4
      %v2961 = vsel %vm221, %v2955, %v2956
      %vm2962 = vcmask 220160
      %v2963 = vsel %vm2962, %v2944, %v2961
      %v2964 = vsel %vm221, %v2956, %v2957
      %v2965 = vsel %vm2962, %v2946, %v2964
      %v2966 = vsel %vm221, %v2957, %v2958
      %v2967 = vsel %vm2962, %v2948, %v2966
      %v2968 = vsel %vm221, %v2958, %v2959
      %v2969 = vsel %vm2962, %v2950, %v2968
      %v2970 = vsel %vm221, %v2959, %v2960
      %v2971 = vsel %vm2962, %v2952, %v2970
      %v2977 = vadd.f32 %v2912, %v2963
      %v2978 = vadd.f32 %v2913, %v2965
      %v2979 = vadd.f32 %v2914, %v2967
      %v2980 = vadd.f32 %v2915, %v2969
      %v2981 = vadd.f32 %v2916, %v2971
      %s2982 = scalar_lea.vmem %s1, 176
      %v2983 = vld [vmem:[%s2982] sm:$0xf]
      %2985 = vset.pattern.permute.xlu0 0
      %2986 = vperm.xlu0 %2985, %v2983
      %v2987 = vpop.permute.xlu0 %2986
      %v2989 = vunpack.c.l.s4 839922192
      %v2990 = vunpack.c.0.s8 %v2989
      %v2991 = vlaneseq
      %v2992 = vshrl.u32 %v2991, 7
      %v2993 = vsub.s32 %v2990, %v2992
      %v2994 = vrot.slane %v2987, %v2993
      %v2996 = vmul.f32 %v1936, %v2994
      %v2997 = vmul.f32 %v1937, %v2994
      %v2998 = vmul.f32 %v1938, %v2994
      %v2999 = vmul.f32 %v1939, %v2994
      %v3000 = vmul.f32 %v1940, %v2994
      %v3001 = vmul.f32 %v1941, %v2994
      %3008 = vrot.lane.b32.xlu0 %v2996, 26
      %v3009 = vpop.permute.xlu0 %3008
      %3010 = vrot.lane.b32.xlu0 %v2997, 26
      %v3011 = vpop.permute.xlu0 %3010
      %3012 = vrot.lane.b32.xlu0 %v2998, 26
      %v3013 = vpop.permute.xlu0 %3012
      %3014 = vrot.lane.b32.xlu0 %v2999, 26
      %v3015 = vpop.permute.xlu0 %3014
      %3016 = vrot.lane.b32.xlu0 %v3000, 26
      %v3017 = vpop.permute.xlu0 %3016
      %3018 = vrot.lane.b32.xlu0 %v3001, 26
      %v3019 = vpop.permute.xlu0 %3018
      %v3020 = vrot.slane %v3009, 4
      %v3021 = vrot.slane %v3011, 4
      %v3022 = vrot.slane %v3013, 4
      %v3023 = vrot.slane %v3015, 4
      %v3024 = vrot.slane %v3017, 4
      %v3025 = vrot.slane %v3019, 4
      %v3026 = vsel %vm221, %v3020, %v3021
      %vm3027 = vcmask 211968
      %v3028 = vsel %vm3027, %v3009, %v3026
      %v3029 = vsel %vm221, %v3021, %v3022
      %v3030 = vsel %vm3027, %v3011, %v3029
      %v3031 = vsel %vm221, %v3022, %v3023
      %v3032 = vsel %vm3027, %v3013, %v3031
      %v3033 = vsel %vm221, %v3023, %v3024
      %v3034 = vsel %vm3027, %v3015, %v3033
      %v3035 = vsel %vm221, %v3024, %v3025
      %v3036 = vsel %vm3027, %v3017, %v3035
      %v3042 = vadd.f32 %v2977, %v3028
      %v3043 = vadd.f32 %v2978, %v3030
      %v3044 = vadd.f32 %v2979, %v3032
      %v3045 = vadd.f32 %v2980, %v3034
      %v3046 = vadd.f32 %v2981, %v3036
      %s3047 = scalar_lea.vmem %s1, 180
      %v3048 = vld [vmem:[%s3047] sm:$0xf]
      %3050 = vset.pattern.permute.xlu0 0
      %3051 = vperm.xlu0 %3050, %v3048
      %v3052 = vpop.permute.xlu0 %3051
      %v3054 = vunpack.c.l.s4 839922192
      %v3055 = vunpack.c.0.s8 %v3054
      %v3056 = vlaneseq
      %v3057 = vshrl.u32 %v3056, 7
      %v3058 = vsub.s32 %v3055, %v3057
      %v3059 = vrot.slane %v3052, %v3058
      %v3061 = vmul.f32 %v1936, %v3059
      %v3062 = vmul.f32 %v1937, %v3059
      %v3063 = vmul.f32 %v1938, %v3059
      %v3064 = vmul.f32 %v1939, %v3059
      %v3065 = vmul.f32 %v1940, %v3059
      %v3066 = vmul.f32 %v1941, %v3059
      %3073 = vrot.lane.b32.xlu0 %v3061, 25
      %v3074 = vpop.permute.xlu0 %3073
      %3075 = vrot.lane.b32.xlu0 %v3062, 25
      %v3076 = vpop.permute.xlu0 %3075
      %3077 = vrot.lane.b32.xlu0 %v3063, 25
      %v3078 = vpop.permute.xlu0 %3077
      %3079 = vrot.lane.b32.xlu0 %v3064, 25
      %v3080 = vpop.permute.xlu0 %3079
      %3081 = vrot.lane.b32.xlu0 %v3065, 25
      %v3082 = vpop.permute.xlu0 %3081
      %3083 = vrot.lane.b32.xlu0 %v3066, 25
      %v3084 = vpop.permute.xlu0 %3083
      %v3085 = vrot.slane %v3074, 4
      %v3086 = vrot.slane %v3076, 4
      %v3087 = vrot.slane %v3078, 4
      %v3088 = vrot.slane %v3080, 4
      %v3089 = vrot.slane %v3082, 4
      %v3090 = vrot.slane %v3084, 4
      %v3091 = vsel %vm221, %v3085, %v3086
      %vm3092 = vcmask 203776
      %v3093 = vsel %vm3092, %v3074, %v3091
      %v3094 = vsel %vm221, %v3086, %v3087
      %v3095 = vsel %vm3092, %v3076, %v3094
      %v3096 = vsel %vm221, %v3087, %v3088
      %v3097 = vsel %vm3092, %v3078, %v3096
      %v3098 = vsel %vm221, %v3088, %v3089
      %v3099 = vsel %vm3092, %v3080, %v3098
      %v3100 = vsel %vm221, %v3089, %v3090
      %v3101 = vsel %vm3092, %v3082, %v3100
      %v3107 = vadd.f32 %v3042, %v3093
      %v3108 = vadd.f32 %v3043, %v3095
      %v3109 = vadd.f32 %v3044, %v3097
      %v3110 = vadd.f32 %v3045, %v3099
      %v3111 = vadd.f32 %v3046, %v3101
      %s3112 = scalar_lea.vmem %s1, 184
      %v3113 = vld [vmem:[%s3112] sm:$0xf]
      %3115 = vset.pattern.permute.xlu0 0
      %3116 = vperm.xlu0 %3115, %v3113
      %v3117 = vpop.permute.xlu0 %3116
      %v3119 = vunpack.c.l.s4 839922192
      %v3120 = vunpack.c.0.s8 %v3119
      %v3121 = vlaneseq
      %v3122 = vshrl.u32 %v3121, 7
      %v3123 = vsub.s32 %v3120, %v3122
      %v3124 = vrot.slane %v3117, %v3123
      %v3126 = vmul.f32 %v1936, %v3124
      %v3127 = vmul.f32 %v1937, %v3124
      %v3128 = vmul.f32 %v1938, %v3124
      %v3129 = vmul.f32 %v1939, %v3124
      %v3130 = vmul.f32 %v1940, %v3124
      %v3131 = vmul.f32 %v1941, %v3124
      %3138 = vrot.lane.b32.xlu0 %v3126, 24
      %v3139 = vpop.permute.xlu0 %3138
      %3140 = vrot.lane.b32.xlu0 %v3127, 24
      %v3141 = vpop.permute.xlu0 %3140
      %3142 = vrot.lane.b32.xlu0 %v3128, 24
      %v3143 = vpop.permute.xlu0 %3142
      %3144 = vrot.lane.b32.xlu0 %v3129, 24
      %v3145 = vpop.permute.xlu0 %3144
      %3146 = vrot.lane.b32.xlu0 %v3130, 24
      %v3147 = vpop.permute.xlu0 %3146
      %3148 = vrot.lane.b32.xlu0 %v3131, 24
      %v3149 = vpop.permute.xlu0 %3148
      %v3150 = vrot.slane %v3139, 4
      %v3151 = vrot.slane %v3141, 4
      %v3152 = vrot.slane %v3143, 4
      %v3153 = vrot.slane %v3145, 4
      %v3154 = vrot.slane %v3147, 4
      %v3155 = vrot.slane %v3149, 4
      %v3156 = vsel %vm221, %v3150, %v3151
      %vm3157 = vcmask 195584
      %v3158 = vsel %vm3157, %v3139, %v3156
      %v3159 = vsel %vm221, %v3151, %v3152
      %v3160 = vsel %vm3157, %v3141, %v3159
      %v3161 = vsel %vm221, %v3152, %v3153
      %v3162 = vsel %vm3157, %v3143, %v3161
      %v3163 = vsel %vm221, %v3153, %v3154
      %v3164 = vsel %vm3157, %v3145, %v3163
      %v3165 = vsel %vm221, %v3154, %v3155
      %v3166 = vsel %vm3157, %v3147, %v3165
      %v3172 = vadd.f32 %v3107, %v3158
      %v3173 = vadd.f32 %v3108, %v3160
      %v3174 = vadd.f32 %v3109, %v3162
      %v3175 = vadd.f32 %v3110, %v3164
      %v3176 = vadd.f32 %v3111, %v3166
      %s3177 = scalar_lea.vmem %s1, 188
      %v3178 = vld [vmem:[%s3177] sm:$0xf]
      %3180 = vset.pattern.permute.xlu0 0
      %3181 = vperm.xlu0 %3180, %v3178
      %v3182 = vpop.permute.xlu0 %3181
      %v3184 = vunpack.c.l.s4 839922192
      %v3185 = vunpack.c.0.s8 %v3184
      %v3186 = vlaneseq
      %v3187 = vshrl.u32 %v3186, 7
      %v3188 = vsub.s32 %v3185, %v3187
      %v3189 = vrot.slane %v3182, %v3188
      %v3191 = vmul.f32 %v1936, %v3189
      %v3192 = vmul.f32 %v1937, %v3189
      %v3193 = vmul.f32 %v1938, %v3189
      %v3194 = vmul.f32 %v1939, %v3189
      %v3195 = vmul.f32 %v1940, %v3189
      %v3196 = vmul.f32 %v1941, %v3189
      %3203 = vrot.lane.b32.xlu0 %v3191, 23
      %v3204 = vpop.permute.xlu0 %3203
      %3205 = vrot.lane.b32.xlu0 %v3192, 23
      %v3206 = vpop.permute.xlu0 %3205
      %3207 = vrot.lane.b32.xlu0 %v3193, 23
      %v3208 = vpop.permute.xlu0 %3207
      %3209 = vrot.lane.b32.xlu0 %v3194, 23
      %v3210 = vpop.permute.xlu0 %3209
      %3211 = vrot.lane.b32.xlu0 %v3195, 23
      %v3212 = vpop.permute.xlu0 %3211
      %3213 = vrot.lane.b32.xlu0 %v3196, 23
      %v3214 = vpop.permute.xlu0 %3213
      %v3215 = vrot.slane %v3204, 4
      %v3216 = vrot.slane %v3206, 4
      %v3217 = vrot.slane %v3208, 4
      %v3218 = vrot.slane %v3210, 4
      %v3219 = vrot.slane %v3212, 4
      %v3220 = vrot.slane %v3214, 4
      %v3221 = vsel %vm221, %v3215, %v3216
      %vm3222 = vcmask 187392
      %v3223 = vsel %vm3222, %v3204, %v3221
      %v3224 = vsel %vm221, %v3216, %v3217
      %v3225 = vsel %vm3222, %v3206, %v3224
      %v3226 = vsel %vm221, %v3217, %v3218
      %v3227 = vsel %vm3222, %v3208, %v3226
      %v3228 = vsel %vm221, %v3218, %v3219
      %v3229 = vsel %vm3222, %v3210, %v3228
      %v3230 = vsel %vm221, %v3219, %v3220
      %v3231 = vsel %vm3222, %v3212, %v3230
      %v3237 = vadd.f32 %v3172, %v3223
      %v3238 = vadd.f32 %v3173, %v3225
      %v3239 = vadd.f32 %v3174, %v3227
      %v3240 = vadd.f32 %v3175, %v3229
      %v3241 = vadd.f32 %v3176, %v3231
      %s3242 = scalar_lea.vmem %s1, 192
      %v3243 = vld [vmem:[%s3242] sm:$0xf]
      %3245 = vset.pattern.permute.xlu0 0
      %3246 = vperm.xlu0 %3245, %v3243
      %v3247 = vpop.permute.xlu0 %3246
      %v3249 = vunpack.c.l.s4 839922192
      %v3250 = vunpack.c.0.s8 %v3249
      %v3251 = vlaneseq
      %v3252 = vshrl.u32 %v3251, 7
      %v3253 = vsub.s32 %v3250, %v3252
      %v3254 = vrot.slane %v3247, %v3253
      %v3256 = vmul.f32 %v1936, %v3254
      %v3257 = vmul.f32 %v1937, %v3254
      %v3258 = vmul.f32 %v1938, %v3254
      %v3259 = vmul.f32 %v1939, %v3254
      %v3260 = vmul.f32 %v1940, %v3254
      %v3261 = vmul.f32 %v1941, %v3254
      %3268 = vrot.lane.b32.xlu0 %v3256, 22
      %v3269 = vpop.permute.xlu0 %3268
      %3270 = vrot.lane.b32.xlu0 %v3257, 22
      %v3271 = vpop.permute.xlu0 %3270
      %3272 = vrot.lane.b32.xlu0 %v3258, 22
      %v3273 = vpop.permute.xlu0 %3272
      %3274 = vrot.lane.b32.xlu0 %v3259, 22
      %v3275 = vpop.permute.xlu0 %3274
      %3276 = vrot.lane.b32.xlu0 %v3260, 22
      %v3277 = vpop.permute.xlu0 %3276
      %3278 = vrot.lane.b32.xlu0 %v3261, 22
      %v3279 = vpop.permute.xlu0 %3278
      %v3280 = vrot.slane %v3269, 4
      %v3281 = vrot.slane %v3271, 4
      %v3282 = vrot.slane %v3273, 4
      %v3283 = vrot.slane %v3275, 4
      %v3284 = vrot.slane %v3277, 4
      %v3285 = vrot.slane %v3279, 4
      %v3286 = vsel %vm221, %v3280, %v3281
      %vm3287 = vcmask 179200
      %v3288 = vsel %vm3287, %v3269, %v3286
      %v3289 = vsel %vm221, %v3281, %v3282
      %v3290 = vsel %vm3287, %v3271, %v3289
      %v3291 = vsel %vm221, %v3282, %v3283
      %v3292 = vsel %vm3287, %v3273, %v3291
      %v3293 = vsel %vm221, %v3283, %v3284
      %v3294 = vsel %vm3287, %v3275, %v3293
      %v3295 = vsel %vm221, %v3284, %v3285
      %v3296 = vsel %vm3287, %v3277, %v3295
      %v3302 = vadd.f32 %v3237, %v3288
      %v3303 = vadd.f32 %v3238, %v3290
      %v3304 = vadd.f32 %v3239, %v3292
      %v3305 = vadd.f32 %v3240, %v3294
      %v3306 = vadd.f32 %v3241, %v3296
      %v3312 = vcombine.high %v3302, %v3302
      %v3313 = vcombine.high %v3303, %v3303
      %v3314 = vcombine.high %v3304, %v3304
      %v3315 = vcombine.high %v3305, %v3305
      %v3316 = vcombine.high %v3306, %v3306
      %v3322 = vsel %vm221, %v3302, 0.0
      %v3323 = vrot.slane %v3322, 4
      %v3324 = vadd.f32 %v3322, %v3323
      %v3325 = vrot.slane %v3324, 2
      %v3326 = vadd.f32 %v3324, %v3325
      %v3327 = vrot.slane %v3326, 1
      %v3328 = vadd.f32 %v3326, %v3327
      %v3329 = vsel %vm221, %v3312, 0.0
      %v3330 = vrot.slane %v3329, 4
      %v3331 = vadd.f32 %v3329, %v3330
      %v3332 = vrot.slane %v3331, 2
      %v3333 = vadd.f32 %v3331, %v3332
      %v3334 = vrot.slane %v3333, 1
      %v3335 = vadd.f32 %v3333, %v3334
      %v3336 = vsel %vm221, %v3303, 0.0
      %v3337 = vrot.slane %v3336, 4
      %v3338 = vadd.f32 %v3336, %v3337
      %v3339 = vrot.slane %v3338, 2
      %v3340 = vadd.f32 %v3338, %v3339
      %v3341 = vrot.slane %v3340, 1
      %v3342 = vadd.f32 %v3340, %v3341
      %v3343 = vsel %vm221, %v3313, 0.0
      %v3344 = vrot.slane %v3343, 4
      %v3345 = vadd.f32 %v3343, %v3344
      %v3346 = vrot.slane %v3345, 2
      %v3347 = vadd.f32 %v3345, %v3346
      %v3348 = vrot.slane %v3347, 1
      %v3349 = vadd.f32 %v3347, %v3348
      %v3350 = vsel %vm221, %v3304, 0.0
      %v3351 = vrot.slane %v3350, 4
      %v3352 = vadd.f32 %v3350, %v3351
      %v3353 = vrot.slane %v3352, 2
      %v3354 = vadd.f32 %v3352, %v3353
      %v3355 = vrot.slane %v3354, 1
      %v3356 = vadd.f32 %v3354, %v3355
      %v3357 = vsel %vm221, %v3314, 0.0
      %v3358 = vrot.slane %v3357, 4
      %v3359 = vadd.f32 %v3357, %v3358
      %v3360 = vrot.slane %v3359, 2
      %v3361 = vadd.f32 %v3359, %v3360
      %v3362 = vrot.slane %v3361, 1
      %v3363 = vadd.f32 %v3361, %v3362
      %v3364 = vsel %vm221, %v3305, 0.0
      %v3365 = vrot.slane %v3364, 4
      %v3366 = vadd.f32 %v3364, %v3365
      %v3367 = vrot.slane %v3366, 2
      %v3368 = vadd.f32 %v3366, %v3367
      %v3369 = vrot.slane %v3368, 1
      %v3370 = vadd.f32 %v3368, %v3369
      %v3371 = vsel %vm221, %v3315, 0.0
      %v3372 = vrot.slane %v3371, 4
      %v3373 = vadd.f32 %v3371, %v3372
      %v3374 = vrot.slane %v3373, 2
      %v3375 = vadd.f32 %v3373, %v3374
      %v3376 = vrot.slane %v3375, 1
      %v3377 = vadd.f32 %v3375, %v3376
      %v3378 = vsel %vm221, %v3306, 0.0
      %v3379 = vrot.slane %v3378, 4
      %v3380 = vadd.f32 %v3378, %v3379
      %v3381 = vrot.slane %v3380, 2
      %v3382 = vadd.f32 %v3380, %v3381
      %v3383 = vrot.slane %v3382, 1
      %v3384 = vadd.f32 %v3382, %v3383
      %v3385 = vsel %vm221, %v3316, 0.0
      %v3386 = vrot.slane %v3385, 4
      %v3387 = vadd.f32 %v3385, %v3386
      %v3388 = vrot.slane %v3387, 2
      %v3389 = vadd.f32 %v3387, %v3388
      %v3390 = vrot.slane %v3389, 1
      %v3391 = vadd.f32 %v3389, %v3390
      %v3392 = vxor.u32 %v3328, 2147483648
      %v3393 = vxor.u32 %v3335, 2147483648
      %v3394 = vxor.u32 %v3342, 2147483648
      %v3395 = vxor.u32 %v3349, 2147483648
      %v3396 = vxor.u32 %v3356, 2147483648
      %v3397 = vxor.u32 %v3363, 2147483648
      %v3398 = vxor.u32 %v3370, 2147483648
      %v3399 = vxor.u32 %v3377, 2147483648
      %v3400 = vxor.u32 %v3384, 2147483648
      %v3401 = vxor.u32 %v3391, 2147483648
      %v3402 = vmul.f32 %v3392, 1.442695
      %v3403 = vpow.pop %v3402
      %v3404 = vmul.f32 %v3393, 1.442695
      %v3405 = vpow.pop %v3404
      %v3406 = vmul.f32 %v3394, 1.442695
      %v3407 = vpow.pop %v3406
      %v3408 = vmul.f32 %v3395, 1.442695
      %v3409 = vpow.pop %v3408
      %v3410 = vmul.f32 %v3396, 1.442695
      %v3411 = vpow.pop %v3410
      %v3412 = vmul.f32 %v3397, 1.442695
      %v3413 = vpow.pop %v3412
      %v3414 = vmul.f32 %v3398, 1.442695
      %v3415 = vpow.pop %v3414
      %v3416 = vmul.f32 %v3399, 1.442695
      %v3417 = vpow.pop %v3416
      %v3418 = vmul.f32 %v3400, 1.442695
      %v3419 = vpow.pop %v3418
      %v3420 = vmul.f32 %v3401, 1.442695
      %v3421 = vpow.pop %v3420
      %v3422 = vadd.f32 %v3403, 1.0
      %v3423 = vadd.f32 %v3405, 1.0
      %v3424 = vadd.f32 %v3407, 1.0
      %v3425 = vadd.f32 %v3409, 1.0
      %v3426 = vadd.f32 %v3411, 1.0
      %v3427 = vadd.f32 %v3413, 1.0
      %v3428 = vadd.f32 %v3415, 1.0
      %v3429 = vadd.f32 %v3417, 1.0
      %v3430 = vadd.f32 %v3419, 1.0
      %v3431 = vadd.f32 %v3421, 1.0
      %v3432 = vrcp.pop %v3422
      %v3433 = vmul.f32 1.0, %v3432
      %v3434 = vrcp.pop %v3423
      %v3435 = vmul.f32 1.0, %v3434
      %v3436 = vrcp.pop %v3424
      %v3437 = vmul.f32 1.0, %v3436
      %v3438 = vrcp.pop %v3425
      %v3439 = vmul.f32 1.0, %v3438
      %v3440 = vrcp.pop %v3426
      %v3441 = vmul.f32 1.0, %v3440
      %v3442 = vrcp.pop %v3427
      %v3443 = vmul.f32 1.0, %v3442
      %v3444 = vrcp.pop %v3428
      %v3445 = vmul.f32 1.0, %v3444
      %v3446 = vrcp.pop %v3429
      %v3447 = vmul.f32 1.0, %v3446
      %v3448 = vrcp.pop %v3430
      %v3449 = vmul.f32 1.0, %v3448
      %v3450 = vrcp.pop %v3431
      %v3451 = vmul.f32 1.0, %v3450
      %v3462 = vcombine.low %v3433, %v3435
      %v3463 = vcombine.low %v3437, %v3439
      %v3464 = vcombine.low %v3441, %v3443
      %v3465 = vcombine.low %v3445, %v3447
      %v3467 = vunpack.c.l.s4 1966171168
      %v3468 = vunpack.c.0.s8 %v3467
      %v3469 = vlaneseq
      %v3470 = vshrl.u32 %v3469, 7
      %v3471 = vsub.s32 %v3468, %v3470
      %v3472 = vrot.slane %v3462, %v3471
      %v3474 = vunpack.c.l.s4 1966171168
      %v3475 = vunpack.c.0.s8 %v3474
      %v3476 = vlaneseq
      %v3477 = vshrl.u32 %v3476, 7
      %v3478 = vsub.s32 %v3475, %v3477
      %v3479 = vrot.slane %v3463, %v3478
      %v3481 = vunpack.c.l.s4 1966171168
      %v3482 = vunpack.c.0.s8 %v3481
      %v3483 = vlaneseq
      %v3484 = vshrl.u32 %v3483, 7
      %v3485 = vsub.s32 %v3482, %v3484
      %v3486 = vrot.slane %v3464, %v3485
      %v3488 = vunpack.c.l.s4 1966171168
      %v3489 = vunpack.c.0.s8 %v3488
      %v3490 = vlaneseq
      %v3491 = vshrl.u32 %v3490, 7
      %v3492 = vsub.s32 %v3489, %v3491
      %v3493 = vrot.slane %v3465, %v3492
      %v3494 = vcombine.low %v3472, %v3479
      %v3495 = vcombine.low %v3486, %v3493
      %v3497 = vunpack.c.l.s4 1966171168
      %v3498 = vunpack.c.0.s8 %v3497
      %v3499 = vlaneseq
      %v3500 = vshrl.u32 %v3499, 7
      %v3501 = vsub.s32 %v3498, %v3500
      %v3502 = vrot.slane %v3494, %v3501
      %v3504 = vunpack.c.l.s4 1966171168
      %v3505 = vunpack.c.0.s8 %v3504
      %v3506 = vlaneseq
      %v3507 = vshrl.u32 %v3506, 7
      %v3508 = vsub.s32 %v3505, %v3507
      %v3509 = vrot.slane %v3495, %v3508
      %v3510 = vcombine.low %v3502, %v3509
      %v3511 = vcombine.low %v3449, %v3451
      %v3513 = vunpack.c.l.s4 1966171168
      %v3514 = vunpack.c.0.s8 %v3513
      %v3515 = vlaneseq
      %v3516 = vshrl.u32 %v3515, 7
      %v3517 = vsub.s32 %v3514, %v3516
      %v3518 = vrot.slane %v3511, %v3517
      %v3520 = vunpack.c.l.s4 1966171168
      %v3521 = vunpack.c.0.s8 %v3520
      %v3522 = vlaneseq
      %v3523 = vshrl.u32 %v3522, 7
      %v3524 = vsub.s32 %v3521, %v3523
      %v3525 = vrot.slane %v3518, %v3524
      %3528 = vst [vmem:[%s141] sm:$0xff] %v3510
      %v3529 = vlaneseq
      %vm3530 = vcmp.ge.s32.totalorder %v3529, 0
      %vm3531 = vcmp.lt.s32.totalorder %v3529, 256
      %vm3532 = vmand %vm3530, %vm3531
      %3533 = vst.msk [vmem:[%s141 + $0x8] sm:$0x3] %vm3532, %v3525
      %p3534 = scmp.lt.s32.totalorder %s13, 1
      %s3535 = scalar_select %p3534, %s13, 1
      %s3536 = smul.addr %s3535, 10
      %s3537 = scalar_lea.vmem %s2, %s3536
      // Predicated region
      $region29: #{mask_generator_r.5} parent=27 // pred_check
        %p3538 = pneg %p78
      $region30: #{mask_generator_r.5} parent=27 // pred_check_branch
        %3540 = sbr.rel (%p3538) target = $region32
      $region31: #{mask_generator_r.5} parent=27 // pred_region
        _
      $region32: #{mask_generator_r.5} parent=27 // pred_fallthru
        _
    $region28: #{mask_generator_r.5} parent=5 // pred_fallthru
      _
    %p3541 = scmp.le.s32.totalorder 2, %s8
    // Predicated region
    $region33: #{mask_generator_r.5} parent=5 // pred_check
      %p3542 = pneg %p3541
    $region34: #{mask_generator_r.5} parent=5 // pred_check_branch
      %3544 = sbr.rel (%p3542) target = $region36
    $region35: #{mask_generator_r.5} parent=5 // pred_region
      %s3545 = ssub.s32 %s8, 2
      // Predicated region
      $region37: #{mask_generator_r.5} parent=35 // pred_check
        %p3546 = pneg %p84
      $region38: #{mask_generator_r.5} parent=35 // pred_check_branch
        %3548 = sbr.rel (%p3546) target = $region40
      $region39: #{mask_generator_r.5} parent=35 // pred_region
        %p3549 = scmp.lt.s32.totalorder %s14, 1
        %s3550 = scalar_select %p3549, %s14, 1
        %s3551 = smul.addr %s3550, 10
        %s3552 = scalar_lea.vmem %s2, %s3551
      $region40: #{mask_generator_r.5} parent=35 // pred_fallthru
        _
    $region36: #{mask_generator_r.5} parent=5 // pred_fallthru
      _
  $region6: #{mask_generator_r.5} parent=0 // loop_footer
    %s12 = sadd.s32 1, %s8
  $region7: #{mask_generator_r.5} parent=0 // loop_footer_branch
    %7 = sbr.rel target = $region3
  $region8: #{mask_generator_r.5} parent=0 // loop_exit
    _

</llo_original>
